<compile_context>
chip_gen: v7x
topology: tpu7x:2x2x1
jax: 0.10.0
libtpu: 0.0.40
codegen_flags: <defaults>
</compile_context>

<pallas_src>
import math
import jax
import jax.numpy as jnp
from jax import lax
from jax.experimental import pallas as pl
from jax.experimental.pallas import tpu as pltpu

# ---- hyper-parameters (match the PyTorch module defaults, small graph) ----
N_OBS_IN = 7
N_FEATURES = 64                      # n_features == embed_dim
N_HEADS = 4
KEY_DIM = N_FEATURES // N_HEADS      # 16
VAL_DIM = KEY_DIM
N_LAYERS = 3
OUT_DIM = 4                          # num_actions_avail
GRAPH_N = 8                          # nodes; the module requires adj width == N
DIM_WHOLE_OBS = N_OBS_IN + GRAPH_N   # 15
NF_PAD = 8                           # node-feature lanes padded 7 -> 8


def _mpnn_kernel(nf_ref, adj_ref, w_init_ref, wq_ref, wk_ref, wv_ref, wo_ref,
                 wpool_ref, wp_exp_ref, wa_exp_ref, wb_exp_ref, bexp_ref,
                 lsel_ref, tile_n_ref, sgbias_ref, mi_ref, mj_ref, out_ref):
    """One grid step = BB graphs, batch folded into matmul rows (R = BB*N)."""
    f32 = jnp.float32
    bf16 = jnp.bfloat16
    KD = KEY_DIM

    adj = adj_ref[...]                                          # (R, N) f32
    # tile adjacency columns N -> R with the resident 0/1 tiler (MXU move),
    # then combine with the resident block-diagonal graph bias: one select.
    adj_big = jnp.dot(adj, tile_n_ref[...], preferred_element_type=f32)   # (R, R)
    bias = jnp.where(adj_big != 0.0, sgbias_ref[...], -1e30)              # (R, R)
    # rows with no neighbours at all get all-zero attention (torch -inf path)
    row_valid = jnp.max(jnp.where(adj != 0.0, 1.0, 0.0),
                        axis=-1, keepdims=True)                           # (R, 1)

    # ---- node init embedding: Linear(7 -> F, no bias) + ReLU (zero-padded) --
    x = jnp.maximum(jnp.dot(nf_ref[...], w_init_ref[...],
                            preferred_element_type=f32), 0.0)             # (R, F) f32

    # ---- n_layers x (multi-head self-attention + skip connection) ----------
    for l in range(N_LAYERS):
        x_bf = x.astype(bf16)
        wo_l = wo_ref[l]                                                  # (H*VD, F) bf16
        # fused-head projections (scale 1/sqrt(KD) folded into wq)
        q = jnp.dot(x_bf, wq_ref[l], preferred_element_type=f32).astype(bf16)
        k = jnp.dot(x_bf, wk_ref[l], preferred_element_type=f32).astype(bf16)
        v = jnp.dot(x_bf, wv_ref[l], preferred_element_type=f32).astype(bf16)
        for h in range(N_HEADS):
            sl = slice(h * KD, (h + 1) * KD)
            s = lax.dot_general(q[:, sl], k[:, sl],
                                (((1,), (1,)), ((), ())),
                                preferred_element_type=f32) + bias        # (R, R) f32
            p = jnp.exp(s - jnp.max(s, axis=-1, keepdims=True))           # masked -> 0
            den = jnp.sum(p, axis=-1, keepdims=True)                      # >= 1 (valid rows)
            inv = row_valid / den                                         # (R, 1)
            pv = jnp.dot(p.astype(bf16), v[:, sl],
                         preferred_element_type=f32)                      # (R, KD)
            # per-head W_out accumulation (no concat): distributes exactly
            x = x + jnp.dot((pv * inv).astype(bf16), wo_l[sl, :],
                            preferred_element_type=f32)

    # ---- readout, emitted lane-dense as one (BB, N*N*D) slab ---------------
    lsel = lsel_ref[...]                                                  # (BB, R) f32
    # pooled = (mean over nodes) @ W_pool  (1/N folded into W_pool)
    pooled = jnp.dot(jnp.dot(lsel, x, preferred_element_type=f32),
                     wpool_ref[...], preferred_element_type=f32)          # (BB, F)
    rp = jnp.maximum(pooled, 0.0)
    rx = jnp.maximum(x, 0.0).astype(bf16)

    ta = jnp.dot(rx, wa_exp_ref[...], preferred_element_type=f32)         # (R, N*N*D)
    tb = jnp.dot(rx, wb_exp_ref[...], preferred_element_type=f32)
    m = ta * mi_ref[...] + tb * mj_ref[...]                               # resident 0/1 masks
    out_ref[...] = (jnp.dot(lsel, m, preferred_element_type=f32)          # per-graph row sum
                    + jnp.dot(rp, wp_exp_ref[...], preferred_element_type=f32)
                    + bexp_ref[...])


def _const_map(ndim):
    return lambda g: (0,) * ndim


def _prep_weights(params):
    """One-time weight repacking (head fusion, scale/mean folding, lane-dense
    readout expansion, bf16 pre-cast for MXU consumers)."""
    F, H, L, KD, VD = N_FEATURES, N_HEADS, N_LAYERS, KEY_DIM, VAL_DIM
    N, D = GRAPH_N, OUT_DIM
    f32, bf16 = jnp.float32, jnp.bfloat16

    scale = 1.0 / math.sqrt(KD)
    wq = (jnp.transpose(params["wq"], (0, 2, 1, 3)).reshape(L, F, H * KD)
          * scale).astype(bf16)
    wk = jnp.transpose(params["wk"], (0, 2, 1, 3)).reshape(L, F, H * KD).astype(bf16)
    wv = jnp.transpose(params["wv"], (0, 2, 1, 3)).reshape(L, F, H * VD).astype(bf16)
    wo = params["wo"].reshape(L, H * VD, F).astype(bf16)

    # node-init weight zero-padded so it consumes the 8-wide padded node rows
    w_init = jnp.zeros((NF_PAD, F), f32).at[:N_OBS_IN].set(
        params["w_init"].astype(f32))

    # pooled linear with the 1/N of the mean folded in (kept f32, tiny matmul)
    wpool = (params["wpool"] / N).astype(f32)

    # readout weights expanded to lane-dense (F, N*N*D):
    #   tile_all[d, i*N*D + j*D + d'] = (d == d')
    tile_all = jnp.tile(jnp.eye(D, dtype=f32), (1, N * N))                # (D, N*N*D)
    wr = params["w_read"].astype(f32)
    wp_exp = (wr[0:F] @ tile_all).astype(f32)                             # pooled part
    wa_exp = (wr[F:2 * F] @ tile_all).astype(bf16)                        # x_i part
    wb_exp = (wr[2 * F:3 * F] @ tile_all).astype(bf16)                    # x_j part
    bexp = params["b_read"].reshape(1, D).astype(f32) @ tile_all          # (1, N*N*D)

    return (w_init, wq, wk, wv, wo, wpool, wp_exp, wa_exp, wb_exp, bexp)


def _prep_constants(BB):
    """Step-invariant constants, DMA'd once and VMEM-resident in the kernel."""
    N, D = GRAPH_N, OUT_DIM
    R = BB * N
    f32 = jnp.float32

    # per-graph row-sum selector: lsel[b, r] = 1 iff node-row r belongs to graph b
    lsel = (jnp.arange(R)[None, :] // N == jnp.arange(BB)[:, None]).astype(f32)
    # adjacency column tiler: tile_n[n, c] = (n == c % N)
    tile_n = (jnp.arange(N)[:, None] == (jnp.arange(R)[None, :] % N)).astype(f32)
    # block-diagonal "same graph" additive bias (0 inside the graph, -1e30 outside)
    g = jnp.arange(R) // N
    sg_bias = jnp.where(g[:, None] == g[None, :], 0.0, -1e30).astype(f32)
    # readout lane masks: lane = i*N*D + j*D + d, row node index = r % N
    lane = jnp.arange(N * N * D)
    node = jnp.arange(R) % N
    mi = (lane[None, :] // (N * D) == node[:, None]).astype(f32)          # i == node
    mj = ((lane[None, :] // D) % N == node[:, None]).astype(f32)          # j == node
    return (lsel, tile_n, sg_bias, mi, mj)


def _pick_block_graphs(B, requested=16):
    """BB graphs per grid step (R = 8*BB matmul rows).  Keep R a multiple of 8
    and, when possible, give the parallel grid axis >= 2 steps so both v7x
    TensorCores get work.  BB=16 (R=128, full lanes) is the sweet spot."""
    if B <= 8:
        return B
    BB = min(requested, 16)
    if pl.cdiv(B, BB) < 2:
        BB = 8
    return max(BB, 8)


def mpnn_forward(obs, params, block_graphs=16):
    """obs: (B, N*DIM_WHOLE_OBS) float32.  Returns (B, N, N, OUT_DIM)."""
    B = obs.shape[0]
    N = GRAPH_N
    BB = _pick_block_graphs(B, block_graphs)
    G = pl.cdiv(B, BB)
    B_pad = G * BB

    obs3 = obs.reshape(B, N, DIM_WHOLE_OBS).astype(jnp.float32)
    if B_pad != B:                         # padded graphs have adj == 0 -> inert
        obs3 = jnp.pad(obs3, ((0, B_pad - B), (0, 0), (0, 0)))
    nf = obs3[:, :, :N_OBS_IN].reshape(B_pad * N, N_OBS_IN)
    nf = jnp.pad(nf, ((0, 0), (0, NF_PAD - N_OBS_IN)))        # 7 -> 8 lanes, dense
    adj = obs3[:, :, N_OBS_IN:].reshape(B_pad * N, N)

    statics = _prep_weights(params) + _prep_constants(BB)

    R = BB * N
    in_specs = ([pl.BlockSpec((R, NF_PAD), lambda g: (g, 0)),
                 pl.BlockSpec((R, N), lambda g: (g, 0))]
                + [pl.BlockSpec(w.shape, _const_map(w.ndim)) for w in statics])
    out_specs = pl.BlockSpec((BB, N * N * OUT_DIM), lambda g: (g, 0))

    out_flat = pl.pallas_call(
        _mpnn_kernel,
        out_shape=jax.ShapeDtypeStruct((B_pad, N * N * OUT_DIM), jnp.float32),
        grid=(G,),
        in_specs=in_specs,
        out_specs=out_specs,
        compiler_params=pltpu.CompilerParams(
            dimension_semantics=("parallel",)),
    )(nf, adj, *statics)

    return out_flat[:B].reshape(B, N, N, OUT_DIM)


def reference_forward(obs, params):
    """Plain-JAX f32 literal translation of the PyTorch forward (for checking)."""
    B = obs.shape[0]
    o = obs.reshape(B, -1, DIM_WHOLE_OBS)
    nf = o[:, :, :N_OBS_IN]
    adj = o[:, :, N_OBS_IN:]
    N = nf.shape[1]
    mask = (adj != 0.0)[None]                                   # (1, B, N, N)
    scale = 1.0 / math.sqrt(KEY_DIM)

    x = jax.nn.relu(nf @ params["w_init"])                      # (B, N, F)
    for l in range(N_LAYERS):
        Q = jnp.einsum("bni,hik->hbnk", x, params["wq"][l])
        K = jnp.einsum("bni,hik->hbnk", x, params["wk"][l])
        V = jnp.einsum("bni,hiv->hbnv", x, params["wv"][l])
        logits = scale * jnp.einsum("hbnk,hbmk->hbnm", Q, K)
        ml = jnp.where(mask, logits, -1e30)
        p = jnp.where(mask, jnp.exp(ml - ml.max(-1, keepdims=True)), 0.0)
        den = p.sum(-1, keepdims=True)
        attn = p * jnp.where(den > 0.0, 1.0 / den, 0.0)
        heads = jnp.einsum("hbnm,hbmv->hbnv", attn, V)
        x = x + jnp.einsum("hbnv,hve->bne", heads, params["wo"][l])

    pooled = (x.sum(1) / N) @ params["wpool"]                   # (B, F)
    f_p = jnp.broadcast_to(pooled[:, None, None, :], (B, N, N, N_FEATURES))
    f_i = jnp.broadcast_to(x[:, :, None, :], (B, N, N, N_FEATURES))
    f_j = jnp.broadcast_to(x[:, None, :, :], (B, N, N, N_FEATURES))
    feat = jax.nn.relu(jnp.concatenate([f_p, f_i, f_j], axis=-1))
    return feat @ params["w_read"] + params["b_read"]


def make_params(key):
    ks = jax.random.split(key, 8)

    def u(k, shape, scale):
        return jax.random.uniform(k, shape, jnp.float32, -scale, scale)

    F, H, L = N_FEATURES, N_HEADS, N_LAYERS
    return {
        "w_init": u(ks[0], (N_OBS_IN, F), 1.0 / math.sqrt(N_OBS_IN)),
        "wq": u(ks[1], (L, H, F, KEY_DIM), 1.0 / math.sqrt(KEY_DIM)),
        "wk": u(ks[2], (L, H, F, KEY_DIM), 1.0 / math.sqrt(KEY_DIM)),
        "wv": u(ks[3], (L, H, F, VAL_DIM), 1.0 / math.sqrt(VAL_DIM)),
        "wo": u(ks[4], (L, H, VAL_DIM, F), 1.0 / math.sqrt(F)),
        "wpool": u(ks[5], (F, F), 1.0 / math.sqrt(F)),
        "w_read": u(ks[6], (3 * F, OUT_DIM), 1.0 / math.sqrt(3 * F)),
        "b_read": u(ks[7], (1, OUT_DIM), 1.0 / math.sqrt(3 * F)),
    }


if __name__ == "__main__":
    key = jax.random.PRNGKey(0)
    k_par, k_nf, k_adj = jax.random.split(key, 3)

    B = 32                                # 2 grid steps of 16 graphs each
    params = make_params(k_par)

    node_features = jax.random.uniform(k_nf, (B, GRAPH_N, N_OBS_IN), jnp.float32)
    adj = (jax.random.uniform(k_adj, (B, GRAPH_N, GRAPH_N)) < 0.7).astype(jnp.float32)
    obs = jnp.concatenate([node_features, adj], axis=-1).reshape(B, -1)   # (B, 120)

    out = mpnn_forward(obs, params)
    out = jax.block_until_ready(out)

    ref = reference_forward(obs, params)
    assert out.shape == (B, GRAPH_N, GRAPH_N, OUT_DIM)
    max_err = float(jnp.max(jnp.abs(out - ref)))
    # bf16 MXU operands inside the kernel => relaxed tolerance vs. f32 reference
    assert jnp.allclose(out, ref, atol=3e-2, rtol=3e-2), max_err

    print("KERNEL_OK")
</pallas_src>

<mosaic_0001>
module attributes {stable_mosaic.version = 11 : i64} {
  func.func @_mpnn_kernel(%arg0: i32, %arg1: memref<128x8xf32, #tpu.memory_space<vmem>>, %arg2: memref<128x8xf32, #tpu.memory_space<vmem>>, %arg3: memref<8x64xf32, #tpu.memory_space<vmem>>, %arg4: memref<3x64x64xbf16, #tpu.memory_space<vmem>>, %arg5: memref<3x64x64xbf16, #tpu.memory_space<vmem>>, %arg6: memref<3x64x64xbf16, #tpu.memory_space<vmem>>, %arg7: memref<3x64x64xbf16, #tpu.memory_space<vmem>>, %arg8: memref<64x64xf32, #tpu.memory_space<vmem>>, %arg9: memref<64x256xf32, #tpu.memory_space<vmem>>, %arg10: memref<64x256xbf16, #tpu.memory_space<vmem>>, %arg11: memref<64x256xbf16, #tpu.memory_space<vmem>>, %arg12: memref<1x256xf32, #tpu.memory_space<vmem>>, %arg13: memref<16x128xf32, #tpu.memory_space<vmem>>, %arg14: memref<8x128xf32, #tpu.memory_space<vmem>>, %arg15: memref<128x128xf32, #tpu.memory_space<vmem>>, %arg16: memref<128x256xf32, #tpu.memory_space<vmem>>, %arg17: memref<128x256xf32, #tpu.memory_space<vmem>>, %arg18: memref<16x256xf32, #tpu.memory_space<vmem>>) attributes {dimension_semantics = [#tpu.dimension_semantics<parallel>], iteration_bounds = array<i64: 2>, scalar_prefetch = 0 : i64, scratch_operands = 0 : i64, tpu.core_type = #tpu.core_type<tc>, window_params = [{transform_indices = @transform_0, window_bounds = array<i64: 128, 8>}, {transform_indices = @transform_1, window_bounds = array<i64: 128, 8>}, {pipeline_mode = #tpu.pipeline_mode<synchronous>, transform_indices = @transform_2, window_bounds = array<i64: 8, 64>}, {pipeline_mode = #tpu.pipeline_mode<synchronous>, transform_indices = @transform_3, window_bounds = array<i64: 3, 64, 64>}, {pipeline_mode = #tpu.pipeline_mode<synchronous>, transform_indices = @transform_4, window_bounds = array<i64: 3, 64, 64>}, {pipeline_mode = #tpu.pipeline_mode<synchronous>, transform_indices = @transform_5, window_bounds = array<i64: 3, 64, 64>}, {pipeline_mode = #tpu.pipeline_mode<synchronous>, transform_indices = @transform_6, window_bounds = array<i64: 3, 64, 64>}, {pipeline_mode = #tpu.pipeline_mode<synchronous>, transform_indices = @transform_7, window_bounds = array<i64: 64, 64>}, {pipeline_mode = #tpu.pipeline_mode<synchronous>, transform_indices = @transform_8, window_bounds = array<i64: 64, 256>}, {pipeline_mode = #tpu.pipeline_mode<synchronous>, transform_indices = @transform_9, window_bounds = array<i64: 64, 256>}, {pipeline_mode = #tpu.pipeline_mode<synchronous>, transform_indices = @transform_10, window_bounds = array<i64: 64, 256>}, {pipeline_mode = #tpu.pipeline_mode<synchronous>, transform_indices = @transform_11, window_bounds = array<i64: 1, 256>}, {pipeline_mode = #tpu.pipeline_mode<synchronous>, transform_indices = @transform_12, window_bounds = array<i64: 16, 128>}, {pipeline_mode = #tpu.pipeline_mode<synchronous>, transform_indices = @transform_13, window_bounds = array<i64: 8, 128>}, {pipeline_mode = #tpu.pipeline_mode<synchronous>, transform_indices = @transform_14, window_bounds = array<i64: 128, 128>}, {pipeline_mode = #tpu.pipeline_mode<synchronous>, transform_indices = @transform_15, window_bounds = array<i64: 128, 256>}, {pipeline_mode = #tpu.pipeline_mode<synchronous>, transform_indices = @transform_16, window_bounds = array<i64: 128, 256>}, {transform_indices = @transform_17, window_bounds = array<i64: 16, 256>}]} {
    %c0 = arith.constant 0 : index
    %c0_0 = arith.constant 0 : index
    %0 = vector.load %arg2[%c0, %c0_0] : memref<128x8xf32, #tpu.memory_space<vmem>>, vector<128x8xf32>
    %c0_1 = arith.constant 0 : index
    %c0_2 = arith.constant 0 : index
    %1 = vector.load %arg14[%c0_1, %c0_2] : memref<8x128xf32, #tpu.memory_space<vmem>>, vector<8x128xf32>
    %cst = arith.constant dense<0.000000e+00> : vector<128x128xf32>
    %2 = tpu.matmul %0, %1, %cst {dimension_numbers = #tpu.dot_dimension_numbers<[1], [0], [0], [1], [0, 0, 1, 1], [], []>} : vector<128x8xf32>, vector<8x128xf32>, vector<128x128xf32> -> vector<128x128xf32>
    %cst_3 = arith.constant 0.000000e+00 : f32
    %3 = vector.broadcast %cst_3 : f32 to vector<128x128xf32>
    %4 = arith.cmpf one, %2, %3 : vector<128x128xf32>
    %c0_4 = arith.constant 0 : index
    %c0_5 = arith.constant 0 : index
    %5 = vector.load %arg15[%c0_4, %c0_5] : memref<128x128xf32, #tpu.memory_space<vmem>>, vector<128x128xf32>
    %cst_6 = arith.constant -1.000000e+30 : f32
    %6 = vector.broadcast %cst_6 : f32 to vector<128x128xf32>
    %7 = arith.select %4, %5, %6 : vector<128x128xi1>, vector<128x128xf32>
    %cst_7 = arith.constant 0.000000e+00 : f32
    %8 = vector.broadcast %cst_7 : f32 to vector<128x8xf32>
    %9 = arith.cmpf one, %0, %8 : vector<128x8xf32>
    %cst_8 = arith.constant 1.000000e+00 : f32
    %cst_9 = arith.constant 0.000000e+00 : f32
    %10 = vector.broadcast %cst_8 : f32 to vector<128x8xf32>
    %11 = vector.broadcast %cst_9 : f32 to vector<128x8xf32>
    %12 = arith.select %9, %10, %11 : vector<128x8xi1>, vector<128x8xf32>
    %cst_10 = arith.constant dense<0xFF800000> : vector<128xf32>
    %13 = vector.multi_reduction <maximumf>, %12, %cst_10 [1] : vector<128x8xf32> to vector<128xf32>
    %14 = vector.shape_cast %13 : vector<128xf32> to vector<128x1xf32>
    %c0_11 = arith.constant 0 : index
    %c0_12 = arith.constant 0 : index
    %15 = vector.load %arg1[%c0_11, %c0_12] : memref<128x8xf32, #tpu.memory_space<vmem>>, vector<128x8xf32>
    %c0_13 = arith.constant 0 : index
    %c0_14 = arith.constant 0 : index
    %16 = vector.load %arg3[%c0_13, %c0_14] : memref<8x64xf32, #tpu.memory_space<vmem>>, vector<8x64xf32>
    %cst_15 = arith.constant dense<0.000000e+00> : vector<128x64xf32>
    %17 = tpu.matmul %15, %16, %cst_15 {dimension_numbers = #tpu.dot_dimension_numbers<[1], [0], [0], [1], [0, 0, 1, 1], [], []>} : vector<128x8xf32>, vector<8x64xf32>, vector<128x64xf32> -> vector<128x64xf32>
    %cst_16 = arith.constant 0.000000e+00 : f32
    %18 = vector.broadcast %cst_16 : f32 to vector<128x64xf32>
    %19 = arith.maximumf %17, %18 : vector<128x64xf32>
    %20 = arith.truncf %19 : vector<128x64xf32> to vector<128x64xbf16>
    %c0_17 = arith.constant 0 : index
    %c0_18 = arith.constant 0 : index
    %c0_19 = arith.constant 0 : index
    %21 = vector.load %arg7[%c0_17, %c0_18, %c0_19] : memref<3x64x64xbf16, #tpu.memory_space<vmem>>, vector<1x64x64xbf16>
    %22 = vector.shape_cast %21 : vector<1x64x64xbf16> to vector<64x64xbf16>
    %c0_20 = arith.constant 0 : index
    %c0_21 = arith.constant 0 : index
    %c0_22 = arith.constant 0 : index
    %23 = vector.load %arg4[%c0_20, %c0_21, %c0_22] : memref<3x64x64xbf16, #tpu.memory_space<vmem>>, vector<1x64x64xbf16>
    %24 = vector.shape_cast %23 : vector<1x64x64xbf16> to vector<64x64xbf16>
    %cst_23 = arith.constant dense<0.000000e+00> : vector<128x64xf32>
    %25 = tpu.matmul %20, %24, %cst_23 {dimension_numbers = #tpu.dot_dimension_numbers<[1], [0], [0], [1], [0, 0, 1, 1], [], []>} : vector<128x64xbf16>, vector<64x64xbf16>, vector<128x64xf32> -> vector<128x64xf32>
    %26 = arith.truncf %25 : vector<128x64xf32> to vector<128x64xbf16>
    %c0_24 = arith.constant 0 : index
    %c0_25 = arith.constant 0 : index
    %c0_26 = arith.constant 0 : index
    %27 = vector.load %arg5[%c0_24, %c0_25, %c0_26] : memref<3x64x64xbf16, #tpu.memory_space<vmem>>, vector<1x64x64xbf16>
    %28 = vector.shape_cast %27 : vector<1x64x64xbf16> to vector<64x64xbf16>
    %cst_27 = arith.constant dense<0.000000e+00> : vector<128x64xf32>
    %29 = tpu.matmul %20, %28, %cst_27 {dimension_numbers = #tpu.dot_dimension_numbers<[1], [0], [0], [1], [0, 0, 1, 1], [], []>} : vector<128x64xbf16>, vector<64x64xbf16>, vector<128x64xf32> -> vector<128x64xf32>
    %30 = arith.truncf %29 : vector<128x64xf32> to vector<128x64xbf16>
    %c0_28 = arith.constant 0 : index
    %c0_29 = arith.constant 0 : index
    %c0_30 = arith.constant 0 : index
    %31 = vector.load %arg6[%c0_28, %c0_29, %c0_30] : memref<3x64x64xbf16, #tpu.memory_space<vmem>>, vector<1x64x64xbf16>
    %32 = vector.shape_cast %31 : vector<1x64x64xbf16> to vector<64x64xbf16>
    %cst_31 = arith.constant dense<0.000000e+00> : vector<128x64xf32>
    %33 = tpu.matmul %20, %32, %cst_31 {dimension_numbers = #tpu.dot_dimension_numbers<[1], [0], [0], [1], [0, 0, 1, 1], [], []>} : vector<128x64xbf16>, vector<64x64xbf16>, vector<128x64xf32> -> vector<128x64xf32>
    %34 = arith.truncf %33 : vector<128x64xf32> to vector<128x64xbf16>
    %35 = vector.extract_strided_slice %26 {offsets = [0, 0], sizes = [128, 16], strides = [1, 1]} : vector<128x64xbf16> to vector<128x16xbf16>
    %36 = vector.extract_strided_slice %30 {offsets = [0, 0], sizes = [128, 16], strides = [1, 1]} : vector<128x64xbf16> to vector<128x16xbf16>
    %cst_32 = arith.constant dense<0.000000e+00> : vector<128x128xf32>
    %37 = tpu.matmul %35, %36, %cst_32 {dimension_numbers = #tpu.dot_dimension_numbers<[1], [1], [0], [0], [0, 0, 1, 0], [], []>} : vector<128x16xbf16>, vector<128x16xbf16>, vector<128x128xf32> -> vector<128x128xf32>
    %38 = arith.addf %37, %7 : vector<128x128xf32>
    %cst_33 = arith.constant dense<0xFF800000> : vector<128xf32>
    %39 = vector.multi_reduction <maximumf>, %38, %cst_33 [1] : vector<128x128xf32> to vector<128xf32>
    %40 = vector.shape_cast %39 : vector<128xf32> to vector<128x1xf32>
    %41 = vector.broadcast %40 : vector<128x1xf32> to vector<128x128xf32>
    %42 = arith.subf %38, %41 : vector<128x128xf32>
    %43 = math.exp %42 : vector<128x128xf32>
    %cst_34 = arith.constant dense<0.000000e+00> : vector<128xf32>
    %44 = vector.multi_reduction <add>, %43, %cst_34 [1] : vector<128x128xf32> to vector<128xf32>
    %45 = vector.shape_cast %44 : vector<128xf32> to vector<128x1xf32>
    %46 = arith.divf %14, %45 : vector<128x1xf32>
    %47 = arith.truncf %43 : vector<128x128xf32> to vector<128x128xbf16>
    %48 = vector.extract_strided_slice %34 {offsets = [0, 0], sizes = [128, 16], strides = [1, 1]} : vector<128x64xbf16> to vector<128x16xbf16>
    %cst_35 = arith.constant dense<0.000000e+00> : vector<128x16xf32>
    %49 = tpu.matmul %47, %48, %cst_35 {dimension_numbers = #tpu.dot_dimension_numbers<[1], [0], [0], [1], [0, 0, 1, 1], [], []>} : vector<128x128xbf16>, vector<128x16xbf16>, vector<128x16xf32> -> vector<128x16xf32>
    %50 = vector.broadcast %46 : vector<128x1xf32> to vector<128x16xf32>
    %51 = arith.mulf %49, %50 : vector<128x16xf32>
    %52 = arith.truncf %51 : vector<128x16xf32> to vector<128x16xbf16>
    %53 = vector.extract_strided_slice %22 {offsets = [0, 0], sizes = [16, 64], strides = [1, 1]} : vector<64x64xbf16> to vector<16x64xbf16>
    %cst_36 = arith.constant dense<0.000000e+00> : vector<128x64xf32>
    %54 = tpu.matmul %52, %53, %cst_36 {dimension_numbers = #tpu.dot_dimension_numbers<[1], [0], [0], [1], [0, 0, 1, 1], [], []>} : vector<128x16xbf16>, vector<16x64xbf16>, vector<128x64xf32> -> vector<128x64xf32>
    %55 = arith.addf %19, %54 : vector<128x64xf32>
    %56 = vector.extract_strided_slice %26 {offsets = [0, 16], sizes = [128, 16], strides = [1, 1]} : vector<128x64xbf16> to vector<128x16xbf16>
    %57 = vector.extract_strided_slice %30 {offsets = [0, 16], sizes = [128, 16], strides = [1, 1]} : vector<128x64xbf16> to vector<128x16xbf16>
    %cst_37 = arith.constant dense<0.000000e+00> : vector<128x128xf32>
    %58 = tpu.matmul %56, %57, %cst_37 {dimension_numbers = #tpu.dot_dimension_numbers<[1], [1], [0], [0], [0, 0, 1, 0], [], []>} : vector<128x16xbf16>, vector<128x16xbf16>, vector<128x128xf32> -> vector<128x128xf32>
    %59 = arith.addf %58, %7 : vector<128x128xf32>
    %cst_38 = arith.constant dense<0xFF800000> : vector<128xf32>
    %60 = vector.multi_reduction <maximumf>, %59, %cst_38 [1] : vector<128x128xf32> to vector<128xf32>
    %61 = vector.shape_cast %60 : vector<128xf32> to vector<128x1xf32>
    %62 = vector.broadcast %61 : vector<128x1xf32> to vector<128x128xf32>
    %63 = arith.subf %59, %62 : vector<128x128xf32>
    %64 = math.exp %63 : vector<128x128xf32>
    %cst_39 = arith.constant dense<0.000000e+00> : vector<128xf32>
    %65 = vector.multi_reduction <add>, %64, %cst_39 [1] : vector<128x128xf32> to vector<128xf32>
    %66 = vector.shape_cast %65 : vector<128xf32> to vector<128x1xf32>
    %67 = arith.divf %14, %66 : vector<128x1xf32>
    %68 = arith.truncf %64 : vector<128x128xf32> to vector<128x128xbf16>
    %69 = vector.extract_strided_slice %34 {offsets = [0, 16], sizes = [128, 16], strides = [1, 1]} : vector<128x64xbf16> to vector<128x16xbf16>
    %cst_40 = arith.constant dense<0.000000e+00> : vector<128x16xf32>
    %70 = tpu.matmul %68, %69, %cst_40 {dimension_numbers = #tpu.dot_dimension_numbers<[1], [0], [0], [1], [0, 0, 1, 1], [], []>} : vector<128x128xbf16>, vector<128x16xbf16>, vector<128x16xf32> -> vector<128x16xf32>
    %71 = vector.broadcast %67 : vector<128x1xf32> to vector<128x16xf32>
    %72 = arith.mulf %70, %71 : vector<128x16xf32>
    %73 = arith.truncf %72 : vector<128x16xf32> to vector<128x16xbf16>
    %74 = vector.extract_strided_slice %22 {offsets = [16, 0], sizes = [16, 64], strides = [1, 1]} : vector<64x64xbf16> to vector<16x64xbf16>
    %cst_41 = arith.constant dense<0.000000e+00> : vector<128x64xf32>
    %75 = tpu.matmul %73, %74, %cst_41 {dimension_numbers = #tpu.dot_dimension_numbers<[1], [0], [0], [1], [0, 0, 1, 1], [], []>} : vector<128x16xbf16>, vector<16x64xbf16>, vector<128x64xf32> -> vector<128x64xf32>
    %76 = arith.addf %55, %75 : vector<128x64xf32>
    %77 = vector.extract_strided_slice %26 {offsets = [0, 32], sizes = [128, 16], strides = [1, 1]} : vector<128x64xbf16> to vector<128x16xbf16>
    %78 = vector.extract_strided_slice %30 {offsets = [0, 32], sizes = [128, 16], strides = [1, 1]} : vector<128x64xbf16> to vector<128x16xbf16>
    %cst_42 = arith.constant dense<0.000000e+00> : vector<128x128xf32>
    %79 = tpu.matmul %77, %78, %cst_42 {dimension_numbers = #tpu.dot_dimension_numbers<[1], [1], [0], [0], [0, 0, 1, 0], [], []>} : vector<128x16xbf16>, vector<128x16xbf16>, vector<128x128xf32> -> vector<128x128xf32>
    %80 = arith.addf %79, %7 : vector<128x128xf32>
    %cst_43 = arith.constant dense<0xFF800000> : vector<128xf32>
    %81 = vector.multi_reduction <maximumf>, %80, %cst_43 [1] : vector<128x128xf32> to vector<128xf32>
    %82 = vector.shape_cast %81 : vector<128xf32> to vector<128x1xf32>
    %83 = vector.broadcast %82 : vector<128x1xf32> to vector<128x128xf32>
    %84 = arith.subf %80, %83 : vector<128x128xf32>
    %85 = math.exp %84 : vector<128x128xf32>
    %cst_44 = arith.constant dense<0.000000e+00> : vector<128xf32>
    %86 = vector.multi_reduction <add>, %85, %cst_44 [1] : vector<128x128xf32> to vector<128xf32>
    %87 = vector.shape_cast %86 : vector<128xf32> to vector<128x1xf32>
    %88 = arith.divf %14, %87 : vector<128x1xf32>
    %89 = arith.truncf %85 : vector<128x128xf32> to vector<128x128xbf16>
    %90 = vector.extract_strided_slice %34 {offsets = [0, 32], sizes = [128, 16], strides = [1, 1]} : vector<128x64xbf16> to vector<128x16xbf16>
    %cst_45 = arith.constant dense<0.000000e+00> : vector<128x16xf32>
    %91 = tpu.matmul %89, %90, %cst_45 {dimension_numbers = #tpu.dot_dimension_numbers<[1], [0], [0], [1], [0, 0, 1, 1], [], []>} : vector<128x128xbf16>, vector<128x16xbf16>, vector<128x16xf32> -> vector<128x16xf32>
    %92 = vector.broadcast %88 : vector<128x1xf32> to vector<128x16xf32>
    %93 = arith.mulf %91, %92 : vector<128x16xf32>
    %94 = arith.truncf %93 : vector<128x16xf32> to vector<128x16xbf16>
    %95 = vector.extract_strided_slice %22 {offsets = [32, 0], sizes = [16, 64], strides = [1, 1]} : vector<64x64xbf16> to vector<16x64xbf16>
    %cst_46 = arith.constant dense<0.000000e+00> : vector<128x64xf32>
    %96 = tpu.matmul %94, %95, %cst_46 {dimension_numbers = #tpu.dot_dimension_numbers<[1], [0], [0], [1], [0, 0, 1, 1], [], []>} : vector<128x16xbf16>, vector<16x64xbf16>, vector<128x64xf32> -> vector<128x64xf32>
    %97 = arith.addf %76, %96 : vector<128x64xf32>
    %98 = vector.extract_strided_slice %26 {offsets = [0, 48], sizes = [128, 16], strides = [1, 1]} : vector<128x64xbf16> to vector<128x16xbf16>
    %99 = vector.extract_strided_slice %30 {offsets = [0, 48], sizes = [128, 16], strides = [1, 1]} : vector<128x64xbf16> to vector<128x16xbf16>
    %cst_47 = arith.constant dense<0.000000e+00> : vector<128x128xf32>
    %100 = tpu.matmul %98, %99, %cst_47 {dimension_numbers = #tpu.dot_dimension_numbers<[1], [1], [0], [0], [0, 0, 1, 0], [], []>} : vector<128x16xbf16>, vector<128x16xbf16>, vector<128x128xf32> -> vector<128x128xf32>
    %101 = arith.addf %100, %7 : vector<128x128xf32>
    %cst_48 = arith.constant dense<0xFF800000> : vector<128xf32>
    %102 = vector.multi_reduction <maximumf>, %101, %cst_48 [1] : vector<128x128xf32> to vector<128xf32>
    %103 = vector.shape_cast %102 : vector<128xf32> to vector<128x1xf32>
    %104 = vector.broadcast %103 : vector<128x1xf32> to vector<128x128xf32>
    %105 = arith.subf %101, %104 : vector<128x128xf32>
    %106 = math.exp %105 : vector<128x128xf32>
    %cst_49 = arith.constant dense<0.000000e+00> : vector<128xf32>
    %107 = vector.multi_reduction <add>, %106, %cst_49 [1] : vector<128x128xf32> to vector<128xf32>
    %108 = vector.shape_cast %107 : vector<128xf32> to vector<128x1xf32>
    %109 = arith.divf %14, %108 : vector<128x1xf32>
    %110 = arith.truncf %106 : vector<128x128xf32> to vector<128x128xbf16>
    %111 = vector.extract_strided_slice %34 {offsets = [0, 48], sizes = [128, 16], strides = [1, 1]} : vector<128x64xbf16> to vector<128x16xbf16>
    %cst_50 = arith.constant dense<0.000000e+00> : vector<128x16xf32>
    %112 = tpu.matmul %110, %111, %cst_50 {dimension_numbers = #tpu.dot_dimension_numbers<[1], [0], [0], [1], [0, 0, 1, 1], [], []>} : vector<128x128xbf16>, vector<128x16xbf16>, vector<128x16xf32> -> vector<128x16xf32>
    %113 = vector.broadcast %109 : vector<128x1xf32> to vector<128x16xf32>
    %114 = arith.mulf %112, %113 : vector<128x16xf32>
    %115 = arith.truncf %114 : vector<128x16xf32> to vector<128x16xbf16>
    %116 = vector.extract_strided_slice %22 {offsets = [48, 0], sizes = [16, 64], strides = [1, 1]} : vector<64x64xbf16> to vector<16x64xbf16>
    %cst_51 = arith.constant dense<0.000000e+00> : vector<128x64xf32>
    %117 = tpu.matmul %115, %116, %cst_51 {dimension_numbers = #tpu.dot_dimension_numbers<[1], [0], [0], [1], [0, 0, 1, 1], [], []>} : vector<128x16xbf16>, vector<16x64xbf16>, vector<128x64xf32> -> vector<128x64xf32>
    %118 = arith.addf %97, %117 : vector<128x64xf32>
    %119 = arith.truncf %118 : vector<128x64xf32> to vector<128x64xbf16>
    %c1 = arith.constant 1 : index
    %c0_52 = arith.constant 0 : index
    %c0_53 = arith.constant 0 : index
    %120 = vector.load %arg7[%c1, %c0_52, %c0_53] : memref<3x64x64xbf16, #tpu.memory_space<vmem>>, vector<1x64x64xbf16>
    %121 = vector.shape_cast %120 : vector<1x64x64xbf16> to vector<64x64xbf16>
    %c1_54 = arith.constant 1 : index
    %c0_55 = arith.constant 0 : index
    %c0_56 = arith.constant 0 : index
    %122 = vector.load %arg4[%c1_54, %c0_55, %c0_56] : memref<3x64x64xbf16, #tpu.memory_space<vmem>>, vector<1x64x64xbf16>
    %123 = vector.shape_cast %122 : vector<1x64x64xbf16> to vector<64x64xbf16>
    %cst_57 = arith.constant dense<0.000000e+00> : vector<128x64xf32>
    %124 = tpu.matmul %119, %123, %cst_57 {dimension_numbers = #tpu.dot_dimension_numbers<[1], [0], [0], [1], [0, 0, 1, 1], [], []>} : vector<128x64xbf16>, vector<64x64xbf16>, vector<128x64xf32> -> vector<128x64xf32>
    %125 = arith.truncf %124 : vector<128x64xf32> to vector<128x64xbf16>
    %c1_58 = arith.constant 1 : index
    %c0_59 = arith.constant 0 : index
    %c0_60 = arith.constant 0 : index
    %126 = vector.load %arg5[%c1_58, %c0_59, %c0_60] : memref<3x64x64xbf16, #tpu.memory_space<vmem>>, vector<1x64x64xbf16>
    %127 = vector.shape_cast %126 : vector<1x64x64xbf16> to vector<64x64xbf16>
    %cst_61 = arith.constant dense<0.000000e+00> : vector<128x64xf32>
    %128 = tpu.matmul %119, %127, %cst_61 {dimension_numbers = #tpu.dot_dimension_numbers<[1], [0], [0], [1], [0, 0, 1, 1], [], []>} : vector<128x64xbf16>, vector<64x64xbf16>, vector<128x64xf32> -> vector<128x64xf32>
    %129 = arith.truncf %128 : vector<128x64xf32> to vector<128x64xbf16>
    %c1_62 = arith.constant 1 : index
    %c0_63 = arith.constant 0 : index
    %c0_64 = arith.constant 0 : index
    %130 = vector.load %arg6[%c1_62, %c0_63, %c0_64] : memref<3x64x64xbf16, #tpu.memory_space<vmem>>, vector<1x64x64xbf16>
    %131 = vector.shape_cast %130 : vector<1x64x64xbf16> to vector<64x64xbf16>
    %cst_65 = arith.constant dense<0.000000e+00> : vector<128x64xf32>
    %132 = tpu.matmul %119, %131, %cst_65 {dimension_numbers = #tpu.dot_dimension_numbers<[1], [0], [0], [1], [0, 0, 1, 1], [], []>} : vector<128x64xbf16>, vector<64x64xbf16>, vector<128x64xf32> -> vector<128x64xf32>
    %133 = arith.truncf %132 : vector<128x64xf32> to vector<128x64xbf16>
    %134 = vector.extract_strided_slice %125 {offsets = [0, 0], sizes = [128, 16], strides = [1, 1]} : vector<128x64xbf16> to vector<128x16xbf16>
    %135 = vector.extract_strided_slice %129 {offsets = [0, 0], sizes = [128, 16], strides = [1, 1]} : vector<128x64xbf16> to vector<128x16xbf16>
    %cst_66 = arith.constant dense<0.000000e+00> : vector<128x128xf32>
    %136 = tpu.matmul %134, %135, %cst_66 {dimension_numbers = #tpu.dot_dimension_numbers<[1], [1], [0], [0], [0, 0, 1, 0], [], []>} : vector<128x16xbf16>, vector<128x16xbf16>, vector<128x128xf32> -> vector<128x128xf32>
    %137 = arith.addf %136, %7 : vector<128x128xf32>
    %cst_67 = arith.constant dense<0xFF800000> : vector<128xf32>
    %138 = vector.multi_reduction <maximumf>, %137, %cst_67 [1] : vector<128x128xf32> to vector<128xf32>
    %139 = vector.shape_cast %138 : vector<128xf32> to vector<128x1xf32>
    %140 = vector.broadcast %139 : vector<128x1xf32> to vector<128x128xf32>
    %141 = arith.subf %137, %140 : vector<128x128xf32>
    %142 = math.exp %141 : vector<128x128xf32>
    %cst_68 = arith.constant dense<0.000000e+00> : vector<128xf32>
    %143 = vector.multi_reduction <add>, %142, %cst_68 [1] : vector<128x128xf32> to vector<128xf32>
    %144 = vector.shape_cast %143 : vector<128xf32> to vector<128x1xf32>
    %145 = arith.divf %14, %144 : vector<128x1xf32>
    %146 = arith.truncf %142 : vector<128x128xf32> to vector<128x128xbf16>
    %147 = vector.extract_strided_slice %133 {offsets = [0, 0], sizes = [128, 16], strides = [1, 1]} : vector<128x64xbf16> to vector<128x16xbf16>
    %cst_69 = arith.constant dense<0.000000e+00> : vector<128x16xf32>
    %148 = tpu.matmul %146, %147, %cst_69 {dimension_numbers = #tpu.dot_dimension_numbers<[1], [0], [0], [1], [0, 0, 1, 1], [], []>} : vector<128x128xbf16>, vector<128x16xbf16>, vector<128x16xf32> -> vector<128x16xf32>
    %149 = vector.broadcast %145 : vector<128x1xf32> to vector<128x16xf32>
    %150 = arith.mulf %148, %149 : vector<128x16xf32>
    %151 = arith.truncf %150 : vector<128x16xf32> to vector<128x16xbf16>
    %152 = vector.extract_strided_slice %121 {offsets = [0, 0], sizes = [16, 64], strides = [1, 1]} : vector<64x64xbf16> to vector<16x64xbf16>
    %cst_70 = arith.constant dense<0.000000e+00> : vector<128x64xf32>
    %153 = tpu.matmul %151, %152, %cst_70 {dimension_numbers = #tpu.dot_dimension_numbers<[1], [0], [0], [1], [0, 0, 1, 1], [], []>} : vector<128x16xbf16>, vector<16x64xbf16>, vector<128x64xf32> -> vector<128x64xf32>
    %154 = arith.addf %118, %153 : vector<128x64xf32>
    %155 = vector.extract_strided_slice %125 {offsets = [0, 16], sizes = [128, 16], strides = [1, 1]} : vector<128x64xbf16> to vector<128x16xbf16>
    %156 = vector.extract_strided_slice %129 {offsets = [0, 16], sizes = [128, 16], strides = [1, 1]} : vector<128x64xbf16> to vector<128x16xbf16>
    %cst_71 = arith.constant dense<0.000000e+00> : vector<128x128xf32>
    %157 = tpu.matmul %155, %156, %cst_71 {dimension_numbers = #tpu.dot_dimension_numbers<[1], [1], [0], [0], [0, 0, 1, 0], [], []>} : vector<128x16xbf16>, vector<128x16xbf16>, vector<128x128xf32> -> vector<128x128xf32>
    %158 = arith.addf %157, %7 : vector<128x128xf32>
    %cst_72 = arith.constant dense<0xFF800000> : vector<128xf32>
    %159 = vector.multi_reduction <maximumf>, %158, %cst_72 [1] : vector<128x128xf32> to vector<128xf32>
    %160 = vector.shape_cast %159 : vector<128xf32> to vector<128x1xf32>
    %161 = vector.broadcast %160 : vector<128x1xf32> to vector<128x128xf32>
    %162 = arith.subf %158, %161 : vector<128x128xf32>
    %163 = math.exp %162 : vector<128x128xf32>
    %cst_73 = arith.constant dense<0.000000e+00> : vector<128xf32>
    %164 = vector.multi_reduction <add>, %163, %cst_73 [1] : vector<128x128xf32> to vector<128xf32>
    %165 = vector.shape_cast %164 : vector<128xf32> to vector<128x1xf32>
    %166 = arith.divf %14, %165 : vector<128x1xf32>
    %167 = arith.truncf %163 : vector<128x128xf32> to vector<128x128xbf16>
    %168 = vector.extract_strided_slice %133 {offsets = [0, 16], sizes = [128, 16], strides = [1, 1]} : vector<128x64xbf16> to vector<128x16xbf16>
    %cst_74 = arith.constant dense<0.000000e+00> : vector<128x16xf32>
    %169 = tpu.matmul %167, %168, %cst_74 {dimension_numbers = #tpu.dot_dimension_numbers<[1], [0], [0], [1], [0, 0, 1, 1], [], []>} : vector<128x128xbf16>, vector<128x16xbf16>, vector<128x16xf32> -> vector<128x16xf32>
    %170 = vector.broadcast %166 : vector<128x1xf32> to vector<128x16xf32>
    %171 = arith.mulf %169, %170 : vector<128x16xf32>
    %172 = arith.truncf %171 : vector<128x16xf32> to vector<128x16xbf16>
    %173 = vector.extract_strided_slice %121 {offsets = [16, 0], sizes = [16, 64], strides = [1, 1]} : vector<64x64xbf16> to vector<16x64xbf16>
    %cst_75 = arith.constant dense<0.000000e+00> : vector<128x64xf32>
    %174 = tpu.matmul %172, %173, %cst_75 {dimension_numbers = #tpu.dot_dimension_numbers<[1], [0], [0], [1], [0, 0, 1, 1], [], []>} : vector<128x16xbf16>, vector<16x64xbf16>, vector<128x64xf32> -> vector<128x64xf32>
    %175 = arith.addf %154, %174 : vector<128x64xf32>
    %176 = vector.extract_strided_slice %125 {offsets = [0, 32], sizes = [128, 16], strides = [1, 1]} : vector<128x64xbf16> to vector<128x16xbf16>
    %177 = vector.extract_strided_slice %129 {offsets = [0, 32], sizes = [128, 16], strides = [1, 1]} : vector<128x64xbf16> to vector<128x16xbf16>
    %cst_76 = arith.constant dense<0.000000e+00> : vector<128x128xf32>
    %178 = tpu.matmul %176, %177, %cst_76 {dimension_numbers = #tpu.dot_dimension_numbers<[1], [1], [0], [0], [0, 0, 1, 0], [], []>} : vector<128x16xbf16>, vector<128x16xbf16>, vector<128x128xf32> -> vector<128x128xf32>
    %179 = arith.addf %178, %7 : vector<128x128xf32>
    %cst_77 = arith.constant dense<0xFF800000> : vector<128xf32>
    %180 = vector.multi_reduction <maximumf>, %179, %cst_77 [1] : vector<128x128xf32> to vector<128xf32>
    %181 = vector.shape_cast %180 : vector<128xf32> to vector<128x1xf32>
    %182 = vector.broadcast %181 : vector<128x1xf32> to vector<128x128xf32>
    %183 = arith.subf %179, %182 : vector<128x128xf32>
    %184 = math.exp %183 : vector<128x128xf32>
    %cst_78 = arith.constant dense<0.000000e+00> : vector<128xf32>
    %185 = vector.multi_reduction <add>, %184, %cst_78 [1] : vector<128x128xf32> to vector<128xf32>
    %186 = vector.shape_cast %185 : vector<128xf32> to vector<128x1xf32>
    %187 = arith.divf %14, %186 : vector<128x1xf32>
    %188 = arith.truncf %184 : vector<128x128xf32> to vector<128x128xbf16>
    %189 = vector.extract_strided_slice %133 {offsets = [0, 32], sizes = [128, 16], strides = [1, 1]} : vector<128x64xbf16> to vector<128x16xbf16>
    %cst_79 = arith.constant dense<0.000000e+00> : vector<128x16xf32>
    %190 = tpu.matmul %188, %189, %cst_79 {dimension_numbers = #tpu.dot_dimension_numbers<[1], [0], [0], [1], [0, 0, 1, 1], [], []>} : vector<128x128xbf16>, vector<128x16xbf16>, vector<128x16xf32> -> vector<128x16xf32>
    %191 = vector.broadcast %187 : vector<128x1xf32> to vector<128x16xf32>
    %192 = arith.mulf %190, %191 : vector<128x16xf32>
    %193 = arith.truncf %192 : vector<128x16xf32> to vector<128x16xbf16>
    %194 = vector.extract_strided_slice %121 {offsets = [32, 0], sizes = [16, 64], strides = [1, 1]} : vector<64x64xbf16> to vector<16x64xbf16>
    %cst_80 = arith.constant dense<0.000000e+00> : vector<128x64xf32>
    %195 = tpu.matmul %193, %194, %cst_80 {dimension_numbers = #tpu.dot_dimension_numbers<[1], [0], [0], [1], [0, 0, 1, 1], [], []>} : vector<128x16xbf16>, vector<16x64xbf16>, vector<128x64xf32> -> vector<128x64xf32>
    %196 = arith.addf %175, %195 : vector<128x64xf32>
    %197 = vector.extract_strided_slice %125 {offsets = [0, 48], sizes = [128, 16], strides = [1, 1]} : vector<128x64xbf16> to vector<128x16xbf16>
    %198 = vector.extract_strided_slice %129 {offsets = [0, 48], sizes = [128, 16], strides = [1, 1]} : vector<128x64xbf16> to vector<128x16xbf16>
    %cst_81 = arith.constant dense<0.000000e+00> : vector<128x128xf32>
    %199 = tpu.matmul %197, %198, %cst_81 {dimension_numbers = #tpu.dot_dimension_numbers<[1], [1], [0], [0], [0, 0, 1, 0], [], []>} : vector<128x16xbf16>, vector<128x16xbf16>, vector<128x128xf32> -> vector<128x128xf32>
    %200 = arith.addf %199, %7 : vector<128x128xf32>
    %cst_82 = arith.constant dense<0xFF800000> : vector<128xf32>
    %201 = vector.multi_reduction <maximumf>, %200, %cst_82 [1] : vector<128x128xf32> to vector<128xf32>
    %202 = vector.shape_cast %201 : vector<128xf32> to vector<128x1xf32>
    %203 = vector.broadcast %202 : vector<128x1xf32> to vector<128x128xf32>
    %204 = arith.subf %200, %203 : vector<128x128xf32>
    %205 = math.exp %204 : vector<128x128xf32>
    %cst_83 = arith.constant dense<0.000000e+00> : vector<128xf32>
    %206 = vector.multi_reduction <add>, %205, %cst_83 [1] : vector<128x128xf32> to vector<128xf32>
    %207 = vector.shape_cast %206 : vector<128xf32> to vector<128x1xf32>
    %208 = arith.divf %14, %207 : vector<128x1xf32>
    %209 = arith.truncf %205 : vector<128x128xf32> to vector<128x128xbf16>
    %210 = vector.extract_strided_slice %133 {offsets = [0, 48], sizes = [128, 16], strides = [1, 1]} : vector<128x64xbf16> to vector<128x16xbf16>
    %cst_84 = arith.constant dense<0.000000e+00> : vector<128x16xf32>
    %211 = tpu.matmul %209, %210, %cst_84 {dimension_numbers = #tpu.dot_dimension_numbers<[1], [0], [0], [1], [0, 0, 1, 1], [], []>} : vector<128x128xbf16>, vector<128x16xbf16>, vector<128x16xf32> -> vector<128x16xf32>
    %212 = vector.broadcast %208 : vector<128x1xf32> to vector<128x16xf32>
    %213 = arith.mulf %211, %212 : vector<128x16xf32>
    %214 = arith.truncf %213 : vector<128x16xf32> to vector<128x16xbf16>
    %215 = vector.extract_strided_slice %121 {offsets = [48, 0], sizes = [16, 64], strides = [1, 1]} : vector<64x64xbf16> to vector<16x64xbf16>
    %cst_85 = arith.constant dense<0.000000e+00> : vector<128x64xf32>
    %216 = tpu.matmul %214, %215, %cst_85 {dimension_numbers = #tpu.dot_dimension_numbers<[1], [0], [0], [1], [0, 0, 1, 1], [], []>} : vector<128x16xbf16>, vector<16x64xbf16>, vector<128x64xf32> -> vector<128x64xf32>
    %217 = arith.addf %196, %216 : vector<128x64xf32>
    %218 = arith.truncf %217 : vector<128x64xf32> to vector<128x64xbf16>
    %c2 = arith.constant 2 : index
    %c0_86 = arith.constant 0 : index
    %c0_87 = arith.constant 0 : index
    %219 = vector.load %arg7[%c2, %c0_86, %c0_87] : memref<3x64x64xbf16, #tpu.memory_space<vmem>>, vector<1x64x64xbf16>
    %220 = vector.shape_cast %219 : vector<1x64x64xbf16> to vector<64x64xbf16>
    %c2_88 = arith.constant 2 : index
    %c0_89 = arith.constant 0 : index
    %c0_90 = arith.constant 0 : index
    %221 = vector.load %arg4[%c2_88, %c0_89, %c0_90] : memref<3x64x64xbf16, #tpu.memory_space<vmem>>, vector<1x64x64xbf16>
    %222 = vector.shape_cast %221 : vector<1x64x64xbf16> to vector<64x64xbf16>
    %cst_91 = arith.constant dense<0.000000e+00> : vector<128x64xf32>
    %223 = tpu.matmul %218, %222, %cst_91 {dimension_numbers = #tpu.dot_dimension_numbers<[1], [0], [0], [1], [0, 0, 1, 1], [], []>} : vector<128x64xbf16>, vector<64x64xbf16>, vector<128x64xf32> -> vector<128x64xf32>
    %224 = arith.truncf %223 : vector<128x64xf32> to vector<128x64xbf16>
    %c2_92 = arith.constant 2 : index
    %c0_93 = arith.constant 0 : index
    %c0_94 = arith.constant 0 : index
    %225 = vector.load %arg5[%c2_92, %c0_93, %c0_94] : memref<3x64x64xbf16, #tpu.memory_space<vmem>>, vector<1x64x64xbf16>
    %226 = vector.shape_cast %225 : vector<1x64x64xbf16> to vector<64x64xbf16>
    %cst_95 = arith.constant dense<0.000000e+00> : vector<128x64xf32>
    %227 = tpu.matmul %218, %226, %cst_95 {dimension_numbers = #tpu.dot_dimension_numbers<[1], [0], [0], [1], [0, 0, 1, 1], [], []>} : vector<128x64xbf16>, vector<64x64xbf16>, vector<128x64xf32> -> vector<128x64xf32>
    %228 = arith.truncf %227 : vector<128x64xf32> to vector<128x64xbf16>
    %c2_96 = arith.constant 2 : index
    %c0_97 = arith.constant 0 : index
    %c0_98 = arith.constant 0 : index
    %229 = vector.load %arg6[%c2_96, %c0_97, %c0_98] : memref<3x64x64xbf16, #tpu.memory_space<vmem>>, vector<1x64x64xbf16>
    %230 = vector.shape_cast %229 : vector<1x64x64xbf16> to vector<64x64xbf16>
    %cst_99 = arith.constant dense<0.000000e+00> : vector<128x64xf32>
    %231 = tpu.matmul %218, %230, %cst_99 {dimension_numbers = #tpu.dot_dimension_numbers<[1], [0], [0], [1], [0, 0, 1, 1], [], []>} : vector<128x64xbf16>, vector<64x64xbf16>, vector<128x64xf32> -> vector<128x64xf32>
    %232 = arith.truncf %231 : vector<128x64xf32> to vector<128x64xbf16>
    %233 = vector.extract_strided_slice %224 {offsets = [0, 0], sizes = [128, 16], strides = [1, 1]} : vector<128x64xbf16> to vector<128x16xbf16>
    %234 = vector.extract_strided_slice %228 {offsets = [0, 0], sizes = [128, 16], strides = [1, 1]} : vector<128x64xbf16> to vector<128x16xbf16>
    %cst_100 = arith.constant dense<0.000000e+00> : vector<128x128xf32>
    %235 = tpu.matmul %233, %234, %cst_100 {dimension_numbers = #tpu.dot_dimension_numbers<[1], [1], [0], [0], [0, 0, 1, 0], [], []>} : vector<128x16xbf16>, vector<128x16xbf16>, vector<128x128xf32> -> vector<128x128xf32>
    %236 = arith.addf %235, %7 : vector<128x128xf32>
    %cst_101 = arith.constant dense<0xFF800000> : vector<128xf32>
    %237 = vector.multi_reduction <maximumf>, %236, %cst_101 [1] : vector<128x128xf32> to vector<128xf32>
    %238 = vector.shape_cast %237 : vector<128xf32> to vector<128x1xf32>
    %239 = vector.broadcast %238 : vector<128x1xf32> to vector<128x128xf32>
    %240 = arith.subf %236, %239 : vector<128x128xf32>
    %241 = math.exp %240 : vector<128x128xf32>
    %cst_102 = arith.constant dense<0.000000e+00> : vector<128xf32>
    %242 = vector.multi_reduction <add>, %241, %cst_102 [1] : vector<128x128xf32> to vector<128xf32>
    %243 = vector.shape_cast %242 : vector<128xf32> to vector<128x1xf32>
    %244 = arith.divf %14, %243 : vector<128x1xf32>
    %245 = arith.truncf %241 : vector<128x128xf32> to vector<128x128xbf16>
    %246 = vector.extract_strided_slice %232 {offsets = [0, 0], sizes = [128, 16], strides = [1, 1]} : vector<128x64xbf16> to vector<128x16xbf16>
    %cst_103 = arith.constant dense<0.000000e+00> : vector<128x16xf32>
    %247 = tpu.matmul %245, %246, %cst_103 {dimension_numbers = #tpu.dot_dimension_numbers<[1], [0], [0], [1], [0, 0, 1, 1], [], []>} : vector<128x128xbf16>, vector<128x16xbf16>, vector<128x16xf32> -> vector<128x16xf32>
    %248 = vector.broadcast %244 : vector<128x1xf32> to vector<128x16xf32>
    %249 = arith.mulf %247, %248 : vector<128x16xf32>
    %250 = arith.truncf %249 : vector<128x16xf32> to vector<128x16xbf16>
    %251 = vector.extract_strided_slice %220 {offsets = [0, 0], sizes = [16, 64], strides = [1, 1]} : vector<64x64xbf16> to vector<16x64xbf16>
    %cst_104 = arith.constant dense<0.000000e+00> : vector<128x64xf32>
    %252 = tpu.matmul %250, %251, %cst_104 {dimension_numbers = #tpu.dot_dimension_numbers<[1], [0], [0], [1], [0, 0, 1, 1], [], []>} : vector<128x16xbf16>, vector<16x64xbf16>, vector<128x64xf32> -> vector<128x64xf32>
    %253 = arith.addf %217, %252 : vector<128x64xf32>
    %254 = vector.extract_strided_slice %224 {offsets = [0, 16], sizes = [128, 16], strides = [1, 1]} : vector<128x64xbf16> to vector<128x16xbf16>
    %255 = vector.extract_strided_slice %228 {offsets = [0, 16], sizes = [128, 16], strides = [1, 1]} : vector<128x64xbf16> to vector<128x16xbf16>
    %cst_105 = arith.constant dense<0.000000e+00> : vector<128x128xf32>
    %256 = tpu.matmul %254, %255, %cst_105 {dimension_numbers = #tpu.dot_dimension_numbers<[1], [1], [0], [0], [0, 0, 1, 0], [], []>} : vector<128x16xbf16>, vector<128x16xbf16>, vector<128x128xf32> -> vector<128x128xf32>
    %257 = arith.addf %256, %7 : vector<128x128xf32>
    %cst_106 = arith.constant dense<0xFF800000> : vector<128xf32>
    %258 = vector.multi_reduction <maximumf>, %257, %cst_106 [1] : vector<128x128xf32> to vector<128xf32>
    %259 = vector.shape_cast %258 : vector<128xf32> to vector<128x1xf32>
    %260 = vector.broadcast %259 : vector<128x1xf32> to vector<128x128xf32>
    %261 = arith.subf %257, %260 : vector<128x128xf32>
    %262 = math.exp %261 : vector<128x128xf32>
    %cst_107 = arith.constant dense<0.000000e+00> : vector<128xf32>
    %263 = vector.multi_reduction <add>, %262, %cst_107 [1] : vector<128x128xf32> to vector<128xf32>
    %264 = vector.shape_cast %263 : vector<128xf32> to vector<128x1xf32>
    %265 = arith.divf %14, %264 : vector<128x1xf32>
    %266 = arith.truncf %262 : vector<128x128xf32> to vector<128x128xbf16>
    %267 = vector.extract_strided_slice %232 {offsets = [0, 16], sizes = [128, 16], strides = [1, 1]} : vector<128x64xbf16> to vector<128x16xbf16>
    %cst_108 = arith.constant dense<0.000000e+00> : vector<128x16xf32>
    %268 = tpu.matmul %266, %267, %cst_108 {dimension_numbers = #tpu.dot_dimension_numbers<[1], [0], [0], [1], [0, 0, 1, 1], [], []>} : vector<128x128xbf16>, vector<128x16xbf16>, vector<128x16xf32> -> vector<128x16xf32>
    %269 = vector.broadcast %265 : vector<128x1xf32> to vector<128x16xf32>
    %270 = arith.mulf %268, %269 : vector<128x16xf32>
    %271 = arith.truncf %270 : vector<128x16xf32> to vector<128x16xbf16>
    %272 = vector.extract_strided_slice %220 {offsets = [16, 0], sizes = [16, 64], strides = [1, 1]} : vector<64x64xbf16> to vector<16x64xbf16>
    %cst_109 = arith.constant dense<0.000000e+00> : vector<128x64xf32>
    %273 = tpu.matmul %271, %272, %cst_109 {dimension_numbers = #tpu.dot_dimension_numbers<[1], [0], [0], [1], [0, 0, 1, 1], [], []>} : vector<128x16xbf16>, vector<16x64xbf16>, vector<128x64xf32> -> vector<128x64xf32>
    %274 = arith.addf %253, %273 : vector<128x64xf32>
    %275 = vector.extract_strided_slice %224 {offsets = [0, 32], sizes = [128, 16], strides = [1, 1]} : vector<128x64xbf16> to vector<128x16xbf16>
    %276 = vector.extract_strided_slice %228 {offsets = [0, 32], sizes = [128, 16], strides = [1, 1]} : vector<128x64xbf16> to vector<128x16xbf16>
    %cst_110 = arith.constant dense<0.000000e+00> : vector<128x128xf32>
    %277 = tpu.matmul %275, %276, %cst_110 {dimension_numbers = #tpu.dot_dimension_numbers<[1], [1], [0], [0], [0, 0, 1, 0], [], []>} : vector<128x16xbf16>, vector<128x16xbf16>, vector<128x128xf32> -> vector<128x128xf32>
    %278 = arith.addf %277, %7 : vector<128x128xf32>
    %cst_111 = arith.constant dense<0xFF800000> : vector<128xf32>
    %279 = vector.multi_reduction <maximumf>, %278, %cst_111 [1] : vector<128x128xf32> to vector<128xf32>
    %280 = vector.shape_cast %279 : vector<128xf32> to vector<128x1xf32>
    %281 = vector.broadcast %280 : vector<128x1xf32> to vector<128x128xf32>
    %282 = arith.subf %278, %281 : vector<128x128xf32>
    %283 = math.exp %282 : vector<128x128xf32>
    %cst_112 = arith.constant dense<0.000000e+00> : vector<128xf32>
    %284 = vector.multi_reduction <add>, %283, %cst_112 [1] : vector<128x128xf32> to vector<128xf32>
    %285 = vector.shape_cast %284 : vector<128xf32> to vector<128x1xf32>
    %286 = arith.divf %14, %285 : vector<128x1xf32>
    %287 = arith.truncf %283 : vector<128x128xf32> to vector<128x128xbf16>
    %288 = vector.extract_strided_slice %232 {offsets = [0, 32], sizes = [128, 16], strides = [1, 1]} : vector<128x64xbf16> to vector<128x16xbf16>
    %cst_113 = arith.constant dense<0.000000e+00> : vector<128x16xf32>
    %289 = tpu.matmul %287, %288, %cst_113 {dimension_numbers = #tpu.dot_dimension_numbers<[1], [0], [0], [1], [0, 0, 1, 1], [], []>} : vector<128x128xbf16>, vector<128x16xbf16>, vector<128x16xf32> -> vector<128x16xf32>
    %290 = vector.broadcast %286 : vector<128x1xf32> to vector<128x16xf32>
    %291 = arith.mulf %289, %290 : vector<128x16xf32>
    %292 = arith.truncf %291 : vector<128x16xf32> to vector<128x16xbf16>
    %293 = vector.extract_strided_slice %220 {offsets = [32, 0], sizes = [16, 64], strides = [1, 1]} : vector<64x64xbf16> to vector<16x64xbf16>
    %cst_114 = arith.constant dense<0.000000e+00> : vector<128x64xf32>
    %294 = tpu.matmul %292, %293, %cst_114 {dimension_numbers = #tpu.dot_dimension_numbers<[1], [0], [0], [1], [0, 0, 1, 1], [], []>} : vector<128x16xbf16>, vector<16x64xbf16>, vector<128x64xf32> -> vector<128x64xf32>
    %295 = arith.addf %274, %294 : vector<128x64xf32>
    %296 = vector.extract_strided_slice %224 {offsets = [0, 48], sizes = [128, 16], strides = [1, 1]} : vector<128x64xbf16> to vector<128x16xbf16>
    %297 = vector.extract_strided_slice %228 {offsets = [0, 48], sizes = [128, 16], strides = [1, 1]} : vector<128x64xbf16> to vector<128x16xbf16>
    %cst_115 = arith.constant dense<0.000000e+00> : vector<128x128xf32>
    %298 = tpu.matmul %296, %297, %cst_115 {dimension_numbers = #tpu.dot_dimension_numbers<[1], [1], [0], [0], [0, 0, 1, 0], [], []>} : vector<128x16xbf16>, vector<128x16xbf16>, vector<128x128xf32> -> vector<128x128xf32>
    %299 = arith.addf %298, %7 : vector<128x128xf32>
    %cst_116 = arith.constant dense<0xFF800000> : vector<128xf32>
    %300 = vector.multi_reduction <maximumf>, %299, %cst_116 [1] : vector<128x128xf32> to vector<128xf32>
    %301 = vector.shape_cast %300 : vector<128xf32> to vector<128x1xf32>
    %302 = vector.broadcast %301 : vector<128x1xf32> to vector<128x128xf32>
    %303 = arith.subf %299, %302 : vector<128x128xf32>
    %304 = math.exp %303 : vector<128x128xf32>
    %cst_117 = arith.constant dense<0.000000e+00> : vector<128xf32>
    %305 = vector.multi_reduction <add>, %304, %cst_117 [1] : vector<128x128xf32> to vector<128xf32>
    %306 = vector.shape_cast %305 : vector<128xf32> to vector<128x1xf32>
    %307 = arith.divf %14, %306 : vector<128x1xf32>
    %308 = arith.truncf %304 : vector<128x128xf32> to vector<128x128xbf16>
    %309 = vector.extract_strided_slice %232 {offsets = [0, 48], sizes = [128, 16], strides = [1, 1]} : vector<128x64xbf16> to vector<128x16xbf16>
    %cst_118 = arith.constant dense<0.000000e+00> : vector<128x16xf32>
    %310 = tpu.matmul %308, %309, %cst_118 {dimension_numbers = #tpu.dot_dimension_numbers<[1], [0], [0], [1], [0, 0, 1, 1], [], []>} : vector<128x128xbf16>, vector<128x16xbf16>, vector<128x16xf32> -> vector<128x16xf32>
    %311 = vector.broadcast %307 : vector<128x1xf32> to vector<128x16xf32>
    %312 = arith.mulf %310, %311 : vector<128x16xf32>
    %313 = arith.truncf %312 : vector<128x16xf32> to vector<128x16xbf16>
    %314 = vector.extract_strided_slice %220 {offsets = [48, 0], sizes = [16, 64], strides = [1, 1]} : vector<64x64xbf16> to vector<16x64xbf16>
    %cst_119 = arith.constant dense<0.000000e+00> : vector<128x64xf32>
    %315 = tpu.matmul %313, %314, %cst_119 {dimension_numbers = #tpu.dot_dimension_numbers<[1], [0], [0], [1], [0, 0, 1, 1], [], []>} : vector<128x16xbf16>, vector<16x64xbf16>, vector<128x64xf32> -> vector<128x64xf32>
    %316 = arith.addf %295, %315 : vector<128x64xf32>
    %c0_120 = arith.constant 0 : index
    %c0_121 = arith.constant 0 : index
    %317 = vector.load %arg13[%c0_120, %c0_121] : memref<16x128xf32, #tpu.memory_space<vmem>>, vector<16x128xf32>
    %cst_122 = arith.constant dense<0.000000e+00> : vector<16x64xf32>
    %318 = tpu.matmul %317, %316, %cst_122 {dimension_numbers = #tpu.dot_dimension_numbers<[1], [0], [0], [1], [0, 0, 1, 1], [], []>} : vector<16x128xf32>, vector<128x64xf32>, vector<16x64xf32> -> vector<16x64xf32>
    %c0_123 = arith.constant 0 : index
    %c0_124 = arith.constant 0 : index
    %319 = vector.load %arg8[%c0_123, %c0_124] : memref<64x64xf32, #tpu.memory_space<vmem>>, vector<64x64xf32>
    %cst_125 = arith.constant dense<0.000000e+00> : vector<16x64xf32>
    %320 = tpu.matmul %318, %319, %cst_125 {dimension_numbers = #tpu.dot_dimension_numbers<[1], [0], [0], [1], [0, 0, 1, 1], [], []>} : vector<16x64xf32>, vector<64x64xf32>, vector<16x64xf32> -> vector<16x64xf32>
    %cst_126 = arith.constant 0.000000e+00 : f32
    %321 = vector.broadcast %cst_126 : f32 to vector<16x64xf32>
    %322 = arith.maximumf %320, %321 : vector<16x64xf32>
    %cst_127 = arith.constant 0.000000e+00 : f32
    %323 = vector.broadcast %cst_127 : f32 to vector<128x64xf32>
    %324 = arith.maximumf %316, %323 : vector<128x64xf32>
    %325 = arith.truncf %324 : vector<128x64xf32> to vector<128x64xbf16>
    %c0_128 = arith.constant 0 : index
    %c0_129 = arith.constant 0 : index
    %326 = vector.load %arg10[%c0_128, %c0_129] : memref<64x256xbf16, #tpu.memory_space<vmem>>, vector<64x256xbf16>
    %cst_130 = arith.constant dense<0.000000e+00> : vector<128x256xf32>
    %327 = tpu.matmul %325, %326, %cst_130 {dimension_numbers = #tpu.dot_dimension_numbers<[1], [0], [0], [1], [0, 0, 1, 1], [], []>} : vector<128x64xbf16>, vector<64x256xbf16>, vector<128x256xf32> -> vector<128x256xf32>
    %c0_131 = arith.constant 0 : index
    %c0_132 = arith.constant 0 : index
    %328 = vector.load %arg11[%c0_131, %c0_132] : memref<64x256xbf16, #tpu.memory_space<vmem>>, vector<64x256xbf16>
    %cst_133 = arith.constant dense<0.000000e+00> : vector<128x256xf32>
    %329 = tpu.matmul %325, %328, %cst_133 {dimension_numbers = #tpu.dot_dimension_numbers<[1], [0], [0], [1], [0, 0, 1, 1], [], []>} : vector<128x64xbf16>, vector<64x256xbf16>, vector<128x256xf32> -> vector<128x256xf32>
    %c0_134 = arith.constant 0 : index
    %c0_135 = arith.constant 0 : index
    %330 = vector.load %arg16[%c0_134, %c0_135] : memref<128x256xf32, #tpu.memory_space<vmem>>, vector<128x256xf32>
    %331 = arith.mulf %327, %330 : vector<128x256xf32>
    %c0_136 = arith.constant 0 : index
    %c0_137 = arith.constant 0 : index
    %332 = vector.load %arg17[%c0_136, %c0_137] : memref<128x256xf32, #tpu.memory_space<vmem>>, vector<128x256xf32>
    %333 = arith.mulf %329, %332 : vector<128x256xf32>
    %334 = arith.addf %331, %333 : vector<128x256xf32>
    %cst_138 = arith.constant dense<0.000000e+00> : vector<16x256xf32>
    %335 = tpu.matmul %317, %334, %cst_138 {dimension_numbers = #tpu.dot_dimension_numbers<[1], [0], [0], [1], [0, 0, 1, 1], [], []>} : vector<16x128xf32>, vector<128x256xf32>, vector<16x256xf32> -> vector<16x256xf32>
    %c0_139 = arith.constant 0 : index
    %c0_140 = arith.constant 0 : index
    %336 = vector.load %arg9[%c0_139, %c0_140] : memref<64x256xf32, #tpu.memory_space<vmem>>, vector<64x256xf32>
    %cst_141 = arith.constant dense<0.000000e+00> : vector<16x256xf32>
    %337 = tpu.matmul %322, %336, %cst_141 {dimension_numbers = #tpu.dot_dimension_numbers<[1], [0], [0], [1], [0, 0, 1, 1], [], []>} : vector<16x64xf32>, vector<64x256xf32>, vector<16x256xf32> -> vector<16x256xf32>
    %338 = arith.addf %335, %337 : vector<16x256xf32>
    %c0_142 = arith.constant 0 : index
    %c0_143 = arith.constant 0 : index
    %339 = vector.load %arg12[%c0_142, %c0_143] : memref<1x256xf32, #tpu.memory_space<vmem>>, vector<1x256xf32>
    %340 = vector.broadcast %339 : vector<1x256xf32> to vector<16x256xf32>
    %341 = arith.addf %338, %340 : vector<16x256xf32>
    %c0_144 = arith.constant 0 : index
    %c0_145 = arith.constant 0 : index
    %342 = vector.load %arg18[%c0_144, %c0_145] : memref<16x256xf32, #tpu.memory_space<vmem>>, vector<16x256xf32>
    tpu.vector_store %arg18[%c0_144, %c0_145], %341 {strides = array<i32>} : memref<16x256xf32, #tpu.memory_space<vmem>>, vector<16x256xf32>,
    return
  }
  func.func @transform_0(%arg0: i32) -> (i32, i32) {
    %c0_i32 = arith.constant 0 : i32
    %c0_i32_0 = arith.constant 0 : i32
    return %arg0, %c0_i32 : i32, i32
  }
  func.func @transform_1(%arg0: i32) -> (i32, i32) {
    %c0_i32 = arith.constant 0 : i32
    %c0_i32_0 = arith.constant 0 : i32
    return %arg0, %c0_i32 : i32, i32
  }
  func.func @transform_2(%arg0: i32) -> (i32, i32) {
    %c0_i32 = arith.constant 0 : i32
    %c0_i32_0 = arith.constant 0 : i32
    %c0_i32_1 = arith.constant 0 : i32
    return %c0_i32, %c0_i32_0 : i32, i32
  }
  func.func @transform_3(%arg0: i32) -> (i32, i32, i32) {
    %c0_i32 = arith.constant 0 : i32
    %c0_i32_0 = arith.constant 0 : i32
    %c0_i32_1 = arith.constant 0 : i32
    %c0_i32_2 = arith.constant 0 : i32
    return %c0_i32, %c0_i32_0, %c0_i32_1 : i32, i32, i32
  }
  func.func @transform_4(%arg0: i32) -> (i32, i32, i32) {
    %c0_i32 = arith.constant 0 : i32
    %c0_i32_0 = arith.constant 0 : i32
    %c0_i32_1 = arith.constant 0 : i32
    %c0_i32_2 = arith.constant 0 : i32
    return %c0_i32, %c0_i32_0, %c0_i32_1 : i32, i32, i32
  }
  func.func @transform_5(%arg0: i32) -> (i32, i32, i32) {
    %c0_i32 = arith.constant 0 : i32
    %c0_i32_0 = arith.constant 0 : i32
    %c0_i32_1 = arith.constant 0 : i32
    %c0_i32_2 = arith.constant 0 : i32
    return %c0_i32, %c0_i32_0, %c0_i32_1 : i32, i32, i32
  }
  func.func @transform_6(%arg0: i32) -> (i32, i32, i32) {
    %c0_i32 = arith.constant 0 : i32
    %c0_i32_0 = arith.constant 0 : i32
    %c0_i32_1 = arith.constant 0 : i32
    %c0_i32_2 = arith.constant 0 : i32
    return %c0_i32, %c0_i32_0, %c0_i32_1 : i32, i32, i32
  }
  func.func @transform_7(%arg0: i32) -> (i32, i32) {
    %c0_i32 = arith.constant 0 : i32
    %c0_i32_0 = arith.constant 0 : i32
    %c0_i32_1 = arith.constant 0 : i32
    return %c0_i32, %c0_i32_0 : i32, i32
  }
  func.func @transform_8(%arg0: i32) -> (i32, i32) {
    %c0_i32 = arith.constant 0 : i32
    %c0_i32_0 = arith.constant 0 : i32
    %c0_i32_1 = arith.constant 0 : i32
    return %c0_i32, %c0_i32_0 : i32, i32
  }
  func.func @transform_9(%arg0: i32) -> (i32, i32) {
    %c0_i32 = arith.constant 0 : i32
    %c0_i32_0 = arith.constant 0 : i32
    %c0_i32_1 = arith.constant 0 : i32
    return %c0_i32, %c0_i32_0 : i32, i32
  }
  func.func @transform_10(%arg0: i32) -> (i32, i32) {
    %c0_i32 = arith.constant 0 : i32
    %c0_i32_0 = arith.constant 0 : i32
    %c0_i32_1 = arith.constant 0 : i32
    return %c0_i32, %c0_i32_0 : i32, i32
  }
  func.func @transform_11(%arg0: i32) -> (i32, i32) {
    %c0_i32 = arith.constant 0 : i32
    %c0_i32_0 = arith.constant 0 : i32
    %c0_i32_1 = arith.constant 0 : i32
    return %c0_i32, %c0_i32_0 : i32, i32
  }
  func.func @transform_12(%arg0: i32) -> (i32, i32) {
    %c0_i32 = arith.constant 0 : i32
    %c0_i32_0 = arith.constant 0 : i32
    %c0_i32_1 = arith.constant 0 : i32
    return %c0_i32, %c0_i32_0 : i32, i32
  }
  func.func @transform_13(%arg0: i32) -> (i32, i32) {
    %c0_i32 = arith.constant 0 : i32
    %c0_i32_0 = arith.constant 0 : i32
    %c0_i32_1 = arith.constant 0 : i32
    return %c0_i32, %c0_i32_0 : i32, i32
  }
  func.func @transform_14(%arg0: i32) -> (i32, i32) {
    %c0_i32 = arith.constant 0 : i32
    %c0_i32_0 = arith.constant 0 : i32
    %c0_i32_1 = arith.constant 0 : i32
    return %c0_i32, %c0_i32_0 : i32, i32
  }
  func.func @transform_15(%arg0: i32) -> (i32, i32) {
    %c0_i32 = arith.constant 0 : i32
    %c0_i32_0 = arith.constant 0 : i32
    %c0_i32_1 = arith.constant 0 : i32
    return %c0_i32, %c0_i32_0 : i32, i32
  }
  func.func @transform_16(%arg0: i32) -> (i32, i32) {
    %c0_i32 = arith.constant 0 : i32
    %c0_i32_0 = arith.constant 0 : i32
    %c0_i32_1 = arith.constant 0 : i32
    return %c0_i32, %c0_i32_0 : i32, i32
  }
  func.func @transform_17(%arg0: i32) -> (i32, i32) {
    %c0_i32 = arith.constant 0 : i32
    %c0_i32_0 = arith.constant 0 : i32
    return %arg0, %c0_i32 : i32, i32
  }
}

</mosaic_0001>

<llo_original>
// kernel: tpu_custom_call.1
$region0: #{tpu_custom_call.1}
  #allocation0 [shape = 'u32[]', space=smem, size = 0x4, offset = 0x4, fixed_abs, tag = 'smem constant byte address 0x4 - core index']
  #allocation1 [shape = 'u32[144,128]{1,0:T(1,128)}', space=vmem, size = 0x12000, scoped, tag = 'internal scratch']
  %s0 = inlined_call_operand.vmem [shape: f32[256,8], index: 0, kind: input, shape index: {}]
  %s1 = inlined_call_operand.vmem [shape: f32[256,8], index: 1, kind: input, shape index: {}]
  %s2 = inlined_call_operand.hbm [shape: f32[8,64], index: 2, kind: input, shape index: {}]
  %s3 = inlined_call_operand.hbm [shape: bf16[3,64,64], index: 3, kind: input, shape index: {}]
  %s4 = inlined_call_operand.hbm [shape: bf16[3,64,64], index: 4, kind: input, shape index: {}]
  %s5 = inlined_call_operand.hbm [shape: bf16[3,64,64], index: 5, kind: input, shape index: {}]
  %s6 = inlined_call_operand.hbm [shape: bf16[3,64,64], index: 6, kind: input, shape index: {}]
  %s7 = inlined_call_operand.hbm [shape: f32[64,64], index: 7, kind: input, shape index: {}]
  %s8 = inlined_call_operand.hbm [shape: f32[64,256], index: 8, kind: input, shape index: {}]
  %s9 = inlined_call_operand.hbm [shape: bf16[64,256], index: 9, kind: input, shape index: {}]
  %s10 = inlined_call_operand.vmem [shape: bf16[64,256], index: 10, kind: input, shape index: {}]
  %s11 = inlined_call_operand.vmem [shape: f32[1,256], index: 11, kind: input, shape index: {}]
  %s12 = inlined_call_operand.hbm [shape: f32[16,128], index: 12, kind: input, shape index: {}]
  %s13 = inlined_call_operand.vmem [shape: f32[8,128], index: 13, kind: input, shape index: {}]
  %s14 = inlined_call_operand.hbm [shape: f32[128,128], index: 14, kind: input, shape index: {}]
  %s15 = inlined_call_operand.vmem [shape: f32[128,256], index: 15, kind: input, shape index: {}]
  %s16 = inlined_call_operand.vmem [shape: f32[128,256], index: 16, kind: input, shape index: {}]
  %s17 = inlined_call_operand.hbm [shape: f32[32,256], index: 17, kind: output, shape index: {}]
  %s18 = sld [smem:[#allocation0]]
  $region141: #{tpu_custom_call.1} parent=0
    _
  %s20 = ssub.s32 1, %s18
  %s21 = scalar_select 0, %s20, %s18
  $region1: #{tpu_custom_call.1} parent=0
    #allocation2 [shape = 'u8[4096]{0}', space=vmem, size = 0x1000, scoped, tag = 'input window, operand 2, single buffered']
    #allocation3 [shape = 's32[2]{0}', space=sflag, size = 0x8, scoped, tag = 'scoped memory for tpu_custom_call.1']
    #allocation4 [shape = 's32[2]{0}', space=sflag, size = 0x8, scoped, tag = 'scoped memory for tpu_custom_call.1']
    #allocation5 [shape = 'u8[49152]{0}', space=vmem, size = 0xc000, scoped, tag = 'input window, operand 3, single buffered']
    #allocation6 [shape = 's32[1]{0}', space=sflag, size = 0x4, scoped, tag = 'scoped memory for tpu_custom_call.1']
    #allocation7 [shape = 'u8[49152]{0}', space=vmem, size = 0xc000, scoped, tag = 'input window, operand 4, single buffered']
    #allocation8 [shape = 'u8[49152]{0}', space=vmem, size = 0xc000, scoped, tag = 'input window, operand 5, single buffered']
    #allocation9 [shape = 's32[1]{0}', space=sflag, size = 0x4, scoped, tag = 'scoped memory for tpu_custom_call.1']
    #allocation10 [shape = 'u8[49152]{0}', space=vmem, size = 0xc000, scoped, tag = 'input window, operand 6, single buffered']
    #allocation11 [shape = 'u8[32768]{0}', space=vmem, size = 0x8000, scoped, tag = 'input window, operand 7, single buffered']
    #allocation12 [shape = 's32[1]{0}', space=sflag, size = 0x4, scoped, tag = 'scoped memory for tpu_custom_call.1']
    #allocation13 [shape = 'u8[65536]{0}', space=vmem, size = 0x10000, scoped, tag = 'input window, operand 8, single buffered']
    #allocation14 [shape = 'u8[32768]{0}', space=vmem, size = 0x8000, scoped, tag = 'input window, operand 9, single buffered']
    #allocation15 [shape = 's32[1]{0}', space=sflag, size = 0x4, scoped, tag = 'scoped memory for tpu_custom_call.1']
    #allocation16 [shape = 'u8[8192]{0}', space=vmem, size = 0x2000, scoped, tag = 'input window, operand 12, single buffered']
    #allocation17 [shape = 'u8[65536]{0}', space=vmem, size = 0x10000, scoped, tag = 'input window, operand 14, single buffered']
    #allocation18 [shape = 's32[1]{0}', space=sflag, size = 0x4, scoped, tag = 'scoped memory for tpu_custom_call.1']
    #allocation19 [shape = 'u8[32768]{0}', space=vmem, size = 0x8000, scoped, tag = 'output window, operand 0']
    %22 = vsyncpa [#allocation3], 0
    %23 = vsyncpa [#allocation6], 0
    %24 = vsyncpa [#allocation9], 0
    %25 = vsyncpa [#allocation12], 0
    %26 = vsyncpa [#allocation15], 0
    %27 = vsyncpa [#allocation18], 0
    %28 = vsyncpa [#allocation4], 0
    %s29 = scalar_lea.sflag [#allocation4], 1
    %30 = vsyncpa %s29, 0
    loop: start=0, step=1, limit=4
    $region2: #{tpu_custom_call.1} parent=1 // loop_pre_header
      _
    $region3: #{tpu_custom_call.1} parent=1 // loop_header
      %s32 = sphi 0, %s36
      %p33 = scmp.ge.s32.totalorder %s32, 4
      %s42 = sphi 0, %s44
      %s45 = sphi 0, %s42
      %s46 = sphi 0, %s45
      %s62 = sphi 0, %s46
      %s68 = sphi 0, %s70
      %s71 = sphi 0, %s68
      %s72 = sphi 0, %s71
      %s88 = sphi 0, %s72
      %s92 = sphi 0, %s92
      %s94 = sphi 0, %s92
      %s95 = sphi 0, %s94
      %s109 = sphi 0, %s95
      %s113 = sphi 0, %s113
      %s115 = sphi 0, %s113
      %s116 = sphi 0, %s115
      %s130 = sphi 0, %s116
      %s134 = sphi 0, %s134
      %s136 = sphi 0, %s134
      %s137 = sphi 0, %s136
      %s151 = sphi 0, %s137
      %s155 = sphi 0, %s155
      %s157 = sphi 0, %s155
      %s158 = sphi 0, %s157
      %s172 = sphi 0, %s158
      %s176 = sphi 0, %s176
      %s178 = sphi 0, %s176
      %s179 = sphi 0, %s178
      %s193 = sphi 0, %s179
      %s197 = sphi 0, %s197
      %s199 = sphi 0, %s197
      %s200 = sphi 0, %s199
      %s214 = sphi 0, %s200
      %s218 = sphi 0, %s218
      %s220 = sphi 0, %s218
      %s221 = sphi 0, %s220
      %s235 = sphi 0, %s221
      %s239 = sphi 0, %s239
      %s241 = sphi 0, %s239
      %s242 = sphi 0, %s241
      %s256 = sphi 0, %s242
      %s260 = sphi 0, %s260
      %s262 = sphi 0, %s260
      %s263 = sphi 0, %s262
      %s277 = sphi 0, %s263
      %s281 = sphi 0, %s281
      %s283 = sphi 0, %s281
      %s284 = sphi 0, %s283
      %s298 = sphi 0, %s284
      %s302 = sphi 0, %s302
      %s304 = sphi 0, %s302
      %s305 = sphi 0, %s304
      %s319 = sphi 0, %s305
      %s323 = sphi 0, %s323
      %s325 = sphi 0, %s323
      %s326 = sphi 0, %s325
      %s340 = sphi 0, %s326
      %s344 = sphi 0, %s344
      %s346 = sphi 0, %s344
      %s347 = sphi 0, %s346
      %s361 = sphi 0, %s347
      %s365 = sphi 0, %s365
      %s367 = sphi 0, %s365
      %s368 = sphi 0, %s367
      %s382 = sphi 0, %s368
      %s386 = sphi 0, %s386
      %s388 = sphi 0, %s386
      %s389 = sphi 0, %s388
      %s403 = sphi 0, %s389
      %s409 = sphi 0, %s411
      %s412 = sphi 0, %s409
      %s413 = sphi 0, %s412
      %s429 = sphi 0, %s413
    $region4: #{tpu_custom_call.1} parent=1 // loop_header_branch
      %35 = sbr.rel (%p33) target = $region8
    $region5: #{tpu_custom_call.1} parent=1 // loop_body
      %s37 = ssub.s32 %s32, 1
      %s38 = ssub.s32 %s32, 2
      %s39 = sadd.s32 %s32, 1
      %s40 = ssub.s32 %s32, %s39
      %p41 = scmp.eq.s32.totalorder %s40, 0
      %s43 = sadd.s32 %s42, 1
      %s44 = scalar_select %p41, %s42, %s43
      %p47 = pneg %p41
      %p48 = scmp.eq.s32.totalorder %s32, 1
      %p49 = por %p47, %p48
      %p50 = scmp.ne.s32.totalorder %s42, %s45
      %p51 = scmp.eq.s32.totalorder %s32, 0
      %p52 = por %p50, %p51
      %p53 = scmp.ne.s32.totalorder %s42, %s45
      %p54 = scmp.eq.s32.totalorder %s37, 1
      %p55 = por %p53, %p54
      %p56 = scmp.ne.s32.totalorder %s45, %s46
      %p57 = scmp.eq.s32.totalorder %s37, 0
      %p58 = por %p56, %p57
      %p59 = scmp.ne.s32.totalorder %s45, %s46
      %p60 = scmp.eq.s32.totalorder %s38, 1
      %p61 = por %p59, %p60
      %p63 = scmp.ne.s32.totalorder %s46, %s62
      %p64 = scmp.eq.s32.totalorder %s38, 0
      %p65 = por %p63, %p64
      %s66 = ssub.s32 %s32, %s39
      %p67 = scmp.eq.s32.totalorder %s66, 0
      %s69 = sadd.s32 %s68, 1
      %s70 = scalar_select %p67, %s68, %s69
      %p73 = pneg %p67
      %p74 = scmp.eq.s32.totalorder %s32, 1
      %p75 = por %p73, %p74
      %p76 = scmp.ne.s32.totalorder %s68, %s71
      %p77 = scmp.eq.s32.totalorder %s32, 0
      %p78 = por %p76, %p77
      %p79 = scmp.ne.s32.totalorder %s68, %s71
      %p80 = scmp.eq.s32.totalorder %s37, 1
      %p81 = por %p79, %p80
      %p82 = scmp.ne.s32.totalorder %s71, %s72
      %p83 = scmp.eq.s32.totalorder %s37, 0
      %p84 = por %p82, %p83
      %p85 = scmp.ne.s32.totalorder %s71, %s72
      %p86 = scmp.eq.s32.totalorder %s38, 1
      %p87 = por %p85, %p86
      %p89 = scmp.ne.s32.totalorder %s72, %s88
      %p90 = scmp.eq.s32.totalorder %s38, 0
      %p91 = por %p89, %p90
      %s93 = sadd.s32 %s92, 1
      %p96 = scmp.eq.s32.totalorder %s32, 1
      %p97 = scmp.ne.s32.totalorder %s92, %s94
      %p98 = scmp.eq.s32.totalorder %s32, 0
      %p99 = por %p97, %p98
      %p100 = scmp.ne.s32.totalorder %s92, %s94
      %p101 = scmp.eq.s32.totalorder %s37, 1
      %p102 = por %p100, %p101
      %p103 = scmp.ne.s32.totalorder %s94, %s95
      %p104 = scmp.eq.s32.totalorder %s37, 0
      %p105 = por %p103, %p104
      %p106 = scmp.ne.s32.totalorder %s94, %s95
      %p107 = scmp.eq.s32.totalorder %s38, 1
      %p108 = por %p106, %p107
      %p110 = scmp.ne.s32.totalorder %s95, %s109
      %p111 = scmp.eq.s32.totalorder %s38, 0
      %p112 = por %p110, %p111
      %s114 = sadd.s32 %s113, 1
      %p117 = scmp.eq.s32.totalorder %s32, 1
      %p118 = scmp.ne.s32.totalorder %s113, %s115
      %p119 = scmp.eq.s32.totalorder %s32, 0
      %p120 = por %p118, %p119
      %p121 = scmp.ne.s32.totalorder %s113, %s115
      %p122 = scmp.eq.s32.totalorder %s37, 1
      %p123 = por %p121, %p122
      %p124 = scmp.ne.s32.totalorder %s115, %s116
      %p125 = scmp.eq.s32.totalorder %s37, 0
      %p126 = por %p124, %p125
      %p127 = scmp.ne.s32.totalorder %s115, %s116
      %p128 = scmp.eq.s32.totalorder %s38, 1
      %p129 = por %p127, %p128
      %p131 = scmp.ne.s32.totalorder %s116, %s130
      %p132 = scmp.eq.s32.totalorder %s38, 0
      %p133 = por %p131, %p132
      %s135 = sadd.s32 %s134, 1
      %p138 = scmp.eq.s32.totalorder %s32, 1
      %p139 = scmp.ne.s32.totalorder %s134, %s136
      %p140 = scmp.eq.s32.totalorder %s32, 0
      %p141 = por %p139, %p140
      %p142 = scmp.ne.s32.totalorder %s134, %s136
      %p143 = scmp.eq.s32.totalorder %s37, 1
      %p144 = por %p142, %p143
      %p145 = scmp.ne.s32.totalorder %s136, %s137
      %p146 = scmp.eq.s32.totalorder %s37, 0
      %p147 = por %p145, %p146
      %p148 = scmp.ne.s32.totalorder %s136, %s137
      %p149 = scmp.eq.s32.totalorder %s38, 1
      %p150 = por %p148, %p149
      %p152 = scmp.ne.s32.totalorder %s137, %s151
      %p153 = scmp.eq.s32.totalorder %s38, 0
      %p154 = por %p152, %p153
      %s156 = sadd.s32 %s155, 1
      %p159 = scmp.eq.s32.totalorder %s32, 1
      %p160 = scmp.ne.s32.totalorder %s155, %s157
      %p161 = scmp.eq.s32.totalorder %s32, 0
      %p162 = por %p160, %p161
      %p163 = scmp.ne.s32.totalorder %s155, %s157
      %p164 = scmp.eq.s32.totalorder %s37, 1
      %p165 = por %p163, %p164
      %p166 = scmp.ne.s32.totalorder %s157, %s158
      %p167 = scmp.eq.s32.totalorder %s37, 0
      %p168 = por %p166, %p167
      %p169 = scmp.ne.s32.totalorder %s157, %s158
      %p170 = scmp.eq.s32.totalorder %s38, 1
      %p171 = por %p169, %p170
      %p173 = scmp.ne.s32.totalorder %s158, %s172
      %p174 = scmp.eq.s32.totalorder %s38, 0
      %p175 = por %p173, %p174
      %s177 = sadd.s32 %s176, 1
      %p180 = scmp.eq.s32.totalorder %s32, 1
      %p181 = scmp.ne.s32.totalorder %s176, %s178
      %p182 = scmp.eq.s32.totalorder %s32, 0
      %p183 = por %p181, %p182
      %p184 = scmp.ne.s32.totalorder %s176, %s178
      %p185 = scmp.eq.s32.totalorder %s37, 1
      %p186 = por %p184, %p185
      %p187 = scmp.ne.s32.totalorder %s178, %s179
      %p188 = scmp.eq.s32.totalorder %s37, 0
      %p189 = por %p187, %p188
      %p190 = scmp.ne.s32.totalorder %s178, %s179
      %p191 = scmp.eq.s32.totalorder %s38, 1
      %p192 = por %p190, %p191
      %p194 = scmp.ne.s32.totalorder %s179, %s193
      %p195 = scmp.eq.s32.totalorder %s38, 0
      %p196 = por %p194, %p195
      %s198 = sadd.s32 %s197, 1
      %p201 = scmp.eq.s32.totalorder %s32, 1
      %p202 = scmp.ne.s32.totalorder %s197, %s199
      %p203 = scmp.eq.s32.totalorder %s32, 0
      %p204 = por %p202, %p203
      %p205 = scmp.ne.s32.totalorder %s197, %s199
      %p206 = scmp.eq.s32.totalorder %s37, 1
      %p207 = por %p205, %p206
      %p208 = scmp.ne.s32.totalorder %s199, %s200
      %p209 = scmp.eq.s32.totalorder %s37, 0
      %p210 = por %p208, %p209
      %p211 = scmp.ne.s32.totalorder %s199, %s200
      %p212 = scmp.eq.s32.totalorder %s38, 1
      %p213 = por %p211, %p212
      %p215 = scmp.ne.s32.totalorder %s200, %s214
      %p216 = scmp.eq.s32.totalorder %s38, 0
      %p217 = por %p215, %p216
      %s219 = sadd.s32 %s218, 1
      %p222 = scmp.eq.s32.totalorder %s32, 1
      %p223 = scmp.ne.s32.totalorder %s218, %s220
      %p224 = scmp.eq.s32.totalorder %s32, 0
      %p225 = por %p223, %p224
      %p226 = scmp.ne.s32.totalorder %s218, %s220
      %p227 = scmp.eq.s32.totalorder %s37, 1
      %p228 = por %p226, %p227
      %p229 = scmp.ne.s32.totalorder %s220, %s221
      %p230 = scmp.eq.s32.totalorder %s37, 0
      %p231 = por %p229, %p230
      %p232 = scmp.ne.s32.totalorder %s220, %s221
      %p233 = scmp.eq.s32.totalorder %s38, 1
      %p234 = por %p232, %p233
      %p236 = scmp.ne.s32.totalorder %s221, %s235
      %p237 = scmp.eq.s32.totalorder %s38, 0
      %p238 = por %p236, %p237
      %s240 = sadd.s32 %s239, 1
      %p243 = scmp.eq.s32.totalorder %s32, 1
      %p244 = scmp.ne.s32.totalorder %s239, %s241
      %p245 = scmp.eq.s32.totalorder %s32, 0
      %p246 = por %p244, %p245
      %p247 = scmp.ne.s32.totalorder %s239, %s241
      %p248 = scmp.eq.s32.totalorder %s37, 1
      %p249 = por %p247, %p248
      %p250 = scmp.ne.s32.totalorder %s241, %s242
      %p251 = scmp.eq.s32.totalorder %s37, 0
      %p252 = por %p250, %p251
      %p253 = scmp.ne.s32.totalorder %s241, %s242
      %p254 = scmp.eq.s32.totalorder %s38, 1
      %p255 = por %p253, %p254
      %p257 = scmp.ne.s32.totalorder %s242, %s256
      %p258 = scmp.eq.s32.totalorder %s38, 0
      %p259 = por %p257, %p258
      %s261 = sadd.s32 %s260, 1
      %p264 = scmp.eq.s32.totalorder %s32, 1
      %p265 = scmp.ne.s32.totalorder %s260, %s262
      %p266 = scmp.eq.s32.totalorder %s32, 0
      %p267 = por %p265, %p266
      %p268 = scmp.ne.s32.totalorder %s260, %s262
      %p269 = scmp.eq.s32.totalorder %s37, 1
      %p270 = por %p268, %p269
      %p271 = scmp.ne.s32.totalorder %s262, %s263
      %p272 = scmp.eq.s32.totalorder %s37, 0
      %p273 = por %p271, %p272
      %p274 = scmp.ne.s32.totalorder %s262, %s263
      %p275 = scmp.eq.s32.totalorder %s38, 1
      %p276 = por %p274, %p275
      %p278 = scmp.ne.s32.totalorder %s263, %s277
      %p279 = scmp.eq.s32.totalorder %s38, 0
      %p280 = por %p278, %p279
      %s282 = sadd.s32 %s281, 1
      %p285 = scmp.eq.s32.totalorder %s32, 1
      %p286 = scmp.ne.s32.totalorder %s281, %s283
      %p287 = scmp.eq.s32.totalorder %s32, 0
      %p288 = por %p286, %p287
      %p289 = scmp.ne.s32.totalorder %s281, %s283
      %p290 = scmp.eq.s32.totalorder %s37, 1
      %p291 = por %p289, %p290
      %p292 = scmp.ne.s32.totalorder %s283, %s284
      %p293 = scmp.eq.s32.totalorder %s37, 0
      %p294 = por %p292, %p293
      %p295 = scmp.ne.s32.totalorder %s283, %s284
      %p296 = scmp.eq.s32.totalorder %s38, 1
      %p297 = por %p295, %p296
      %p299 = scmp.ne.s32.totalorder %s284, %s298
      %p300 = scmp.eq.s32.totalorder %s38, 0
      %p301 = por %p299, %p300
      %s303 = sadd.s32 %s302, 1
      %p306 = scmp.eq.s32.totalorder %s32, 1
      %p307 = scmp.ne.s32.totalorder %s302, %s304
      %p308 = scmp.eq.s32.totalorder %s32, 0
      %p309 = por %p307, %p308
      %p310 = scmp.ne.s32.totalorder %s302, %s304
      %p311 = scmp.eq.s32.totalorder %s37, 1
      %p312 = por %p310, %p311
      %p313 = scmp.ne.s32.totalorder %s304, %s305
      %p314 = scmp.eq.s32.totalorder %s37, 0
      %p315 = por %p313, %p314
      %p316 = scmp.ne.s32.totalorder %s304, %s305
      %p317 = scmp.eq.s32.totalorder %s38, 1
      %p318 = por %p316, %p317
      %p320 = scmp.ne.s32.totalorder %s305, %s319
      %p321 = scmp.eq.s32.totalorder %s38, 0
      %p322 = por %p320, %p321
      %s324 = sadd.s32 %s323, 1
      %p327 = scmp.eq.s32.totalorder %s32, 1
      %p328 = scmp.ne.s32.totalorder %s323, %s325
      %p329 = scmp.eq.s32.totalorder %s32, 0
      %p330 = por %p328, %p329
      %p331 = scmp.ne.s32.totalorder %s323, %s325
      %p332 = scmp.eq.s32.totalorder %s37, 1
      %p333 = por %p331, %p332
      %p334 = scmp.ne.s32.totalorder %s325, %s326
      %p335 = scmp.eq.s32.totalorder %s37, 0
      %p336 = por %p334, %p335
      %p337 = scmp.ne.s32.totalorder %s325, %s326
      %p338 = scmp.eq.s32.totalorder %s38, 1
      %p339 = por %p337, %p338
      %p341 = scmp.ne.s32.totalorder %s326, %s340
      %p342 = scmp.eq.s32.totalorder %s38, 0
      %p343 = por %p341, %p342
      %s345 = sadd.s32 %s344, 1
      %p348 = scmp.eq.s32.totalorder %s32, 1
      %p349 = scmp.ne.s32.totalorder %s344, %s346
      %p350 = scmp.eq.s32.totalorder %s32, 0
      %p351 = por %p349, %p350
      %p352 = scmp.ne.s32.totalorder %s344, %s346
      %p353 = scmp.eq.s32.totalorder %s37, 1
      %p354 = por %p352, %p353
      %p355 = scmp.ne.s32.totalorder %s346, %s347
      %p356 = scmp.eq.s32.totalorder %s37, 0
      %p357 = por %p355, %p356
      %p358 = scmp.ne.s32.totalorder %s346, %s347
      %p359 = scmp.eq.s32.totalorder %s38, 1
      %p360 = por %p358, %p359
      %p362 = scmp.ne.s32.totalorder %s347, %s361
      %p363 = scmp.eq.s32.totalorder %s38, 0
      %p364 = por %p362, %p363
      %s366 = sadd.s32 %s365, 1
      %p369 = scmp.eq.s32.totalorder %s32, 1
      %p370 = scmp.ne.s32.totalorder %s365, %s367
      %p371 = scmp.eq.s32.totalorder %s32, 0
      %p372 = por %p370, %p371
      %p373 = scmp.ne.s32.totalorder %s365, %s367
      %p374 = scmp.eq.s32.totalorder %s37, 1
      %p375 = por %p373, %p374
      %p376 = scmp.ne.s32.totalorder %s367, %s368
      %p377 = scmp.eq.s32.totalorder %s37, 0
      %p378 = por %p376, %p377
      %p379 = scmp.ne.s32.totalorder %s367, %s368
      %p380 = scmp.eq.s32.totalorder %s38, 1
      %p381 = por %p379, %p380
      %p383 = scmp.ne.s32.totalorder %s368, %s382
      %p384 = scmp.eq.s32.totalorder %s38, 0
      %p385 = por %p383, %p384
      %s387 = sadd.s32 %s386, 1
      %p390 = scmp.eq.s32.totalorder %s32, 1
      %p391 = scmp.ne.s32.totalorder %s386, %s388
      %p392 = scmp.eq.s32.totalorder %s32, 0
      %p393 = por %p391, %p392
      %p394 = scmp.ne.s32.totalorder %s386, %s388
      %p395 = scmp.eq.s32.totalorder %s37, 1
      %p396 = por %p394, %p395
      %p397 = scmp.ne.s32.totalorder %s388, %s389
      %p398 = scmp.eq.s32.totalorder %s37, 0
      %p399 = por %p397, %p398
      %p400 = scmp.ne.s32.totalorder %s388, %s389
      %p401 = scmp.eq.s32.totalorder %s38, 1
      %p402 = por %p400, %p401
      %p404 = scmp.ne.s32.totalorder %s389, %s403
      %p405 = scmp.eq.s32.totalorder %s38, 0
      %p406 = por %p404, %p405
      %s407 = ssub.s32 %s32, %s39
      %p408 = scmp.eq.s32.totalorder %s407, 0
      %s410 = sadd.s32 %s409, 1
      %s411 = scalar_select %p408, %s409, %s410
      %p414 = pneg %p408
      %p415 = scmp.eq.s32.totalorder %s32, 1
      %p416 = por %p414, %p415
      %p417 = scmp.ne.s32.totalorder %s409, %s412
      %p418 = scmp.eq.s32.totalorder %s32, 0
      %p419 = por %p417, %p418
      %p420 = scmp.ne.s32.totalorder %s409, %s412
      %p421 = scmp.eq.s32.totalorder %s37, 1
      %p422 = por %p420, %p421
      %p423 = scmp.ne.s32.totalorder %s412, %s413
      %p424 = scmp.eq.s32.totalorder %s37, 0
      %p425 = por %p423, %p424
      %p426 = scmp.ne.s32.totalorder %s412, %s413
      %p427 = scmp.eq.s32.totalorder %s38, 1
      %p428 = por %p426, %p427
      %p430 = scmp.ne.s32.totalorder %s413, %s429
      %p431 = scmp.eq.s32.totalorder %s38, 0
      %p432 = por %p430, %p431
      %p433 = scmp.le.s32.totalorder 1, %s32
      %p434 = scmp.lt.s32.totalorder %s32, 3
      %p435 = pnand %p433, %p434
      %p436 = pneg %p435
      // Predicated region
      $region9: #{tpu_custom_call.1} parent=5 // pred_check
        _
      $region10: #{tpu_custom_call.1} parent=5 // pred_check_branch
        %438 = sbr.rel (%p435) target = $region12
      $region11: #{tpu_custom_call.1} parent=5 // pred_region
        %s439 = ssub.s32 %s32, 1
        // Predicated region
        $region13: #{tpu_custom_call.1} parent=11 // pred_check
          %p440 = pneg %p105
        $region14: #{tpu_custom_call.1} parent=11 // pred_check_branch
          %442 = sbr.rel (%p440) target = $region16
        $region15: #{tpu_custom_call.1} parent=11 // pred_region
          %s444 = ssub.s32 128, 128
          %445 = vsyncadd [#allocation3], %s444
          %s447 = sshll.u32 [#allocation2], 4
          %s448 = int_to_ptr.vmem [resolvable:$true] %s447
          %450 = dma.hbm_to_vmem [thread:$0]  %s2, 128, %s448, [#allocation3]
        $region16: #{tpu_custom_call.1} parent=11 // pred_fallthru
          _
        // Predicated region
        $region17: #{tpu_custom_call.1} parent=11 // pred_check
          %p451 = pneg %p126
        $region18: #{tpu_custom_call.1} parent=11 // pred_check_branch
          %453 = sbr.rel (%p451) target = $region20
        $region19: #{tpu_custom_call.1} parent=11 // pred_region
          %s455 = ssub.s32 1536, 1536
          %456 = vsyncadd [#allocation6], %s455
          %s457 = sshll.u32 [#allocation5], 4
          %s458 = int_to_ptr.vmem [resolvable:$true] %s457
          %463 = dma.hbm_to_vmem [thread:$0]  %s3, 1536, %s458, [#allocation6], 64, 64, 4
        $region20: #{tpu_custom_call.1} parent=11 // pred_fallthru
          _
        // Predicated region
        $region21: #{tpu_custom_call.1} parent=11 // pred_check
          %p464 = pneg %p147
        $region22: #{tpu_custom_call.1} parent=11 // pred_check_branch
          %466 = sbr.rel (%p464) target = $region24
        $region23: #{tpu_custom_call.1} parent=11 // pred_region
          %s468 = ssub.s32 1536, 1536
          %469 = vsyncadd [#allocation6], %s468
          %s470 = sshll.u32 [#allocation7], 4
          %s471 = int_to_ptr.vmem [resolvable:$true] %s470
          %476 = dma.hbm_to_vmem [thread:$0]  %s4, 1536, %s471, [#allocation6], 64, 64, 4
        $region24: #{tpu_custom_call.1} parent=11 // pred_fallthru
          _
        // Predicated region
        $region25: #{tpu_custom_call.1} parent=11 // pred_check
          %p477 = pneg %p168
        $region26: #{tpu_custom_call.1} parent=11 // pred_check_branch
          %479 = sbr.rel (%p477) target = $region28
        $region27: #{tpu_custom_call.1} parent=11 // pred_region
          %s481 = ssub.s32 1536, 1536
          %482 = vsyncadd [#allocation9], %s481
          %s483 = sshll.u32 [#allocation8], 4
          %s484 = int_to_ptr.vmem [resolvable:$true] %s483
          %489 = dma.hbm_to_vmem [thread:$0]  %s5, 1536, %s484, [#allocation9], 64, 64, 4
        $region28: #{tpu_custom_call.1} parent=11 // pred_fallthru
          _
        // Predicated region
        $region29: #{tpu_custom_call.1} parent=11 // pred_check
          %p490 = pneg %p189
        $region30: #{tpu_custom_call.1} parent=11 // pred_check_branch
          %492 = sbr.rel (%p490) target = $region32
        $region31: #{tpu_custom_call.1} parent=11 // pred_region
          %s494 = ssub.s32 1536, 1536
          %495 = vsyncadd [#allocation9], %s494
          %s496 = sshll.u32 [#allocation10], 4
          %s497 = int_to_ptr.vmem [resolvable:$true] %s496
          %502 = dma.hbm_to_vmem [thread:$0]  %s6, 1536, %s497, [#allocation9], 64, 64, 4
        $region32: #{tpu_custom_call.1} parent=11 // pred_fallthru
          _
        // Predicated region
        $region33: #{tpu_custom_call.1} parent=11 // pred_check
          %p503 = pneg %p210
        $region34: #{tpu_custom_call.1} parent=11 // pred_check_branch
          %505 = sbr.rel (%p503) target = $region36
        $region35: #{tpu_custom_call.1} parent=11 // pred_region
          %s507 = ssub.s32 1024, 1024
          %508 = vsyncadd [#allocation12], %s507
          %s509 = sshll.u32 [#allocation11], 4
          %s510 = int_to_ptr.vmem [resolvable:$true] %s509
          %515 = dma.hbm_to_vmem [thread:$0]  %s7, 1024, %s510, [#allocation12], 128, 128, 8
        $region36: #{tpu_custom_call.1} parent=11 // pred_fallthru
          _
        // Predicated region
        $region37: #{tpu_custom_call.1} parent=11 // pred_check
          %p516 = pneg %p231
        $region38: #{tpu_custom_call.1} parent=11 // pred_check_branch
          %518 = sbr.rel (%p516) target = $region40
        $region39: #{tpu_custom_call.1} parent=11 // pred_region
          %s520 = ssub.s32 2048, 2048
          %521 = vsyncadd [#allocation12], %s520
          %s522 = sshll.u32 [#allocation13], 4
          %s523 = int_to_ptr.vmem [resolvable:$true] %s522
          %528 = dma.hbm_to_vmem [thread:$0]  %s8, 2048, %s523, [#allocation12], 256, 256, 16
        $region40: #{tpu_custom_call.1} parent=11 // pred_fallthru
          _
        // Predicated region
        $region41: #{tpu_custom_call.1} parent=11 // pred_check
          %p529 = pneg %p252
        $region42: #{tpu_custom_call.1} parent=11 // pred_check_branch
          %531 = sbr.rel (%p529) target = $region44
        $region43: #{tpu_custom_call.1} parent=11 // pred_region
          %s533 = ssub.s32 1024, 1024
          %534 = vsyncadd [#allocation15], %s533
          %s535 = sshll.u32 [#allocation14], 4
          %s536 = int_to_ptr.vmem [resolvable:$true] %s535
          %541 = dma.hbm_to_vmem [thread:$0]  %s9, 1024, %s536, [#allocation15], 128, 128, 8
        $region44: #{tpu_custom_call.1} parent=11 // pred_fallthru
          _
        // Predicated region
        $region45: #{tpu_custom_call.1} parent=11 // pred_check
          %p542 = pneg %p273
        $region46: #{tpu_custom_call.1} parent=11 // pred_check_branch
          %544 = sbr.rel (%p542) target = $region48
        $region47: #{tpu_custom_call.1} parent=11 // pred_region
          _
        $region48: #{tpu_custom_call.1} parent=11 // pred_fallthru
          _
        // Predicated region
        $region49: #{tpu_custom_call.1} parent=11 // pred_check
          %p545 = pneg %p294
        $region50: #{tpu_custom_call.1} parent=11 // pred_check_branch
          %547 = sbr.rel (%p545) target = $region52
        $region51: #{tpu_custom_call.1} parent=11 // pred_region
          _
        $region52: #{tpu_custom_call.1} parent=11 // pred_fallthru
          _
        // Predicated region
        $region53: #{tpu_custom_call.1} parent=11 // pred_check
          %p548 = pneg %p315
        $region54: #{tpu_custom_call.1} parent=11 // pred_check_branch
          %550 = sbr.rel (%p548) target = $region56
        $region55: #{tpu_custom_call.1} parent=11 // pred_region
          %s552 = ssub.s32 256, 256
          %553 = vsyncadd [#allocation15], %s552
          %s554 = sshll.u32 [#allocation16], 4
          %s555 = int_to_ptr.vmem [resolvable:$true] %s554
          %560 = dma.hbm_to_vmem [thread:$0]  %s12, 256, %s555, [#allocation15], 128, 128, 8
        $region56: #{tpu_custom_call.1} parent=11 // pred_fallthru
          _
        // Predicated region
        $region57: #{tpu_custom_call.1} parent=11 // pred_check
          %p561 = pneg %p336
        $region58: #{tpu_custom_call.1} parent=11 // pred_check_branch
          %563 = sbr.rel (%p561) target = $region60
        $region59: #{tpu_custom_call.1} parent=11 // pred_region
          _
        $region60: #{tpu_custom_call.1} parent=11 // pred_fallthru
          _
        // Predicated region
        $region61: #{tpu_custom_call.1} parent=11 // pred_check
          %p564 = pneg %p357
        $region62: #{tpu_custom_call.1} parent=11 // pred_check_branch
          %566 = sbr.rel (%p564) target = $region64
        $region63: #{tpu_custom_call.1} parent=11 // pred_region
          %s568 = ssub.s32 2048, 2048
          %569 = vsyncadd [#allocation18], %s568
          %s570 = sshll.u32 [#allocation17], 4
          %s571 = int_to_ptr.vmem [resolvable:$true] %s570
          %576 = dma.hbm_to_vmem [thread:$0]  %s14, 2048, %s571, [#allocation18], 128, 128, 8
        $region64: #{tpu_custom_call.1} parent=11 // pred_fallthru
          _
        // Predicated region
        $region65: #{tpu_custom_call.1} parent=11 // pred_check
          %p577 = pneg %p378
        $region66: #{tpu_custom_call.1} parent=11 // pred_check_branch
          %579 = sbr.rel (%p577) target = $region68
        $region67: #{tpu_custom_call.1} parent=11 // pred_region
          _
        $region68: #{tpu_custom_call.1} parent=11 // pred_fallthru
          _
        // Predicated region
        $region69: #{tpu_custom_call.1} parent=11 // pred_check
          %p580 = pneg %p399
        $region70: #{tpu_custom_call.1} parent=11 // pred_check_branch
          %582 = sbr.rel (%p580) target = $region72
        $region71: #{tpu_custom_call.1} parent=11 // pred_region
          _
        $region72: #{tpu_custom_call.1} parent=11 // pred_fallthru
          _
      $region12: #{tpu_custom_call.1} parent=5 // pred_fallthru
        _
      %p583 = scmp.lt.s32.totalorder %s32, 2
      // Predicated region
      $region73: #{tpu_custom_call.1} parent=5 // pred_check
        %p584 = pneg %p583
      $region74: #{tpu_custom_call.1} parent=5 // pred_check_branch
        %586 = sbr.rel (%p584) target = $region76
      $region75: #{tpu_custom_call.1} parent=5 // pred_region
        // Predicated region
        $region77: #{tpu_custom_call.1} parent=75 // pred_check
          %p587 = pneg %p52
        $region78: #{tpu_custom_call.1} parent=75 // pred_check_branch
          %589 = sbr.rel (%p587) target = $region80
        $region79: #{tpu_custom_call.1} parent=75 // pred_region
          %s590 = smul.u32 16, %s32
          %p591 = scmp.lt.s32.totalorder %s590, 31
          %s592 = scalar_select %p591, %s590, 31
          %s593 = smul.addr %s592, 8
          %s594 = scalar_lea.vmem %s0, %s593
          %s595 = smul.u32 16, %s32
        $region80: #{tpu_custom_call.1} parent=75 // pred_fallthru
          _
        // Predicated region
        $region81: #{tpu_custom_call.1} parent=75 // pred_check
          %p596 = pneg %p78
        $region82: #{tpu_custom_call.1} parent=75 // pred_check_branch
          %598 = sbr.rel (%p596) target = $region84
        $region83: #{tpu_custom_call.1} parent=75 // pred_region
          %s599 = smul.u32 16, %s32
          %p600 = scmp.lt.s32.totalorder %s599, 31
          %s601 = scalar_select %p600, %s599, 31
          %s602 = smul.addr %s601, 8
          %s603 = scalar_lea.vmem %s1, %s602
          %s604 = smul.u32 16, %s32
        $region84: #{tpu_custom_call.1} parent=75 // pred_fallthru
          _
      $region76: #{tpu_custom_call.1} parent=5 // pred_fallthru
        _
      %p605 = scmp.le.s32.totalorder 1, %s32
      %p606 = scmp.lt.s32.totalorder %s32, 3
      %p607 = pnand %p605, %p606
      %p608 = pneg %p607
      // Predicated region
      $region85: #{tpu_custom_call.1} parent=5 // pred_check
        _
      $region86: #{tpu_custom_call.1} parent=5 // pred_check_branch
        %610 = sbr.rel (%p607) target = $region88
      $region87: #{tpu_custom_call.1} parent=5 // pred_region
        %s611 = ssub.s32 %s32, 1
        // Predicated region
        $region89: #{tpu_custom_call.1} parent=87 // pred_check
          %p612 = pneg %p105
        $region90: #{tpu_custom_call.1} parent=87 // pred_check_branch
          %614 = sbr.rel (%p612) target = $region92
        $region91: #{tpu_custom_call.1} parent=87 // pred_region
          %615 = dma.done [#allocation3], 128
        $region92: #{tpu_custom_call.1} parent=87 // pred_fallthru
          _
        // Predicated region
        $region93: #{tpu_custom_call.1} parent=87 // pred_check
          %p616 = pneg %p126
        $region94: #{tpu_custom_call.1} parent=87 // pred_check_branch
          %618 = sbr.rel (%p616) target = $region96
        $region95: #{tpu_custom_call.1} parent=87 // pred_region
          %619 = dma.done [#allocation6], 1536
        $region96: #{tpu_custom_call.1} parent=87 // pred_fallthru
          _
        // Predicated region
        $region97: #{tpu_custom_call.1} parent=87 // pred_check
          %p620 = pneg %p147
        $region98: #{tpu_custom_call.1} parent=87 // pred_check_branch
          %622 = sbr.rel (%p620) target = $region100
        $region99: #{tpu_custom_call.1} parent=87 // pred_region
          %623 = dma.done [#allocation6], 1536
        $region100: #{tpu_custom_call.1} parent=87 // pred_fallthru
          _
        // Predicated region
        $region101: #{tpu_custom_call.1} parent=87 // pred_check
          %p624 = pneg %p168
        $region102: #{tpu_custom_call.1} parent=87 // pred_check_branch
          %626 = sbr.rel (%p624) target = $region104
        $region103: #{tpu_custom_call.1} parent=87 // pred_region
          %627 = dma.done [#allocation9], 1536
        $region104: #{tpu_custom_call.1} parent=87 // pred_fallthru
          _
        // Predicated region
        $region105: #{tpu_custom_call.1} parent=87 // pred_check
          %p628 = pneg %p189
        $region106: #{tpu_custom_call.1} parent=87 // pred_check_branch
          %630 = sbr.rel (%p628) target = $region108
        $region107: #{tpu_custom_call.1} parent=87 // pred_region
          %631 = dma.done [#allocation9], 1536
        $region108: #{tpu_custom_call.1} parent=87 // pred_fallthru
          _
        // Predicated region
        $region109: #{tpu_custom_call.1} parent=87 // pred_check
          %p632 = pneg %p210
        $region110: #{tpu_custom_call.1} parent=87 // pred_check_branch
          %634 = sbr.rel (%p632) target = $region112
        $region111: #{tpu_custom_call.1} parent=87 // pred_region
          %635 = dma.done [#allocation12], 1024
        $region112: #{tpu_custom_call.1} parent=87 // pred_fallthru
          _
        // Predicated region
        $region113: #{tpu_custom_call.1} parent=87 // pred_check
          %p636 = pneg %p231
        $region114: #{tpu_custom_call.1} parent=87 // pred_check_branch
          %638 = sbr.rel (%p636) target = $region116
        $region115: #{tpu_custom_call.1} parent=87 // pred_region
          %639 = dma.done [#allocation12], 2048
        $region116: #{tpu_custom_call.1} parent=87 // pred_fallthru
          _
        // Predicated region
        $region117: #{tpu_custom_call.1} parent=87 // pred_check
          %p640 = pneg %p252
        $region118: #{tpu_custom_call.1} parent=87 // pred_check_branch
          %642 = sbr.rel (%p640) target = $region120
        $region119: #{tpu_custom_call.1} parent=87 // pred_region
          %643 = dma.done [#allocation15], 1024
        $region120: #{tpu_custom_call.1} parent=87 // pred_fallthru
          _
        // Predicated region
        $region121: #{tpu_custom_call.1} parent=87 // pred_check
          %p644 = pneg %p315
        $region122: #{tpu_custom_call.1} parent=87 // pred_check_branch
          %646 = sbr.rel (%p644) target = $region124
        $region123: #{tpu_custom_call.1} parent=87 // pred_region
          %647 = dma.done [#allocation15], 256
        $region124: #{tpu_custom_call.1} parent=87 // pred_fallthru
          _
        // Predicated region
        $region125: #{tpu_custom_call.1} parent=87 // pred_check
          %p648 = pneg %p357
        $region126: #{tpu_custom_call.1} parent=87 // pred_check_branch
          %650 = sbr.rel (%p648) target = $region128
        $region127: #{tpu_custom_call.1} parent=87 // pred_region
          %651 = dma.done [#allocation18], 2048
        $region128: #{tpu_custom_call.1} parent=87 // pred_fallthru
          _
        %s652 = smul.u32 16, %s37
        %p653 = scmp.lt.s32.totalorder %s652, 31
        %s654 = scalar_select %p653, %s652, 31
        %s655 = smul.addr %s654, 8
        %s656 = scalar_lea.vmem %s0, %s655
        %p657 = pneg %p58
        %p658 = pneg %p55
        %s659 = smul.u32 16, %s37
        %p660 = scmp.lt.s32.totalorder %s659, 31
        %s661 = scalar_select %p660, %s659, 31
        %s662 = smul.addr %s661, 8
        %s663 = scalar_lea.vmem %s1, %s662
        %p664 = pneg %p84
        %p665 = pneg %p81
        %p666 = pneg %p105
        %p667 = pneg %p102
        %p668 = pneg %p126
        %p669 = pneg %p123
        %p670 = pneg %p147
        %p671 = pneg %p144
        %p672 = pneg %p168
        %p673 = pneg %p165
        %p674 = pneg %p189
        %p675 = pneg %p186
        %p676 = pneg %p210
        %p677 = pneg %p207
        %p678 = pneg %p231
        %p679 = pneg %p228
        %p680 = pneg %p252
        %p681 = pneg %p249
        %p682 = pneg %p273
        %p683 = pneg %p270
        %p684 = pneg %p294
        %p685 = pneg %p291
        %p686 = pneg %p315
        %p687 = pneg %p312
        %p688 = pneg %p336
        %p689 = pneg %p333
        %p690 = pneg %p357
        %p691 = pneg %p354
        %p692 = pneg %p378
        %p693 = pneg %p375
        %p694 = pneg %p399
        %p695 = pneg %p396
        %p696 = pneg %p425
        %p697 = pneg %p422
        %s698 = sand.u32 %s412, 1
        %s699 = scalar_lea.sflag [#allocation4], %s698
        %s700 = sand.u32 %s412, 1
        %s701 = smul.addr %s700, 32
        %s702 = scalar_lea.vmem [#allocation19], %s701
        %s703 = smul.u32 16, %s37
        %p704 = scmp.lt.s32.totalorder %s703, 31
        %s705 = scalar_select %p704, %s703, 31
        %s706 = smul.addr %s705, 8
        %s707 = scalar_lea.vmem %s0, %s706
        %s708 = smul.u32 16, %s37
        %s709 = smul.u32 16, %s37
        %p710 = scmp.lt.s32.totalorder %s709, 31
        %s711 = scalar_select %p710, %s709, 31
        %s712 = smul.addr %s711, 8
        %s713 = scalar_lea.vmem %s1, %s712
        %s714 = smul.u32 16, %s37
        %s715 = smul.u32 2, %s37
        %v717 = vld [vmem:[%s713] sm:$0xff]
        %v718 = vld [vmem:[%s713 + $0x8] sm:$0xff]
        %v719 = vld [vmem:[%s713 + $0x10] sm:$0xff]
        %v720 = vld [vmem:[%s713 + $0x18] sm:$0xff]
        %v721 = vld [vmem:[%s713 + $0x20] sm:$0xff]
        %v722 = vld [vmem:[%s713 + $0x28] sm:$0xff]
        %v723 = vld [vmem:[%s713 + $0x30] sm:$0xff]
        %v724 = vld [vmem:[%s713 + $0x38] sm:$0xff]
        %v725 = vld [vmem:[%s713 + $0x40] sm:$0xff]
        %v726 = vld [vmem:[%s713 + $0x48] sm:$0xff]
        %v727 = vld [vmem:[%s713 + $0x50] sm:$0xff]
        %v728 = vld [vmem:[%s713 + $0x58] sm:$0xff]
        %v729 = vld [vmem:[%s713 + $0x60] sm:$0xff]
        %v730 = vld [vmem:[%s713 + $0x68] sm:$0xff]
        %v731 = vld [vmem:[%s713 + $0x70] sm:$0xff]
        %v732 = vld [vmem:[%s713 + $0x78] sm:$0xff]
        %v733 = vld [vmem:[%s13] sm:$0xff]
        %vm734 = vcmask 64512
        %v736 = vsel %vm734, %v717, 0
        %v739 = vsel %vm734, %v718, 0
        %v742 = vsel %vm734, %v719, 0
        %v745 = vsel %vm734, %v720, 0
        %v748 = vsel %vm734, %v721, 0
        %v751 = vsel %vm734, %v722, 0
        %v754 = vsel %vm734, %v723, 0
        %v757 = vsel %vm734, %v724, 0
        %v760 = vsel %vm734, %v725, 0
        %v763 = vsel %vm734, %v726, 0
        %v766 = vsel %vm734, %v727, 0
        %v769 = vsel %vm734, %v728, 0
        %v772 = vsel %vm734, %v729, 0
        %v775 = vsel %vm734, %v730, 0
        %v778 = vsel %vm734, %v731, 0
        %v781 = vsel %vm734, %v732, 0
        %783 = vmatprep.subr.mxu0 0.0
        %784 = vmatpush1.msra.mxu0 %v733
        %785 = vmatprep.subr.mxu0 0.0
        %786 = vmatpush1.msra.mxu0 0.0
        %787 = vmatprep.subr.mxu0 0.0
        %788 = vmatpush1.msra.mxu0 0.0
        %789 = vmatprep.subr.mxu0 0.0
        %790 = vmatpush1.msra.mxu0 0.0
        %791 = vmatprep.subr.mxu0 0.0
        %792 = vmatpush1.msra.mxu0 0.0
        %793 = vmatprep.subr.mxu0 0.0
        %794 = vmatpush1.msra.mxu0 0.0
        %795 = vmatprep.subr.mxu0 0.0
        %796 = vmatpush1.msra.mxu0 0.0
        %797 = vmatprep.subr.mxu0 0.0
        %798 = vmatpush1.msra.mxu0 0.0
        %799 = vmatprep.subr.mxu0 0.0
        %800 = vmatpush1.msra.mxu0 0.0
        %801 = vmatprep.subr.mxu0 0.0
        %802 = vmatpush1.msra.mxu0 0.0
        %803 = vmatprep.subr.mxu0 0.0
        %804 = vmatpush1.msra.mxu0 0.0
        %805 = vmatprep.subr.mxu0 0.0
        %806 = vmatpush1.msra.mxu0 0.0
        %807 = vmatprep.subr.mxu0 0.0
        %808 = vmatpush1.msra.mxu0 0.0
        %809 = vmatprep.subr.mxu0 0.0
        %810 = vmatpush1.msra.mxu0 0.0
        %811 = vmatprep.subr.mxu0 0.0
        %812 = vmatpush1.msra.mxu0 0.0
        %813 = vmatprep.subr.mxu0 0.0
        %814 = vmatpush1.msra.mxu0 0.0
        %815 = vmatprep.subr.mxu0 0.0
        %816 = vmatpush1.msra.mxu0 0.0
        %817 = vmatprep.subr.mxu0 0.0
        %818 = vmatpush1.msra.mxu0 0.0
        %819 = vmatprep.subr.mxu0 0.0
        %820 = vmatpush1.msra.mxu0 0.0
        %821 = vmatprep.subr.mxu0 0.0
        %822 = vmatpush1.msra.mxu0 0.0
        %823 = vmatprep.subr.mxu0 0.0
        %824 = vmatpush1.msra.mxu0 0.0
        %825 = vmatprep.subr.mxu0 0.0
        %826 = vmatpush1.msra.mxu0 0.0
        %827 = vmatprep.subr.mxu0 0.0
        %828 = vmatpush1.msra.mxu0 0.0
        %829 = vmatprep.subr.mxu0 0.0
        %830 = vmatpush1.msra.mxu0 0.0
        %831 = vmatprep.subr.mxu0 0.0
        %832 = vmatpush1.msra.mxu0 0.0
        %833 = vmatprep.subr.mxu0 0.0
        %834 = vmatpush1.msra.mxu0 0.0
        %835 = vmatprep.subr.mxu0 0.0
        %836 = vmatpush1.msra.mxu0 0.0
        %837 = vmatprep.subr.mxu0 0.0
        %838 = vmatpush1.msra.mxu0 0.0
        %839 = vmatprep.subr.mxu0 0.0
        %840 = vmatpush1.msra.mxu0 0.0
        %841 = vmatprep.subr.mxu0 0.0
        %842 = vmatpush1.msra.mxu0 0.0
        %843 = vmatprep.subr.mxu0 0.0
        %844 = vmatpush1.msra.mxu0 0.0
        %845 = vmatprep.subr.mxu0 0.0
        %846 = vmatpush1.msra.mxu0 0.0
        %847 = vmatprep.mubr.f32.mxu0 0.0
        %848 = vmatmul.mubr.f32.gmra.mrb[0].mxu0 %v736
        %v849 = vpop.f32.mrb[0].mxu0
        %v850 = vadd.f32 0.0, %v849
        %v851 = vpop.f32.mrb[0].mxu0
        %852 = vmatprep.mubr.f32.mxu0 0.0
        %853 = vmatmul.mubr.f32.gmra.mrb[0].mxu0 %v739
        %v854 = vpop.f32.mrb[0].mxu0
        %v855 = vadd.f32 0.0, %v854
        %v856 = vpop.f32.mrb[0].mxu0
        %857 = vmatprep.mubr.f32.mxu0 0.0
        %858 = vmatmul.mubr.f32.gmra.mrb[0].mxu0 %v742
        %v859 = vpop.f32.mrb[0].mxu0
        %v860 = vadd.f32 0.0, %v859
        %v861 = vpop.f32.mrb[0].mxu0
        %862 = vmatprep.mubr.f32.mxu0 0.0
        %863 = vmatmul.mubr.f32.gmra.mrb[0].mxu0 %v745
        %v864 = vpop.f32.mrb[0].mxu0
        %v865 = vadd.f32 0.0, %v864
        %v866 = vpop.f32.mrb[0].mxu0
        %867 = vmatprep.mubr.f32.mxu0 0.0
        %868 = vmatmul.mubr.f32.gmra.mrb[0].mxu0 %v748
        %v869 = vpop.f32.mrb[0].mxu0
        %v870 = vadd.f32 0.0, %v869
        %v871 = vpop.f32.mrb[0].mxu0
        %872 = vmatprep.mubr.f32.mxu0 0.0
        %873 = vmatmul.mubr.f32.gmra.mrb[0].mxu0 %v751
        %v874 = vpop.f32.mrb[0].mxu0
        %v875 = vadd.f32 0.0, %v874
        %v876 = vpop.f32.mrb[0].mxu0
        %877 = vmatprep.mubr.f32.mxu0 0.0
        %878 = vmatmul.mubr.f32.gmra.mrb[0].mxu0 %v754
        %v879 = vpop.f32.mrb[0].mxu0
        %v880 = vadd.f32 0.0, %v879
        %v881 = vpop.f32.mrb[0].mxu0
        %882 = vmatprep.mubr.f32.mxu0 0.0
        %883 = vmatmul.mubr.f32.gmra.mrb[0].mxu0 %v757
        %v884 = vpop.f32.mrb[0].mxu0
        %v885 = vadd.f32 0.0, %v884
        %v886 = vpop.f32.mrb[0].mxu0
        %887 = vmatprep.mubr.f32.mxu0 0.0
        %888 = vmatmul.mubr.f32.gmra.mrb[0].mxu0 %v760
        %v889 = vpop.f32.mrb[0].mxu0
        %v890 = vadd.f32 0.0, %v889
        %v891 = vpop.f32.mrb[0].mxu0
        %892 = vmatprep.mubr.f32.mxu0 0.0
        %893 = vmatmul.mubr.f32.gmra.mrb[0].mxu0 %v763
        %v894 = vpop.f32.mrb[0].mxu0
        %v895 = vadd.f32 0.0, %v894
        %v896 = vpop.f32.mrb[0].mxu0
        %897 = vmatprep.mubr.f32.mxu0 0.0
        %898 = vmatmul.mubr.f32.gmra.mrb[0].mxu0 %v766
        %v899 = vpop.f32.mrb[0].mxu0
        %v900 = vadd.f32 0.0, %v899
        %v901 = vpop.f32.mrb[0].mxu0
        %902 = vmatprep.mubr.f32.mxu0 0.0
        %903 = vmatmul.mubr.f32.gmra.mrb[0].mxu0 %v769
        %v904 = vpop.f32.mrb[0].mxu0
        %v905 = vadd.f32 0.0, %v904
        %v906 = vpop.f32.mrb[0].mxu0
        %907 = vmatprep.mubr.f32.mxu0 0.0
        %908 = vmatmul.mubr.f32.gmra.mrb[0].mxu0 %v772
        %v909 = vpop.f32.mrb[0].mxu0
        %v910 = vadd.f32 0.0, %v909
        %v911 = vpop.f32.mrb[0].mxu0
        %912 = vmatprep.mubr.f32.mxu0 0.0
        %913 = vmatmul.mubr.f32.gmra.mrb[0].mxu0 %v775
        %v914 = vpop.f32.mrb[0].mxu0
        %v915 = vadd.f32 0.0, %v914
        %v916 = vpop.f32.mrb[0].mxu0
        %917 = vmatprep.mubr.f32.mxu0 0.0
        %918 = vmatmul.mubr.f32.gmra.mrb[0].mxu0 %v778
        %v919 = vpop.f32.mrb[0].mxu0
        %v920 = vadd.f32 0.0, %v919
        %v921 = vpop.f32.mrb[0].mxu0
        %922 = vmatprep.mubr.f32.mxu0 0.0
        %923 = vmatmul.mubr.f32.gmra.mrb[0].mxu0 %v781
        %v924 = vpop.f32.mrb[0].mxu0
        %v925 = vadd.f32 0.0, %v924
        %v926 = vpop.f32.mrb[0].mxu0
        %927 = vdwg.mxu0
        %vm928 = vcmp.ne.f32.partialorder %v850, 0.0
        %vm929 = vcmp.ne.f32.partialorder %v855, 0.0
        %vm930 = vcmp.ne.f32.partialorder %v860, 0.0
        %vm931 = vcmp.ne.f32.partialorder %v865, 0.0
        %vm932 = vcmp.ne.f32.partialorder %v870, 0.0
        %vm933 = vcmp.ne.f32.partialorder %v875, 0.0
        %vm934 = vcmp.ne.f32.partialorder %v880, 0.0
        %vm935 = vcmp.ne.f32.partialorder %v885, 0.0
        %vm936 = vcmp.ne.f32.partialorder %v890, 0.0
        %vm937 = vcmp.ne.f32.partialorder %v895, 0.0
        %vm938 = vcmp.ne.f32.partialorder %v900, 0.0
        %vm939 = vcmp.ne.f32.partialorder %v905, 0.0
        %vm940 = vcmp.ne.f32.partialorder %v910, 0.0
        %vm941 = vcmp.ne.f32.partialorder %v915, 0.0
        %vm942 = vcmp.ne.f32.partialorder %v920, 0.0
        %vm943 = vcmp.ne.f32.partialorder %v925, 0.0
        %v944 = vld [vmem:[#allocation17] sm:$0xff]
        %v945 = vld [vmem:[#allocation17 + $0x8] sm:$0xff]
        %v946 = vld [vmem:[#allocation17 + $0x10] sm:$0xff]
        %v947 = vld [vmem:[#allocation17 + $0x18] sm:$0xff]
        %v948 = vld [vmem:[#allocation17 + $0x20] sm:$0xff]
        %v949 = vld [vmem:[#allocation17 + $0x28] sm:$0xff]
        %v950 = vld [vmem:[#allocation17 + $0x30] sm:$0xff]
        %v951 = vld [vmem:[#allocation17 + $0x38] sm:$0xff]
        %v952 = vld [vmem:[#allocation17 + $0x40] sm:$0xff]
        %v953 = vld [vmem:[#allocation17 + $0x48] sm:$0xff]
        %v954 = vld [vmem:[#allocation17 + $0x50] sm:$0xff]
        %v955 = vld [vmem:[#allocation17 + $0x58] sm:$0xff]
        %v956 = vld [vmem:[#allocation17 + $0x60] sm:$0xff]
        %v957 = vld [vmem:[#allocation17 + $0x68] sm:$0xff]
        %v958 = vld [vmem:[#allocation17 + $0x70] sm:$0xff]
        %v959 = vld [vmem:[#allocation17 + $0x78] sm:$0xff]
        %v960 = vsel %vm928, %v944, -1e+30
        %v961 = vsel %vm929, %v945, -1e+30
        %v962 = vsel %vm930, %v946, -1e+30
        %v963 = vsel %vm931, %v947, -1e+30
        %v964 = vsel %vm932, %v948, -1e+30
        %v965 = vsel %vm933, %v949, -1e+30
        %v966 = vsel %vm934, %v950, -1e+30
        %v967 = vsel %vm935, %v951, -1e+30
        %v968 = vsel %vm936, %v952, -1e+30
        %v969 = vsel %vm937, %v953, -1e+30
        %v970 = vsel %vm938, %v954, -1e+30
        %v971 = vsel %vm939, %v955, -1e+30
        %v972 = vsel %vm940, %v956, -1e+30
        %v973 = vsel %vm941, %v957, -1e+30
        %v974 = vsel %vm942, %v958, -1e+30
        %v975 = vsel %vm943, %v959, -1e+30
        %vm976 = vcmp.ne.f32.partialorder %v717, 0.0
        %vm977 = vcmp.ne.f32.partialorder %v718, 0.0
        %vm978 = vcmp.ne.f32.partialorder %v719, 0.0
        %vm979 = vcmp.ne.f32.partialorder %v720, 0.0
        %vm980 = vcmp.ne.f32.partialorder %v721, 0.0
        %vm981 = vcmp.ne.f32.partialorder %v722, 0.0
        %vm982 = vcmp.ne.f32.partialorder %v723, 0.0
        %vm983 = vcmp.ne.f32.partialorder %v724, 0.0
        %vm984 = vcmp.ne.f32.partialorder %v725, 0.0
        %vm985 = vcmp.ne.f32.partialorder %v726, 0.0
        %vm986 = vcmp.ne.f32.partialorder %v727, 0.0
        %vm987 = vcmp.ne.f32.partialorder %v728, 0.0
        %vm988 = vcmp.ne.f32.partialorder %v729, 0.0
        %vm989 = vcmp.ne.f32.partialorder %v730, 0.0
        %vm990 = vcmp.ne.f32.partialorder %v731, 0.0
        %vm991 = vcmp.ne.f32.partialorder %v732, 0.0
        %v992 = vsel %vm976, 1.0, 0.0
        %v993 = vsel %vm977, 1.0, 0.0
        %v994 = vsel %vm978, 1.0, 0.0
        %v995 = vsel %vm979, 1.0, 0.0
        %v996 = vsel %vm980, 1.0, 0.0
        %v997 = vsel %vm981, 1.0, 0.0
        %v998 = vsel %vm982, 1.0, 0.0
        %v999 = vsel %vm983, 1.0, 0.0
        %v1000 = vsel %vm984, 1.0, 0.0
        %v1001 = vsel %vm985, 1.0, 0.0
        %v1002 = vsel %vm986, 1.0, 0.0
        %v1003 = vsel %vm987, 1.0, 0.0
        %v1004 = vsel %vm988, 1.0, 0.0
        %v1005 = vsel %vm989, 1.0, 0.0
        %v1006 = vsel %vm990, 1.0, 0.0
        %v1007 = vsel %vm991, 1.0, 0.0
        %v1008 = vsel %vm734, %v992, -inf
        %1009 = vmax.xlane.f32.xlu0 %v1008
        %v1010 = vpop.xlane.xlu0 %1009
        %v1011 = vsel %vm734, %v993, -inf
        %1012 = vmax.xlane.f32.xlu0 %v1011
        %v1013 = vpop.xlane.xlu0 %1012
        %v1014 = vsel %vm734, %v994, -inf
        %1015 = vmax.xlane.f32.xlu0 %v1014
        %v1016 = vpop.xlane.xlu0 %1015
        %v1017 = vsel %vm734, %v995, -inf
        %1018 = vmax.xlane.f32.xlu0 %v1017
        %v1019 = vpop.xlane.xlu0 %1018
        %v1020 = vsel %vm734, %v996, -inf
        %1021 = vmax.xlane.f32.xlu0 %v1020
        %v1022 = vpop.xlane.xlu0 %1021
        %v1023 = vsel %vm734, %v997, -inf
        %1024 = vmax.xlane.f32.xlu0 %v1023
        %v1025 = vpop.xlane.xlu0 %1024
        %v1026 = vsel %vm734, %v998, -inf
        %1027 = vmax.xlane.f32.xlu0 %v1026
        %v1028 = vpop.xlane.xlu0 %1027
        %v1029 = vsel %vm734, %v999, -inf
        %1030 = vmax.xlane.f32.xlu0 %v1029
        %v1031 = vpop.xlane.xlu0 %1030
        %v1032 = vsel %vm734, %v1000, -inf
        %1033 = vmax.xlane.f32.xlu0 %v1032
        %v1034 = vpop.xlane.xlu0 %1033
        %v1035 = vsel %vm734, %v1001, -inf
        %1036 = vmax.xlane.f32.xlu0 %v1035
        %v1037 = vpop.xlane.xlu0 %1036
        %v1038 = vsel %vm734, %v1002, -inf
        %1039 = vmax.xlane.f32.xlu0 %v1038
        %v1040 = vpop.xlane.xlu0 %1039
        %v1041 = vsel %vm734, %v1003, -inf
        %1042 = vmax.xlane.f32.xlu0 %v1041
        %v1043 = vpop.xlane.xlu0 %1042
        %v1044 = vsel %vm734, %v1004, -inf
        %1045 = vmax.xlane.f32.xlu0 %v1044
        %v1046 = vpop.xlane.xlu0 %1045
        %v1047 = vsel %vm734, %v1005, -inf
        %1048 = vmax.xlane.f32.xlu0 %v1047
        %v1049 = vpop.xlane.xlu0 %1048
        %v1050 = vsel %vm734, %v1006, -inf
        %1051 = vmax.xlane.f32.xlu0 %v1050
        %v1052 = vpop.xlane.xlu0 %1051
        %v1053 = vsel %vm734, %v1007, -inf
        %1054 = vmax.xlane.f32.xlu0 %v1053
        %v1055 = vpop.xlane.xlu0 %1054
        %v1056 = vld [vmem:[%s707] sm:$0xff]
        %v1057 = vld [vmem:[%s707 + $0x8] sm:$0xff]
        %v1058 = vld [vmem:[%s707 + $0x10] sm:$0xff]
        %v1059 = vld [vmem:[%s707 + $0x18] sm:$0xff]
        %v1060 = vld [vmem:[%s707 + $0x20] sm:$0xff]
        %v1061 = vld [vmem:[%s707 + $0x28] sm:$0xff]
        %v1062 = vld [vmem:[%s707 + $0x30] sm:$0xff]
        %v1063 = vld [vmem:[%s707 + $0x38] sm:$0xff]
        %v1064 = vld [vmem:[%s707 + $0x40] sm:$0xff]
        %v1065 = vld [vmem:[%s707 + $0x48] sm:$0xff]
        %v1066 = vld [vmem:[%s707 + $0x50] sm:$0xff]
        %v1067 = vld [vmem:[%s707 + $0x58] sm:$0xff]
        %v1068 = vld [vmem:[%s707 + $0x60] sm:$0xff]
        %v1069 = vld [vmem:[%s707 + $0x68] sm:$0xff]
        %v1070 = vld [vmem:[%s707 + $0x70] sm:$0xff]
        %v1071 = vld [vmem:[%s707 + $0x78] sm:$0xff]
        %v1072 = vld [vmem:[#allocation2] sm:$0xff]
        %v1074 = vsel %vm734, %v1056, 0
        %v1077 = vsel %vm734, %v1057, 0
        %v1080 = vsel %vm734, %v1058, 0
        %v1083 = vsel %vm734, %v1059, 0
        %v1086 = vsel %vm734, %v1060, 0
        %v1089 = vsel %vm734, %v1061, 0
        %v1092 = vsel %vm734, %v1062, 0
        %v1095 = vsel %vm734, %v1063, 0
        %v1098 = vsel %vm734, %v1064, 0
        %v1101 = vsel %vm734, %v1065, 0
        %v1104 = vsel %vm734, %v1066, 0
        %v1107 = vsel %vm734, %v1067, 0
        %v1110 = vsel %vm734, %v1068, 0
        %v1113 = vsel %vm734, %v1069, 0
        %v1116 = vsel %vm734, %v1070, 0
        %v1119 = vsel %vm734, %v1071, 0
        %1121 = vmatprep.subr.mxu0 0.0
        %1122 = vmatpush1.msra.mxu0 %v1072
        %1123 = vmatprep.subr.mxu0 0.0
        %1124 = vmatpush1.msra.mxu0 0.0
        %1125 = vmatprep.subr.mxu0 0.0
        %1126 = vmatpush1.msra.mxu0 0.0
        %1127 = vmatprep.subr.mxu0 0.0
        %1128 = vmatpush1.msra.mxu0 0.0
        %1129 = vmatprep.subr.mxu0 0.0
        %1130 = vmatpush1.msra.mxu0 0.0
        %1131 = vmatprep.subr.mxu0 0.0
        %1132 = vmatpush1.msra.mxu0 0.0
        %1133 = vmatprep.subr.mxu0 0.0
        %1134 = vmatpush1.msra.mxu0 0.0
        %1135 = vmatprep.subr.mxu0 0.0
        %1136 = vmatpush1.msra.mxu0 0.0
        %1137 = vmatprep.subr.mxu0 0.0
        %1138 = vmatpush1.msra.mxu0 0.0
        %1139 = vmatprep.subr.mxu0 0.0
        %1140 = vmatpush1.msra.mxu0 0.0
        %1141 = vmatprep.subr.mxu0 0.0
        %1142 = vmatpush1.msra.mxu0 0.0
        %1143 = vmatprep.subr.mxu0 0.0
        %1144 = vmatpush1.msra.mxu0 0.0
        %1145 = vmatprep.subr.mxu0 0.0
        %1146 = vmatpush1.msra.mxu0 0.0
        %1147 = vmatprep.subr.mxu0 0.0
        %1148 = vmatpush1.msra.mxu0 0.0
        %1149 = vmatprep.subr.mxu0 0.0
        %1150 = vmatpush1.msra.mxu0 0.0
        %1151 = vmatprep.subr.mxu0 0.0
        %1152 = vmatpush1.msra.mxu0 0.0
        %1153 = vmatprep.subr.mxu0 0.0
        %1154 = vmatpush1.msra.mxu0 0.0
        %1155 = vmatprep.subr.mxu0 0.0
        %1156 = vmatpush1.msra.mxu0 0.0
        %1157 = vmatprep.subr.mxu0 0.0
        %1158 = vmatpush1.msra.mxu0 0.0
        %1159 = vmatprep.subr.mxu0 0.0
        %1160 = vmatpush1.msra.mxu0 0.0
        %1161 = vmatprep.subr.mxu0 0.0
        %1162 = vmatpush1.msra.mxu0 0.0
        %1163 = vmatprep.subr.mxu0 0.0
        %1164 = vmatpush1.msra.mxu0 0.0
        %1165 = vmatprep.subr.mxu0 0.0
        %1166 = vmatpush1.msra.mxu0 0.0
        %1167 = vmatprep.subr.mxu0 0.0
        %1168 = vmatpush1.msra.mxu0 0.0
        %1169 = vmatprep.subr.mxu0 0.0
        %1170 = vmatpush1.msra.mxu0 0.0
        %1171 = vmatprep.subr.mxu0 0.0
        %1172 = vmatpush1.msra.mxu0 0.0
        %1173 = vmatprep.subr.mxu0 0.0
        %1174 = vmatpush1.msra.mxu0 0.0
        %1175 = vmatprep.subr.mxu0 0.0
        %1176 = vmatpush1.msra.mxu0 0.0
        %1177 = vmatprep.subr.mxu0 0.0
        %1178 = vmatpush1.msra.mxu0 0.0
        %1179 = vmatprep.subr.mxu0 0.0
        %1180 = vmatpush1.msra.mxu0 0.0
        %1181 = vmatprep.subr.mxu0 0.0
        %1182 = vmatpush1.msra.mxu0 0.0
        %1183 = vmatprep.subr.mxu0 0.0
        %1184 = vmatpush1.msra.mxu0 0.0
        %1185 = vmatprep.mubr.f32.mxu0 0.0
        %1186 = vmatmul.mubr.f32.gmra.mrb[0].mxu0 %v1074
        %v1187 = vpop.f32.mrb[0].mxu0
        %v1188 = vadd.f32 0.0, %v1187
        %v1189 = vpop.f32.mrb[0].mxu0
        %1190 = vmatprep.mubr.f32.mxu0 0.0
        %1191 = vmatmul.mubr.f32.gmra.mrb[0].mxu0 %v1077
        %v1192 = vpop.f32.mrb[0].mxu0
        %v1193 = vadd.f32 0.0, %v1192
        %v1194 = vpop.f32.mrb[0].mxu0
        %1195 = vmatprep.mubr.f32.mxu0 0.0
        %1196 = vmatmul.mubr.f32.gmra.mrb[0].mxu0 %v1080
        %v1197 = vpop.f32.mrb[0].mxu0
        %v1198 = vadd.f32 0.0, %v1197
        %v1199 = vpop.f32.mrb[0].mxu0
        %1200 = vmatprep.mubr.f32.mxu0 0.0
        %1201 = vmatmul.mubr.f32.gmra.mrb[0].mxu0 %v1083
        %v1202 = vpop.f32.mrb[0].mxu0
        %v1203 = vadd.f32 0.0, %v1202
        %v1204 = vpop.f32.mrb[0].mxu0
        %1205 = vmatprep.mubr.f32.mxu0 0.0
        %1206 = vmatmul.mubr.f32.gmra.mrb[0].mxu0 %v1086
        %v1207 = vpop.f32.mrb[0].mxu0
        %v1208 = vadd.f32 0.0, %v1207
        %v1209 = vpop.f32.mrb[0].mxu0
        %1210 = vmatprep.mubr.f32.mxu0 0.0
        %1211 = vmatmul.mubr.f32.gmra.mrb[0].mxu0 %v1089
        %v1212 = vpop.f32.mrb[0].mxu0
        %v1213 = vadd.f32 0.0, %v1212
        %v1214 = vpop.f32.mrb[0].mxu0
        %1215 = vmatprep.mubr.f32.mxu0 0.0
        %1216 = vmatmul.mubr.f32.gmra.mrb[0].mxu0 %v1092
        %v1217 = vpop.f32.mrb[0].mxu0
        %v1218 = vadd.f32 0.0, %v1217
        %v1219 = vpop.f32.mrb[0].mxu0
        %1220 = vmatprep.mubr.f32.mxu0 0.0
        %1221 = vmatmul.mubr.f32.gmra.mrb[0].mxu0 %v1095
        %v1222 = vpop.f32.mrb[0].mxu0
        %v1223 = vadd.f32 0.0, %v1222
        %v1224 = vpop.f32.mrb[0].mxu0
        %1225 = vmatprep.mubr.f32.mxu0 0.0
        %1226 = vmatmul.mubr.f32.gmra.mrb[0].mxu0 %v1098
        %v1227 = vpop.f32.mrb[0].mxu0
        %v1228 = vadd.f32 0.0, %v1227
        %v1229 = vpop.f32.mrb[0].mxu0
        %1230 = vmatprep.mubr.f32.mxu0 0.0
        %1231 = vmatmul.mubr.f32.gmra.mrb[0].mxu0 %v1101
        %v1232 = vpop.f32.mrb[0].mxu0
        %v1233 = vadd.f32 0.0, %v1232
        %v1234 = vpop.f32.mrb[0].mxu0
        %1235 = vmatprep.mubr.f32.mxu0 0.0
        %1236 = vmatmul.mubr.f32.gmra.mrb[0].mxu0 %v1104
        %v1237 = vpop.f32.mrb[0].mxu0
        %v1238 = vadd.f32 0.0, %v1237
        %v1239 = vpop.f32.mrb[0].mxu0
        %1240 = vmatprep.mubr.f32.mxu0 0.0
        %1241 = vmatmul.mubr.f32.gmra.mrb[0].mxu0 %v1107
        %v1242 = vpop.f32.mrb[0].mxu0
        %v1243 = vadd.f32 0.0, %v1242
        %v1244 = vpop.f32.mrb[0].mxu0
        %1245 = vmatprep.mubr.f32.mxu0 0.0
        %1246 = vmatmul.mubr.f32.gmra.mrb[0].mxu0 %v1110
        %v1247 = vpop.f32.mrb[0].mxu0
        %v1248 = vadd.f32 0.0, %v1247
        %v1249 = vpop.f32.mrb[0].mxu0
        %1250 = vmatprep.mubr.f32.mxu0 0.0
        %1251 = vmatmul.mubr.f32.gmra.mrb[0].mxu0 %v1113
        %v1252 = vpop.f32.mrb[0].mxu0
        %v1253 = vadd.f32 0.0, %v1252
        %v1254 = vpop.f32.mrb[0].mxu0
        %1255 = vmatprep.mubr.f32.mxu0 0.0
        %1256 = vmatmul.mubr.f32.gmra.mrb[0].mxu0 %v1116
        %v1257 = vpop.f32.mrb[0].mxu0
        %v1258 = vadd.f32 0.0, %v1257
        %v1259 = vpop.f32.mrb[0].mxu0
        %1260 = vmatprep.mubr.f32.mxu0 0.0
        %1261 = vmatmul.mubr.f32.gmra.mrb[0].mxu0 %v1119
        %v1262 = vpop.f32.mrb[0].mxu0
        %v1263 = vadd.f32 0.0, %v1262
        %v1264 = vpop.f32.mrb[0].mxu0
        %1265 = vdwg.mxu0
        %v1266 = vmax.f32 %v1188, 0.0
        %v1267 = vmax.f32 %v1193, 0.0
        %v1268 = vmax.f32 %v1198, 0.0
        %v1269 = vmax.f32 %v1203, 0.0
        %v1270 = vmax.f32 %v1208, 0.0
        %v1271 = vmax.f32 %v1213, 0.0
        %v1272 = vmax.f32 %v1218, 0.0
        %v1273 = vmax.f32 %v1223, 0.0
        %v1274 = vmax.f32 %v1228, 0.0
        %v1275 = vmax.f32 %v1233, 0.0
        %v1276 = vmax.f32 %v1238, 0.0
        %v1277 = vmax.f32 %v1243, 0.0
        %v1278 = vmax.f32 %v1248, 0.0
        %v1279 = vmax.f32 %v1253, 0.0
        %v1280 = vmax.f32 %v1258, 0.0
        %v1281 = vmax.f32 %v1263, 0.0
        %v1282 = vpack.c.bf16 %v1267, %v1266
        %v1283 = vpack.c.bf16 %v1269, %v1268
        %v1284 = vpack.c.bf16 %v1271, %v1270
        %v1285 = vpack.c.bf16 %v1273, %v1272
        %v1286 = vpack.c.bf16 %v1275, %v1274
        %v1287 = vpack.c.bf16 %v1277, %v1276
        %v1288 = vpack.c.bf16 %v1279, %v1278
        %v1289 = vpack.c.bf16 %v1281, %v1280
        %v1290 = vld [vmem:[#allocation10] sm:$0xf]
        %v1291 = vld [vmem:[#allocation10 + $0x4] sm:$0xf]
        %v1292 = vld [vmem:[#allocation10 + $0x8] sm:$0xf]
        %v1293 = vld [vmem:[#allocation10 + $0xc] sm:$0xf]
        %v1294 = vld [vmem:[#allocation10 + $0x10] sm:$0xf]
        %v1295 = vld [vmem:[#allocation10 + $0x14] sm:$0xf]
        %v1296 = vld [vmem:[#allocation10 + $0x18] sm:$0xf]
        %v1297 = vld [vmem:[#allocation10 + $0x1c] sm:$0xf]
        %v1298 = vld [vmem:[#allocation5] sm:$0xf]
        %v1299 = vld [vmem:[#allocation5 + $0x4] sm:$0xf]
        %v1300 = vld [vmem:[#allocation5 + $0x8] sm:$0xf]
        %v1301 = vld [vmem:[#allocation5 + $0xc] sm:$0xf]
        %v1302 = vld [vmem:[#allocation5 + $0x10] sm:$0xf]
        %v1303 = vld [vmem:[#allocation5 + $0x14] sm:$0xf]
        %v1304 = vld [vmem:[#allocation5 + $0x18] sm:$0xf]
        %v1305 = vld [vmem:[#allocation5 + $0x1c] sm:$0xf]
        %v1314 = vunpack.c.l.b16 %v1298
        %v1315 = vunpack.c.l.b16 %v1299
        %v1316 = vunpack.c.l.b16 %v1300
        %v1317 = vunpack.c.l.b16 %v1301
        %v1318 = vunpack.c.l.b16 %v1302
        %v1319 = vunpack.c.l.b16 %v1303
        %v1320 = vunpack.c.l.b16 %v1304
        %v1321 = vunpack.c.l.b16 %v1305
        %v1322 = vpack.c.b16 %v1315, %v1314
        %v1323 = vpack.c.b16 %v1317, %v1316
        %v1324 = vpack.c.b16 %v1319, %v1318
        %v1325 = vpack.c.b16 %v1321, %v1320
        %vm1330 = vcmask 523264
        %v1332 = vsel %vm1330, %v1282, 0
        %v1335 = vsel %vm1330, %v1283, 0
        %v1338 = vsel %vm1330, %v1284, 0
        %v1341 = vsel %vm1330, %v1285, 0
        %v1344 = vsel %vm1330, %v1286, 0
        %v1347 = vsel %vm1330, %v1287, 0
        %v1350 = vsel %vm1330, %v1288, 0
        %v1353 = vsel %vm1330, %v1289, 0
        %1355 = vmatprep.subr.bf16.mxu0 0
        %1356 = vmatpush1.bf16.msra.mxu0 %v1322
        %1357 = vmatprep.subr.bf16.mxu0 0
        %1358 = vmatpush1.bf16.msra.mxu0 %v1323
        %1359 = vmatprep.subr.bf16.mxu0 0
        %1360 = vmatpush1.bf16.msra.mxu0 %v1324
        %1361 = vmatprep.subr.bf16.mxu0 0
        %1362 = vmatpush1.bf16.msra.mxu0 %v1325
        %1363 = vmatprep.subr.bf16.mxu0 0
        %1364 = vmatpush1.bf16.msra.mxu0 0
        %1365 = vmatprep.subr.bf16.mxu0 0
        %1366 = vmatpush1.bf16.msra.mxu0 0
        %1367 = vmatprep.subr.bf16.mxu0 0
        %1368 = vmatpush1.bf16.msra.mxu0 0
        %1369 = vmatprep.subr.bf16.mxu0 0
        %1370 = vmatpush1.bf16.msra.mxu0 0
        %1371 = vmatprep.subr.bf16.mxu0 0
        %1372 = vmatpush1.bf16.msra.mxu0 0
        %1373 = vmatprep.subr.bf16.mxu0 0
        %1374 = vmatpush1.bf16.msra.mxu0 0
        %1375 = vmatprep.subr.bf16.mxu0 0
        %1376 = vmatpush1.bf16.msra.mxu0 0
        %1377 = vmatprep.subr.bf16.mxu0 0
        %1378 = vmatpush1.bf16.msra.mxu0 0
        %1379 = vmatprep.subr.bf16.mxu0 0
        %1380 = vmatpush1.bf16.msra.mxu0 0
        %1381 = vmatprep.subr.bf16.mxu0 0
        %1382 = vmatpush1.bf16.msra.mxu0 0
        %1383 = vmatprep.subr.bf16.mxu0 0
        %1384 = vmatpush1.bf16.msra.mxu0 0
        %1385 = vmatprep.subr.bf16.mxu0 0
        %1386 = vmatpush1.bf16.msra.mxu0 0
        %1387 = vmatprep.mubr.bf16.mxu0 0
        %1388 = vmatmul.mubr.bf16.gmra.mrb[0].mxu0 %v1332
        %v1389 = vpop.f32.mrb[0].mxu0
        %v1390 = vadd.f32 0.0, %v1389
        %v1391 = vpop.f32.mrb[0].mxu0
        %v1392 = vpop.f32.mrb[0].mxu0
        %v1393 = vadd.f32 0.0, %v1392
        %v1394 = vpop.f32.mrb[0].mxu0
        %1395 = vmatprep.mubr.bf16.mxu0 0
        %1396 = vmatmul.mubr.bf16.gmra.mrb[0].mxu0 %v1335
        %v1397 = vpop.f32.mrb[0].mxu0
        %v1398 = vadd.f32 0.0, %v1397
        %v1399 = vpop.f32.mrb[0].mxu0
        %v1400 = vpop.f32.mrb[0].mxu0
        %v1401 = vadd.f32 0.0, %v1400
        %v1402 = vpop.f32.mrb[0].mxu0
        %1403 = vmatprep.mubr.bf16.mxu0 0
        %1404 = vmatmul.mubr.bf16.gmra.mrb[0].mxu0 %v1338
        %v1405 = vpop.f32.mrb[0].mxu0
        %v1406 = vadd.f32 0.0, %v1405
        %v1407 = vpop.f32.mrb[0].mxu0
        %v1408 = vpop.f32.mrb[0].mxu0
        %v1409 = vadd.f32 0.0, %v1408
        %v1410 = vpop.f32.mrb[0].mxu0
        %1411 = vmatprep.mubr.bf16.mxu0 0
        %1412 = vmatmul.mubr.bf16.gmra.mrb[0].mxu0 %v1341
        %v1413 = vpop.f32.mrb[0].mxu0
        %v1414 = vadd.f32 0.0, %v1413
        %v1415 = vpop.f32.mrb[0].mxu0
        %v1416 = vpop.f32.mrb[0].mxu0
        %v1417 = vadd.f32 0.0, %v1416
        %v1418 = vpop.f32.mrb[0].mxu0
        %1419 = vmatprep.mubr.bf16.mxu0 0
        %1420 = vmatmul.mubr.bf16.gmra.mrb[0].mxu0 %v1344
        %v1421 = vpop.f32.mrb[0].mxu0
        %v1422 = vadd.f32 0.0, %v1421
        %v1423 = vpop.f32.mrb[0].mxu0
        %v1424 = vpop.f32.mrb[0].mxu0
        %v1425 = vadd.f32 0.0, %v1424
        %v1426 = vpop.f32.mrb[0].mxu0
        %1427 = vmatprep.mubr.bf16.mxu0 0
        %1428 = vmatmul.mubr.bf16.gmra.mrb[0].mxu0 %v1347
        %v1429 = vpop.f32.mrb[0].mxu0
        %v1430 = vadd.f32 0.0, %v1429
        %v1431 = vpop.f32.mrb[0].mxu0
        %v1432 = vpop.f32.mrb[0].mxu0
        %v1433 = vadd.f32 0.0, %v1432
        %v1434 = vpop.f32.mrb[0].mxu0
        %1435 = vmatprep.mubr.bf16.mxu0 0
        %1436 = vmatmul.mubr.bf16.gmra.mrb[0].mxu0 %v1350
        %v1437 = vpop.f32.mrb[0].mxu0
        %v1438 = vadd.f32 0.0, %v1437
        %v1439 = vpop.f32.mrb[0].mxu0
        %v1440 = vpop.f32.mrb[0].mxu0
        %v1441 = vadd.f32 0.0, %v1440
        %v1442 = vpop.f32.mrb[0].mxu0
        %1443 = vmatprep.mubr.bf16.mxu0 0
        %1444 = vmatmul.mubr.bf16.gmra.mrb[0].mxu0 %v1353
        %v1445 = vpop.f32.mrb[0].mxu0
        %v1446 = vadd.f32 0.0, %v1445
        %v1447 = vpop.f32.mrb[0].mxu0
        %v1448 = vpop.f32.mrb[0].mxu0
        %v1449 = vadd.f32 0.0, %v1448
        %v1450 = vpop.f32.mrb[0].mxu0
        %1451 = vdwg.mxu0
        %v1452 = vpack.c.bf16 %v1393, %v1390
        %v1453 = vpack.c.bf16 %v1401, %v1398
        %v1454 = vpack.c.bf16 %v1409, %v1406
        %v1455 = vpack.c.bf16 %v1417, %v1414
        %v1456 = vpack.c.bf16 %v1425, %v1422
        %v1457 = vpack.c.bf16 %v1433, %v1430
        %v1458 = vpack.c.bf16 %v1441, %v1438
        %v1459 = vpack.c.bf16 %v1449, %v1446
        %v1460 = vld [vmem:[#allocation7] sm:$0xf]
        %v1461 = vld [vmem:[#allocation7 + $0x4] sm:$0xf]
        %v1462 = vld [vmem:[#allocation7 + $0x8] sm:$0xf]
        %v1463 = vld [vmem:[#allocation7 + $0xc] sm:$0xf]
        %v1464 = vld [vmem:[#allocation7 + $0x10] sm:$0xf]
        %v1465 = vld [vmem:[#allocation7 + $0x14] sm:$0xf]
        %v1466 = vld [vmem:[#allocation7 + $0x18] sm:$0xf]
        %v1467 = vld [vmem:[#allocation7 + $0x1c] sm:$0xf]
        %v1476 = vunpack.c.l.b16 %v1460
        %v1477 = vunpack.c.l.b16 %v1461
        %v1478 = vunpack.c.l.b16 %v1462
        %v1479 = vunpack.c.l.b16 %v1463
        %v1480 = vunpack.c.l.b16 %v1464
        %v1481 = vunpack.c.l.b16 %v1465
        %v1482 = vunpack.c.l.b16 %v1466
        %v1483 = vunpack.c.l.b16 %v1467
        %v1484 = vpack.c.b16 %v1477, %v1476
        %v1485 = vpack.c.b16 %v1479, %v1478
        %v1486 = vpack.c.b16 %v1481, %v1480
        %v1487 = vpack.c.b16 %v1483, %v1482
        %1492 = vmatprep.subr.bf16.mxu0 0
        %1493 = vmatpush1.bf16.msra.mxu0 %v1484
        %1494 = vmatprep.subr.bf16.mxu0 0
        %1495 = vmatpush1.bf16.msra.mxu0 %v1485
        %1496 = vmatprep.subr.bf16.mxu0 0
        %1497 = vmatpush1.bf16.msra.mxu0 %v1486
        %1498 = vmatprep.subr.bf16.mxu0 0
        %1499 = vmatpush1.bf16.msra.mxu0 %v1487
        %1500 = vmatprep.subr.bf16.mxu0 0
        %1501 = vmatpush1.bf16.msra.mxu0 0
        %1502 = vmatprep.subr.bf16.mxu0 0
        %1503 = vmatpush1.bf16.msra.mxu0 0
        %1504 = vmatprep.subr.bf16.mxu0 0
        %1505 = vmatpush1.bf16.msra.mxu0 0
        %1506 = vmatprep.subr.bf16.mxu0 0
        %1507 = vmatpush1.bf16.msra.mxu0 0
        %1508 = vmatprep.subr.bf16.mxu0 0
        %1509 = vmatpush1.bf16.msra.mxu0 0
        %1510 = vmatprep.subr.bf16.mxu0 0
        %1511 = vmatpush1.bf16.msra.mxu0 0
        %1512 = vmatprep.subr.bf16.mxu0 0
        %1513 = vmatpush1.bf16.msra.mxu0 0
        %1514 = vmatprep.subr.bf16.mxu0 0
        %1515 = vmatpush1.bf16.msra.mxu0 0
        %1516 = vmatprep.subr.bf16.mxu0 0
        %1517 = vmatpush1.bf16.msra.mxu0 0
        %1518 = vmatprep.subr.bf16.mxu0 0
        %1519 = vmatpush1.bf16.msra.mxu0 0
        %1520 = vmatprep.subr.bf16.mxu0 0
        %1521 = vmatpush1.bf16.msra.mxu0 0
        %1522 = vmatprep.subr.bf16.mxu0 0
        %1523 = vmatpush1.bf16.msra.mxu0 0
        %1524 = vmatprep.mubr.bf16.mxu0 0
        %1525 = vmatmul.mubr.bf16.gmra.mrb[0].mxu0 %v1332
        %v1526 = vpop.f32.mrb[0].mxu0
        %v1527 = vadd.f32 0.0, %v1526
        %v1528 = vpop.f32.mrb[0].mxu0
        %v1529 = vpop.f32.mrb[0].mxu0
        %v1530 = vadd.f32 0.0, %v1529
        %v1531 = vpop.f32.mrb[0].mxu0
        %1532 = vmatprep.mubr.bf16.mxu0 0
        %1533 = vmatmul.mubr.bf16.gmra.mrb[0].mxu0 %v1335
        %v1534 = vpop.f32.mrb[0].mxu0
        %v1535 = vadd.f32 0.0, %v1534
        %v1536 = vpop.f32.mrb[0].mxu0
        %v1537 = vpop.f32.mrb[0].mxu0
        %v1538 = vadd.f32 0.0, %v1537
        %v1539 = vpop.f32.mrb[0].mxu0
        %1540 = vmatprep.mubr.bf16.mxu0 0
        %1541 = vmatmul.mubr.bf16.gmra.mrb[0].mxu0 %v1338
        %v1542 = vpop.f32.mrb[0].mxu0
        %v1543 = vadd.f32 0.0, %v1542
        %v1544 = vpop.f32.mrb[0].mxu0
        %v1545 = vpop.f32.mrb[0].mxu0
        %v1546 = vadd.f32 0.0, %v1545
        %v1547 = vpop.f32.mrb[0].mxu0
        %1548 = vmatprep.mubr.bf16.mxu0 0
        %1549 = vmatmul.mubr.bf16.gmra.mrb[0].mxu0 %v1341
        %v1550 = vpop.f32.mrb[0].mxu0
        %v1551 = vadd.f32 0.0, %v1550
        %v1552 = vpop.f32.mrb[0].mxu0
        %v1553 = vpop.f32.mrb[0].mxu0
        %v1554 = vadd.f32 0.0, %v1553
        %v1555 = vpop.f32.mrb[0].mxu0
        %1556 = vmatprep.mubr.bf16.mxu0 0
        %1557 = vmatmul.mubr.bf16.gmra.mrb[0].mxu0 %v1344
        %v1558 = vpop.f32.mrb[0].mxu0
        %v1559 = vadd.f32 0.0, %v1558
        %v1560 = vpop.f32.mrb[0].mxu0
        %v1561 = vpop.f32.mrb[0].mxu0
        %v1562 = vadd.f32 0.0, %v1561
        %v1563 = vpop.f32.mrb[0].mxu0
        %1564 = vmatprep.mubr.bf16.mxu0 0
        %1565 = vmatmul.mubr.bf16.gmra.mrb[0].mxu0 %v1347
        %v1566 = vpop.f32.mrb[0].mxu0
        %v1567 = vadd.f32 0.0, %v1566
        %v1568 = vpop.f32.mrb[0].mxu0
        %v1569 = vpop.f32.mrb[0].mxu0
        %v1570 = vadd.f32 0.0, %v1569
        %v1571 = vpop.f32.mrb[0].mxu0
        %1572 = vmatprep.mubr.bf16.mxu0 0
        %1573 = vmatmul.mubr.bf16.gmra.mrb[0].mxu0 %v1350
        %v1574 = vpop.f32.mrb[0].mxu0
        %v1575 = vadd.f32 0.0, %v1574
        %v1576 = vpop.f32.mrb[0].mxu0
        %v1577 = vpop.f32.mrb[0].mxu0
        %v1578 = vadd.f32 0.0, %v1577
        %v1579 = vpop.f32.mrb[0].mxu0
        %1580 = vmatprep.mubr.bf16.mxu0 0
        %1581 = vmatmul.mubr.bf16.gmra.mrb[0].mxu0 %v1353
        %v1582 = vpop.f32.mrb[0].mxu0
        %v1583 = vadd.f32 0.0, %v1582
        %v1584 = vpop.f32.mrb[0].mxu0
        %v1585 = vpop.f32.mrb[0].mxu0
        %v1586 = vadd.f32 0.0, %v1585
        %v1587 = vpop.f32.mrb[0].mxu0
        %1588 = vdwg.mxu0
        %v1589 = vpack.c.bf16 %v1530, %v1527
        %v1590 = vpack.c.bf16 %v1538, %v1535
        %v1591 = vpack.c.bf16 %v1546, %v1543
        %v1592 = vpack.c.bf16 %v1554, %v1551
        %v1593 = vpack.c.bf16 %v1562, %v1559
        %v1594 = vpack.c.bf16 %v1570, %v1567
        %v1595 = vpack.c.bf16 %v1578, %v1575
        %v1596 = vpack.c.bf16 %v1586, %v1583
        %v1597 = vld [vmem:[#allocation8] sm:$0xf]
        %v1598 = vld [vmem:[#allocation8 + $0x4] sm:$0xf]
        %v1599 = vld [vmem:[#allocation8 + $0x8] sm:$0xf]
        %v1600 = vld [vmem:[#allocation8 + $0xc] sm:$0xf]
        %v1601 = vld [vmem:[#allocation8 + $0x10] sm:$0xf]
        %v1602 = vld [vmem:[#allocation8 + $0x14] sm:$0xf]
        %v1603 = vld [vmem:[#allocation8 + $0x18] sm:$0xf]
        %v1604 = vld [vmem:[#allocation8 + $0x1c] sm:$0xf]
        %v1613 = vunpack.c.l.b16 %v1597
        %v1614 = vunpack.c.l.b16 %v1598
        %v1615 = vunpack.c.l.b16 %v1599
        %v1616 = vunpack.c.l.b16 %v1600
        %v1617 = vunpack.c.l.b16 %v1601
        %v1618 = vunpack.c.l.b16 %v1602
        %v1619 = vunpack.c.l.b16 %v1603
        %v1620 = vunpack.c.l.b16 %v1604
        %v1621 = vpack.c.b16 %v1614, %v1613
        %v1622 = vpack.c.b16 %v1616, %v1615
        %v1623 = vpack.c.b16 %v1618, %v1617
        %v1624 = vpack.c.b16 %v1620, %v1619
        %1629 = vmatprep.subr.bf16.mxu0 0
        %1630 = vmatpush1.bf16.msra.mxu0 %v1621
        %1631 = vmatprep.subr.bf16.mxu0 0
        %1632 = vmatpush1.bf16.msra.mxu0 %v1622
        %1633 = vmatprep.subr.bf16.mxu0 0
        %1634 = vmatpush1.bf16.msra.mxu0 %v1623
        %1635 = vmatprep.subr.bf16.mxu0 0
        %1636 = vmatpush1.bf16.msra.mxu0 %v1624
        %1637 = vmatprep.subr.bf16.mxu0 0
        %1638 = vmatpush1.bf16.msra.mxu0 0
        %1639 = vmatprep.subr.bf16.mxu0 0
        %1640 = vmatpush1.bf16.msra.mxu0 0
        %1641 = vmatprep.subr.bf16.mxu0 0
        %1642 = vmatpush1.bf16.msra.mxu0 0
        %1643 = vmatprep.subr.bf16.mxu0 0
        %1644 = vmatpush1.bf16.msra.mxu0 0
        %1645 = vmatprep.subr.bf16.mxu0 0
        %1646 = vmatpush1.bf16.msra.mxu0 0
        %1647 = vmatprep.subr.bf16.mxu0 0
        %1648 = vmatpush1.bf16.msra.mxu0 0
        %1649 = vmatprep.subr.bf16.mxu0 0
        %1650 = vmatpush1.bf16.msra.mxu0 0
        %1651 = vmatprep.subr.bf16.mxu0 0
        %1652 = vmatpush1.bf16.msra.mxu0 0
        %1653 = vmatprep.subr.bf16.mxu0 0
        %1654 = vmatpush1.bf16.msra.mxu0 0
        %1655 = vmatprep.subr.bf16.mxu0 0
        %1656 = vmatpush1.bf16.msra.mxu0 0
        %1657 = vmatprep.subr.bf16.mxu0 0
        %1658 = vmatpush1.bf16.msra.mxu0 0
        %1659 = vmatprep.subr.bf16.mxu0 0
        %1660 = vmatpush1.bf16.msra.mxu0 0
        %1661 = vmatprep.mubr.bf16.mxu0 0
        %1662 = vmatmul.mubr.bf16.gmra.mrb[0].mxu0 %v1332
        %v1663 = vpop.f32.mrb[0].mxu0
        %v1664 = vadd.f32 0.0, %v1663
        %v1665 = vpop.f32.mrb[0].mxu0
        %v1666 = vpop.f32.mrb[0].mxu0
        %v1667 = vadd.f32 0.0, %v1666
        %v1668 = vpop.f32.mrb[0].mxu0
        %1669 = vmatprep.mubr.bf16.mxu0 0
        %1670 = vmatmul.mubr.bf16.gmra.mrb[0].mxu0 %v1335
        %v1671 = vpop.f32.mrb[0].mxu0
        %v1672 = vadd.f32 0.0, %v1671
        %v1673 = vpop.f32.mrb[0].mxu0
        %v1674 = vpop.f32.mrb[0].mxu0
        %v1675 = vadd.f32 0.0, %v1674
        %v1676 = vpop.f32.mrb[0].mxu0
        %1677 = vmatprep.mubr.bf16.mxu0 0
        %1678 = vmatmul.mubr.bf16.gmra.mrb[0].mxu0 %v1338
        %v1679 = vpop.f32.mrb[0].mxu0
        %v1680 = vadd.f32 0.0, %v1679
        %v1681 = vpop.f32.mrb[0].mxu0
        %v1682 = vpop.f32.mrb[0].mxu0
        %v1683 = vadd.f32 0.0, %v1682
        %v1684 = vpop.f32.mrb[0].mxu0
        %1685 = vmatprep.mubr.bf16.mxu0 0
        %1686 = vmatmul.mubr.bf16.gmra.mrb[0].mxu0 %v1341
        %v1687 = vpop.f32.mrb[0].mxu0
        %v1688 = vadd.f32 0.0, %v1687
        %v1689 = vpop.f32.mrb[0].mxu0
        %v1690 = vpop.f32.mrb[0].mxu0
        %v1691 = vadd.f32 0.0, %v1690
        %v1692 = vpop.f32.mrb[0].mxu0
        %1693 = vmatprep.mubr.bf16.mxu0 0
        %1694 = vmatmul.mubr.bf16.gmra.mrb[0].mxu0 %v1344
        %v1695 = vpop.f32.mrb[0].mxu0
        %v1696 = vadd.f32 0.0, %v1695
        %v1697 = vpop.f32.mrb[0].mxu0
        %v1698 = vpop.f32.mrb[0].mxu0
        %v1699 = vadd.f32 0.0, %v1698
        %v1700 = vpop.f32.mrb[0].mxu0
        %1701 = vmatprep.mubr.bf16.mxu0 0
        %1702 = vmatmul.mubr.bf16.gmra.mrb[0].mxu0 %v1347
        %v1703 = vpop.f32.mrb[0].mxu0
        %v1704 = vadd.f32 0.0, %v1703
        %v1705 = vpop.f32.mrb[0].mxu0
        %v1706 = vpop.f32.mrb[0].mxu0
        %v1707 = vadd.f32 0.0, %v1706
        %v1708 = vpop.f32.mrb[0].mxu0
        %1709 = vmatprep.mubr.bf16.mxu0 0
        %1710 = vmatmul.mubr.bf16.gmra.mrb[0].mxu0 %v1350
        %v1711 = vpop.f32.mrb[0].mxu0
        %v1712 = vadd.f32 0.0, %v1711
        %v1713 = vpop.f32.mrb[0].mxu0
        %v1714 = vpop.f32.mrb[0].mxu0
        %v1715 = vadd.f32 0.0, %v1714
        %v1716 = vpop.f32.mrb[0].mxu0
        %1717 = vmatprep.mubr.bf16.mxu0 0
        %1718 = vmatmul.mubr.bf16.gmra.mrb[0].mxu0 %v1353
        %v1719 = vpop.f32.mrb[0].mxu0
        %v1720 = vadd.f32 0.0, %v1719
        %v1721 = vpop.f32.mrb[0].mxu0
        %v1722 = vpop.f32.mrb[0].mxu0
        %v1723 = vadd.f32 0.0, %v1722
        %v1724 = vpop.f32.mrb[0].mxu0
        %1725 = vdwg.mxu0
        %v1726 = vpack.c.bf16 %v1667, %v1664
        %v1727 = vpack.c.bf16 %v1675, %v1672
        %v1728 = vpack.c.bf16 %v1683, %v1680
        %v1729 = vpack.c.bf16 %v1691, %v1688
        %v1730 = vpack.c.bf16 %v1699, %v1696
        %v1731 = vpack.c.bf16 %v1707, %v1704
        %v1732 = vpack.c.bf16 %v1715, %v1712
        %v1733 = vpack.c.bf16 %v1723, %v1720
        %vm1734 = vcmask 130048
        %v1736 = vsel %vm1734, %v1452, 0
        %v1739 = vsel %vm1734, %v1453, 0
        %v1742 = vsel %vm1734, %v1454, 0
        %v1745 = vsel %vm1734, %v1455, 0
        %v1748 = vsel %vm1734, %v1456, 0
        %v1751 = vsel %vm1734, %v1457, 0
        %v1754 = vsel %vm1734, %v1458, 0
        %v1757 = vsel %vm1734, %v1459, 0
        %v1760 = vsel %vm1734, %v1589, 0
        %v1763 = vsel %vm1734, %v1590, 0
        %v1766 = vsel %vm1734, %v1591, 0
        %v1769 = vsel %vm1734, %v1592, 0
        %v1772 = vsel %vm1734, %v1593, 0
        %v1775 = vsel %vm1734, %v1594, 0
        %v1778 = vsel %vm1734, %v1595, 0
        %v1781 = vsel %vm1734, %v1596, 0
        %1783 = vmatprep.subr.bf16.mxu0 0
        %1784 = vmatpush1.bf16.xpose.msra.mxu0 %v1760
        %1785 = vmatprep.subr.bf16.mxu0 0
        %1786 = vmatpush1.bf16.xpose.msra.mxu0 %v1763
        %1787 = vmatprep.subr.bf16.mxu0 0
        %1788 = vmatpush1.bf16.xpose.msra.mxu0 %v1766
        %1789 = vmatprep.subr.bf16.mxu0 0
        %1790 = vmatpush1.bf16.xpose.msra.mxu0 %v1769
        %1791 = vmatprep.subr.bf16.mxu0 0
        %1792 = vmatpush1.bf16.xpose.msra.mxu0 %v1772
        %1793 = vmatprep.subr.bf16.mxu0 0
        %1794 = vmatpush1.bf16.xpose.msra.mxu0 %v1775
        %1795 = vmatprep.subr.bf16.mxu0 0
        %1796 = vmatpush1.bf16.xpose.msra.mxu0 %v1778
        %1797 = vmatprep.subr.bf16.mxu0 0
        %1798 = vmatpush1.bf16.xpose.msra.mxu0 %v1781
        %1799 = vmatprep.subr.bf16.mxu0 0
        %1800 = vmatpush1.bf16.xpose.msra.mxu0 0
        %1801 = vmatprep.subr.bf16.mxu0 0
        %1802 = vmatpush1.bf16.xpose.msra.mxu0 0
        %1803 = vmatprep.subr.bf16.mxu0 0
        %1804 = vmatpush1.bf16.xpose.msra.mxu0 0
        %1805 = vmatprep.subr.bf16.mxu0 0
        %1806 = vmatpush1.bf16.xpose.msra.mxu0 0
        %1807 = vmatprep.subr.bf16.mxu0 0
        %1808 = vmatpush1.bf16.xpose.msra.mxu0 0
        %1809 = vmatprep.subr.bf16.mxu0 0
        %1810 = vmatpush1.bf16.xpose.msra.mxu0 0
        %1811 = vmatprep.subr.bf16.mxu0 0
        %1812 = vmatpush1.bf16.xpose.msra.mxu0 0
        %1813 = vmatprep.subr.bf16.mxu0 0
        %1814 = vmatpush1.bf16.xpose.msra.mxu0 0
        %1815 = vmatprep.mubr.bf16.mxu0 0
        %1816 = vmatmul.mubr.bf16.gmra.mrb[0].mxu0 %v1736
        %v1817 = vpop.f32.mrb[0].mxu0
        %v1818 = vadd.f32 %v960, %v1817
        %v1819 = vpop.f32.mrb[0].mxu0
        %v1820 = vpop.f32.mrb[0].mxu0
        %v1821 = vadd.f32 %v961, %v1820
        %v1822 = vpop.f32.mrb[0].mxu0
        %1823 = vmatprep.mubr.bf16.mxu0 0
        %1824 = vmatmul.mubr.bf16.gmra.mrb[0].mxu0 %v1739
        %v1825 = vpop.f32.mrb[0].mxu0
        %v1826 = vadd.f32 %v962, %v1825
        %v1827 = vpop.f32.mrb[0].mxu0
        %v1828 = vpop.f32.mrb[0].mxu0
        %v1829 = vadd.f32 %v963, %v1828
        %v1830 = vpop.f32.mrb[0].mxu0
        %1831 = vmatprep.mubr.bf16.mxu0 0
        %1832 = vmatmul.mubr.bf16.gmra.mrb[0].mxu0 %v1742
        %v1833 = vpop.f32.mrb[0].mxu0
        %v1834 = vadd.f32 %v964, %v1833
        %v1835 = vpop.f32.mrb[0].mxu0
        %v1836 = vpop.f32.mrb[0].mxu0
        %v1837 = vadd.f32 %v965, %v1836
        %v1838 = vpop.f32.mrb[0].mxu0
        %1839 = vmatprep.mubr.bf16.mxu0 0
        %1840 = vmatmul.mubr.bf16.gmra.mrb[0].mxu0 %v1745
        %v1841 = vpop.f32.mrb[0].mxu0
        %v1842 = vadd.f32 %v966, %v1841
        %v1843 = vpop.f32.mrb[0].mxu0
        %v1844 = vpop.f32.mrb[0].mxu0
        %v1845 = vadd.f32 %v967, %v1844
        %v1846 = vpop.f32.mrb[0].mxu0
        %1847 = vmatprep.mubr.bf16.mxu0 0
        %1848 = vmatmul.mubr.bf16.gmra.mrb[0].mxu0 %v1748
        %v1849 = vpop.f32.mrb[0].mxu0
        %v1850 = vadd.f32 %v968, %v1849
        %v1851 = vpop.f32.mrb[0].mxu0
        %v1852 = vpop.f32.mrb[0].mxu0
        %v1853 = vadd.f32 %v969, %v1852
        %v1854 = vpop.f32.mrb[0].mxu0
        %1855 = vmatprep.mubr.bf16.mxu0 0
        %1856 = vmatmul.mubr.bf16.gmra.mrb[0].mxu0 %v1751
        %v1857 = vpop.f32.mrb[0].mxu0
        %v1858 = vadd.f32 %v970, %v1857
        %v1859 = vpop.f32.mrb[0].mxu0
        %v1860 = vpop.f32.mrb[0].mxu0
        %v1861 = vadd.f32 %v971, %v1860
        %v1862 = vpop.f32.mrb[0].mxu0
        %1863 = vmatprep.mubr.bf16.mxu0 0
        %1864 = vmatmul.mubr.bf16.gmra.mrb[0].mxu0 %v1754
        %v1865 = vpop.f32.mrb[0].mxu0
        %v1866 = vadd.f32 %v972, %v1865
        %v1867 = vpop.f32.mrb[0].mxu0
        %v1868 = vpop.f32.mrb[0].mxu0
        %v1869 = vadd.f32 %v973, %v1868
        %v1870 = vpop.f32.mrb[0].mxu0
        %1871 = vmatprep.mubr.bf16.mxu0 0
        %1872 = vmatmul.mubr.bf16.gmra.mrb[0].mxu0 %v1757
        %v1873 = vpop.f32.mrb[0].mxu0
        %v1874 = vadd.f32 %v974, %v1873
        %v1875 = vpop.f32.mrb[0].mxu0
        %v1876 = vpop.f32.mrb[0].mxu0
        %v1877 = vadd.f32 %v975, %v1876
        %v1878 = vpop.f32.mrb[0].mxu0
        %1879 = vdwg.mxu0
        %1880 = vmax.xlane.f32.xlu0 %v1818
        %v1881 = vpop.xlane.xlu0 %1880
        %1882 = vmax.xlane.f32.xlu0 %v1821
        %v1883 = vpop.xlane.xlu0 %1882
        %1884 = vmax.xlane.f32.xlu0 %v1826
        %v1885 = vpop.xlane.xlu0 %1884
        %1886 = vmax.xlane.f32.xlu0 %v1829
        %v1887 = vpop.xlane.xlu0 %1886
        %1888 = vmax.xlane.f32.xlu0 %v1834
        %v1889 = vpop.xlane.xlu0 %1888
        %1890 = vmax.xlane.f32.xlu0 %v1837
        %v1891 = vpop.xlane.xlu0 %1890
        %1892 = vmax.xlane.f32.xlu0 %v1842
        %v1893 = vpop.xlane.xlu0 %1892
        %1894 = vmax.xlane.f32.xlu0 %v1845
        %v1895 = vpop.xlane.xlu0 %1894
        %1896 = vmax.xlane.f32.xlu0 %v1850
        %v1897 = vpop.xlane.xlu0 %1896
        %1898 = vmax.xlane.f32.xlu0 %v1853
        %v1899 = vpop.xlane.xlu0 %1898
        %1900 = vmax.xlane.f32.xlu0 %v1858
        %v1901 = vpop.xlane.xlu0 %1900
        %1902 = vmax.xlane.f32.xlu0 %v1861
        %v1903 = vpop.xlane.xlu0 %1902
        %1904 = vmax.xlane.f32.xlu0 %v1866
        %v1905 = vpop.xlane.xlu0 %1904
        %1906 = vmax.xlane.f32.xlu0 %v1869
        %v1907 = vpop.xlane.xlu0 %1906
        %1908 = vmax.xlane.f32.xlu0 %v1874
        %v1909 = vpop.xlane.xlu0 %1908
        %1910 = vmax.xlane.f32.xlu0 %v1877
        %v1911 = vpop.xlane.xlu0 %1910
        %v1912 = vsub.f32 %v1818, %v1881
        %v1913 = vsub.f32 %v1821, %v1883
        %v1914 = vsub.f32 %v1826, %v1885
        %v1915 = vsub.f32 %v1829, %v1887
        %v1916 = vsub.f32 %v1834, %v1889
        %v1917 = vsub.f32 %v1837, %v1891
        %v1918 = vsub.f32 %v1842, %v1893
        %v1919 = vsub.f32 %v1845, %v1895
        %v1920 = vsub.f32 %v1850, %v1897
        %v1921 = vsub.f32 %v1853, %v1899
        %v1922 = vsub.f32 %v1858, %v1901
        %v1923 = vsub.f32 %v1861, %v1903
        %v1924 = vsub.f32 %v1866, %v1905
        %v1925 = vsub.f32 %v1869, %v1907
        %v1926 = vsub.f32 %v1874, %v1909
        %v1927 = vsub.f32 %v1877, %v1911
        %v1928 = vmul.f32 %v1912, 1.442695
        %v1929 = vpow.pop %v1928
        %v1930 = vmul.f32 %v1913, 1.442695
        %v1931 = vpow.pop %v1930
        %v1932 = vmul.f32 %v1914, 1.442695
        %v1933 = vpow.pop %v1932
        %v1934 = vmul.f32 %v1915, 1.442695
        %v1935 = vpow.pop %v1934
        %v1936 = vmul.f32 %v1916, 1.442695
        %v1937 = vpow.pop %v1936
        %v1938 = vmul.f32 %v1917, 1.442695
        %v1939 = vpow.pop %v1938
        %v1940 = vmul.f32 %v1918, 1.442695
        %v1941 = vpow.pop %v1940
        %v1942 = vmul.f32 %v1919, 1.442695
        %v1943 = vpow.pop %v1942
        %v1944 = vmul.f32 %v1920, 1.442695
        %v1945 = vpow.pop %v1944
        %v1946 = vmul.f32 %v1921, 1.442695
        %v1947 = vpow.pop %v1946
        %v1948 = vmul.f32 %v1922, 1.442695
        %v1949 = vpow.pop %v1948
        %v1950 = vmul.f32 %v1923, 1.442695
        %v1951 = vpow.pop %v1950
        %v1952 = vmul.f32 %v1924, 1.442695
        %v1953 = vpow.pop %v1952
        %v1954 = vmul.f32 %v1925, 1.442695
        %v1955 = vpow.pop %v1954
        %v1956 = vmul.f32 %v1926, 1.442695
        %v1957 = vpow.pop %v1956
        %v1958 = vmul.f32 %v1927, 1.442695
        %v1959 = vpow.pop %v1958
        %1960 = vadd.xlane.f32.xlu0 %v1929
        %v1961 = vpop.xlane.xlu0 %1960
        %1962 = vadd.xlane.f32.xlu0 %v1931
        %v1963 = vpop.xlane.xlu0 %1962
        %1964 = vadd.xlane.f32.xlu0 %v1933
        %v1965 = vpop.xlane.xlu0 %1964
        %1966 = vadd.xlane.f32.xlu0 %v1935
        %v1967 = vpop.xlane.xlu0 %1966
        %1968 = vadd.xlane.f32.xlu0 %v1937
        %v1969 = vpop.xlane.xlu0 %1968
        %1970 = vadd.xlane.f32.xlu0 %v1939
        %v1971 = vpop.xlane.xlu0 %1970
        %1972 = vadd.xlane.f32.xlu0 %v1941
        %v1973 = vpop.xlane.xlu0 %1972
        %1974 = vadd.xlane.f32.xlu0 %v1943
        %v1975 = vpop.xlane.xlu0 %1974
        %1976 = vadd.xlane.f32.xlu0 %v1945
        %v1977 = vpop.xlane.xlu0 %1976
        %1978 = vadd.xlane.f32.xlu0 %v1947
        %v1979 = vpop.xlane.xlu0 %1978
        %1980 = vadd.xlane.f32.xlu0 %v1949
        %v1981 = vpop.xlane.xlu0 %1980
        %1982 = vadd.xlane.f32.xlu0 %v1951
        %v1983 = vpop.xlane.xlu0 %1982
        %1984 = vadd.xlane.f32.xlu0 %v1953
        %v1985 = vpop.xlane.xlu0 %1984
        %1986 = vadd.xlane.f32.xlu0 %v1955
        %v1987 = vpop.xlane.xlu0 %1986
        %1988 = vadd.xlane.f32.xlu0 %v1957
        %v1989 = vpop.xlane.xlu0 %1988
        %1990 = vadd.xlane.f32.xlu0 %v1959
        %v1991 = vpop.xlane.xlu0 %1990
        %v1992 = vrcp.pop %v1961
        %v1993 = vmul.f32 %v1010, %v1992
        %v1994 = vrcp.pop %v1963
        %v1995 = vmul.f32 %v1013, %v1994
        %v1996 = vrcp.pop %v1965
        %v1997 = vmul.f32 %v1016, %v1996
        %v1998 = vrcp.pop %v1967
        %v1999 = vmul.f32 %v1019, %v1998
        %v2000 = vrcp.pop %v1969
        %v2001 = vmul.f32 %v1022, %v2000
        %v2002 = vrcp.pop %v1971
        %v2003 = vmul.f32 %v1025, %v2002
        %v2004 = vrcp.pop %v1973
        %v2005 = vmul.f32 %v1028, %v2004
        %v2006 = vrcp.pop %v1975
        %v2007 = vmul.f32 %v1031, %v2006
        %v2008 = vrcp.pop %v1977
        %v2009 = vmul.f32 %v1034, %v2008
        %v2010 = vrcp.pop %v1979
        %v2011 = vmul.f32 %v1037, %v2010
        %v2012 = vrcp.pop %v1981
        %v2013 = vmul.f32 %v1040, %v2012
        %v2014 = vrcp.pop %v1983
        %v2015 = vmul.f32 %v1043, %v2014
        %v2016 = vrcp.pop %v1985
        %v2017 = vmul.f32 %v1046, %v2016
        %v2018 = vrcp.pop %v1987
        %v2019 = vmul.f32 %v1049, %v2018
        %v2020 = vrcp.pop %v1989
        %v2021 = vmul.f32 %v1052, %v2020
        %v2022 = vrcp.pop %v1991
        %v2023 = vmul.f32 %v1055, %v2022
        %v2024 = vpack.c.bf16 %v1931, %v1929
        %v2025 = vpack.c.bf16 %v1935, %v1933
        %v2026 = vpack.c.bf16 %v1939, %v1937
        %v2027 = vpack.c.bf16 %v1943, %v1941
        %v2028 = vpack.c.bf16 %v1947, %v1945
        %v2029 = vpack.c.bf16 %v1951, %v1949
        %v2030 = vpack.c.bf16 %v1955, %v1953
        %v2031 = vpack.c.bf16 %v1959, %v1957
        %2032 = vmatprep.subr.bf16.mxu0 0
        %2033 = vmatpush1.bf16.msra.mxu0 %v1726
        %2034 = vmatprep.subr.bf16.mxu0 0
        %2035 = vmatpush1.bf16.msra.mxu0 %v1727
        %2036 = vmatprep.subr.bf16.mxu0 0
        %2037 = vmatpush1.bf16.msra.mxu0 %v1728
        %2038 = vmatprep.subr.bf16.mxu0 0
        %2039 = vmatpush1.bf16.msra.mxu0 %v1729
        %2040 = vmatprep.subr.bf16.mxu0 0
        %2041 = vmatpush1.bf16.msra.mxu0 %v1730
        %2042 = vmatprep.subr.bf16.mxu0 0
        %2043 = vmatpush1.bf16.msra.mxu0 %v1731
        %2044 = vmatprep.subr.bf16.mxu0 0
        %2045 = vmatpush1.bf16.msra.mxu0 %v1732
        %2046 = vmatprep.subr.bf16.mxu0 0
        %2047 = vmatpush1.bf16.msra.mxu0 %v1733
        %2048 = vmatprep.subr.bf16.mxu0 0
        %2049 = vmatpush1.bf16.msra.mxu0 0
        %2050 = vmatprep.subr.bf16.mxu0 0
        %2051 = vmatpush1.bf16.msra.mxu0 0
        %2052 = vmatprep.subr.bf16.mxu0 0
        %2053 = vmatpush1.bf16.msra.mxu0 0
        %2054 = vmatprep.subr.bf16.mxu0 0
        %2055 = vmatpush1.bf16.msra.mxu0 0
        %2056 = vmatprep.subr.bf16.mxu0 0
        %2057 = vmatpush1.bf16.msra.mxu0 0
        %2058 = vmatprep.subr.bf16.mxu0 0
        %2059 = vmatpush1.bf16.msra.mxu0 0
        %2060 = vmatprep.subr.bf16.mxu0 0
        %2061 = vmatpush1.bf16.msra.mxu0 0
        %2062 = vmatprep.subr.bf16.mxu0 0
        %2063 = vmatpush1.bf16.msra.mxu0 0
        %2064 = vmatprep.mubr.bf16.mxu0 0
        %2065 = vmatmul.mubr.bf16.gmra.mrb[0].mxu0 %v2024
        %v2066 = vpop.f32.mrb[0].mxu0
        %v2067 = vadd.f32 0.0, %v2066
        %v2068 = vpop.f32.mrb[0].mxu0
        %v2069 = vpop.f32.mrb[0].mxu0
        %v2070 = vadd.f32 0.0, %v2069
        %v2071 = vpop.f32.mrb[0].mxu0
        %2072 = vmatprep.mubr.bf16.mxu0 0
        %2073 = vmatmul.mubr.bf16.gmra.mrb[0].mxu0 %v2025
        %v2074 = vpop.f32.mrb[0].mxu0
        %v2075 = vadd.f32 0.0, %v2074
        %v2076 = vpop.f32.mrb[0].mxu0
        %v2077 = vpop.f32.mrb[0].mxu0
        %v2078 = vadd.f32 0.0, %v2077
        %v2079 = vpop.f32.mrb[0].mxu0
        %2080 = vmatprep.mubr.bf16.mxu0 0
        %2081 = vmatmul.mubr.bf16.gmra.mrb[0].mxu0 %v2026
        %v2082 = vpop.f32.mrb[0].mxu0
        %v2083 = vadd.f32 0.0, %v2082
        %v2084 = vpop.f32.mrb[0].mxu0
        %v2085 = vpop.f32.mrb[0].mxu0
        %v2086 = vadd.f32 0.0, %v2085
        %v2087 = vpop.f32.mrb[0].mxu0
        %2088 = vmatprep.mubr.bf16.mxu0 0
        %2089 = vmatmul.mubr.bf16.gmra.mrb[0].mxu0 %v2027
        %v2090 = vpop.f32.mrb[0].mxu0
        %v2091 = vadd.f32 0.0, %v2090
        %v2092 = vpop.f32.mrb[0].mxu0
        %v2093 = vpop.f32.mrb[0].mxu0
        %v2094 = vadd.f32 0.0, %v2093
        %v2095 = vpop.f32.mrb[0].mxu0
        %2096 = vmatprep.mubr.bf16.mxu0 0
        %2097 = vmatmul.mubr.bf16.gmra.mrb[0].mxu0 %v2028
        %v2098 = vpop.f32.mrb[0].mxu0
        %v2099 = vadd.f32 0.0, %v2098
        %v2100 = vpop.f32.mrb[0].mxu0
        %v2101 = vpop.f32.mrb[0].mxu0
        %v2102 = vadd.f32 0.0, %v2101
        %v2103 = vpop.f32.mrb[0].mxu0
        %2104 = vmatprep.mubr.bf16.mxu0 0
        %2105 = vmatmul.mubr.bf16.gmra.mrb[0].mxu0 %v2029
        %v2106 = vpop.f32.mrb[0].mxu0
        %v2107 = vadd.f32 0.0, %v2106
        %v2108 = vpop.f32.mrb[0].mxu0
        %v2109 = vpop.f32.mrb[0].mxu0
        %v2110 = vadd.f32 0.0, %v2109
        %v2111 = vpop.f32.mrb[0].mxu0
        %2112 = vmatprep.mubr.bf16.mxu0 0
        %2113 = vmatmul.mubr.bf16.gmra.mrb[0].mxu0 %v2030
        %v2114 = vpop.f32.mrb[0].mxu0
        %v2115 = vadd.f32 0.0, %v2114
        %v2116 = vpop.f32.mrb[0].mxu0
        %v2117 = vpop.f32.mrb[0].mxu0
        %v2118 = vadd.f32 0.0, %v2117
        %v2119 = vpop.f32.mrb[0].mxu0
        %2120 = vmatprep.mubr.bf16.mxu0 0
        %2121 = vmatmul.mubr.bf16.gmra.mrb[0].mxu0 %v2031
        %v2122 = vpop.f32.mrb[0].mxu0
        %v2123 = vadd.f32 0.0, %v2122
        %v2124 = vpop.f32.mrb[0].mxu0
        %v2125 = vpop.f32.mrb[0].mxu0
        %v2126 = vadd.f32 0.0, %v2125
        %v2127 = vpop.f32.mrb[0].mxu0
        %2128 = vdwg.mxu0
        %v2129 = vmul.f32 %v2067, %v1993
        %v2130 = vmul.f32 %v2070, %v1995
        %v2131 = vmul.f32 %v2075, %v1997
        %v2132 = vmul.f32 %v2078, %v1999
        %v2133 = vmul.f32 %v2083, %v2001
        %v2134 = vmul.f32 %v2086, %v2003
        %v2135 = vmul.f32 %v2091, %v2005
        %v2136 = vmul.f32 %v2094, %v2007
        %v2137 = vmul.f32 %v2099, %v2009
        %v2138 = vmul.f32 %v2102, %v2011
        %v2139 = vmul.f32 %v2107, %v2013
        %v2140 = vmul.f32 %v2110, %v2015
        %v2141 = vmul.f32 %v2115, %v2017
        %v2142 = vmul.f32 %v2118, %v2019
        %v2143 = vmul.f32 %v2123, %v2021
        %v2144 = vmul.f32 %v2126, %v2023
        %v2145 = vpack.c.bf16 %v2130, %v2129
        %v2146 = vpack.c.bf16 %v2132, %v2131
        %v2147 = vpack.c.bf16 %v2134, %v2133
        %v2148 = vpack.c.bf16 %v2136, %v2135
        %v2149 = vpack.c.bf16 %v2138, %v2137
        %v2150 = vpack.c.bf16 %v2140, %v2139
        %v2151 = vpack.c.bf16 %v2142, %v2141
        %v2152 = vpack.c.bf16 %v2144, %v2143
        %v2155 = vunpack.c.l.b16 %v1290
        %v2156 = vunpack.c.l.b16 %v1291
        %v2157 = vpack.c.b16 %v2156, %v2155
        %v2160 = vsel %vm1734, %v2145, 0
        %v2163 = vsel %vm1734, %v2146, 0
        %v2166 = vsel %vm1734, %v2147, 0
        %v2169 = vsel %vm1734, %v2148, 0
        %v2172 = vsel %vm1734, %v2149, 0
        %v2175 = vsel %vm1734, %v2150, 0
        %v2178 = vsel %vm1734, %v2151, 0
        %v2181 = vsel %vm1734, %v2152, 0
        %2183 = vmatprep.subr.bf16.mxu0 0
        %2184 = vmatpush1.bf16.msra.mxu0 %v2157
        %2185 = vmatprep.subr.bf16.mxu0 0
        %2186 = vmatpush1.bf16.msra.mxu0 0
        %2187 = vmatprep.subr.bf16.mxu0 0
        %2188 = vmatpush1.bf16.msra.mxu0 0
        %2189 = vmatprep.subr.bf16.mxu0 0
        %2190 = vmatpush1.bf16.msra.mxu0 0
        %2191 = vmatprep.subr.bf16.mxu0 0
        %2192 = vmatpush1.bf16.msra.mxu0 0
        %2193 = vmatprep.subr.bf16.mxu0 0
        %2194 = vmatpush1.bf16.msra.mxu0 0
        %2195 = vmatprep.subr.bf16.mxu0 0
        %2196 = vmatpush1.bf16.msra.mxu0 0
        %2197 = vmatprep.subr.bf16.mxu0 0
        %2198 = vmatpush1.bf16.msra.mxu0 0
        %2199 = vmatprep.subr.bf16.mxu0 0
        %2200 = vmatpush1.bf16.msra.mxu0 0
        %2201 = vmatprep.subr.bf16.mxu0 0
        %2202 = vmatpush1.bf16.msra.mxu0 0
        %2203 = vmatprep.subr.bf16.mxu0 0
        %2204 = vmatpush1.bf16.msra.mxu0 0
        %2205 = vmatprep.subr.bf16.mxu0 0
        %2206 = vmatpush1.bf16.msra.mxu0 0
        %2207 = vmatprep.subr.bf16.mxu0 0
        %2208 = vmatpush1.bf16.msra.mxu0 0
        %2209 = vmatprep.subr.bf16.mxu0 0
        %2210 = vmatpush1.bf16.msra.mxu0 0
        %2211 = vmatprep.subr.bf16.mxu0 0
        %2212 = vmatpush1.bf16.msra.mxu0 0
        %2213 = vmatprep.subr.bf16.mxu0 0
        %2214 = vmatpush1.bf16.msra.mxu0 0
        %2215 = vmatprep.mubr.bf16.mxu0 0
        %2216 = vmatmul.mubr.bf16.gmra.mrb[0].mxu0 %v2160
        %v2217 = vpop.f32.mrb[0].mxu0
        %v2218 = vadd.f32 0.0, %v2217
        %v2219 = vpop.f32.mrb[0].mxu0
        %v2220 = vpop.f32.mrb[0].mxu0
        %v2221 = vadd.f32 0.0, %v2220
        %v2222 = vpop.f32.mrb[0].mxu0
        %2223 = vmatprep.mubr.bf16.mxu0 0
        %2224 = vmatmul.mubr.bf16.gmra.mrb[0].mxu0 %v2163
        %v2225 = vpop.f32.mrb[0].mxu0
        %v2226 = vadd.f32 0.0, %v2225
        %v2227 = vpop.f32.mrb[0].mxu0
        %v2228 = vpop.f32.mrb[0].mxu0
        %v2229 = vadd.f32 0.0, %v2228
        %v2230 = vpop.f32.mrb[0].mxu0
        %2231 = vmatprep.mubr.bf16.mxu0 0
        %2232 = vmatmul.mubr.bf16.gmra.mrb[0].mxu0 %v2166
        %v2233 = vpop.f32.mrb[0].mxu0
        %v2234 = vadd.f32 0.0, %v2233
        %v2235 = vpop.f32.mrb[0].mxu0
        %v2236 = vpop.f32.mrb[0].mxu0
        %v2237 = vadd.f32 0.0, %v2236
        %v2238 = vpop.f32.mrb[0].mxu0
        %2239 = vmatprep.mubr.bf16.mxu0 0
        %2240 = vmatmul.mubr.bf16.gmra.mrb[0].mxu0 %v2169
        %v2241 = vpop.f32.mrb[0].mxu0
        %v2242 = vadd.f32 0.0, %v2241
        %v2243 = vpop.f32.mrb[0].mxu0
        %v2244 = vpop.f32.mrb[0].mxu0
        %v2245 = vadd.f32 0.0, %v2244
        %v2246 = vpop.f32.mrb[0].mxu0
        %2247 = vmatprep.mubr.bf16.mxu0 0
        %2248 = vmatmul.mubr.bf16.gmra.mrb[0].mxu0 %v2172
        %v2249 = vpop.f32.mrb[0].mxu0
        %v2250 = vadd.f32 0.0, %v2249
        %v2251 = vpop.f32.mrb[0].mxu0
        %v2252 = vpop.f32.mrb[0].mxu0
        %v2253 = vadd.f32 0.0, %v2252
        %v2254 = vpop.f32.mrb[0].mxu0
        %2255 = vmatprep.mubr.bf16.mxu0 0
        %2256 = vmatmul.mubr.bf16.gmra.mrb[0].mxu0 %v2175
        %v2257 = vpop.f32.mrb[0].mxu0
        %v2258 = vadd.f32 0.0, %v2257
        %v2259 = vpop.f32.mrb[0].mxu0
        %v2260 = vpop.f32.mrb[0].mxu0
        %v2261 = vadd.f32 0.0, %v2260
        %v2262 = vpop.f32.mrb[0].mxu0
        %2263 = vmatprep.mubr.bf16.mxu0 0
        %2264 = vmatmul.mubr.bf16.gmra.mrb[0].mxu0 %v2178
        %v2265 = vpop.f32.mrb[0].mxu0
        %v2266 = vadd.f32 0.0, %v2265
        %v2267 = vpop.f32.mrb[0].mxu0
        %v2268 = vpop.f32.mrb[0].mxu0
        %v2269 = vadd.f32 0.0, %v2268
        %v2270 = vpop.f32.mrb[0].mxu0
        %2271 = vmatprep.mubr.bf16.mxu0 0
        %2272 = vmatmul.mubr.bf16.gmra.mrb[0].mxu0 %v2181
        %v2273 = vpop.f32.mrb[0].mxu0
        %v2274 = vadd.f32 0.0, %v2273
        %v2275 = vpop.f32.mrb[0].mxu0
        %v2276 = vpop.f32.mrb[0].mxu0
        %v2277 = vadd.f32 0.0, %v2276
        %v2278 = vpop.f32.mrb[0].mxu0
        %2279 = vdwg.mxu0
        %v2280 = vadd.f32 %v1266, %v2218
        %v2281 = vadd.f32 %v1267, %v2221
        %v2282 = vadd.f32 %v1268, %v2226
        %v2283 = vadd.f32 %v1269, %v2229
        %v2284 = vadd.f32 %v1270, %v2234
        %v2285 = vadd.f32 %v1271, %v2237
        %v2286 = vadd.f32 %v1272, %v2242
        %v2287 = vadd.f32 %v1273, %v2245
        %v2288 = vadd.f32 %v1274, %v2250
        %v2289 = vadd.f32 %v1275, %v2253
        %v2290 = vadd.f32 %v1276, %v2258
        %v2291 = vadd.f32 %v1277, %v2261
        %v2292 = vadd.f32 %v1278, %v2266
        %v2293 = vadd.f32 %v1279, %v2269
        %v2294 = vadd.f32 %v1280, %v2274
        %v2295 = vadd.f32 %v1281, %v2277
        %2304 = vrot.lane.b32.xlu0 %v1452, 112
        %v2305 = vpop.permute.xlu0 %2304
        %2306 = vrot.lane.b32.xlu0 %v1453, 112
        %v2307 = vpop.permute.xlu0 %2306
        %2308 = vrot.lane.b32.xlu0 %v1454, 112
        %v2309 = vpop.permute.xlu0 %2308
        %2310 = vrot.lane.b32.xlu0 %v1455, 112
        %v2311 = vpop.permute.xlu0 %2310
        %2312 = vrot.lane.b32.xlu0 %v1456, 112
        %v2313 = vpop.permute.xlu0 %2312
        %2314 = vrot.lane.b32.xlu0 %v1457, 112
        %v2315 = vpop.permute.xlu0 %2314
        %2316 = vrot.lane.b32.xlu0 %v1458, 112
        %v2317 = vpop.permute.xlu0 %2316
        %2318 = vrot.lane.b32.xlu0 %v1459, 112
        %v2319 = vpop.permute.xlu0 %2318
        %2328 = vrot.lane.b32.xlu0 %v1589, 112
        %v2329 = vpop.permute.xlu0 %2328
        %2330 = vrot.lane.b32.xlu0 %v1590, 112
        %v2331 = vpop.permute.xlu0 %2330
        %2332 = vrot.lane.b32.xlu0 %v1591, 112
        %v2333 = vpop.permute.xlu0 %2332
        %2334 = vrot.lane.b32.xlu0 %v1592, 112
        %v2335 = vpop.permute.xlu0 %2334
        %2336 = vrot.lane.b32.xlu0 %v1593, 112
        %v2337 = vpop.permute.xlu0 %2336
        %2338 = vrot.lane.b32.xlu0 %v1594, 112
        %v2339 = vpop.permute.xlu0 %2338
        %2340 = vrot.lane.b32.xlu0 %v1595, 112
        %v2341 = vpop.permute.xlu0 %2340
        %2342 = vrot.lane.b32.xlu0 %v1596, 112
        %v2343 = vpop.permute.xlu0 %2342
        %v2345 = vsel %vm1734, %v2305, 0
        %v2348 = vsel %vm1734, %v2307, 0
        %v2351 = vsel %vm1734, %v2309, 0
        %v2354 = vsel %vm1734, %v2311, 0
        %v2357 = vsel %vm1734, %v2313, 0
        %v2360 = vsel %vm1734, %v2315, 0
        %v2363 = vsel %vm1734, %v2317, 0
        %v2366 = vsel %vm1734, %v2319, 0
        %v2369 = vsel %vm1734, %v2329, 0
        %v2372 = vsel %vm1734, %v2331, 0
        %v2375 = vsel %vm1734, %v2333, 0
        %v2378 = vsel %vm1734, %v2335, 0
        %v2381 = vsel %vm1734, %v2337, 0
        %v2384 = vsel %vm1734, %v2339, 0
        %v2387 = vsel %vm1734, %v2341, 0
        %v2390 = vsel %vm1734, %v2343, 0
        %2392 = vmatprep.subr.bf16.mxu0 0
        %2393 = vmatpush1.bf16.xpose.msra.mxu0 %v2369
        %2394 = vmatprep.subr.bf16.mxu0 0
        %2395 = vmatpush1.bf16.xpose.msra.mxu0 %v2372
        %2396 = vmatprep.subr.bf16.mxu0 0
        %2397 = vmatpush1.bf16.xpose.msra.mxu0 %v2375
        %2398 = vmatprep.subr.bf16.mxu0 0
        %2399 = vmatpush1.bf16.xpose.msra.mxu0 %v2378
        %2400 = vmatprep.subr.bf16.mxu0 0
        %2401 = vmatpush1.bf16.xpose.msra.mxu0 %v2381
        %2402 = vmatprep.subr.bf16.mxu0 0
        %2403 = vmatpush1.bf16.xpose.msra.mxu0 %v2384
        %2404 = vmatprep.subr.bf16.mxu0 0
        %2405 = vmatpush1.bf16.xpose.msra.mxu0 %v2387
        %2406 = vmatprep.subr.bf16.mxu0 0
        %2407 = vmatpush1.bf16.xpose.msra.mxu0 %v2390
        %2408 = vmatprep.subr.bf16.mxu0 0
        %2409 = vmatpush1.bf16.xpose.msra.mxu0 0
        %2410 = vmatprep.subr.bf16.mxu0 0
        %2411 = vmatpush1.bf16.xpose.msra.mxu0 0
        %2412 = vmatprep.subr.bf16.mxu0 0
        %2413 = vmatpush1.bf16.xpose.msra.mxu0 0
        %2414 = vmatprep.subr.bf16.mxu0 0
        %2415 = vmatpush1.bf16.xpose.msra.mxu0 0
        %2416 = vmatprep.subr.bf16.mxu0 0
        %2417 = vmatpush1.bf16.xpose.msra.mxu0 0
        %2418 = vmatprep.subr.bf16.mxu0 0
        %2419 = vmatpush1.bf16.xpose.msra.mxu0 0
        %2420 = vmatprep.subr.bf16.mxu0 0
        %2421 = vmatpush1.bf16.xpose.msra.mxu0 0
        %2422 = vmatprep.subr.bf16.mxu0 0
        %2423 = vmatpush1.bf16.xpose.msra.mxu0 0
        %2424 = vmatprep.mubr.bf16.mxu0 0
        %2425 = vmatmul.mubr.bf16.gmra.mrb[0].mxu0 %v2345
        %v2426 = vpop.f32.mrb[0].mxu0
        %v2427 = vadd.f32 %v960, %v2426
        %v2428 = vpop.f32.mrb[0].mxu0
        %v2429 = vpop.f32.mrb[0].mxu0
        %v2430 = vadd.f32 %v961, %v2429
        %v2431 = vpop.f32.mrb[0].mxu0
        %2432 = vmatprep.mubr.bf16.mxu0 0
        %2433 = vmatmul.mubr.bf16.gmra.mrb[0].mxu0 %v2348
        %v2434 = vpop.f32.mrb[0].mxu0
        %v2435 = vadd.f32 %v962, %v2434
        %v2436 = vpop.f32.mrb[0].mxu0
        %v2437 = vpop.f32.mrb[0].mxu0
        %v2438 = vadd.f32 %v963, %v2437
        %v2439 = vpop.f32.mrb[0].mxu0
        %2440 = vmatprep.mubr.bf16.mxu0 0
        %2441 = vmatmul.mubr.bf16.gmra.mrb[0].mxu0 %v2351
        %v2442 = vpop.f32.mrb[0].mxu0
        %v2443 = vadd.f32 %v964, %v2442
        %v2444 = vpop.f32.mrb[0].mxu0
        %v2445 = vpop.f32.mrb[0].mxu0
        %v2446 = vadd.f32 %v965, %v2445
        %v2447 = vpop.f32.mrb[0].mxu0
        %2448 = vmatprep.mubr.bf16.mxu0 0
        %2449 = vmatmul.mubr.bf16.gmra.mrb[0].mxu0 %v2354
        %v2450 = vpop.f32.mrb[0].mxu0
        %v2451 = vadd.f32 %v966, %v2450
        %v2452 = vpop.f32.mrb[0].mxu0
        %v2453 = vpop.f32.mrb[0].mxu0
        %v2454 = vadd.f32 %v967, %v2453
        %v2455 = vpop.f32.mrb[0].mxu0
        %2456 = vmatprep.mubr.bf16.mxu0 0
        %2457 = vmatmul.mubr.bf16.gmra.mrb[0].mxu0 %v2357
        %v2458 = vpop.f32.mrb[0].mxu0
        %v2459 = vadd.f32 %v968, %v2458
        %v2460 = vpop.f32.mrb[0].mxu0
        %v2461 = vpop.f32.mrb[0].mxu0
        %v2462 = vadd.f32 %v969, %v2461
        %v2463 = vpop.f32.mrb[0].mxu0
        %2464 = vmatprep.mubr.bf16.mxu0 0
        %2465 = vmatmul.mubr.bf16.gmra.mrb[0].mxu0 %v2360
        %v2466 = vpop.f32.mrb[0].mxu0
        %v2467 = vadd.f32 %v970, %v2466
        %v2468 = vpop.f32.mrb[0].mxu0
        %v2469 = vpop.f32.mrb[0].mxu0
        %v2470 = vadd.f32 %v971, %v2469
        %v2471 = vpop.f32.mrb[0].mxu0
        %2472 = vmatprep.mubr.bf16.mxu0 0
        %2473 = vmatmul.mubr.bf16.gmra.mrb[0].mxu0 %v2363
        %v2474 = vpop.f32.mrb[0].mxu0
        %v2475 = vadd.f32 %v972, %v2474
        %v2476 = vpop.f32.mrb[0].mxu0
        %v2477 = vpop.f32.mrb[0].mxu0
        %v2478 = vadd.f32 %v973, %v2477
        %v2479 = vpop.f32.mrb[0].mxu0
        %2480 = vmatprep.mubr.bf16.mxu0 0
        %2481 = vmatmul.mubr.bf16.gmra.mrb[0].mxu0 %v2366
        %v2482 = vpop.f32.mrb[0].mxu0
        %v2483 = vadd.f32 %v974, %v2482
        %v2484 = vpop.f32.mrb[0].mxu0
        %v2485 = vpop.f32.mrb[0].mxu0
        %v2486 = vadd.f32 %v975, %v2485
        %v2487 = vpop.f32.mrb[0].mxu0
        %2488 = vdwg.mxu0
        %2489 = vmax.xlane.f32.xlu0 %v2427
        %v2490 = vpop.xlane.xlu0 %2489
        %2491 = vmax.xlane.f32.xlu0 %v2430
        %v2492 = vpop.xlane.xlu0 %2491
        %2493 = vmax.xlane.f32.xlu0 %v2435
        %v2494 = vpop.xlane.xlu0 %2493
        %2495 = vmax.xlane.f32.xlu0 %v2438
        %v2496 = vpop.xlane.xlu0 %2495
        %2497 = vmax.xlane.f32.xlu0 %v2443
        %v2498 = vpop.xlane.xlu0 %2497
        %2499 = vmax.xlane.f32.xlu0 %v2446
        %v2500 = vpop.xlane.xlu0 %2499
        %2501 = vmax.xlane.f32.xlu0 %v2451
        %v2502 = vpop.xlane.xlu0 %2501
        %2503 = vmax.xlane.f32.xlu0 %v2454
        %v2504 = vpop.xlane.xlu0 %2503
        %2505 = vmax.xlane.f32.xlu0 %v2459
        %v2506 = vpop.xlane.xlu0 %2505
        %2507 = vmax.xlane.f32.xlu0 %v2462
        %v2508 = vpop.xlane.xlu0 %2507
        %2509 = vmax.xlane.f32.xlu0 %v2467
        %v2510 = vpop.xlane.xlu0 %2509
        %2511 = vmax.xlane.f32.xlu0 %v2470
        %v2512 = vpop.xlane.xlu0 %2511
        %2513 = vmax.xlane.f32.xlu0 %v2475
        %v2514 = vpop.xlane.xlu0 %2513
        %2515 = vmax.xlane.f32.xlu0 %v2478
        %v2516 = vpop.xlane.xlu0 %2515
        %2517 = vmax.xlane.f32.xlu0 %v2483
        %v2518 = vpop.xlane.xlu0 %2517
        %2519 = vmax.xlane.f32.xlu0 %v2486
        %v2520 = vpop.xlane.xlu0 %2519
        %v2521 = vsub.f32 %v2427, %v2490
        %v2522 = vsub.f32 %v2430, %v2492
        %v2523 = vsub.f32 %v2435, %v2494
        %v2524 = vsub.f32 %v2438, %v2496
        %v2525 = vsub.f32 %v2443, %v2498
        %v2526 = vsub.f32 %v2446, %v2500
        %v2527 = vsub.f32 %v2451, %v2502
        %v2528 = vsub.f32 %v2454, %v2504
        %v2529 = vsub.f32 %v2459, %v2506
        %v2530 = vsub.f32 %v2462, %v2508
        %v2531 = vsub.f32 %v2467, %v2510
        %v2532 = vsub.f32 %v2470, %v2512
        %v2533 = vsub.f32 %v2475, %v2514
        %v2534 = vsub.f32 %v2478, %v2516
        %v2535 = vsub.f32 %v2483, %v2518
        %v2536 = vsub.f32 %v2486, %v2520
        %v2537 = vmul.f32 %v2521, 1.442695
        %v2538 = vpow.pop %v2537
        %v2539 = vmul.f32 %v2522, 1.442695
        %v2540 = vpow.pop %v2539
        %v2541 = vmul.f32 %v2523, 1.442695
        %v2542 = vpow.pop %v2541
        %v2543 = vmul.f32 %v2524, 1.442695
        %v2544 = vpow.pop %v2543
        %v2545 = vmul.f32 %v2525, 1.442695
        %v2546 = vpow.pop %v2545
        %v2547 = vmul.f32 %v2526, 1.442695
        %v2548 = vpow.pop %v2547
        %v2549 = vmul.f32 %v2527, 1.442695
        %v2550 = vpow.pop %v2549
        %v2551 = vmul.f32 %v2528, 1.442695
        %v2552 = vpow.pop %v2551
        %v2553 = vmul.f32 %v2529, 1.442695
        %v2554 = vpow.pop %v2553
        %v2555 = vmul.f32 %v2530, 1.442695
        %v2556 = vpow.pop %v2555
        %v2557 = vmul.f32 %v2531, 1.442695
        %v2558 = vpow.pop %v2557
        %v2559 = vmul.f32 %v2532, 1.442695
        %v2560 = vpow.pop %v2559
        %v2561 = vmul.f32 %v2533, 1.442695
        %v2562 = vpow.pop %v2561
        %v2563 = vmul.f32 %v2534, 1.442695
        %v2564 = vpow.pop %v2563
        %v2565 = vmul.f32 %v2535, 1.442695
        %v2566 = vpow.pop %v2565
        %v2567 = vmul.f32 %v2536, 1.442695
        %v2568 = vpow.pop %v2567
        %2569 = vadd.xlane.f32.xlu0 %v2538
        %v2570 = vpop.xlane.xlu0 %2569
        %2571 = vadd.xlane.f32.xlu0 %v2540
        %v2572 = vpop.xlane.xlu0 %2571
        %2573 = vadd.xlane.f32.xlu0 %v2542
        %v2574 = vpop.xlane.xlu0 %2573
        %2575 = vadd.xlane.f32.xlu0 %v2544
        %v2576 = vpop.xlane.xlu0 %2575
        %2577 = vadd.xlane.f32.xlu0 %v2546
        %v2578 = vpop.xlane.xlu0 %2577
        %2579 = vadd.xlane.f32.xlu0 %v2548
        %v2580 = vpop.xlane.xlu0 %2579
        %2581 = vadd.xlane.f32.xlu0 %v2550
        %v2582 = vpop.xlane.xlu0 %2581
        %2583 = vadd.xlane.f32.xlu0 %v2552
        %v2584 = vpop.xlane.xlu0 %2583
        %2585 = vadd.xlane.f32.xlu0 %v2554
        %v2586 = vpop.xlane.xlu0 %2585
        %2587 = vadd.xlane.f32.xlu0 %v2556
        %v2588 = vpop.xlane.xlu0 %2587
        %2589 = vadd.xlane.f32.xlu0 %v2558
        %v2590 = vpop.xlane.xlu0 %2589
        %2591 = vadd.xlane.f32.xlu0 %v2560
        %v2592 = vpop.xlane.xlu0 %2591
        %2593 = vadd.xlane.f32.xlu0 %v2562
        %v2594 = vpop.xlane.xlu0 %2593
        %2595 = vadd.xlane.f32.xlu0 %v2564
        %v2596 = vpop.xlane.xlu0 %2595
        %2597 = vadd.xlane.f32.xlu0 %v2566
        %v2598 = vpop.xlane.xlu0 %2597
        %2599 = vadd.xlane.f32.xlu0 %v2568
        %v2600 = vpop.xlane.xlu0 %2599
        %v2601 = vrcp.pop %v2570
        %v2602 = vmul.f32 %v1010, %v2601
        %v2603 = vrcp.pop %v2572
        %v2604 = vmul.f32 %v1013, %v2603
        %v2605 = vrcp.pop %v2574
        %v2606 = vmul.f32 %v1016, %v2605
        %v2607 = vrcp.pop %v2576
        %v2608 = vmul.f32 %v1019, %v2607
        %v2609 = vrcp.pop %v2578
        %v2610 = vmul.f32 %v1022, %v2609
        %v2611 = vrcp.pop %v2580
        %v2612 = vmul.f32 %v1025, %v2611
        %v2613 = vrcp.pop %v2582
        %v2614 = vmul.f32 %v1028, %v2613
        %v2615 = vrcp.pop %v2584
        %v2616 = vmul.f32 %v1031, %v2615
        %v2617 = vrcp.pop %v2586
        %v2618 = vmul.f32 %v1034, %v2617
        %v2619 = vrcp.pop %v2588
        %v2620 = vmul.f32 %v1037, %v2619
        %v2621 = vrcp.pop %v2590
        %v2622 = vmul.f32 %v1040, %v2621
        %v2623 = vrcp.pop %v2592
        %v2624 = vmul.f32 %v1043, %v2623
        %v2625 = vrcp.pop %v2594
        %v2626 = vmul.f32 %v1046, %v2625
        %v2627 = vrcp.pop %v2596
        %v2628 = vmul.f32 %v1049, %v2627
        %v2629 = vrcp.pop %v2598
        %v2630 = vmul.f32 %v1052, %v2629
        %v2631 = vrcp.pop %v2600
        %v2632 = vmul.f32 %v1055, %v2631
        %v2633 = vpack.c.bf16 %v2540, %v2538
        %v2634 = vpack.c.bf16 %v2544, %v2542
        %v2635 = vpack.c.bf16 %v2548, %v2546
        %v2636 = vpack.c.bf16 %v2552, %v2550
        %v2637 = vpack.c.bf16 %v2556, %v2554
        %v2638 = vpack.c.bf16 %v2560, %v2558
        %v2639 = vpack.c.bf16 %v2564, %v2562
        %v2640 = vpack.c.bf16 %v2568, %v2566
        %2649 = vrot.lane.b32.xlu0 %v1726, 112
        %v2650 = vpop.permute.xlu0 %2649
        %2651 = vrot.lane.b32.xlu0 %v1727, 112
        %v2652 = vpop.permute.xlu0 %2651
        %2653 = vrot.lane.b32.xlu0 %v1728, 112
        %v2654 = vpop.permute.xlu0 %2653
        %2655 = vrot.lane.b32.xlu0 %v1729, 112
        %v2656 = vpop.permute.xlu0 %2655
        %2657 = vrot.lane.b32.xlu0 %v1730, 112
        %v2658 = vpop.permute.xlu0 %2657
        %2659 = vrot.lane.b32.xlu0 %v1731, 112
        %v2660 = vpop.permute.xlu0 %2659
        %2661 = vrot.lane.b32.xlu0 %v1732, 112
        %v2662 = vpop.permute.xlu0 %2661
        %2663 = vrot.lane.b32.xlu0 %v1733, 112
        %v2664 = vpop.permute.xlu0 %2663
        %2673 = vmatprep.subr.bf16.mxu0 0
        %2674 = vmatpush1.bf16.msra.mxu0 %v2650
        %2675 = vmatprep.subr.bf16.mxu0 0
        %2676 = vmatpush1.bf16.msra.mxu0 %v2652
        %2677 = vmatprep.subr.bf16.mxu0 0
        %2678 = vmatpush1.bf16.msra.mxu0 %v2654
        %2679 = vmatprep.subr.bf16.mxu0 0
        %2680 = vmatpush1.bf16.msra.mxu0 %v2656
        %2681 = vmatprep.subr.bf16.mxu0 0
        %2682 = vmatpush1.bf16.msra.mxu0 %v2658
        %2683 = vmatprep.subr.bf16.mxu0 0
        %2684 = vmatpush1.bf16.msra.mxu0 %v2660
        %2685 = vmatprep.subr.bf16.mxu0 0
        %2686 = vmatpush1.bf16.msra.mxu0 %v2662
        %2687 = vmatprep.subr.bf16.mxu0 0
        %2688 = vmatpush1.bf16.msra.mxu0 %v2664
        %2689 = vmatprep.subr.bf16.mxu0 0
        %2690 = vmatpush1.bf16.msra.mxu0 0
        %2691 = vmatprep.subr.bf16.mxu0 0
        %2692 = vmatpush1.bf16.msra.mxu0 0
        %2693 = vmatprep.subr.bf16.mxu0 0
        %2694 = vmatpush1.bf16.msra.mxu0 0
        %2695 = vmatprep.subr.bf16.mxu0 0
        %2696 = vmatpush1.bf16.msra.mxu0 0
        %2697 = vmatprep.subr.bf16.mxu0 0
        %2698 = vmatpush1.bf16.msra.mxu0 0
        %2699 = vmatprep.subr.bf16.mxu0 0
        %2700 = vmatpush1.bf16.msra.mxu0 0
        %2701 = vmatprep.subr.bf16.mxu0 0
        %2702 = vmatpush1.bf16.msra.mxu0 0
        %2703 = vmatprep.subr.bf16.mxu0 0
        %2704 = vmatpush1.bf16.msra.mxu0 0
        %2705 = vmatprep.mubr.bf16.mxu0 0
        %2706 = vmatmul.mubr.bf16.gmra.mrb[0].mxu0 %v2633
        %v2707 = vpop.f32.mrb[0].mxu0
        %v2708 = vadd.f32 0.0, %v2707
        %v2709 = vpop.f32.mrb[0].mxu0
        %v2710 = vpop.f32.mrb[0].mxu0
        %v2711 = vadd.f32 0.0, %v2710
        %v2712 = vpop.f32.mrb[0].mxu0
        %2713 = vmatprep.mubr.bf16.mxu0 0
        %2714 = vmatmul.mubr.bf16.gmra.mrb[0].mxu0 %v2634
        %v2715 = vpop.f32.mrb[0].mxu0
        %v2716 = vadd.f32 0.0, %v2715
        %v2717 = vpop.f32.mrb[0].mxu0
        %v2718 = vpop.f32.mrb[0].mxu0
        %v2719 = vadd.f32 0.0, %v2718
        %v2720 = vpop.f32.mrb[0].mxu0
        %2721 = vmatprep.mubr.bf16.mxu0 0
        %2722 = vmatmul.mubr.bf16.gmra.mrb[0].mxu0 %v2635
        %v2723 = vpop.f32.mrb[0].mxu0
        %v2724 = vadd.f32 0.0, %v2723
        %v2725 = vpop.f32.mrb[0].mxu0
        %v2726 = vpop.f32.mrb[0].mxu0
        %v2727 = vadd.f32 0.0, %v2726
        %v2728 = vpop.f32.mrb[0].mxu0
        %2729 = vmatprep.mubr.bf16.mxu0 0
        %2730 = vmatmul.mubr.bf16.gmra.mrb[0].mxu0 %v2636
        %v2731 = vpop.f32.mrb[0].mxu0
        %v2732 = vadd.f32 0.0, %v2731
        %v2733 = vpop.f32.mrb[0].mxu0
        %v2734 = vpop.f32.mrb[0].mxu0
        %v2735 = vadd.f32 0.0, %v2734
        %v2736 = vpop.f32.mrb[0].mxu0
        %2737 = vmatprep.mubr.bf16.mxu0 0
        %2738 = vmatmul.mubr.bf16.gmra.mrb[0].mxu0 %v2637
        %v2739 = vpop.f32.mrb[0].mxu0
        %v2740 = vadd.f32 0.0, %v2739
        %v2741 = vpop.f32.mrb[0].mxu0
        %v2742 = vpop.f32.mrb[0].mxu0
        %v2743 = vadd.f32 0.0, %v2742
        %v2744 = vpop.f32.mrb[0].mxu0
        %2745 = vmatprep.mubr.bf16.mxu0 0
        %2746 = vmatmul.mubr.bf16.gmra.mrb[0].mxu0 %v2638
        %v2747 = vpop.f32.mrb[0].mxu0
        %v2748 = vadd.f32 0.0, %v2747
        %v2749 = vpop.f32.mrb[0].mxu0
        %v2750 = vpop.f32.mrb[0].mxu0
        %v2751 = vadd.f32 0.0, %v2750
        %v2752 = vpop.f32.mrb[0].mxu0
        %2753 = vmatprep.mubr.bf16.mxu0 0
        %2754 = vmatmul.mubr.bf16.gmra.mrb[0].mxu0 %v2639
        %v2755 = vpop.f32.mrb[0].mxu0
        %v2756 = vadd.f32 0.0, %v2755
        %v2757 = vpop.f32.mrb[0].mxu0
        %v2758 = vpop.f32.mrb[0].mxu0
        %v2759 = vadd.f32 0.0, %v2758
        %v2760 = vpop.f32.mrb[0].mxu0
        %2761 = vmatprep.mubr.bf16.mxu0 0
        %2762 = vmatmul.mubr.bf16.gmra.mrb[0].mxu0 %v2640
        %v2763 = vpop.f32.mrb[0].mxu0
        %v2764 = vadd.f32 0.0, %v2763
        %v2765 = vpop.f32.mrb[0].mxu0
        %v2766 = vpop.f32.mrb[0].mxu0
        %v2767 = vadd.f32 0.0, %v2766
        %v2768 = vpop.f32.mrb[0].mxu0
        %2769 = vdwg.mxu0
        %v2770 = vmul.f32 %v2708, %v2602
        %v2771 = vmul.f32 %v2711, %v2604
        %v2772 = vmul.f32 %v2716, %v2606
        %v2773 = vmul.f32 %v2719, %v2608
        %v2774 = vmul.f32 %v2724, %v2610
        %v2775 = vmul.f32 %v2727, %v2612
        %v2776 = vmul.f32 %v2732, %v2614
        %v2777 = vmul.f32 %v2735, %v2616
        %v2778 = vmul.f32 %v2740, %v2618
        %v2779 = vmul.f32 %v2743, %v2620
        %v2780 = vmul.f32 %v2748, %v2622
        %v2781 = vmul.f32 %v2751, %v2624
        %v2782 = vmul.f32 %v2756, %v2626
        %v2783 = vmul.f32 %v2759, %v2628
        %v2784 = vmul.f32 %v2764, %v2630
        %v2785 = vmul.f32 %v2767, %v2632
        %v2786 = vpack.c.bf16 %v2771, %v2770
        %v2787 = vpack.c.bf16 %v2773, %v2772
        %v2788 = vpack.c.bf16 %v2775, %v2774
        %v2789 = vpack.c.bf16 %v2777, %v2776
        %v2790 = vpack.c.bf16 %v2779, %v2778
        %v2791 = vpack.c.bf16 %v2781, %v2780
        %v2792 = vpack.c.bf16 %v2783, %v2782
        %v2793 = vpack.c.bf16 %v2785, %v2784
        %v2796 = vunpack.c.l.b16 %v1292
        %v2797 = vunpack.c.l.b16 %v1293
        %v2798 = vpack.c.b16 %v2797, %v2796
        %v2801 = vsel %vm1734, %v2786, 0
        %v2804 = vsel %vm1734, %v2787, 0
        %v2807 = vsel %vm1734, %v2788, 0
        %v2810 = vsel %vm1734, %v2789, 0
        %v2813 = vsel %vm1734, %v2790, 0
        %v2816 = vsel %vm1734, %v2791, 0
        %v2819 = vsel %vm1734, %v2792, 0
        %v2822 = vsel %vm1734, %v2793, 0
        %2824 = vmatprep.subr.bf16.mxu0 0
        %2825 = vmatpush1.bf16.msra.mxu0 %v2798
        %2826 = vmatprep.subr.bf16.mxu0 0
        %2827 = vmatpush1.bf16.msra.mxu0 0
        %2828 = vmatprep.subr.bf16.mxu0 0
        %2829 = vmatpush1.bf16.msra.mxu0 0
        %2830 = vmatprep.subr.bf16.mxu0 0
        %2831 = vmatpush1.bf16.msra.mxu0 0
        %2832 = vmatprep.subr.bf16.mxu0 0
        %2833 = vmatpush1.bf16.msra.mxu0 0
        %2834 = vmatprep.subr.bf16.mxu0 0
        %2835 = vmatpush1.bf16.msra.mxu0 0
        %2836 = vmatprep.subr.bf16.mxu0 0
        %2837 = vmatpush1.bf16.msra.mxu0 0
        %2838 = vmatprep.subr.bf16.mxu0 0
        %2839 = vmatpush1.bf16.msra.mxu0 0
        %2840 = vmatprep.subr.bf16.mxu0 0
        %2841 = vmatpush1.bf16.msra.mxu0 0
        %2842 = vmatprep.subr.bf16.mxu0 0
        %2843 = vmatpush1.bf16.msra.mxu0 0
        %2844 = vmatprep.subr.bf16.mxu0 0
        %2845 = vmatpush1.bf16.msra.mxu0 0
        %2846 = vmatprep.subr.bf16.mxu0 0
        %2847 = vmatpush1.bf16.msra.mxu0 0
        %2848 = vmatprep.subr.bf16.mxu0 0
        %2849 = vmatpush1.bf16.msra.mxu0 0
        %2850 = vmatprep.subr.bf16.mxu0 0
        %2851 = vmatpush1.bf16.msra.mxu0 0
        %2852 = vmatprep.subr.bf16.mxu0 0
        %2853 = vmatpush1.bf16.msra.mxu0 0
        %2854 = vmatprep.subr.bf16.mxu0 0
        %2855 = vmatpush1.bf16.msra.mxu0 0
        %2856 = vmatprep.mubr.bf16.mxu0 0
        %2857 = vmatmul.mubr.bf16.gmra.mrb[0].mxu0 %v2801
        %v2858 = vpop.f32.mrb[0].mxu0
        %v2859 = vadd.f32 0.0, %v2858
        %v2860 = vpop.f32.mrb[0].mxu0
        %v2861 = vpop.f32.mrb[0].mxu0
        %v2862 = vadd.f32 0.0, %v2861
        %v2863 = vpop.f32.mrb[0].mxu0
        %2864 = vmatprep.mubr.bf16.mxu0 0
        %2865 = vmatmul.mubr.bf16.gmra.mrb[0].mxu0 %v2804
        %v2866 = vpop.f32.mrb[0].mxu0
        %v2867 = vadd.f32 0.0, %v2866
        %v2868 = vpop.f32.mrb[0].mxu0
        %v2869 = vpop.f32.mrb[0].mxu0
        %v2870 = vadd.f32 0.0, %v2869
        %v2871 = vpop.f32.mrb[0].mxu0
        %2872 = vmatprep.mubr.bf16.mxu0 0
        %2873 = vmatmul.mubr.bf16.gmra.mrb[0].mxu0 %v2807
        %v2874 = vpop.f32.mrb[0].mxu0
        %v2875 = vadd.f32 0.0, %v2874
        %v2876 = vpop.f32.mrb[0].mxu0
        %v2877 = vpop.f32.mrb[0].mxu0
        %v2878 = vadd.f32 0.0, %v2877
        %v2879 = vpop.f32.mrb[0].mxu0
        %2880 = vmatprep.mubr.bf16.mxu0 0
        %2881 = vmatmul.mubr.bf16.gmra.mrb[0].mxu0 %v2810
        %v2882 = vpop.f32.mrb[0].mxu0
        %v2883 = vadd.f32 0.0, %v2882
        %v2884 = vpop.f32.mrb[0].mxu0
        %v2885 = vpop.f32.mrb[0].mxu0
        %v2886 = vadd.f32 0.0, %v2885
        %v2887 = vpop.f32.mrb[0].mxu0
        %2888 = vmatprep.mubr.bf16.mxu0 0
        %2889 = vmatmul.mubr.bf16.gmra.mrb[0].mxu0 %v2813
        %v2890 = vpop.f32.mrb[0].mxu0
        %v2891 = vadd.f32 0.0, %v2890
        %v2892 = vpop.f32.mrb[0].mxu0
        %v2893 = vpop.f32.mrb[0].mxu0
        %v2894 = vadd.f32 0.0, %v2893
        %v2895 = vpop.f32.mrb[0].mxu0
        %2896 = vmatprep.mubr.bf16.mxu0 0
        %2897 = vmatmul.mubr.bf16.gmra.mrb[0].mxu0 %v2816
        %v2898 = vpop.f32.mrb[0].mxu0
        %v2899 = vadd.f32 0.0, %v2898
        %v2900 = vpop.f32.mrb[0].mxu0
        %v2901 = vpop.f32.mrb[0].mxu0
        %v2902 = vadd.f32 0.0, %v2901
        %v2903 = vpop.f32.mrb[0].mxu0
        %2904 = vmatprep.mubr.bf16.mxu0 0
        %2905 = vmatmul.mubr.bf16.gmra.mrb[0].mxu0 %v2819
        %v2906 = vpop.f32.mrb[0].mxu0
        %v2907 = vadd.f32 0.0, %v2906
        %v2908 = vpop.f32.mrb[0].mxu0
        %v2909 = vpop.f32.mrb[0].mxu0
        %v2910 = vadd.f32 0.0, %v2909
        %v2911 = vpop.f32.mrb[0].mxu0
        %2912 = vmatprep.mubr.bf16.mxu0 0
        %2913 = vmatmul.mubr.bf16.gmra.mrb[0].mxu0 %v2822
        %v2914 = vpop.f32.mrb[0].mxu0
        %v2915 = vadd.f32 0.0, %v2914
        %v2916 = vpop.f32.mrb[0].mxu0
        %v2917 = vpop.f32.mrb[0].mxu0
        %v2918 = vadd.f32 0.0, %v2917
        %v2919 = vpop.f32.mrb[0].mxu0
        %2920 = vdwg.mxu0
        %v2921 = vadd.f32 %v2280, %v2859
        %v2922 = vadd.f32 %v2281, %v2862
        %v2923 = vadd.f32 %v2282, %v2867
        %v2924 = vadd.f32 %v2283, %v2870
        %v2925 = vadd.f32 %v2284, %v2875
        %v2926 = vadd.f32 %v2285, %v2878
        %v2927 = vadd.f32 %v2286, %v2883
        %v2928 = vadd.f32 %v2287, %v2886
        %v2929 = vadd.f32 %v2288, %v2891
        %v2930 = vadd.f32 %v2289, %v2894
        %v2931 = vadd.f32 %v2290, %v2899
        %v2932 = vadd.f32 %v2291, %v2902
        %v2933 = vadd.f32 %v2292, %v2907
        %v2934 = vadd.f32 %v2293, %v2910
        %v2935 = vadd.f32 %v2294, %v2915
        %v2936 = vadd.f32 %v2295, %v2918
        %2937 = vrot.lane.b32.xlu0 %v1452, 96
        %v2938 = vpop.permute.xlu0 %2937
        %2939 = vrot.lane.b32.xlu0 %v1453, 96
        %v2940 = vpop.permute.xlu0 %2939
        %2941 = vrot.lane.b32.xlu0 %v1454, 96
        %v2942 = vpop.permute.xlu0 %2941
        %2943 = vrot.lane.b32.xlu0 %v1455, 96
        %v2944 = vpop.permute.xlu0 %2943
        %2945 = vrot.lane.b32.xlu0 %v1456, 96
        %v2946 = vpop.permute.xlu0 %2945
        %2947 = vrot.lane.b32.xlu0 %v1457, 96
        %v2948 = vpop.permute.xlu0 %2947
        %2949 = vrot.lane.b32.xlu0 %v1458, 96
        %v2950 = vpop.permute.xlu0 %2949
        %2951 = vrot.lane.b32.xlu0 %v1459, 96
        %v2952 = vpop.permute.xlu0 %2951
        %2953 = vrot.lane.b32.xlu0 %v1589, 96
        %v2954 = vpop.permute.xlu0 %2953
        %2955 = vrot.lane.b32.xlu0 %v1590, 96
        %v2956 = vpop.permute.xlu0 %2955
        %2957 = vrot.lane.b32.xlu0 %v1591, 96
        %v2958 = vpop.permute.xlu0 %2957
        %2959 = vrot.lane.b32.xlu0 %v1592, 96
        %v2960 = vpop.permute.xlu0 %2959
        %2961 = vrot.lane.b32.xlu0 %v1593, 96
        %v2962 = vpop.permute.xlu0 %2961
        %2963 = vrot.lane.b32.xlu0 %v1594, 96
        %v2964 = vpop.permute.xlu0 %2963
        %2965 = vrot.lane.b32.xlu0 %v1595, 96
        %v2966 = vpop.permute.xlu0 %2965
        %2967 = vrot.lane.b32.xlu0 %v1596, 96
        %v2968 = vpop.permute.xlu0 %2967
        %v2970 = vsel %vm1734, %v2938, 0
        %v2973 = vsel %vm1734, %v2940, 0
        %v2976 = vsel %vm1734, %v2942, 0
        %v2979 = vsel %vm1734, %v2944, 0
        %v2982 = vsel %vm1734, %v2946, 0
        %v2985 = vsel %vm1734, %v2948, 0
        %v2988 = vsel %vm1734, %v2950, 0
        %v2991 = vsel %vm1734, %v2952, 0
        %v2994 = vsel %vm1734, %v2954, 0
        %v2997 = vsel %vm1734, %v2956, 0
        %v3000 = vsel %vm1734, %v2958, 0
        %v3003 = vsel %vm1734, %v2960, 0
        %v3006 = vsel %vm1734, %v2962, 0
        %v3009 = vsel %vm1734, %v2964, 0
        %v3012 = vsel %vm1734, %v2966, 0
        %v3015 = vsel %vm1734, %v2968, 0
        %3017 = vmatprep.subr.bf16.mxu0 0
        %3018 = vmatpush1.bf16.xpose.msra.mxu0 %v2994
        %3019 = vmatprep.subr.bf16.mxu0 0
        %3020 = vmatpush1.bf16.xpose.msra.mxu0 %v2997
        %3021 = vmatprep.subr.bf16.mxu0 0
        %3022 = vmatpush1.bf16.xpose.msra.mxu0 %v3000
        %3023 = vmatprep.subr.bf16.mxu0 0
        %3024 = vmatpush1.bf16.xpose.msra.mxu0 %v3003
        %3025 = vmatprep.subr.bf16.mxu0 0
        %3026 = vmatpush1.bf16.xpose.msra.mxu0 %v3006
        %3027 = vmatprep.subr.bf16.mxu0 0
        %3028 = vmatpush1.bf16.xpose.msra.mxu0 %v3009
        %3029 = vmatprep.subr.bf16.mxu0 0
        %3030 = vmatpush1.bf16.xpose.msra.mxu0 %v3012
        %3031 = vmatprep.subr.bf16.mxu0 0
        %3032 = vmatpush1.bf16.xpose.msra.mxu0 %v3015
        %3033 = vmatprep.subr.bf16.mxu0 0
        %3034 = vmatpush1.bf16.xpose.msra.mxu0 0
        %3035 = vmatprep.subr.bf16.mxu0 0
        %3036 = vmatpush1.bf16.xpose.msra.mxu0 0
        %3037 = vmatprep.subr.bf16.mxu0 0
        %3038 = vmatpush1.bf16.xpose.msra.mxu0 0
        %3039 = vmatprep.subr.bf16.mxu0 0
        %3040 = vmatpush1.bf16.xpose.msra.mxu0 0
        %3041 = vmatprep.subr.bf16.mxu0 0
        %3042 = vmatpush1.bf16.xpose.msra.mxu0 0
        %3043 = vmatprep.subr.bf16.mxu0 0
        %3044 = vmatpush1.bf16.xpose.msra.mxu0 0
        %3045 = vmatprep.subr.bf16.mxu0 0
        %3046 = vmatpush1.bf16.xpose.msra.mxu0 0
        %3047 = vmatprep.subr.bf16.mxu0 0
        %3048 = vmatpush1.bf16.xpose.msra.mxu0 0
        %3049 = vmatprep.mubr.bf16.mxu0 0
        %3050 = vmatmul.mubr.bf16.gmra.mrb[0].mxu0 %v2970
        %v3051 = vpop.f32.mrb[0].mxu0
        %v3052 = vadd.f32 %v960, %v3051
        %v3053 = vpop.f32.mrb[0].mxu0
        %v3054 = vpop.f32.mrb[0].mxu0
        %v3055 = vadd.f32 %v961, %v3054
        %v3056 = vpop.f32.mrb[0].mxu0
        %3057 = vmatprep.mubr.bf16.mxu0 0
        %3058 = vmatmul.mubr.bf16.gmra.mrb[0].mxu0 %v2973
        %v3059 = vpop.f32.mrb[0].mxu0
        %v3060 = vadd.f32 %v962, %v3059
        %v3061 = vpop.f32.mrb[0].mxu0
        %v3062 = vpop.f32.mrb[0].mxu0
        %v3063 = vadd.f32 %v963, %v3062
        %v3064 = vpop.f32.mrb[0].mxu0
        %3065 = vmatprep.mubr.bf16.mxu0 0
        %3066 = vmatmul.mubr.bf16.gmra.mrb[0].mxu0 %v2976
        %v3067 = vpop.f32.mrb[0].mxu0
        %v3068 = vadd.f32 %v964, %v3067
        %v3069 = vpop.f32.mrb[0].mxu0
        %v3070 = vpop.f32.mrb[0].mxu0
        %v3071 = vadd.f32 %v965, %v3070
        %v3072 = vpop.f32.mrb[0].mxu0
        %3073 = vmatprep.mubr.bf16.mxu0 0
        %3074 = vmatmul.mubr.bf16.gmra.mrb[0].mxu0 %v2979
        %v3075 = vpop.f32.mrb[0].mxu0
        %v3076 = vadd.f32 %v966, %v3075
        %v3077 = vpop.f32.mrb[0].mxu0
        %v3078 = vpop.f32.mrb[0].mxu0
        %v3079 = vadd.f32 %v967, %v3078
        %v3080 = vpop.f32.mrb[0].mxu0
        %3081 = vmatprep.mubr.bf16.mxu0 0
        %3082 = vmatmul.mubr.bf16.gmra.mrb[0].mxu0 %v2982
        %v3083 = vpop.f32.mrb[0].mxu0
        %v3084 = vadd.f32 %v968, %v3083
        %v3085 = vpop.f32.mrb[0].mxu0
        %v3086 = vpop.f32.mrb[0].mxu0
        %v3087 = vadd.f32 %v969, %v3086
        %v3088 = vpop.f32.mrb[0].mxu0
        %3089 = vmatprep.mubr.bf16.mxu0 0
        %3090 = vmatmul.mubr.bf16.gmra.mrb[0].mxu0 %v2985
        %v3091 = vpop.f32.mrb[0].mxu0
        %v3092 = vadd.f32 %v970, %v3091
        %v3093 = vpop.f32.mrb[0].mxu0
        %v3094 = vpop.f32.mrb[0].mxu0
        %v3095 = vadd.f32 %v971, %v3094
        %v3096 = vpop.f32.mrb[0].mxu0
        %3097 = vmatprep.mubr.bf16.mxu0 0
        %3098 = vmatmul.mubr.bf16.gmra.mrb[0].mxu0 %v2988
        %v3099 = vpop.f32.mrb[0].mxu0
        %v3100 = vadd.f32 %v972, %v3099
        %v3101 = vpop.f32.mrb[0].mxu0
        %v3102 = vpop.f32.mrb[0].mxu0
        %v3103 = vadd.f32 %v973, %v3102
        %v3104 = vpop.f32.mrb[0].mxu0
        %3105 = vmatprep.mubr.bf16.mxu0 0
        %3106 = vmatmul.mubr.bf16.gmra.mrb[0].mxu0 %v2991
        %v3107 = vpop.f32.mrb[0].mxu0
        %v3108 = vadd.f32 %v974, %v3107
        %v3109 = vpop.f32.mrb[0].mxu0
        %v3110 = vpop.f32.mrb[0].mxu0
        %v3111 = vadd.f32 %v975, %v3110
        %v3112 = vpop.f32.mrb[0].mxu0
        %3113 = vdwg.mxu0
        %3114 = vmax.xlane.f32.xlu0 %v3052
        %v3115 = vpop.xlane.xlu0 %3114
        %3116 = vmax.xlane.f32.xlu0 %v3055
        %v3117 = vpop.xlane.xlu0 %3116
        %3118 = vmax.xlane.f32.xlu0 %v3060
        %v3119 = vpop.xlane.xlu0 %3118
        %3120 = vmax.xlane.f32.xlu0 %v3063
        %v3121 = vpop.xlane.xlu0 %3120
        %3122 = vmax.xlane.f32.xlu0 %v3068
        %v3123 = vpop.xlane.xlu0 %3122
        %3124 = vmax.xlane.f32.xlu0 %v3071
        %v3125 = vpop.xlane.xlu0 %3124
        %3126 = vmax.xlane.f32.xlu0 %v3076
        %v3127 = vpop.xlane.xlu0 %3126
        %3128 = vmax.xlane.f32.xlu0 %v3079
        %v3129 = vpop.xlane.xlu0 %3128
        %3130 = vmax.xlane.f32.xlu0 %v3084
        %v3131 = vpop.xlane.xlu0 %3130
        %3132 = vmax.xlane.f32.xlu0 %v3087
        %v3133 = vpop.xlane.xlu0 %3132
        %3134 = vmax.xlane.f32.xlu0 %v3092
        %v3135 = vpop.xlane.xlu0 %3134
        %3136 = vmax.xlane.f32.xlu0 %v3095
        %v3137 = vpop.xlane.xlu0 %3136
        %3138 = vmax.xlane.f32.xlu0 %v3100
        %v3139 = vpop.xlane.xlu0 %3138
        %3140 = vmax.xlane.f32.xlu0 %v3103
        %v3141 = vpop.xlane.xlu0 %3140
        %3142 = vmax.xlane.f32.xlu0 %v3108
        %v3143 = vpop.xlane.xlu0 %3142
        %3144 = vmax.xlane.f32.xlu0 %v3111
        %v3145 = vpop.xlane.xlu0 %3144
        %v3146 = vsub.f32 %v3052, %v3115
        %v3147 = vsub.f32 %v3055, %v3117
        %v3148 = vsub.f32 %v3060, %v3119
        %v3149 = vsub.f32 %v3063, %v3121
        %v3150 = vsub.f32 %v3068, %v3123
        %v3151 = vsub.f32 %v3071, %v3125
        %v3152 = vsub.f32 %v3076, %v3127
        %v3153 = vsub.f32 %v3079, %v3129
        %v3154 = vsub.f32 %v3084, %v3131
        %v3155 = vsub.f32 %v3087, %v3133
        %v3156 = vsub.f32 %v3092, %v3135
        %v3157 = vsub.f32 %v3095, %v3137
        %v3158 = vsub.f32 %v3100, %v3139
        %v3159 = vsub.f32 %v3103, %v3141
        %v3160 = vsub.f32 %v3108, %v3143
        %v3161 = vsub.f32 %v3111, %v3145
        %v3162 = vmul.f32 %v3146, 1.442695
        %v3163 = vpow.pop %v3162
        %v3164 = vmul.f32 %v3147, 1.442695
        %v3165 = vpow.pop %v3164
        %v3166 = vmul.f32 %v3148, 1.442695
        %v3167 = vpow.pop %v3166
        %v3168 = vmul.f32 %v3149, 1.442695
        %v3169 = vpow.pop %v3168
        %v3170 = vmul.f32 %v3150, 1.442695
        %v3171 = vpow.pop %v3170
        %v3172 = vmul.f32 %v3151, 1.442695
        %v3173 = vpow.pop %v3172
        %v3174 = vmul.f32 %v3152, 1.442695
        %v3175 = vpow.pop %v3174
        %v3176 = vmul.f32 %v3153, 1.442695
        %v3177 = vpow.pop %v3176
        %v3178 = vmul.f32 %v3154, 1.442695
        %v3179 = vpow.pop %v3178
        %v3180 = vmul.f32 %v3155, 1.442695
        %v3181 = vpow.pop %v3180
        %v3182 = vmul.f32 %v3156, 1.442695
        %v3183 = vpow.pop %v3182
        %v3184 = vmul.f32 %v3157, 1.442695
        %v3185 = vpow.pop %v3184
        %v3186 = vmul.f32 %v3158, 1.442695
        %v3187 = vpow.pop %v3186
        %v3188 = vmul.f32 %v3159, 1.442695
        %v3189 = vpow.pop %v3188
        %v3190 = vmul.f32 %v3160, 1.442695
        %v3191 = vpow.pop %v3190
        %v3192 = vmul.f32 %v3161, 1.442695
        %v3193 = vpow.pop %v3192
        %3194 = vadd.xlane.f32.xlu0 %v3163
        %v3195 = vpop.xlane.xlu0 %3194
        %3196 = vadd.xlane.f32.xlu0 %v3165
        %v3197 = vpop.xlane.xlu0 %3196
        %3198 = vadd.xlane.f32.xlu0 %v3167
        %v3199 = vpop.xlane.xlu0 %3198
        %3200 = vadd.xlane.f32.xlu0 %v3169
        %v3201 = vpop.xlane.xlu0 %3200
        %3202 = vadd.xlane.f32.xlu0 %v3171
        %v3203 = vpop.xlane.xlu0 %3202
        %3204 = vadd.xlane.f32.xlu0 %v3173
        %v3205 = vpop.xlane.xlu0 %3204
        %3206 = vadd.xlane.f32.xlu0 %v3175
        %v3207 = vpop.xlane.xlu0 %3206
        %3208 = vadd.xlane.f32.xlu0 %v3177
        %v3209 = vpop.xlane.xlu0 %3208
        %3210 = vadd.xlane.f32.xlu0 %v3179
        %v3211 = vpop.xlane.xlu0 %3210
        %3212 = vadd.xlane.f32.xlu0 %v3181
        %v3213 = vpop.xlane.xlu0 %3212
        %3214 = vadd.xlane.f32.xlu0 %v3183
        %v3215 = vpop.xlane.xlu0 %3214
        %3216 = vadd.xlane.f32.xlu0 %v3185
        %v3217 = vpop.xlane.xlu0 %3216
        %3218 = vadd.xlane.f32.xlu0 %v3187
        %v3219 = vpop.xlane.xlu0 %3218
        %3220 = vadd.xlane.f32.xlu0 %v3189
        %v3221 = vpop.xlane.xlu0 %3220
        %3222 = vadd.xlane.f32.xlu0 %v3191
        %v3223 = vpop.xlane.xlu0 %3222
        %3224 = vadd.xlane.f32.xlu0 %v3193
        %v3225 = vpop.xlane.xlu0 %3224
        %v3226 = vrcp.pop %v3195
        %v3227 = vmul.f32 %v1010, %v3226
        %v3228 = vrcp.pop %v3197
        %v3229 = vmul.f32 %v1013, %v3228
        %v3230 = vrcp.pop %v3199
        %v3231 = vmul.f32 %v1016, %v3230
        %v3232 = vrcp.pop %v3201
        %v3233 = vmul.f32 %v1019, %v3232
        %v3234 = vrcp.pop %v3203
        %v3235 = vmul.f32 %v1022, %v3234
        %v3236 = vrcp.pop %v3205
        %v3237 = vmul.f32 %v1025, %v3236
        %v3238 = vrcp.pop %v3207
        %v3239 = vmul.f32 %v1028, %v3238
        %v3240 = vrcp.pop %v3209
        %v3241 = vmul.f32 %v1031, %v3240
        %v3242 = vrcp.pop %v3211
        %v3243 = vmul.f32 %v1034, %v3242
        %v3244 = vrcp.pop %v3213
        %v3245 = vmul.f32 %v1037, %v3244
        %v3246 = vrcp.pop %v3215
        %v3247 = vmul.f32 %v1040, %v3246
        %v3248 = vrcp.pop %v3217
        %v3249 = vmul.f32 %v1043, %v3248
        %v3250 = vrcp.pop %v3219
        %v3251 = vmul.f32 %v1046, %v3250
        %v3252 = vrcp.pop %v3221
        %v3253 = vmul.f32 %v1049, %v3252
        %v3254 = vrcp.pop %v3223
        %v3255 = vmul.f32 %v1052, %v3254
        %v3256 = vrcp.pop %v3225
        %v3257 = vmul.f32 %v1055, %v3256
        %v3258 = vpack.c.bf16 %v3165, %v3163
        %v3259 = vpack.c.bf16 %v3169, %v3167
        %v3260 = vpack.c.bf16 %v3173, %v3171
        %v3261 = vpack.c.bf16 %v3177, %v3175
        %v3262 = vpack.c.bf16 %v3181, %v3179
        %v3263 = vpack.c.bf16 %v3185, %v3183
        %v3264 = vpack.c.bf16 %v3189, %v3187
        %v3265 = vpack.c.bf16 %v3193, %v3191
        %3266 = vrot.lane.b32.xlu0 %v1726, 96
        %v3267 = vpop.permute.xlu0 %3266
        %3268 = vrot.lane.b32.xlu0 %v1727, 96
        %v3269 = vpop.permute.xlu0 %3268
        %3270 = vrot.lane.b32.xlu0 %v1728, 96
        %v3271 = vpop.permute.xlu0 %3270
        %3272 = vrot.lane.b32.xlu0 %v1729, 96
        %v3273 = vpop.permute.xlu0 %3272
        %3274 = vrot.lane.b32.xlu0 %v1730, 96
        %v3275 = vpop.permute.xlu0 %3274
        %3276 = vrot.lane.b32.xlu0 %v1731, 96
        %v3277 = vpop.permute.xlu0 %3276
        %3278 = vrot.lane.b32.xlu0 %v1732, 96
        %v3279 = vpop.permute.xlu0 %3278
        %3280 = vrot.lane.b32.xlu0 %v1733, 96
        %v3281 = vpop.permute.xlu0 %3280
        %3290 = vmatprep.subr.bf16.mxu0 0
        %3291 = vmatpush1.bf16.msra.mxu0 %v3267
        %3292 = vmatprep.subr.bf16.mxu0 0
        %3293 = vmatpush1.bf16.msra.mxu0 %v3269
        %3294 = vmatprep.subr.bf16.mxu0 0
        %3295 = vmatpush1.bf16.msra.mxu0 %v3271
        %3296 = vmatprep.subr.bf16.mxu0 0
        %3297 = vmatpush1.bf16.msra.mxu0 %v3273
        %3298 = vmatprep.subr.bf16.mxu0 0
        %3299 = vmatpush1.bf16.msra.mxu0 %v3275
        %3300 = vmatprep.subr.bf16.mxu0 0
        %3301 = vmatpush1.bf16.msra.mxu0 %v3277
        %3302 = vmatprep.subr.bf16.mxu0 0
        %3303 = vmatpush1.bf16.msra.mxu0 %v3279
        %3304 = vmatprep.subr.bf16.mxu0 0
        %3305 = vmatpush1.bf16.msra.mxu0 %v3281
        %3306 = vmatprep.subr.bf16.mxu0 0
        %3307 = vmatpush1.bf16.msra.mxu0 0
        %3308 = vmatprep.subr.bf16.mxu0 0
        %3309 = vmatpush1.bf16.msra.mxu0 0
        %3310 = vmatprep.subr.bf16.mxu0 0
        %3311 = vmatpush1.bf16.msra.mxu0 0
        %3312 = vmatprep.subr.bf16.mxu0 0
        %3313 = vmatpush1.bf16.msra.mxu0 0
        %3314 = vmatprep.subr.bf16.mxu0 0
        %3315 = vmatpush1.bf16.msra.mxu0 0
        %3316 = vmatprep.subr.bf16.mxu0 0
        %3317 = vmatpush1.bf16.msra.mxu0 0
        %3318 = vmatprep.subr.bf16.mxu0 0
        %3319 = vmatpush1.bf16.msra.mxu0 0
        %3320 = vmatprep.subr.bf16.mxu0 0
        %3321 = vmatpush1.bf16.msra.mxu0 0
        %3322 = vmatprep.mubr.bf16.mxu0 0
        %3323 = vmatmul.mubr.bf16.gmra.mrb[0].mxu0 %v3258
        %v3324 = vpop.f32.mrb[0].mxu0
        %v3325 = vadd.f32 0.0, %v3324
        %v3326 = vpop.f32.mrb[0].mxu0
        %v3327 = vpop.f32.mrb[0].mxu0
        %v3328 = vadd.f32 0.0, %v3327
        %v3329 = vpop.f32.mrb[0].mxu0
        %3330 = vmatprep.mubr.bf16.mxu0 0
        %3331 = vmatmul.mubr.bf16.gmra.mrb[0].mxu0 %v3259
        %v3332 = vpop.f32.mrb[0].mxu0
        %v3333 = vadd.f32 0.0, %v3332
        %v3334 = vpop.f32.mrb[0].mxu0
        %v3335 = vpop.f32.mrb[0].mxu0
        %v3336 = vadd.f32 0.0, %v3335
        %v3337 = vpop.f32.mrb[0].mxu0
        %3338 = vmatprep.mubr.bf16.mxu0 0
        %3339 = vmatmul.mubr.bf16.gmra.mrb[0].mxu0 %v3260
        %v3340 = vpop.f32.mrb[0].mxu0
        %v3341 = vadd.f32 0.0, %v3340
        %v3342 = vpop.f32.mrb[0].mxu0
        %v3343 = vpop.f32.mrb[0].mxu0
        %v3344 = vadd.f32 0.0, %v3343
        %v3345 = vpop.f32.mrb[0].mxu0
        %3346 = vmatprep.mubr.bf16.mxu0 0
        %3347 = vmatmul.mubr.bf16.gmra.mrb[0].mxu0 %v3261
        %v3348 = vpop.f32.mrb[0].mxu0
        %v3349 = vadd.f32 0.0, %v3348
        %v3350 = vpop.f32.mrb[0].mxu0
        %v3351 = vpop.f32.mrb[0].mxu0
        %v3352 = vadd.f32 0.0, %v3351
        %v3353 = vpop.f32.mrb[0].mxu0
        %3354 = vmatprep.mubr.bf16.mxu0 0
        %3355 = vmatmul.mubr.bf16.gmra.mrb[0].mxu0 %v3262
        %v3356 = vpop.f32.mrb[0].mxu0
        %v3357 = vadd.f32 0.0, %v3356
        %v3358 = vpop.f32.mrb[0].mxu0
        %v3359 = vpop.f32.mrb[0].mxu0
        %v3360 = vadd.f32 0.0, %v3359
        %v3361 = vpop.f32.mrb[0].mxu0
        %3362 = vmatprep.mubr.bf16.mxu0 0
        %3363 = vmatmul.mubr.bf16.gmra.mrb[0].mxu0 %v3263
        %v3364 = vpop.f32.mrb[0].mxu0
        %v3365 = vadd.f32 0.0, %v3364
        %v3366 = vpop.f32.mrb[0].mxu0
        %v3367 = vpop.f32.mrb[0].mxu0
        %v3368 = vadd.f32 0.0, %v3367
        %v3369 = vpop.f32.mrb[0].mxu0
        %3370 = vmatprep.mubr.bf16.mxu0 0
        %3371 = vmatmul.mubr.bf16.gmra.mrb[0].mxu0 %v3264
        %v3372 = vpop.f32.mrb[0].mxu0
        %v3373 = vadd.f32 0.0, %v3372
        %v3374 = vpop.f32.mrb[0].mxu0
        %v3375 = vpop.f32.mrb[0].mxu0
        %v3376 = vadd.f32 0.0, %v3375
        %v3377 = vpop.f32.mrb[0].mxu0
        %3378 = vmatprep.mubr.bf16.mxu0 0
        %3379 = vmatmul.mubr.bf16.gmra.mrb[0].mxu0 %v3265
        %v3380 = vpop.f32.mrb[0].mxu0
        %v3381 = vadd.f32 0.0, %v3380
        %v3382 = vpop.f32.mrb[0].mxu0
        %v3383 = vpop.f32.mrb[0].mxu0
        %v3384 = vadd.f32 0.0, %v3383
        %v3385 = vpop.f32.mrb[0].mxu0
        %3386 = vdwg.mxu0
        %v3387 = vmul.f32 %v3325, %v3227
        %v3388 = vmul.f32 %v3328, %v3229
        %v3389 = vmul.f32 %v3333, %v3231
        %v3390 = vmul.f32 %v3336, %v3233
        %v3391 = vmul.f32 %v3341, %v3235
        %v3392 = vmul.f32 %v3344, %v3237
        %v3393 = vmul.f32 %v3349, %v3239
        %v3394 = vmul.f32 %v3352, %v3241
        %v3395 = vmul.f32 %v3357, %v3243
        %v3396 = vmul.f32 %v3360, %v3245
        %v3397 = vmul.f32 %v3365, %v3247
        %v3398 = vmul.f32 %v3368, %v3249
        %v3399 = vmul.f32 %v3373, %v3251
        %v3400 = vmul.f32 %v3376, %v3253
        %v3401 = vmul.f32 %v3381, %v3255
        %v3402 = vmul.f32 %v3384, %v3257
        %v3403 = vpack.c.bf16 %v3388, %v3387
        %v3404 = vpack.c.bf16 %v3390, %v3389
        %v3405 = vpack.c.bf16 %v3392, %v3391
        %v3406 = vpack.c.bf16 %v3394, %v3393
        %v3407 = vpack.c.bf16 %v3396, %v3395
        %v3408 = vpack.c.bf16 %v3398, %v3397
        %v3409 = vpack.c.bf16 %v3400, %v3399
        %v3410 = vpack.c.bf16 %v3402, %v3401
        %v3413 = vunpack.c.l.b16 %v1294
        %v3414 = vunpack.c.l.b16 %v1295
        %v3415 = vpack.c.b16 %v3414, %v3413
        %v3418 = vsel %vm1734, %v3403, 0
        %v3421 = vsel %vm1734, %v3404, 0
        %v3424 = vsel %vm1734, %v3405, 0
        %v3427 = vsel %vm1734, %v3406, 0
        %v3430 = vsel %vm1734, %v3407, 0
        %v3433 = vsel %vm1734, %v3408, 0
        %v3436 = vsel %vm1734, %v3409, 0
        %v3439 = vsel %vm1734, %v3410, 0
        %3441 = vmatprep.subr.bf16.mxu0 0
        %3442 = vmatpush1.bf16.msra.mxu0 %v3415
        %3443 = vmatprep.subr.bf16.mxu0 0
        %3444 = vmatpush1.bf16.msra.mxu0 0
        %3445 = vmatprep.subr.bf16.mxu0 0
        %3446 = vmatpush1.bf16.msra.mxu0 0
        %3447 = vmatprep.subr.bf16.mxu0 0
        %3448 = vmatpush1.bf16.msra.mxu0 0
        %3449 = vmatprep.subr.bf16.mxu0 0
        %3450 = vmatpush1.bf16.msra.mxu0 0
        %3451 = vmatprep.subr.bf16.mxu0 0
        %3452 = vmatpush1.bf16.msra.mxu0 0
        %3453 = vmatprep.subr.bf16.mxu0 0
        %3454 = vmatpush1.bf16.msra.mxu0 0
        %3455 = vmatprep.subr.bf16.mxu0 0
        %3456 = vmatpush1.bf16.msra.mxu0 0
        %3457 = vmatprep.subr.bf16.mxu0 0
        %3458 = vmatpush1.bf16.msra.mxu0 0
        %3459 = vmatprep.subr.bf16.mxu0 0
        %3460 = vmatpush1.bf16.msra.mxu0 0
        %3461 = vmatprep.subr.bf16.mxu0 0
        %3462 = vmatpush1.bf16.msra.mxu0 0
        %3463 = vmatprep.subr.bf16.mxu0 0
        %3464 = vmatpush1.bf16.msra.mxu0 0
        %3465 = vmatprep.subr.bf16.mxu0 0
        %3466 = vmatpush1.bf16.msra.mxu0 0
        %3467 = vmatprep.subr.bf16.mxu0 0
        %3468 = vmatpush1.bf16.msra.mxu0 0
        %3469 = vmatprep.subr.bf16.mxu0 0
        %3470 = vmatpush1.bf16.msra.mxu0 0
        %3471 = vmatprep.subr.bf16.mxu0 0
        %3472 = vmatpush1.bf16.msra.mxu0 0
        %3473 = vmatprep.mubr.bf16.mxu0 0
        %3474 = vmatmul.mubr.bf16.gmra.mrb[0].mxu0 %v3418
        %v3475 = vpop.f32.mrb[0].mxu0
        %v3476 = vadd.f32 0.0, %v3475
        %v3477 = vpop.f32.mrb[0].mxu0
        %v3478 = vpop.f32.mrb[0].mxu0
        %v3479 = vadd.f32 0.0, %v3478
        %v3480 = vpop.f32.mrb[0].mxu0
        %3481 = vmatprep.mubr.bf16.mxu0 0
        %3482 = vmatmul.mubr.bf16.gmra.mrb[0].mxu0 %v3421
        %v3483 = vpop.f32.mrb[0].mxu0
        %v3484 = vadd.f32 0.0, %v3483
        %v3485 = vpop.f32.mrb[0].mxu0
        %v3486 = vpop.f32.mrb[0].mxu0
        %v3487 = vadd.f32 0.0, %v3486
        %v3488 = vpop.f32.mrb[0].mxu0
        %3489 = vmatprep.mubr.bf16.mxu0 0
        %3490 = vmatmul.mubr.bf16.gmra.mrb[0].mxu0 %v3424
        %v3491 = vpop.f32.mrb[0].mxu0
        %v3492 = vadd.f32 0.0, %v3491
        %v3493 = vpop.f32.mrb[0].mxu0
        %v3494 = vpop.f32.mrb[0].mxu0
        %v3495 = vadd.f32 0.0, %v3494
        %v3496 = vpop.f32.mrb[0].mxu0
        %3497 = vmatprep.mubr.bf16.mxu0 0
        %3498 = vmatmul.mubr.bf16.gmra.mrb[0].mxu0 %v3427
        %v3499 = vpop.f32.mrb[0].mxu0
        %v3500 = vadd.f32 0.0, %v3499
        %v3501 = vpop.f32.mrb[0].mxu0
        %v3502 = vpop.f32.mrb[0].mxu0
        %v3503 = vadd.f32 0.0, %v3502
        %v3504 = vpop.f32.mrb[0].mxu0
        %3505 = vmatprep.mubr.bf16.mxu0 0
        %3506 = vmatmul.mubr.bf16.gmra.mrb[0].mxu0 %v3430
        %v3507 = vpop.f32.mrb[0].mxu0
        %v3508 = vadd.f32 0.0, %v3507
        %v3509 = vpop.f32.mrb[0].mxu0
        %v3510 = vpop.f32.mrb[0].mxu0
        %v3511 = vadd.f32 0.0, %v3510
        %v3512 = vpop.f32.mrb[0].mxu0
        %3513 = vmatprep.mubr.bf16.mxu0 0
        %3514 = vmatmul.mubr.bf16.gmra.mrb[0].mxu0 %v3433
        %v3515 = vpop.f32.mrb[0].mxu0
        %v3516 = vadd.f32 0.0, %v3515
        %v3517 = vpop.f32.mrb[0].mxu0
        %v3518 = vpop.f32.mrb[0].mxu0
        %v3519 = vadd.f32 0.0, %v3518
        %v3520 = vpop.f32.mrb[0].mxu0
        %3521 = vmatprep.mubr.bf16.mxu0 0
        %3522 = vmatmul.mubr.bf16.gmra.mrb[0].mxu0 %v3436
        %v3523 = vpop.f32.mrb[0].mxu0
        %v3524 = vadd.f32 0.0, %v3523
        %v3525 = vpop.f32.mrb[0].mxu0
        %v3526 = vpop.f32.mrb[0].mxu0
        %v3527 = vadd.f32 0.0, %v3526
        %v3528 = vpop.f32.mrb[0].mxu0
        %3529 = vmatprep.mubr.bf16.mxu0 0
        %3530 = vmatmul.mubr.bf16.gmra.mrb[0].mxu0 %v3439
        %v3531 = vpop.f32.mrb[0].mxu0
        %v3532 = vadd.f32 0.0, %v3531
        %v3533 = vpop.f32.mrb[0].mxu0
        %v3534 = vpop.f32.mrb[0].mxu0
        %v3535 = vadd.f32 0.0, %v3534
        %v3536 = vpop.f32.mrb[0].mxu0
        %3537 = vdwg.mxu0
        %v3538 = vadd.f32 %v2921, %v3476
        %v3539 = vadd.f32 %v2922, %v3479
        %v3540 = vadd.f32 %v2923, %v3484
        %v3541 = vadd.f32 %v2924, %v3487
        %v3542 = vadd.f32 %v2925, %v3492
        %v3543 = vadd.f32 %v2926, %v3495
        %v3544 = vadd.f32 %v2927, %v3500
        %v3545 = vadd.f32 %v2928, %v3503
        %v3546 = vadd.f32 %v2929, %v3508
        %v3547 = vadd.f32 %v2930, %v3511
        %v3548 = vadd.f32 %v2931, %v3516
        %v3549 = vadd.f32 %v2932, %v3519
        %v3550 = vadd.f32 %v2933, %v3524
        %v3551 = vadd.f32 %v2934, %v3527
        %v3552 = vadd.f32 %v2935, %v3532
        %v3553 = vadd.f32 %v2936, %v3535
        %3554 = vrot.lane.b32.xlu0 %v1452, 80
        %v3555 = vpop.permute.xlu0 %3554
        %3556 = vrot.lane.b32.xlu0 %v1453, 80
        %v3557 = vpop.permute.xlu0 %3556
        %3558 = vrot.lane.b32.xlu0 %v1454, 80
        %v3559 = vpop.permute.xlu0 %3558
        %3560 = vrot.lane.b32.xlu0 %v1455, 80
        %v3561 = vpop.permute.xlu0 %3560
        %3562 = vrot.lane.b32.xlu0 %v1456, 80
        %v3563 = vpop.permute.xlu0 %3562
        %3564 = vrot.lane.b32.xlu0 %v1457, 80
        %v3565 = vpop.permute.xlu0 %3564
        %3566 = vrot.lane.b32.xlu0 %v1458, 80
        %v3567 = vpop.permute.xlu0 %3566
        %3568 = vrot.lane.b32.xlu0 %v1459, 80
        %v3569 = vpop.permute.xlu0 %3568
        %3570 = vrot.lane.b32.xlu0 %v1589, 80
        %v3571 = vpop.permute.xlu0 %3570
        %3572 = vrot.lane.b32.xlu0 %v1590, 80
        %v3573 = vpop.permute.xlu0 %3572
        %3574 = vrot.lane.b32.xlu0 %v1591, 80
        %v3575 = vpop.permute.xlu0 %3574
        %3576 = vrot.lane.b32.xlu0 %v1592, 80
        %v3577 = vpop.permute.xlu0 %3576
        %3578 = vrot.lane.b32.xlu0 %v1593, 80
        %v3579 = vpop.permute.xlu0 %3578
        %3580 = vrot.lane.b32.xlu0 %v1594, 80
        %v3581 = vpop.permute.xlu0 %3580
        %3582 = vrot.lane.b32.xlu0 %v1595, 80
        %v3583 = vpop.permute.xlu0 %3582
        %3584 = vrot.lane.b32.xlu0 %v1596, 80
        %v3585 = vpop.permute.xlu0 %3584
        %v3587 = vsel %vm1734, %v3555, 0
        %v3590 = vsel %vm1734, %v3557, 0
        %v3593 = vsel %vm1734, %v3559, 0
        %v3596 = vsel %vm1734, %v3561, 0
        %v3599 = vsel %vm1734, %v3563, 0
        %v3602 = vsel %vm1734, %v3565, 0
        %v3605 = vsel %vm1734, %v3567, 0
        %v3608 = vsel %vm1734, %v3569, 0
        %v3611 = vsel %vm1734, %v3571, 0
        %v3614 = vsel %vm1734, %v3573, 0
        %v3617 = vsel %vm1734, %v3575, 0
        %v3620 = vsel %vm1734, %v3577, 0
        %v3623 = vsel %vm1734, %v3579, 0
        %v3626 = vsel %vm1734, %v3581, 0
        %v3629 = vsel %vm1734, %v3583, 0
        %v3632 = vsel %vm1734, %v3585, 0
        %3634 = vmatprep.subr.bf16.mxu0 0
        %3635 = vmatpush1.bf16.xpose.msra.mxu0 %v3611
        %3636 = vmatprep.subr.bf16.mxu0 0
        %3637 = vmatpush1.bf16.xpose.msra.mxu0 %v3614
        %3638 = vmatprep.subr.bf16.mxu0 0
        %3639 = vmatpush1.bf16.xpose.msra.mxu0 %v3617
        %3640 = vmatprep.subr.bf16.mxu0 0
        %3641 = vmatpush1.bf16.xpose.msra.mxu0 %v3620
        %3642 = vmatprep.subr.bf16.mxu0 0
        %3643 = vmatpush1.bf16.xpose.msra.mxu0 %v3623
        %3644 = vmatprep.subr.bf16.mxu0 0
        %3645 = vmatpush1.bf16.xpose.msra.mxu0 %v3626
        %3646 = vmatprep.subr.bf16.mxu0 0
        %3647 = vmatpush1.bf16.xpose.msra.mxu0 %v3629
        %3648 = vmatprep.subr.bf16.mxu0 0
        %3649 = vmatpush1.bf16.xpose.msra.mxu0 %v3632
        %3650 = vmatprep.subr.bf16.mxu0 0
        %3651 = vmatpush1.bf16.xpose.msra.mxu0 0
        %3652 = vmatprep.subr.bf16.mxu0 0
        %3653 = vmatpush1.bf16.xpose.msra.mxu0 0
        %3654 = vmatprep.subr.bf16.mxu0 0
        %3655 = vmatpush1.bf16.xpose.msra.mxu0 0
        %3656 = vmatprep.subr.bf16.mxu0 0
        %3657 = vmatpush1.bf16.xpose.msra.mxu0 0
        %3658 = vmatprep.subr.bf16.mxu0 0
        %3659 = vmatpush1.bf16.xpose.msra.mxu0 0
        %3660 = vmatprep.subr.bf16.mxu0 0
        %3661 = vmatpush1.bf16.xpose.msra.mxu0 0
        %3662 = vmatprep.subr.bf16.mxu0 0
        %3663 = vmatpush1.bf16.xpose.msra.mxu0 0
        %3664 = vmatprep.subr.bf16.mxu0 0
        %3665 = vmatpush1.bf16.xpose.msra.mxu0 0
        %3666 = vmatprep.mubr.bf16.mxu0 0
        %3667 = vmatmul.mubr.bf16.gmra.mrb[0].mxu0 %v3587
        %v3668 = vpop.f32.mrb[0].mxu0
        %v3669 = vadd.f32 %v960, %v3668
        %v3670 = vpop.f32.mrb[0].mxu0
        %v3671 = vpop.f32.mrb[0].mxu0
        %v3672 = vadd.f32 %v961, %v3671
        %v3673 = vpop.f32.mrb[0].mxu0
        %3674 = vmatprep.mubr.bf16.mxu0 0
        %3675 = vmatmul.mubr.bf16.gmra.mrb[0].mxu0 %v3590
        %v3676 = vpop.f32.mrb[0].mxu0
        %v3677 = vadd.f32 %v962, %v3676
        %v3678 = vpop.f32.mrb[0].mxu0
        %v3679 = vpop.f32.mrb[0].mxu0
        %v3680 = vadd.f32 %v963, %v3679
        %v3681 = vpop.f32.mrb[0].mxu0
        %3682 = vmatprep.mubr.bf16.mxu0 0
        %3683 = vmatmul.mubr.bf16.gmra.mrb[0].mxu0 %v3593
        %v3684 = vpop.f32.mrb[0].mxu0
        %v3685 = vadd.f32 %v964, %v3684
        %v3686 = vpop.f32.mrb[0].mxu0
        %v3687 = vpop.f32.mrb[0].mxu0
        %v3688 = vadd.f32 %v965, %v3687
        %v3689 = vpop.f32.mrb[0].mxu0
        %3690 = vmatprep.mubr.bf16.mxu0 0
        %3691 = vmatmul.mubr.bf16.gmra.mrb[0].mxu0 %v3596
        %v3692 = vpop.f32.mrb[0].mxu0
        %v3693 = vadd.f32 %v966, %v3692
        %v3694 = vpop.f32.mrb[0].mxu0
        %v3695 = vpop.f32.mrb[0].mxu0
        %v3696 = vadd.f32 %v967, %v3695
        %v3697 = vpop.f32.mrb[0].mxu0
        %3698 = vmatprep.mubr.bf16.mxu0 0
        %3699 = vmatmul.mubr.bf16.gmra.mrb[0].mxu0 %v3599
        %v3700 = vpop.f32.mrb[0].mxu0
        %v3701 = vadd.f32 %v968, %v3700
        %v3702 = vpop.f32.mrb[0].mxu0
        %v3703 = vpop.f32.mrb[0].mxu0
        %v3704 = vadd.f32 %v969, %v3703
        %v3705 = vpop.f32.mrb[0].mxu0
        %3706 = vmatprep.mubr.bf16.mxu0 0
        %3707 = vmatmul.mubr.bf16.gmra.mrb[0].mxu0 %v3602
        %v3708 = vpop.f32.mrb[0].mxu0
        %v3709 = vadd.f32 %v970, %v3708
        %v3710 = vpop.f32.mrb[0].mxu0
        %v3711 = vpop.f32.mrb[0].mxu0
        %v3712 = vadd.f32 %v971, %v3711
        %v3713 = vpop.f32.mrb[0].mxu0
        %3714 = vmatprep.mubr.bf16.mxu0 0
        %3715 = vmatmul.mubr.bf16.gmra.mrb[0].mxu0 %v3605
        %v3716 = vpop.f32.mrb[0].mxu0
        %v3717 = vadd.f32 %v972, %v3716
        %v3718 = vpop.f32.mrb[0].mxu0
        %v3719 = vpop.f32.mrb[0].mxu0
        %v3720 = vadd.f32 %v973, %v3719
        %v3721 = vpop.f32.mrb[0].mxu0
        %3722 = vmatprep.mubr.bf16.mxu0 0
        %3723 = vmatmul.mubr.bf16.gmra.mrb[0].mxu0 %v3608
        %v3724 = vpop.f32.mrb[0].mxu0
        %v3725 = vadd.f32 %v974, %v3724
        %v3726 = vpop.f32.mrb[0].mxu0
        %v3727 = vpop.f32.mrb[0].mxu0
        %v3728 = vadd.f32 %v975, %v3727
        %v3729 = vpop.f32.mrb[0].mxu0
        %3730 = vdwg.mxu0
        %3731 = vmax.xlane.f32.xlu0 %v3669
        %v3732 = vpop.xlane.xlu0 %3731
        %3733 = vmax.xlane.f32.xlu0 %v3672
        %v3734 = vpop.xlane.xlu0 %3733
        %3735 = vmax.xlane.f32.xlu0 %v3677
        %v3736 = vpop.xlane.xlu0 %3735
        %3737 = vmax.xlane.f32.xlu0 %v3680
        %v3738 = vpop.xlane.xlu0 %3737
        %3739 = vmax.xlane.f32.xlu0 %v3685
        %v3740 = vpop.xlane.xlu0 %3739
        %3741 = vmax.xlane.f32.xlu0 %v3688
        %v3742 = vpop.xlane.xlu0 %3741
        %3743 = vmax.xlane.f32.xlu0 %v3693
        %v3744 = vpop.xlane.xlu0 %3743
        %3745 = vmax.xlane.f32.xlu0 %v3696
        %v3746 = vpop.xlane.xlu0 %3745
        %3747 = vmax.xlane.f32.xlu0 %v3701
        %v3748 = vpop.xlane.xlu0 %3747
        %3749 = vmax.xlane.f32.xlu0 %v3704
        %v3750 = vpop.xlane.xlu0 %3749
        %3751 = vmax.xlane.f32.xlu0 %v3709
        %v3752 = vpop.xlane.xlu0 %3751
        %3753 = vmax.xlane.f32.xlu0 %v3712
        %v3754 = vpop.xlane.xlu0 %3753
        %3755 = vmax.xlane.f32.xlu0 %v3717
        %v3756 = vpop.xlane.xlu0 %3755
        %3757 = vmax.xlane.f32.xlu0 %v3720
        %v3758 = vpop.xlane.xlu0 %3757
        %3759 = vmax.xlane.f32.xlu0 %v3725
        %v3760 = vpop.xlane.xlu0 %3759
        %3761 = vmax.xlane.f32.xlu0 %v3728
        %v3762 = vpop.xlane.xlu0 %3761
        %v3763 = vsub.f32 %v3669, %v3732
        %v3764 = vsub.f32 %v3672, %v3734
        %v3765 = vsub.f32 %v3677, %v3736
        %v3766 = vsub.f32 %v3680, %v3738
        %v3767 = vsub.f32 %v3685, %v3740
        %v3768 = vsub.f32 %v3688, %v3742
        %v3769 = vsub.f32 %v3693, %v3744
        %v3770 = vsub.f32 %v3696, %v3746
        %v3771 = vsub.f32 %v3701, %v3748
        %v3772 = vsub.f32 %v3704, %v3750
        %v3773 = vsub.f32 %v3709, %v3752
        %v3774 = vsub.f32 %v3712, %v3754
        %v3775 = vsub.f32 %v3717, %v3756
        %v3776 = vsub.f32 %v3720, %v3758
        %v3777 = vsub.f32 %v3725, %v3760
        %v3778 = vsub.f32 %v3728, %v3762
        %v3779 = vmul.f32 %v3763, 1.442695
        %v3780 = vpow.pop %v3779
        %v3781 = vmul.f32 %v3764, 1.442695
        %v3782 = vpow.pop %v3781
        %v3783 = vmul.f32 %v3765, 1.442695
        %v3784 = vpow.pop %v3783
        %v3785 = vmul.f32 %v3766, 1.442695
        %v3786 = vpow.pop %v3785
        %v3787 = vmul.f32 %v3767, 1.442695
        %v3788 = vpow.pop %v3787
        %v3789 = vmul.f32 %v3768, 1.442695
        %v3790 = vpow.pop %v3789
        %v3791 = vmul.f32 %v3769, 1.442695
        %v3792 = vpow.pop %v3791
        %v3793 = vmul.f32 %v3770, 1.442695
        %v3794 = vpow.pop %v3793
        %v3795 = vmul.f32 %v3771, 1.442695
        %v3796 = vpow.pop %v3795
        %v3797 = vmul.f32 %v3772, 1.442695
        %v3798 = vpow.pop %v3797
        %v3799 = vmul.f32 %v3773, 1.442695
        %v3800 = vpow.pop %v3799
        %v3801 = vmul.f32 %v3774, 1.442695
        %v3802 = vpow.pop %v3801
        %v3803 = vmul.f32 %v3775, 1.442695
        %v3804 = vpow.pop %v3803
        %v3805 = vmul.f32 %v3776, 1.442695
        %v3806 = vpow.pop %v3805
        %v3807 = vmul.f32 %v3777, 1.442695
        %v3808 = vpow.pop %v3807
        %v3809 = vmul.f32 %v3778, 1.442695
        %v3810 = vpow.pop %v3809
        %3811 = vadd.xlane.f32.xlu0 %v3780
        %v3812 = vpop.xlane.xlu0 %3811
        %3813 = vadd.xlane.f32.xlu0 %v3782
        %v3814 = vpop.xlane.xlu0 %3813
        %3815 = vadd.xlane.f32.xlu0 %v3784
        %v3816 = vpop.xlane.xlu0 %3815
        %3817 = vadd.xlane.f32.xlu0 %v3786
        %v3818 = vpop.xlane.xlu0 %3817
        %3819 = vadd.xlane.f32.xlu0 %v3788
        %v3820 = vpop.xlane.xlu0 %3819
        %3821 = vadd.xlane.f32.xlu0 %v3790
        %v3822 = vpop.xlane.xlu0 %3821
        %3823 = vadd.xlane.f32.xlu0 %v3792
        %v3824 = vpop.xlane.xlu0 %3823
        %3825 = vadd.xlane.f32.xlu0 %v3794
        %v3826 = vpop.xlane.xlu0 %3825
        %3827 = vadd.xlane.f32.xlu0 %v3796
        %v3828 = vpop.xlane.xlu0 %3827
        %3829 = vadd.xlane.f32.xlu0 %v3798
        %v3830 = vpop.xlane.xlu0 %3829
        %3831 = vadd.xlane.f32.xlu0 %v3800
        %v3832 = vpop.xlane.xlu0 %3831
        %3833 = vadd.xlane.f32.xlu0 %v3802
        %v3834 = vpop.xlane.xlu0 %3833
        %3835 = vadd.xlane.f32.xlu0 %v3804
        %v3836 = vpop.xlane.xlu0 %3835
        %3837 = vadd.xlane.f32.xlu0 %v3806
        %v3838 = vpop.xlane.xlu0 %3837
        %3839 = vadd.xlane.f32.xlu0 %v3808
        %v3840 = vpop.xlane.xlu0 %3839
        %3841 = vadd.xlane.f32.xlu0 %v3810
        %v3842 = vpop.xlane.xlu0 %3841
        %v3843 = vrcp.pop %v3812
        %v3844 = vmul.f32 %v1010, %v3843
        %v3845 = vrcp.pop %v3814
        %v3846 = vmul.f32 %v1013, %v3845
        %v3847 = vrcp.pop %v3816
        %v3848 = vmul.f32 %v1016, %v3847
        %v3849 = vrcp.pop %v3818
        %v3850 = vmul.f32 %v1019, %v3849
        %v3851 = vrcp.pop %v3820
        %v3852 = vmul.f32 %v1022, %v3851
        %v3853 = vrcp.pop %v3822
        %v3854 = vmul.f32 %v1025, %v3853
        %v3855 = vrcp.pop %v3824
        %v3856 = vmul.f32 %v1028, %v3855
        %v3857 = vrcp.pop %v3826
        %v3858 = vmul.f32 %v1031, %v3857
        %v3859 = vrcp.pop %v3828
        %v3860 = vmul.f32 %v1034, %v3859
        %v3861 = vrcp.pop %v3830
        %v3862 = vmul.f32 %v1037, %v3861
        %v3863 = vrcp.pop %v3832
        %v3864 = vmul.f32 %v1040, %v3863
        %v3865 = vrcp.pop %v3834
        %v3866 = vmul.f32 %v1043, %v3865
        %v3867 = vrcp.pop %v3836
        %v3868 = vmul.f32 %v1046, %v3867
        %v3869 = vrcp.pop %v3838
        %v3870 = vmul.f32 %v1049, %v3869
        %v3871 = vrcp.pop %v3840
        %v3872 = vmul.f32 %v1052, %v3871
        %v3873 = vrcp.pop %v3842
        %v3874 = vmul.f32 %v1055, %v3873
        %v3875 = vpack.c.bf16 %v3782, %v3780
        %v3876 = vpack.c.bf16 %v3786, %v3784
        %v3877 = vpack.c.bf16 %v3790, %v3788
        %v3878 = vpack.c.bf16 %v3794, %v3792
        %v3879 = vpack.c.bf16 %v3798, %v3796
        %v3880 = vpack.c.bf16 %v3802, %v3800
        %v3881 = vpack.c.bf16 %v3806, %v3804
        %v3882 = vpack.c.bf16 %v3810, %v3808
        %3883 = vrot.lane.b32.xlu0 %v1726, 80
        %v3884 = vpop.permute.xlu0 %3883
        %3885 = vrot.lane.b32.xlu0 %v1727, 80
        %v3886 = vpop.permute.xlu0 %3885
        %3887 = vrot.lane.b32.xlu0 %v1728, 80
        %v3888 = vpop.permute.xlu0 %3887
        %3889 = vrot.lane.b32.xlu0 %v1729, 80
        %v3890 = vpop.permute.xlu0 %3889
        %3891 = vrot.lane.b32.xlu0 %v1730, 80
        %v3892 = vpop.permute.xlu0 %3891
        %3893 = vrot.lane.b32.xlu0 %v1731, 80
        %v3894 = vpop.permute.xlu0 %3893
        %3895 = vrot.lane.b32.xlu0 %v1732, 80
        %v3896 = vpop.permute.xlu0 %3895
        %3897 = vrot.lane.b32.xlu0 %v1733, 80
        %v3898 = vpop.permute.xlu0 %3897
        %3907 = vmatprep.subr.bf16.mxu0 0
        %3908 = vmatpush1.bf16.msra.mxu0 %v3884
        %3909 = vmatprep.subr.bf16.mxu0 0
        %3910 = vmatpush1.bf16.msra.mxu0 %v3886
        %3911 = vmatprep.subr.bf16.mxu0 0
        %3912 = vmatpush1.bf16.msra.mxu0 %v3888
        %3913 = vmatprep.subr.bf16.mxu0 0
        %3914 = vmatpush1.bf16.msra.mxu0 %v3890
        %3915 = vmatprep.subr.bf16.mxu0 0
        %3916 = vmatpush1.bf16.msra.mxu0 %v3892
        %3917 = vmatprep.subr.bf16.mxu0 0
        %3918 = vmatpush1.bf16.msra.mxu0 %v3894
        %3919 = vmatprep.subr.bf16.mxu0 0
        %3920 = vmatpush1.bf16.msra.mxu0 %v3896
        %3921 = vmatprep.subr.bf16.mxu0 0
        %3922 = vmatpush1.bf16.msra.mxu0 %v3898
        %3923 = vmatprep.subr.bf16.mxu0 0
        %3924 = vmatpush1.bf16.msra.mxu0 0
        %3925 = vmatprep.subr.bf16.mxu0 0
        %3926 = vmatpush1.bf16.msra.mxu0 0
        %3927 = vmatprep.subr.bf16.mxu0 0
        %3928 = vmatpush1.bf16.msra.mxu0 0
        %3929 = vmatprep.subr.bf16.mxu0 0
        %3930 = vmatpush1.bf16.msra.mxu0 0
        %3931 = vmatprep.subr.bf16.mxu0 0
        %3932 = vmatpush1.bf16.msra.mxu0 0
        %3933 = vmatprep.subr.bf16.mxu0 0
        %3934 = vmatpush1.bf16.msra.mxu0 0
        %3935 = vmatprep.subr.bf16.mxu0 0
        %3936 = vmatpush1.bf16.msra.mxu0 0
        %3937 = vmatprep.subr.bf16.mxu0 0
        %3938 = vmatpush1.bf16.msra.mxu0 0
        %3939 = vmatprep.mubr.bf16.mxu0 0
        %3940 = vmatmul.mubr.bf16.gmra.mrb[0].mxu0 %v3875
        %v3941 = vpop.f32.mrb[0].mxu0
        %v3942 = vadd.f32 0.0, %v3941
        %v3943 = vpop.f32.mrb[0].mxu0
        %v3944 = vpop.f32.mrb[0].mxu0
        %v3945 = vadd.f32 0.0, %v3944
        %v3946 = vpop.f32.mrb[0].mxu0
        %3947 = vmatprep.mubr.bf16.mxu0 0
        %3948 = vmatmul.mubr.bf16.gmra.mrb[0].mxu0 %v3876
        %v3949 = vpop.f32.mrb[0].mxu0
        %v3950 = vadd.f32 0.0, %v3949
        %v3951 = vpop.f32.mrb[0].mxu0
        %v3952 = vpop.f32.mrb[0].mxu0
        %v3953 = vadd.f32 0.0, %v3952
        %v3954 = vpop.f32.mrb[0].mxu0
        %3955 = vmatprep.mubr.bf16.mxu0 0
        %3956 = vmatmul.mubr.bf16.gmra.mrb[0].mxu0 %v3877
        %v3957 = vpop.f32.mrb[0].mxu0
        %v3958 = vadd.f32 0.0, %v3957
        %v3959 = vpop.f32.mrb[0].mxu0
        %v3960 = vpop.f32.mrb[0].mxu0
        %v3961 = vadd.f32 0.0, %v3960
        %v3962 = vpop.f32.mrb[0].mxu0
        %3963 = vmatprep.mubr.bf16.mxu0 0
        %3964 = vmatmul.mubr.bf16.gmra.mrb[0].mxu0 %v3878
        %v3965 = vpop.f32.mrb[0].mxu0
        %v3966 = vadd.f32 0.0, %v3965
        %v3967 = vpop.f32.mrb[0].mxu0
        %v3968 = vpop.f32.mrb[0].mxu0
        %v3969 = vadd.f32 0.0, %v3968
        %v3970 = vpop.f32.mrb[0].mxu0
        %3971 = vmatprep.mubr.bf16.mxu0 0
        %3972 = vmatmul.mubr.bf16.gmra.mrb[0].mxu0 %v3879
        %v3973 = vpop.f32.mrb[0].mxu0
        %v3974 = vadd.f32 0.0, %v3973
        %v3975 = vpop.f32.mrb[0].mxu0
        %v3976 = vpop.f32.mrb[0].mxu0
        %v3977 = vadd.f32 0.0, %v3976
        %v3978 = vpop.f32.mrb[0].mxu0
        %3979 = vmatprep.mubr.bf16.mxu0 0
        %3980 = vmatmul.mubr.bf16.gmra.mrb[0].mxu0 %v3880
        %v3981 = vpop.f32.mrb[0].mxu0
        %v3982 = vadd.f32 0.0, %v3981
        %v3983 = vpop.f32.mrb[0].mxu0
        %v3984 = vpop.f32.mrb[0].mxu0
        %v3985 = vadd.f32 0.0, %v3984
        %v3986 = vpop.f32.mrb[0].mxu0
        %3987 = vmatprep.mubr.bf16.mxu0 0
        %3988 = vmatmul.mubr.bf16.gmra.mrb[0].mxu0 %v3881
        %v3989 = vpop.f32.mrb[0].mxu0
        %v3990 = vadd.f32 0.0, %v3989
        %v3991 = vpop.f32.mrb[0].mxu0
        %v3992 = vpop.f32.mrb[0].mxu0
        %v3993 = vadd.f32 0.0, %v3992
        %v3994 = vpop.f32.mrb[0].mxu0
        %3995 = vmatprep.mubr.bf16.mxu0 0
        %3996 = vmatmul.mubr.bf16.gmra.mrb[0].mxu0 %v3882
        %v3997 = vpop.f32.mrb[0].mxu0
        %v3998 = vadd.f32 0.0, %v3997
        %v3999 = vpop.f32.mrb[0].mxu0
        %v4000 = vpop.f32.mrb[0].mxu0
        %v4001 = vadd.f32 0.0, %v4000
        %v4002 = vpop.f32.mrb[0].mxu0
        %4003 = vdwg.mxu0
        %v4004 = vmul.f32 %v3942, %v3844
        %v4005 = vmul.f32 %v3945, %v3846
        %v4006 = vmul.f32 %v3950, %v3848
        %v4007 = vmul.f32 %v3953, %v3850
        %v4008 = vmul.f32 %v3958, %v3852
        %v4009 = vmul.f32 %v3961, %v3854
        %v4010 = vmul.f32 %v3966, %v3856
        %v4011 = vmul.f32 %v3969, %v3858
        %v4012 = vmul.f32 %v3974, %v3860
        %v4013 = vmul.f32 %v3977, %v3862
        %v4014 = vmul.f32 %v3982, %v3864
        %v4015 = vmul.f32 %v3985, %v3866
        %v4016 = vmul.f32 %v3990, %v3868
        %v4017 = vmul.f32 %v3993, %v3870
        %v4018 = vmul.f32 %v3998, %v3872
        %v4019 = vmul.f32 %v4001, %v3874
        %v4020 = vpack.c.bf16 %v4005, %v4004
        %v4021 = vpack.c.bf16 %v4007, %v4006
        %v4022 = vpack.c.bf16 %v4009, %v4008
        %v4023 = vpack.c.bf16 %v4011, %v4010
        %v4024 = vpack.c.bf16 %v4013, %v4012
        %v4025 = vpack.c.bf16 %v4015, %v4014
        %v4026 = vpack.c.bf16 %v4017, %v4016
        %v4027 = vpack.c.bf16 %v4019, %v4018
        %v4030 = vunpack.c.l.b16 %v1296
        %v4031 = vunpack.c.l.b16 %v1297
        %v4032 = vpack.c.b16 %v4031, %v4030
        %v4035 = vsel %vm1734, %v4020, 0
        %v4038 = vsel %vm1734, %v4021, 0
        %v4041 = vsel %vm1734, %v4022, 0
        %v4044 = vsel %vm1734, %v4023, 0
        %v4047 = vsel %vm1734, %v4024, 0
        %v4050 = vsel %vm1734, %v4025, 0
        %v4053 = vsel %vm1734, %v4026, 0
        %v4056 = vsel %vm1734, %v4027, 0
        %4058 = vmatprep.subr.bf16.mxu0 0
        %4059 = vmatpush1.bf16.msra.mxu0 %v4032
        %4060 = vmatprep.subr.bf16.mxu0 0
        %4061 = vmatpush1.bf16.msra.mxu0 0
        %4062 = vmatprep.subr.bf16.mxu0 0
        %4063 = vmatpush1.bf16.msra.mxu0 0
        %4064 = vmatprep.subr.bf16.mxu0 0
        %4065 = vmatpush1.bf16.msra.mxu0 0
        %4066 = vmatprep.subr.bf16.mxu0 0
        %4067 = vmatpush1.bf16.msra.mxu0 0
        %4068 = vmatprep.subr.bf16.mxu0 0
        %4069 = vmatpush1.bf16.msra.mxu0 0
        %4070 = vmatprep.subr.bf16.mxu0 0
        %4071 = vmatpush1.bf16.msra.mxu0 0
        %4072 = vmatprep.subr.bf16.mxu0 0
        %4073 = vmatpush1.bf16.msra.mxu0 0
        %4074 = vmatprep.subr.bf16.mxu0 0
        %4075 = vmatpush1.bf16.msra.mxu0 0
        %4076 = vmatprep.subr.bf16.mxu0 0
        %4077 = vmatpush1.bf16.msra.mxu0 0
        %4078 = vmatprep.subr.bf16.mxu0 0
        %4079 = vmatpush1.bf16.msra.mxu0 0
        %4080 = vmatprep.subr.bf16.mxu0 0
        %4081 = vmatpush1.bf16.msra.mxu0 0
        %4082 = vmatprep.subr.bf16.mxu0 0
        %4083 = vmatpush1.bf16.msra.mxu0 0
        %4084 = vmatprep.subr.bf16.mxu0 0
        %4085 = vmatpush1.bf16.msra.mxu0 0
        %4086 = vmatprep.subr.bf16.mxu0 0
        %4087 = vmatpush1.bf16.msra.mxu0 0
        %4088 = vmatprep.subr.bf16.mxu0 0
        %4089 = vmatpush1.bf16.msra.mxu0 0
        %4090 = vmatprep.mubr.bf16.mxu0 0
        %4091 = vmatmul.mubr.bf16.gmra.mrb[0].mxu0 %v4035
        %v4092 = vpop.f32.mrb[0].mxu0
        %v4093 = vadd.f32 0.0, %v4092
        %v4094 = vpop.f32.mrb[0].mxu0
        %v4095 = vpop.f32.mrb[0].mxu0
        %v4096 = vadd.f32 0.0, %v4095
        %v4097 = vpop.f32.mrb[0].mxu0
        %4098 = vmatprep.mubr.bf16.mxu0 0
        %4099 = vmatmul.mubr.bf16.gmra.mrb[0].mxu0 %v4038
        %v4100 = vpop.f32.mrb[0].mxu0
        %v4101 = vadd.f32 0.0, %v4100
        %v4102 = vpop.f32.mrb[0].mxu0
        %v4103 = vpop.f32.mrb[0].mxu0
        %v4104 = vadd.f32 0.0, %v4103
        %v4105 = vpop.f32.mrb[0].mxu0
        %4106 = vmatprep.mubr.bf16.mxu0 0
        %4107 = vmatmul.mubr.bf16.gmra.mrb[0].mxu0 %v4041
        %v4108 = vpop.f32.mrb[0].mxu0
        %v4109 = vadd.f32 0.0, %v4108
        %v4110 = vpop.f32.mrb[0].mxu0
        %v4111 = vpop.f32.mrb[0].mxu0
        %v4112 = vadd.f32 0.0, %v4111
        %v4113 = vpop.f32.mrb[0].mxu0
        %4114 = vmatprep.mubr.bf16.mxu0 0
        %4115 = vmatmul.mubr.bf16.gmra.mrb[0].mxu0 %v4044
        %v4116 = vpop.f32.mrb[0].mxu0
        %v4117 = vadd.f32 0.0, %v4116
        %v4118 = vpop.f32.mrb[0].mxu0
        %v4119 = vpop.f32.mrb[0].mxu0
        %v4120 = vadd.f32 0.0, %v4119
        %v4121 = vpop.f32.mrb[0].mxu0
        %4122 = vmatprep.mubr.bf16.mxu0 0
        %4123 = vmatmul.mubr.bf16.gmra.mrb[0].mxu0 %v4047
        %v4124 = vpop.f32.mrb[0].mxu0
        %v4125 = vadd.f32 0.0, %v4124
        %v4126 = vpop.f32.mrb[0].mxu0
        %v4127 = vpop.f32.mrb[0].mxu0
        %v4128 = vadd.f32 0.0, %v4127
        %v4129 = vpop.f32.mrb[0].mxu0
        %4130 = vmatprep.mubr.bf16.mxu0 0
        %4131 = vmatmul.mubr.bf16.gmra.mrb[0].mxu0 %v4050
        %v4132 = vpop.f32.mrb[0].mxu0
        %v4133 = vadd.f32 0.0, %v4132
        %v4134 = vpop.f32.mrb[0].mxu0
        %v4135 = vpop.f32.mrb[0].mxu0
        %v4136 = vadd.f32 0.0, %v4135
        %v4137 = vpop.f32.mrb[0].mxu0
        %4138 = vmatprep.mubr.bf16.mxu0 0
        %4139 = vmatmul.mubr.bf16.gmra.mrb[0].mxu0 %v4053
        %v4140 = vpop.f32.mrb[0].mxu0
        %v4141 = vadd.f32 0.0, %v4140
        %v4142 = vpop.f32.mrb[0].mxu0
        %v4143 = vpop.f32.mrb[0].mxu0
        %v4144 = vadd.f32 0.0, %v4143
        %v4145 = vpop.f32.mrb[0].mxu0
        %4146 = vmatprep.mubr.bf16.mxu0 0
        %4147 = vmatmul.mubr.bf16.gmra.mrb[0].mxu0 %v4056
        %v4148 = vpop.f32.mrb[0].mxu0
        %v4149 = vadd.f32 0.0, %v4148
        %v4150 = vpop.f32.mrb[0].mxu0
        %v4151 = vpop.f32.mrb[0].mxu0
        %v4152 = vadd.f32 0.0, %v4151
        %v4153 = vpop.f32.mrb[0].mxu0
        %4154 = vdwg.mxu0
        %v4155 = vadd.f32 %v3538, %v4093
        %v4156 = vadd.f32 %v3539, %v4096
        %v4157 = vadd.f32 %v3540, %v4101
        %v4158 = vadd.f32 %v3541, %v4104
        %v4159 = vadd.f32 %v3542, %v4109
        %v4160 = vadd.f32 %v3543, %v4112
        %v4161 = vadd.f32 %v3544, %v4117
        %v4162 = vadd.f32 %v3545, %v4120
        %v4163 = vadd.f32 %v3546, %v4125
        %v4164 = vadd.f32 %v3547, %v4128
        %v4165 = vadd.f32 %v3548, %v4133
        %v4166 = vadd.f32 %v3549, %v4136
        %v4167 = vadd.f32 %v3550, %v4141
        %v4168 = vadd.f32 %v3551, %v4144
        %v4169 = vadd.f32 %v3552, %v4149
        %v4170 = vadd.f32 %v3553, %v4152
        %v4171 = vpack.c.bf16 %v4156, %v4155
        %v4172 = vpack.c.bf16 %v4158, %v4157
        %v4173 = vpack.c.bf16 %v4160, %v4159
        %v4174 = vpack.c.bf16 %v4162, %v4161
        %v4175 = vpack.c.bf16 %v4164, %v4163
        %v4176 = vpack.c.bf16 %v4166, %v4165
        %v4177 = vpack.c.bf16 %v4168, %v4167
        %v4178 = vpack.c.bf16 %v4170, %v4169
        %s4179 = scalar_lea.vmem [#allocation10], 32
        %v4180 = vld [vmem:[%s4179] sm:$0xf]
        %v4181 = vld [vmem:[%s4179 + $0x4] sm:$0xf]
        %v4182 = vld [vmem:[%s4179 + $0x8] sm:$0xf]
        %v4183 = vld [vmem:[%s4179 + $0xc] sm:$0xf]
        %v4184 = vld [vmem:[%s4179 + $0x10] sm:$0xf]
        %v4185 = vld [vmem:[%s4179 + $0x14] sm:$0xf]
        %v4186 = vld [vmem:[%s4179 + $0x18] sm:$0xf]
        %v4187 = vld [vmem:[%s4179 + $0x1c] sm:$0xf]
        %s4188 = scalar_lea.vmem [#allocation5], 32
        %v4189 = vld [vmem:[%s4188] sm:$0xf]
        %v4190 = vld [vmem:[%s4188 + $0x4] sm:$0xf]
        %v4191 = vld [vmem:[%s4188 + $0x8] sm:$0xf]
        %v4192 = vld [vmem:[%s4188 + $0xc] sm:$0xf]
        %v4193 = vld [vmem:[%s4188 + $0x10] sm:$0xf]
        %v4194 = vld [vmem:[%s4188 + $0x14] sm:$0xf]
        %v4195 = vld [vmem:[%s4188 + $0x18] sm:$0xf]
        %v4196 = vld [vmem:[%s4188 + $0x1c] sm:$0xf]
        %v4205 = vunpack.c.l.b16 %v4189
        %v4206 = vunpack.c.l.b16 %v4190
        %v4207 = vunpack.c.l.b16 %v4191
        %v4208 = vunpack.c.l.b16 %v4192
        %v4209 = vunpack.c.l.b16 %v4193
        %v4210 = vunpack.c.l.b16 %v4194
        %v4211 = vunpack.c.l.b16 %v4195
        %v4212 = vunpack.c.l.b16 %v4196
        %v4213 = vpack.c.b16 %v4206, %v4205
        %v4214 = vpack.c.b16 %v4208, %v4207
        %v4215 = vpack.c.b16 %v4210, %v4209
        %v4216 = vpack.c.b16 %v4212, %v4211
        %v4222 = vsel %vm1330, %v4171, 0
        %v4225 = vsel %vm1330, %v4172, 0
        %v4228 = vsel %vm1330, %v4173, 0
        %v4231 = vsel %vm1330, %v4174, 0
        %v4234 = vsel %vm1330, %v4175, 0
        %v4237 = vsel %vm1330, %v4176, 0
        %v4240 = vsel %vm1330, %v4177, 0
        %v4243 = vsel %vm1330, %v4178, 0
        %4245 = vmatprep.subr.bf16.mxu0 0
        %4246 = vmatpush1.bf16.msra.mxu0 %v4213
        %4247 = vmatprep.subr.bf16.mxu0 0
        %4248 = vmatpush1.bf16.msra.mxu0 %v4214
        %4249 = vmatprep.subr.bf16.mxu0 0
        %4250 = vmatpush1.bf16.msra.mxu0 %v4215
        %4251 = vmatprep.subr.bf16.mxu0 0
        %4252 = vmatpush1.bf16.msra.mxu0 %v4216
        %4253 = vmatprep.subr.bf16.mxu0 0
        %4254 = vmatpush1.bf16.msra.mxu0 0
        %4255 = vmatprep.subr.bf16.mxu0 0
        %4256 = vmatpush1.bf16.msra.mxu0 0
        %4257 = vmatprep.subr.bf16.mxu0 0
        %4258 = vmatpush1.bf16.msra.mxu0 0
        %4259 = vmatprep.subr.bf16.mxu0 0
        %4260 = vmatpush1.bf16.msra.mxu0 0
        %4261 = vmatprep.subr.bf16.mxu0 0
        %4262 = vmatpush1.bf16.msra.mxu0 0
        %4263 = vmatprep.subr.bf16.mxu0 0
        %4264 = vmatpush1.bf16.msra.mxu0 0
        %4265 = vmatprep.subr.bf16.mxu0 0
        %4266 = vmatpush1.bf16.msra.mxu0 0
        %4267 = vmatprep.subr.bf16.mxu0 0
        %4268 = vmatpush1.bf16.msra.mxu0 0
        %4269 = vmatprep.subr.bf16.mxu0 0
        %4270 = vmatpush1.bf16.msra.mxu0 0
        %4271 = vmatprep.subr.bf16.mxu0 0
        %4272 = vmatpush1.bf16.msra.mxu0 0
        %4273 = vmatprep.subr.bf16.mxu0 0
        %4274 = vmatpush1.bf16.msra.mxu0 0
        %4275 = vmatprep.subr.bf16.mxu0 0
        %4276 = vmatpush1.bf16.msra.mxu0 0
        %4277 = vmatprep.mubr.bf16.mxu0 0
        %4278 = vmatmul.mubr.bf16.gmra.mrb[0].mxu0 %v4222
        %v4279 = vpop.f32.mrb[0].mxu0
        %v4280 = vadd.f32 0.0, %v4279
        %v4281 = vpop.f32.mrb[0].mxu0
        %v4282 = vpop.f32.mrb[0].mxu0
        %v4283 = vadd.f32 0.0, %v4282
        %v4284 = vpop.f32.mrb[0].mxu0
        %4285 = vmatprep.mubr.bf16.mxu0 0
        %4286 = vmatmul.mubr.bf16.gmra.mrb[0].mxu0 %v4225
        %v4287 = vpop.f32.mrb[0].mxu0
        %v4288 = vadd.f32 0.0, %v4287
        %v4289 = vpop.f32.mrb[0].mxu0
        %v4290 = vpop.f32.mrb[0].mxu0
        %v4291 = vadd.f32 0.0, %v4290
        %v4292 = vpop.f32.mrb[0].mxu0
        %4293 = vmatprep.mubr.bf16.mxu0 0
        %4294 = vmatmul.mubr.bf16.gmra.mrb[0].mxu0 %v4228
        %v4295 = vpop.f32.mrb[0].mxu0
        %v4296 = vadd.f32 0.0, %v4295
        %v4297 = vpop.f32.mrb[0].mxu0
        %v4298 = vpop.f32.mrb[0].mxu0
        %v4299 = vadd.f32 0.0, %v4298
        %v4300 = vpop.f32.mrb[0].mxu0
        %4301 = vmatprep.mubr.bf16.mxu0 0
        %4302 = vmatmul.mubr.bf16.gmra.mrb[0].mxu0 %v4231
        %v4303 = vpop.f32.mrb[0].mxu0
        %v4304 = vadd.f32 0.0, %v4303
        %v4305 = vpop.f32.mrb[0].mxu0
        %v4306 = vpop.f32.mrb[0].mxu0
        %v4307 = vadd.f32 0.0, %v4306
        %v4308 = vpop.f32.mrb[0].mxu0
        %4309 = vmatprep.mubr.bf16.mxu0 0
        %4310 = vmatmul.mubr.bf16.gmra.mrb[0].mxu0 %v4234
        %v4311 = vpop.f32.mrb[0].mxu0
        %v4312 = vadd.f32 0.0, %v4311
        %v4313 = vpop.f32.mrb[0].mxu0
        %v4314 = vpop.f32.mrb[0].mxu0
        %v4315 = vadd.f32 0.0, %v4314
        %v4316 = vpop.f32.mrb[0].mxu0
        %4317 = vmatprep.mubr.bf16.mxu0 0
        %4318 = vmatmul.mubr.bf16.gmra.mrb[0].mxu0 %v4237
        %v4319 = vpop.f32.mrb[0].mxu0
        %v4320 = vadd.f32 0.0, %v4319
        %v4321 = vpop.f32.mrb[0].mxu0
        %v4322 = vpop.f32.mrb[0].mxu0
        %v4323 = vadd.f32 0.0, %v4322
        %v4324 = vpop.f32.mrb[0].mxu0
        %4325 = vmatprep.mubr.bf16.mxu0 0
        %4326 = vmatmul.mubr.bf16.gmra.mrb[0].mxu0 %v4240
        %v4327 = vpop.f32.mrb[0].mxu0
        %v4328 = vadd.f32 0.0, %v4327
        %v4329 = vpop.f32.mrb[0].mxu0
        %v4330 = vpop.f32.mrb[0].mxu0
        %v4331 = vadd.f32 0.0, %v4330
        %v4332 = vpop.f32.mrb[0].mxu0
        %4333 = vmatprep.mubr.bf16.mxu0 0
        %4334 = vmatmul.mubr.bf16.gmra.mrb[0].mxu0 %v4243
        %v4335 = vpop.f32.mrb[0].mxu0
        %v4336 = vadd.f32 0.0, %v4335
        %v4337 = vpop.f32.mrb[0].mxu0
        %v4338 = vpop.f32.mrb[0].mxu0
        %v4339 = vadd.f32 0.0, %v4338
        %v4340 = vpop.f32.mrb[0].mxu0
        %4341 = vdwg.mxu0
        %v4342 = vpack.c.bf16 %v4283, %v4280
        %v4343 = vpack.c.bf16 %v4291, %v4288
        %v4344 = vpack.c.bf16 %v4299, %v4296
        %v4345 = vpack.c.bf16 %v4307, %v4304
        %v4346 = vpack.c.bf16 %v4315, %v4312
        %v4347 = vpack.c.bf16 %v4323, %v4320
        %v4348 = vpack.c.bf16 %v4331, %v4328
        %v4349 = vpack.c.bf16 %v4339, %v4336
        %s4350 = scalar_lea.vmem [#allocation7], 32
        %v4351 = vld [vmem:[%s4350] sm:$0xf]
        %v4352 = vld [vmem:[%s4350 + $0x4] sm:$0xf]
        %v4353 = vld [vmem:[%s4350 + $0x8] sm:$0xf]
        %v4354 = vld [vmem:[%s4350 + $0xc] sm:$0xf]
        %v4355 = vld [vmem:[%s4350 + $0x10] sm:$0xf]
        %v4356 = vld [vmem:[%s4350 + $0x14] sm:$0xf]
        %v4357 = vld [vmem:[%s4350 + $0x18] sm:$0xf]
        %v4358 = vld [vmem:[%s4350 + $0x1c] sm:$0xf]
        %v4367 = vunpack.c.l.b16 %v4351
        %v4368 = vunpack.c.l.b16 %v4352
        %v4369 = vunpack.c.l.b16 %v4353
        %v4370 = vunpack.c.l.b16 %v4354
        %v4371 = vunpack.c.l.b16 %v4355
        %v4372 = vunpack.c.l.b16 %v4356
        %v4373 = vunpack.c.l.b16 %v4357
        %v4374 = vunpack.c.l.b16 %v4358
        %v4375 = vpack.c.b16 %v4368, %v4367
        %v4376 = vpack.c.b16 %v4370, %v4369
        %v4377 = vpack.c.b16 %v4372, %v4371
        %v4378 = vpack.c.b16 %v4374, %v4373
        %4383 = vmatprep.subr.bf16.mxu0 0
        %4384 = vmatpush1.bf16.msra.mxu0 %v4375
        %4385 = vmatprep.subr.bf16.mxu0 0
        %4386 = vmatpush1.bf16.msra.mxu0 %v4376
        %4387 = vmatprep.subr.bf16.mxu0 0
        %4388 = vmatpush1.bf16.msra.mxu0 %v4377
        %4389 = vmatprep.subr.bf16.mxu0 0
        %4390 = vmatpush1.bf16.msra.mxu0 %v4378
        %4391 = vmatprep.subr.bf16.mxu0 0
        %4392 = vmatpush1.bf16.msra.mxu0 0
        %4393 = vmatprep.subr.bf16.mxu0 0
        %4394 = vmatpush1.bf16.msra.mxu0 0
        %4395 = vmatprep.subr.bf16.mxu0 0
        %4396 = vmatpush1.bf16.msra.mxu0 0
        %4397 = vmatprep.subr.bf16.mxu0 0
        %4398 = vmatpush1.bf16.msra.mxu0 0
        %4399 = vmatprep.subr.bf16.mxu0 0
        %4400 = vmatpush1.bf16.msra.mxu0 0
        %4401 = vmatprep.subr.bf16.mxu0 0
        %4402 = vmatpush1.bf16.msra.mxu0 0
        %4403 = vmatprep.subr.bf16.mxu0 0
        %4404 = vmatpush1.bf16.msra.mxu0 0
        %4405 = vmatprep.subr.bf16.mxu0 0
        %4406 = vmatpush1.bf16.msra.mxu0 0
        %4407 = vmatprep.subr.bf16.mxu0 0
        %4408 = vmatpush1.bf16.msra.mxu0 0
        %4409 = vmatprep.subr.bf16.mxu0 0
        %4410 = vmatpush1.bf16.msra.mxu0 0
        %4411 = vmatprep.subr.bf16.mxu0 0
        %4412 = vmatpush1.bf16.msra.mxu0 0
        %4413 = vmatprep.subr.bf16.mxu0 0
        %4414 = vmatpush1.bf16.msra.mxu0 0
        %4415 = vmatprep.mubr.bf16.mxu0 0
        %4416 = vmatmul.mubr.bf16.gmra.mrb[0].mxu0 %v4222
        %v4417 = vpop.f32.mrb[0].mxu0
        %v4418 = vadd.f32 0.0, %v4417
        %v4419 = vpop.f32.mrb[0].mxu0
        %v4420 = vpop.f32.mrb[0].mxu0
        %v4421 = vadd.f32 0.0, %v4420
        %v4422 = vpop.f32.mrb[0].mxu0
        %4423 = vmatprep.mubr.bf16.mxu0 0
        %4424 = vmatmul.mubr.bf16.gmra.mrb[0].mxu0 %v4225
        %v4425 = vpop.f32.mrb[0].mxu0
        %v4426 = vadd.f32 0.0, %v4425
        %v4427 = vpop.f32.mrb[0].mxu0
        %v4428 = vpop.f32.mrb[0].mxu0
        %v4429 = vadd.f32 0.0, %v4428
        %v4430 = vpop.f32.mrb[0].mxu0
        %4431 = vmatprep.mubr.bf16.mxu0 0
        %4432 = vmatmul.mubr.bf16.gmra.mrb[0].mxu0 %v4228
        %v4433 = vpop.f32.mrb[0].mxu0
        %v4434 = vadd.f32 0.0, %v4433
        %v4435 = vpop.f32.mrb[0].mxu0
        %v4436 = vpop.f32.mrb[0].mxu0
        %v4437 = vadd.f32 0.0, %v4436
        %v4438 = vpop.f32.mrb[0].mxu0
        %4439 = vmatprep.mubr.bf16.mxu0 0
        %4440 = vmatmul.mubr.bf16.gmra.mrb[0].mxu0 %v4231
        %v4441 = vpop.f32.mrb[0].mxu0
        %v4442 = vadd.f32 0.0, %v4441
        %v4443 = vpop.f32.mrb[0].mxu0
        %v4444 = vpop.f32.mrb[0].mxu0
        %v4445 = vadd.f32 0.0, %v4444
        %v4446 = vpop.f32.mrb[0].mxu0
        %4447 = vmatprep.mubr.bf16.mxu0 0
        %4448 = vmatmul.mubr.bf16.gmra.mrb[0].mxu0 %v4234
        %v4449 = vpop.f32.mrb[0].mxu0
        %v4450 = vadd.f32 0.0, %v4449
        %v4451 = vpop.f32.mrb[0].mxu0
        %v4452 = vpop.f32.mrb[0].mxu0
        %v4453 = vadd.f32 0.0, %v4452
        %v4454 = vpop.f32.mrb[0].mxu0
        %4455 = vmatprep.mubr.bf16.mxu0 0
        %4456 = vmatmul.mubr.bf16.gmra.mrb[0].mxu0 %v4237
        %v4457 = vpop.f32.mrb[0].mxu0
        %v4458 = vadd.f32 0.0, %v4457
        %v4459 = vpop.f32.mrb[0].mxu0
        %v4460 = vpop.f32.mrb[0].mxu0
        %v4461 = vadd.f32 0.0, %v4460
        %v4462 = vpop.f32.mrb[0].mxu0
        %4463 = vmatprep.mubr.bf16.mxu0 0
        %4464 = vmatmul.mubr.bf16.gmra.mrb[0].mxu0 %v4240
        %v4465 = vpop.f32.mrb[0].mxu0
        %v4466 = vadd.f32 0.0, %v4465
        %v4467 = vpop.f32.mrb[0].mxu0
        %v4468 = vpop.f32.mrb[0].mxu0
        %v4469 = vadd.f32 0.0, %v4468
        %v4470 = vpop.f32.mrb[0].mxu0
        %4471 = vmatprep.mubr.bf16.mxu0 0
        %4472 = vmatmul.mubr.bf16.gmra.mrb[0].mxu0 %v4243
        %v4473 = vpop.f32.mrb[0].mxu0
        %v4474 = vadd.f32 0.0, %v4473
        %v4475 = vpop.f32.mrb[0].mxu0
        %v4476 = vpop.f32.mrb[0].mxu0
        %v4477 = vadd.f32 0.0, %v4476
        %v4478 = vpop.f32.mrb[0].mxu0
        %4479 = vdwg.mxu0
        %v4480 = vpack.c.bf16 %v4421, %v4418
        %v4481 = vpack.c.bf16 %v4429, %v4426
        %v4482 = vpack.c.bf16 %v4437, %v4434
        %v4483 = vpack.c.bf16 %v4445, %v4442
        %v4484 = vpack.c.bf16 %v4453, %v4450
        %v4485 = vpack.c.bf16 %v4461, %v4458
        %v4486 = vpack.c.bf16 %v4469, %v4466
        %v4487 = vpack.c.bf16 %v4477, %v4474
        %s4488 = scalar_lea.vmem [#allocation8], 32
        %v4489 = vld [vmem:[%s4488] sm:$0xf]
        %v4490 = vld [vmem:[%s4488 + $0x4] sm:$0xf]
        %v4491 = vld [vmem:[%s4488 + $0x8] sm:$0xf]
        %v4492 = vld [vmem:[%s4488 + $0xc] sm:$0xf]
        %v4493 = vld [vmem:[%s4488 + $0x10] sm:$0xf]
        %v4494 = vld [vmem:[%s4488 + $0x14] sm:$0xf]
        %v4495 = vld [vmem:[%s4488 + $0x18] sm:$0xf]
        %v4496 = vld [vmem:[%s4488 + $0x1c] sm:$0xf]
        %v4505 = vunpack.c.l.b16 %v4489
        %v4506 = vunpack.c.l.b16 %v4490
        %v4507 = vunpack.c.l.b16 %v4491
        %v4508 = vunpack.c.l.b16 %v4492
        %v4509 = vunpack.c.l.b16 %v4493
        %v4510 = vunpack.c.l.b16 %v4494
        %v4511 = vunpack.c.l.b16 %v4495
        %v4512 = vunpack.c.l.b16 %v4496
        %v4513 = vpack.c.b16 %v4506, %v4505
        %v4514 = vpack.c.b16 %v4508, %v4507
        %v4515 = vpack.c.b16 %v4510, %v4509
        %v4516 = vpack.c.b16 %v4512, %v4511
        %4521 = vmatprep.subr.bf16.mxu0 0
        %4522 = vmatpush1.bf16.msra.mxu0 %v4513
        %4523 = vmatprep.subr.bf16.mxu0 0
        %4524 = vmatpush1.bf16.msra.mxu0 %v4514
        %4525 = vmatprep.subr.bf16.mxu0 0
        %4526 = vmatpush1.bf16.msra.mxu0 %v4515
        %4527 = vmatprep.subr.bf16.mxu0 0
        %4528 = vmatpush1.bf16.msra.mxu0 %v4516
        %4529 = vmatprep.subr.bf16.mxu0 0
        %4530 = vmatpush1.bf16.msra.mxu0 0
        %4531 = vmatprep.subr.bf16.mxu0 0
        %4532 = vmatpush1.bf16.msra.mxu0 0
        %4533 = vmatprep.subr.bf16.mxu0 0
        %4534 = vmatpush1.bf16.msra.mxu0 0
        %4535 = vmatprep.subr.bf16.mxu0 0
        %4536 = vmatpush1.bf16.msra.mxu0 0
        %4537 = vmatprep.subr.bf16.mxu0 0
        %4538 = vmatpush1.bf16.msra.mxu0 0
        %4539 = vmatprep.subr.bf16.mxu0 0
        %4540 = vmatpush1.bf16.msra.mxu0 0
        %4541 = vmatprep.subr.bf16.mxu0 0
        %4542 = vmatpush1.bf16.msra.mxu0 0
        %4543 = vmatprep.subr.bf16.mxu0 0
        %4544 = vmatpush1.bf16.msra.mxu0 0
        %4545 = vmatprep.subr.bf16.mxu0 0
        %4546 = vmatpush1.bf16.msra.mxu0 0
        %4547 = vmatprep.subr.bf16.mxu0 0
        %4548 = vmatpush1.bf16.msra.mxu0 0
        %4549 = vmatprep.subr.bf16.mxu0 0
        %4550 = vmatpush1.bf16.msra.mxu0 0
        %4551 = vmatprep.subr.bf16.mxu0 0
        %4552 = vmatpush1.bf16.msra.mxu0 0
        %4553 = vmatprep.mubr.bf16.mxu0 0
        %4554 = vmatmul.mubr.bf16.gmra.mrb[0].mxu0 %v4222
        %v4555 = vpop.f32.mrb[0].mxu0
        %v4556 = vadd.f32 0.0, %v4555
        %v4557 = vpop.f32.mrb[0].mxu0
        %v4558 = vpop.f32.mrb[0].mxu0
        %v4559 = vadd.f32 0.0, %v4558
        %v4560 = vpop.f32.mrb[0].mxu0
        %4561 = vmatprep.mubr.bf16.mxu0 0
        %4562 = vmatmul.mubr.bf16.gmra.mrb[0].mxu0 %v4225
        %v4563 = vpop.f32.mrb[0].mxu0
        %v4564 = vadd.f32 0.0, %v4563
        %v4565 = vpop.f32.mrb[0].mxu0
        %v4566 = vpop.f32.mrb[0].mxu0
        %v4567 = vadd.f32 0.0, %v4566
        %v4568 = vpop.f32.mrb[0].mxu0
        %4569 = vmatprep.mubr.bf16.mxu0 0
        %4570 = vmatmul.mubr.bf16.gmra.mrb[0].mxu0 %v4228
        %v4571 = vpop.f32.mrb[0].mxu0
        %v4572 = vadd.f32 0.0, %v4571
        %v4573 = vpop.f32.mrb[0].mxu0
        %v4574 = vpop.f32.mrb[0].mxu0
        %v4575 = vadd.f32 0.0, %v4574
        %v4576 = vpop.f32.mrb[0].mxu0
        %4577 = vmatprep.mubr.bf16.mxu0 0
        %4578 = vmatmul.mubr.bf16.gmra.mrb[0].mxu0 %v4231
        %v4579 = vpop.f32.mrb[0].mxu0
        %v4580 = vadd.f32 0.0, %v4579
        %v4581 = vpop.f32.mrb[0].mxu0
        %v4582 = vpop.f32.mrb[0].mxu0
        %v4583 = vadd.f32 0.0, %v4582
        %v4584 = vpop.f32.mrb[0].mxu0
        %4585 = vmatprep.mubr.bf16.mxu0 0
        %4586 = vmatmul.mubr.bf16.gmra.mrb[0].mxu0 %v4234
        %v4587 = vpop.f32.mrb[0].mxu0
        %v4588 = vadd.f32 0.0, %v4587
        %v4589 = vpop.f32.mrb[0].mxu0
        %v4590 = vpop.f32.mrb[0].mxu0
        %v4591 = vadd.f32 0.0, %v4590
        %v4592 = vpop.f32.mrb[0].mxu0
        %4593 = vmatprep.mubr.bf16.mxu0 0
        %4594 = vmatmul.mubr.bf16.gmra.mrb[0].mxu0 %v4237
        %v4595 = vpop.f32.mrb[0].mxu0
        %v4596 = vadd.f32 0.0, %v4595
        %v4597 = vpop.f32.mrb[0].mxu0
        %v4598 = vpop.f32.mrb[0].mxu0
        %v4599 = vadd.f32 0.0, %v4598
        %v4600 = vpop.f32.mrb[0].mxu0
        %4601 = vmatprep.mubr.bf16.mxu0 0
        %4602 = vmatmul.mubr.bf16.gmra.mrb[0].mxu0 %v4240
        %v4603 = vpop.f32.mrb[0].mxu0
        %v4604 = vadd.f32 0.0, %v4603
        %v4605 = vpop.f32.mrb[0].mxu0
        %v4606 = vpop.f32.mrb[0].mxu0
        %v4607 = vadd.f32 0.0, %v4606
        %v4608 = vpop.f32.mrb[0].mxu0
        %4609 = vmatprep.mubr.bf16.mxu0 0
        %4610 = vmatmul.mubr.bf16.gmra.mrb[0].mxu0 %v4243
        %v4611 = vpop.f32.mrb[0].mxu0
        %v4612 = vadd.f32 0.0, %v4611
        %v4613 = vpop.f32.mrb[0].mxu0
        %v4614 = vpop.f32.mrb[0].mxu0
        %v4615 = vadd.f32 0.0, %v4614
        %v4616 = vpop.f32.mrb[0].mxu0
        %4617 = vdwg.mxu0
        %v4618 = vpack.c.bf16 %v4559, %v4556
        %v4619 = vpack.c.bf16 %v4567, %v4564
        %v4620 = vpack.c.bf16 %v4575, %v4572
        %v4621 = vpack.c.bf16 %v4583, %v4580
        %v4622 = vpack.c.bf16 %v4591, %v4588
        %v4623 = vpack.c.bf16 %v4599, %v4596
        %v4624 = vpack.c.bf16 %v4607, %v4604
        %v4625 = vpack.c.bf16 %v4615, %v4612
        %v4627 = vsel %vm1734, %v4342, 0
        %v4630 = vsel %vm1734, %v4343, 0
        %v4633 = vsel %vm1734, %v4344, 0
        %v4636 = vsel %vm1734, %v4345, 0
        %v4639 = vsel %vm1734, %v4346, 0
        %v4642 = vsel %vm1734, %v4347, 0
        %v4645 = vsel %vm1734, %v4348, 0
        %v4648 = vsel %vm1734, %v4349, 0
        %v4651 = vsel %vm1734, %v4480, 0
        %v4654 = vsel %vm1734, %v4481, 0
        %v4657 = vsel %vm1734, %v4482, 0
        %v4660 = vsel %vm1734, %v4483, 0
        %v4663 = vsel %vm1734, %v4484, 0
        %v4666 = vsel %vm1734, %v4485, 0
        %v4669 = vsel %vm1734, %v4486, 0
        %v4672 = vsel %vm1734, %v4487, 0
        %4674 = vmatprep.subr.bf16.mxu0 0
        %4675 = vmatpush1.bf16.xpose.msra.mxu0 %v4651
        %4676 = vmatprep.subr.bf16.mxu0 0
        %4677 = vmatpush1.bf16.xpose.msra.mxu0 %v4654
        %4678 = vmatprep.subr.bf16.mxu0 0
        %4679 = vmatpush1.bf16.xpose.msra.mxu0 %v4657
        %4680 = vmatprep.subr.bf16.mxu0 0
        %4681 = vmatpush1.bf16.xpose.msra.mxu0 %v4660
        %4682 = vmatprep.subr.bf16.mxu0 0
        %4683 = vmatpush1.bf16.xpose.msra.mxu0 %v4663
        %4684 = vmatprep.subr.bf16.mxu0 0
        %4685 = vmatpush1.bf16.xpose.msra.mxu0 %v4666
        %4686 = vmatprep.subr.bf16.mxu0 0
        %4687 = vmatpush1.bf16.xpose.msra.mxu0 %v4669
        %4688 = vmatprep.subr.bf16.mxu0 0
        %4689 = vmatpush1.bf16.xpose.msra.mxu0 %v4672
        %4690 = vmatprep.subr.bf16.mxu0 0
        %4691 = vmatpush1.bf16.xpose.msra.mxu0 0
        %4692 = vmatprep.subr.bf16.mxu0 0
        %4693 = vmatpush1.bf16.xpose.msra.mxu0 0
        %4694 = vmatprep.subr.bf16.mxu0 0
        %4695 = vmatpush1.bf16.xpose.msra.mxu0 0
        %4696 = vmatprep.subr.bf16.mxu0 0
        %4697 = vmatpush1.bf16.xpose.msra.mxu0 0
        %4698 = vmatprep.subr.bf16.mxu0 0
        %4699 = vmatpush1.bf16.xpose.msra.mxu0 0
        %4700 = vmatprep.subr.bf16.mxu0 0
        %4701 = vmatpush1.bf16.xpose.msra.mxu0 0
        %4702 = vmatprep.subr.bf16.mxu0 0
        %4703 = vmatpush1.bf16.xpose.msra.mxu0 0
        %4704 = vmatprep.subr.bf16.mxu0 0
        %4705 = vmatpush1.bf16.xpose.msra.mxu0 0
        %4706 = vmatprep.mubr.bf16.mxu0 0
        %4707 = vmatmul.mubr.bf16.gmra.mrb[0].mxu0 %v4627
        %v4708 = vpop.f32.mrb[0].mxu0
        %v4709 = vadd.f32 %v960, %v4708
        %v4710 = vpop.f32.mrb[0].mxu0
        %v4711 = vpop.f32.mrb[0].mxu0
        %v4712 = vadd.f32 %v961, %v4711
        %v4713 = vpop.f32.mrb[0].mxu0
        %4714 = vmatprep.mubr.bf16.mxu0 0
        %4715 = vmatmul.mubr.bf16.gmra.mrb[0].mxu0 %v4630
        %v4716 = vpop.f32.mrb[0].mxu0
        %v4717 = vadd.f32 %v962, %v4716
        %v4718 = vpop.f32.mrb[0].mxu0
        %v4719 = vpop.f32.mrb[0].mxu0
        %v4720 = vadd.f32 %v963, %v4719
        %v4721 = vpop.f32.mrb[0].mxu0
        %4722 = vmatprep.mubr.bf16.mxu0 0
        %4723 = vmatmul.mubr.bf16.gmra.mrb[0].mxu0 %v4633
        %v4724 = vpop.f32.mrb[0].mxu0
        %v4725 = vadd.f32 %v964, %v4724
        %v4726 = vpop.f32.mrb[0].mxu0
        %v4727 = vpop.f32.mrb[0].mxu0
        %v4728 = vadd.f32 %v965, %v4727
        %v4729 = vpop.f32.mrb[0].mxu0
        %4730 = vmatprep.mubr.bf16.mxu0 0
        %4731 = vmatmul.mubr.bf16.gmra.mrb[0].mxu0 %v4636
        %v4732 = vpop.f32.mrb[0].mxu0
        %v4733 = vadd.f32 %v966, %v4732
        %v4734 = vpop.f32.mrb[0].mxu0
        %v4735 = vpop.f32.mrb[0].mxu0
        %v4736 = vadd.f32 %v967, %v4735
        %v4737 = vpop.f32.mrb[0].mxu0
        %4738 = vmatprep.mubr.bf16.mxu0 0
        %4739 = vmatmul.mubr.bf16.gmra.mrb[0].mxu0 %v4639
        %v4740 = vpop.f32.mrb[0].mxu0
        %v4741 = vadd.f32 %v968, %v4740
        %v4742 = vpop.f32.mrb[0].mxu0
        %v4743 = vpop.f32.mrb[0].mxu0
        %v4744 = vadd.f32 %v969, %v4743
        %v4745 = vpop.f32.mrb[0].mxu0
        %4746 = vmatprep.mubr.bf16.mxu0 0
        %4747 = vmatmul.mubr.bf16.gmra.mrb[0].mxu0 %v4642
        %v4748 = vpop.f32.mrb[0].mxu0
        %v4749 = vadd.f32 %v970, %v4748
        %v4750 = vpop.f32.mrb[0].mxu0
        %v4751 = vpop.f32.mrb[0].mxu0
        %v4752 = vadd.f32 %v971, %v4751
        %v4753 = vpop.f32.mrb[0].mxu0
        %4754 = vmatprep.mubr.bf16.mxu0 0
        %4755 = vmatmul.mubr.bf16.gmra.mrb[0].mxu0 %v4645
        %v4756 = vpop.f32.mrb[0].mxu0
        %v4757 = vadd.f32 %v972, %v4756
        %v4758 = vpop.f32.mrb[0].mxu0
        %v4759 = vpop.f32.mrb[0].mxu0
        %v4760 = vadd.f32 %v973, %v4759
        %v4761 = vpop.f32.mrb[0].mxu0
        %4762 = vmatprep.mubr.bf16.mxu0 0
        %4763 = vmatmul.mubr.bf16.gmra.mrb[0].mxu0 %v4648
        %v4764 = vpop.f32.mrb[0].mxu0
        %v4765 = vadd.f32 %v974, %v4764
        %v4766 = vpop.f32.mrb[0].mxu0
        %v4767 = vpop.f32.mrb[0].mxu0
        %v4768 = vadd.f32 %v975, %v4767
        %v4769 = vpop.f32.mrb[0].mxu0
        %4770 = vdwg.mxu0
        %4771 = vmax.xlane.f32.xlu0 %v4709
        %v4772 = vpop.xlane.xlu0 %4771
        %4773 = vmax.xlane.f32.xlu0 %v4712
        %v4774 = vpop.xlane.xlu0 %4773
        %4775 = vmax.xlane.f32.xlu0 %v4717
        %v4776 = vpop.xlane.xlu0 %4775
        %4777 = vmax.xlane.f32.xlu0 %v4720
        %v4778 = vpop.xlane.xlu0 %4777
        %4779 = vmax.xlane.f32.xlu0 %v4725
        %v4780 = vpop.xlane.xlu0 %4779
        %4781 = vmax.xlane.f32.xlu0 %v4728
        %v4782 = vpop.xlane.xlu0 %4781
        %4783 = vmax.xlane.f32.xlu0 %v4733
        %v4784 = vpop.xlane.xlu0 %4783
        %4785 = vmax.xlane.f32.xlu0 %v4736
        %v4786 = vpop.xlane.xlu0 %4785
        %4787 = vmax.xlane.f32.xlu0 %v4741
        %v4788 = vpop.xlane.xlu0 %4787
        %4789 = vmax.xlane.f32.xlu0 %v4744
        %v4790 = vpop.xlane.xlu0 %4789
        %4791 = vmax.xlane.f32.xlu0 %v4749
        %v4792 = vpop.xlane.xlu0 %4791
        %4793 = vmax.xlane.f32.xlu0 %v4752
        %v4794 = vpop.xlane.xlu0 %4793
        %4795 = vmax.xlane.f32.xlu0 %v4757
        %v4796 = vpop.xlane.xlu0 %4795
        %4797 = vmax.xlane.f32.xlu0 %v4760
        %v4798 = vpop.xlane.xlu0 %4797
        %4799 = vmax.xlane.f32.xlu0 %v4765
        %v4800 = vpop.xlane.xlu0 %4799
        %4801 = vmax.xlane.f32.xlu0 %v4768
        %v4802 = vpop.xlane.xlu0 %4801
        %v4803 = vsub.f32 %v4709, %v4772
        %v4804 = vsub.f32 %v4712, %v4774
        %v4805 = vsub.f32 %v4717, %v4776
        %v4806 = vsub.f32 %v4720, %v4778
        %v4807 = vsub.f32 %v4725, %v4780
        %v4808 = vsub.f32 %v4728, %v4782
        %v4809 = vsub.f32 %v4733, %v4784
        %v4810 = vsub.f32 %v4736, %v4786
        %v4811 = vsub.f32 %v4741, %v4788
        %v4812 = vsub.f32 %v4744, %v4790
        %v4813 = vsub.f32 %v4749, %v4792
        %v4814 = vsub.f32 %v4752, %v4794
        %v4815 = vsub.f32 %v4757, %v4796
        %v4816 = vsub.f32 %v4760, %v4798
        %v4817 = vsub.f32 %v4765, %v4800
        %v4818 = vsub.f32 %v4768, %v4802
        %v4819 = vmul.f32 %v4803, 1.442695
        %v4820 = vpow.pop %v4819
        %v4821 = vmul.f32 %v4804, 1.442695
        %v4822 = vpow.pop %v4821
        %v4823 = vmul.f32 %v4805, 1.442695
        %v4824 = vpow.pop %v4823
        %v4825 = vmul.f32 %v4806, 1.442695
        %v4826 = vpow.pop %v4825
        %v4827 = vmul.f32 %v4807, 1.442695
        %v4828 = vpow.pop %v4827
        %v4829 = vmul.f32 %v4808, 1.442695
        %v4830 = vpow.pop %v4829
        %v4831 = vmul.f32 %v4809, 1.442695
        %v4832 = vpow.pop %v4831
        %v4833 = vmul.f32 %v4810, 1.442695
        %v4834 = vpow.pop %v4833
        %v4835 = vmul.f32 %v4811, 1.442695
        %v4836 = vpow.pop %v4835
        %v4837 = vmul.f32 %v4812, 1.442695
        %v4838 = vpow.pop %v4837
        %v4839 = vmul.f32 %v4813, 1.442695
        %v4840 = vpow.pop %v4839
        %v4841 = vmul.f32 %v4814, 1.442695
        %v4842 = vpow.pop %v4841
        %v4843 = vmul.f32 %v4815, 1.442695
        %v4844 = vpow.pop %v4843
        %v4845 = vmul.f32 %v4816, 1.442695
        %v4846 = vpow.pop %v4845
        %v4847 = vmul.f32 %v4817, 1.442695
        %v4848 = vpow.pop %v4847
        %v4849 = vmul.f32 %v4818, 1.442695
        %v4850 = vpow.pop %v4849
        %4851 = vadd.xlane.f32.xlu0 %v4820
        %v4852 = vpop.xlane.xlu0 %4851
        %4853 = vadd.xlane.f32.xlu0 %v4822
        %v4854 = vpop.xlane.xlu0 %4853
        %4855 = vadd.xlane.f32.xlu0 %v4824
        %v4856 = vpop.xlane.xlu0 %4855
        %4857 = vadd.xlane.f32.xlu0 %v4826
        %v4858 = vpop.xlane.xlu0 %4857
        %4859 = vadd.xlane.f32.xlu0 %v4828
        %v4860 = vpop.xlane.xlu0 %4859
        %4861 = vadd.xlane.f32.xlu0 %v4830
        %v4862 = vpop.xlane.xlu0 %4861
        %4863 = vadd.xlane.f32.xlu0 %v4832
        %v4864 = vpop.xlane.xlu0 %4863
        %4865 = vadd.xlane.f32.xlu0 %v4834
        %v4866 = vpop.xlane.xlu0 %4865
        %4867 = vadd.xlane.f32.xlu0 %v4836
        %v4868 = vpop.xlane.xlu0 %4867
        %4869 = vadd.xlane.f32.xlu0 %v4838
        %v4870 = vpop.xlane.xlu0 %4869
        %4871 = vadd.xlane.f32.xlu0 %v4840
        %v4872 = vpop.xlane.xlu0 %4871
        %4873 = vadd.xlane.f32.xlu0 %v4842
        %v4874 = vpop.xlane.xlu0 %4873
        %4875 = vadd.xlane.f32.xlu0 %v4844
        %v4876 = vpop.xlane.xlu0 %4875
        %4877 = vadd.xlane.f32.xlu0 %v4846
        %v4878 = vpop.xlane.xlu0 %4877
        %4879 = vadd.xlane.f32.xlu0 %v4848
        %v4880 = vpop.xlane.xlu0 %4879
        %4881 = vadd.xlane.f32.xlu0 %v4850
        %v4882 = vpop.xlane.xlu0 %4881
        %v4883 = vrcp.pop %v4852
        %v4884 = vmul.f32 %v1010, %v4883
        %v4885 = vrcp.pop %v4854
        %v4886 = vmul.f32 %v1013, %v4885
        %v4887 = vrcp.pop %v4856
        %v4888 = vmul.f32 %v1016, %v4887
        %v4889 = vrcp.pop %v4858
        %v4890 = vmul.f32 %v1019, %v4889
        %v4891 = vrcp.pop %v4860
        %v4892 = vmul.f32 %v1022, %v4891
        %v4893 = vrcp.pop %v4862
        %v4894 = vmul.f32 %v1025, %v4893
        %v4895 = vrcp.pop %v4864
        %v4896 = vmul.f32 %v1028, %v4895
        %v4897 = vrcp.pop %v4866
        %v4898 = vmul.f32 %v1031, %v4897
        %v4899 = vrcp.pop %v4868
        %v4900 = vmul.f32 %v1034, %v4899
        %v4901 = vrcp.pop %v4870
        %v4902 = vmul.f32 %v1037, %v4901
        %v4903 = vrcp.pop %v4872
        %v4904 = vmul.f32 %v1040, %v4903
        %v4905 = vrcp.pop %v4874
        %v4906 = vmul.f32 %v1043, %v4905
        %v4907 = vrcp.pop %v4876
        %v4908 = vmul.f32 %v1046, %v4907
        %v4909 = vrcp.pop %v4878
        %v4910 = vmul.f32 %v1049, %v4909
        %v4911 = vrcp.pop %v4880
        %v4912 = vmul.f32 %v1052, %v4911
        %v4913 = vrcp.pop %v4882
        %v4914 = vmul.f32 %v1055, %v4913
        %v4915 = vpack.c.bf16 %v4822, %v4820
        %v4916 = vpack.c.bf16 %v4826, %v4824
        %v4917 = vpack.c.bf16 %v4830, %v4828
        %v4918 = vpack.c.bf16 %v4834, %v4832
        %v4919 = vpack.c.bf16 %v4838, %v4836
        %v4920 = vpack.c.bf16 %v4842, %v4840
        %v4921 = vpack.c.bf16 %v4846, %v4844
        %v4922 = vpack.c.bf16 %v4850, %v4848
        %4923 = vmatprep.subr.bf16.mxu0 0
        %4924 = vmatpush1.bf16.msra.mxu0 %v4618
        %4925 = vmatprep.subr.bf16.mxu0 0
        %4926 = vmatpush1.bf16.msra.mxu0 %v4619
        %4927 = vmatprep.subr.bf16.mxu0 0
        %4928 = vmatpush1.bf16.msra.mxu0 %v4620
        %4929 = vmatprep.subr.bf16.mxu0 0
        %4930 = vmatpush1.bf16.msra.mxu0 %v4621
        %4931 = vmatprep.subr.bf16.mxu0 0
        %4932 = vmatpush1.bf16.msra.mxu0 %v4622
        %4933 = vmatprep.subr.bf16.mxu0 0
        %4934 = vmatpush1.bf16.msra.mxu0 %v4623
        %4935 = vmatprep.subr.bf16.mxu0 0
        %4936 = vmatpush1.bf16.msra.mxu0 %v4624
        %4937 = vmatprep.subr.bf16.mxu0 0
        %4938 = vmatpush1.bf16.msra.mxu0 %v4625
        %4939 = vmatprep.subr.bf16.mxu0 0
        %4940 = vmatpush1.bf16.msra.mxu0 0
        %4941 = vmatprep.subr.bf16.mxu0 0
        %4942 = vmatpush1.bf16.msra.mxu0 0
        %4943 = vmatprep.subr.bf16.mxu0 0
        %4944 = vmatpush1.bf16.msra.mxu0 0
        %4945 = vmatprep.subr.bf16.mxu0 0
        %4946 = vmatpush1.bf16.msra.mxu0 0
        %4947 = vmatprep.subr.bf16.mxu0 0
        %4948 = vmatpush1.bf16.msra.mxu0 0
        %4949 = vmatprep.subr.bf16.mxu0 0
        %4950 = vmatpush1.bf16.msra.mxu0 0
        %4951 = vmatprep.subr.bf16.mxu0 0
        %4952 = vmatpush1.bf16.msra.mxu0 0
        %4953 = vmatprep.subr.bf16.mxu0 0
        %4954 = vmatpush1.bf16.msra.mxu0 0
        %4955 = vmatprep.mubr.bf16.mxu0 0
        %4956 = vmatmul.mubr.bf16.gmra.mrb[0].mxu0 %v4915
        %v4957 = vpop.f32.mrb[0].mxu0
        %v4958 = vadd.f32 0.0, %v4957
        %v4959 = vpop.f32.mrb[0].mxu0
        %v4960 = vpop.f32.mrb[0].mxu0
        %v4961 = vadd.f32 0.0, %v4960
        %v4962 = vpop.f32.mrb[0].mxu0
        %4963 = vmatprep.mubr.bf16.mxu0 0
        %4964 = vmatmul.mubr.bf16.gmra.mrb[0].mxu0 %v4916
        %v4965 = vpop.f32.mrb[0].mxu0
        %v4966 = vadd.f32 0.0, %v4965
        %v4967 = vpop.f32.mrb[0].mxu0
        %v4968 = vpop.f32.mrb[0].mxu0
        %v4969 = vadd.f32 0.0, %v4968
        %v4970 = vpop.f32.mrb[0].mxu0
        %4971 = vmatprep.mubr.bf16.mxu0 0
        %4972 = vmatmul.mubr.bf16.gmra.mrb[0].mxu0 %v4917
        %v4973 = vpop.f32.mrb[0].mxu0
        %v4974 = vadd.f32 0.0, %v4973
        %v4975 = vpop.f32.mrb[0].mxu0
        %v4976 = vpop.f32.mrb[0].mxu0
        %v4977 = vadd.f32 0.0, %v4976
        %v4978 = vpop.f32.mrb[0].mxu0
        %4979 = vmatprep.mubr.bf16.mxu0 0
        %4980 = vmatmul.mubr.bf16.gmra.mrb[0].mxu0 %v4918
        %v4981 = vpop.f32.mrb[0].mxu0
        %v4982 = vadd.f32 0.0, %v4981
        %v4983 = vpop.f32.mrb[0].mxu0
        %v4984 = vpop.f32.mrb[0].mxu0
        %v4985 = vadd.f32 0.0, %v4984
        %v4986 = vpop.f32.mrb[0].mxu0
        %4987 = vmatprep.mubr.bf16.mxu0 0
        %4988 = vmatmul.mubr.bf16.gmra.mrb[0].mxu0 %v4919
        %v4989 = vpop.f32.mrb[0].mxu0
        %v4990 = vadd.f32 0.0, %v4989
        %v4991 = vpop.f32.mrb[0].mxu0
        %v4992 = vpop.f32.mrb[0].mxu0
        %v4993 = vadd.f32 0.0, %v4992
        %v4994 = vpop.f32.mrb[0].mxu0
        %4995 = vmatprep.mubr.bf16.mxu0 0
        %4996 = vmatmul.mubr.bf16.gmra.mrb[0].mxu0 %v4920
        %v4997 = vpop.f32.mrb[0].mxu0
        %v4998 = vadd.f32 0.0, %v4997
        %v4999 = vpop.f32.mrb[0].mxu0
        %v5000 = vpop.f32.mrb[0].mxu0
        %v5001 = vadd.f32 0.0, %v5000
        %v5002 = vpop.f32.mrb[0].mxu0
        %5003 = vmatprep.mubr.bf16.mxu0 0
        %5004 = vmatmul.mubr.bf16.gmra.mrb[0].mxu0 %v4921
        %v5005 = vpop.f32.mrb[0].mxu0
        %v5006 = vadd.f32 0.0, %v5005
        %v5007 = vpop.f32.mrb[0].mxu0
        %v5008 = vpop.f32.mrb[0].mxu0
        %v5009 = vadd.f32 0.0, %v5008
        %v5010 = vpop.f32.mrb[0].mxu0
        %5011 = vmatprep.mubr.bf16.mxu0 0
        %5012 = vmatmul.mubr.bf16.gmra.mrb[0].mxu0 %v4922
        %v5013 = vpop.f32.mrb[0].mxu0
        %v5014 = vadd.f32 0.0, %v5013
        %v5015 = vpop.f32.mrb[0].mxu0
        %v5016 = vpop.f32.mrb[0].mxu0
        %v5017 = vadd.f32 0.0, %v5016
        %v5018 = vpop.f32.mrb[0].mxu0
        %5019 = vdwg.mxu0
        %v5020 = vmul.f32 %v4958, %v4884
        %v5021 = vmul.f32 %v4961, %v4886
        %v5022 = vmul.f32 %v4966, %v4888
        %v5023 = vmul.f32 %v4969, %v4890
        %v5024 = vmul.f32 %v4974, %v4892
        %v5025 = vmul.f32 %v4977, %v4894
        %v5026 = vmul.f32 %v4982, %v4896
        %v5027 = vmul.f32 %v4985, %v4898
        %v5028 = vmul.f32 %v4990, %v4900
        %v5029 = vmul.f32 %v4993, %v4902
        %v5030 = vmul.f32 %v4998, %v4904
        %v5031 = vmul.f32 %v5001, %v4906
        %v5032 = vmul.f32 %v5006, %v4908
        %v5033 = vmul.f32 %v5009, %v4910
        %v5034 = vmul.f32 %v5014, %v4912
        %v5035 = vmul.f32 %v5017, %v4914
        %v5036 = vpack.c.bf16 %v5021, %v5020
        %v5037 = vpack.c.bf16 %v5023, %v5022
        %v5038 = vpack.c.bf16 %v5025, %v5024
        %v5039 = vpack.c.bf16 %v5027, %v5026
        %v5040 = vpack.c.bf16 %v5029, %v5028
        %v5041 = vpack.c.bf16 %v5031, %v5030
        %v5042 = vpack.c.bf16 %v5033, %v5032
        %v5043 = vpack.c.bf16 %v5035, %v5034
        %v5046 = vunpack.c.l.b16 %v4180
        %v5047 = vunpack.c.l.b16 %v4181
        %v5048 = vpack.c.b16 %v5047, %v5046
        %v5051 = vsel %vm1734, %v5036, 0
        %v5054 = vsel %vm1734, %v5037, 0
        %v5057 = vsel %vm1734, %v5038, 0
        %v5060 = vsel %vm1734, %v5039, 0
        %v5063 = vsel %vm1734, %v5040, 0
        %v5066 = vsel %vm1734, %v5041, 0
        %v5069 = vsel %vm1734, %v5042, 0
        %v5072 = vsel %vm1734, %v5043, 0
        %5074 = vmatprep.subr.bf16.mxu0 0
        %5075 = vmatpush1.bf16.msra.mxu0 %v5048
        %5076 = vmatprep.subr.bf16.mxu0 0
        %5077 = vmatpush1.bf16.msra.mxu0 0
        %5078 = vmatprep.subr.bf16.mxu0 0
        %5079 = vmatpush1.bf16.msra.mxu0 0
        %5080 = vmatprep.subr.bf16.mxu0 0
        %5081 = vmatpush1.bf16.msra.mxu0 0
        %5082 = vmatprep.subr.bf16.mxu0 0
        %5083 = vmatpush1.bf16.msra.mxu0 0
        %5084 = vmatprep.subr.bf16.mxu0 0
        %5085 = vmatpush1.bf16.msra.mxu0 0
        %5086 = vmatprep.subr.bf16.mxu0 0
        %5087 = vmatpush1.bf16.msra.mxu0 0
        %5088 = vmatprep.subr.bf16.mxu0 0
        %5089 = vmatpush1.bf16.msra.mxu0 0
        %5090 = vmatprep.subr.bf16.mxu0 0
        %5091 = vmatpush1.bf16.msra.mxu0 0
        %5092 = vmatprep.subr.bf16.mxu0 0
        %5093 = vmatpush1.bf16.msra.mxu0 0
        %5094 = vmatprep.subr.bf16.mxu0 0
        %5095 = vmatpush1.bf16.msra.mxu0 0
        %5096 = vmatprep.subr.bf16.mxu0 0
        %5097 = vmatpush1.bf16.msra.mxu0 0
        %5098 = vmatprep.subr.bf16.mxu0 0
        %5099 = vmatpush1.bf16.msra.mxu0 0
        %5100 = vmatprep.subr.bf16.mxu0 0
        %5101 = vmatpush1.bf16.msra.mxu0 0
        %5102 = vmatprep.subr.bf16.mxu0 0
        %5103 = vmatpush1.bf16.msra.mxu0 0
        %5104 = vmatprep.subr.bf16.mxu0 0
        %5105 = vmatpush1.bf16.msra.mxu0 0
        %5106 = vmatprep.mubr.bf16.mxu0 0
        %5107 = vmatmul.mubr.bf16.gmra.mrb[0].mxu0 %v5051
        %v5108 = vpop.f32.mrb[0].mxu0
        %v5109 = vadd.f32 0.0, %v5108
        %v5110 = vpop.f32.mrb[0].mxu0
        %v5111 = vpop.f32.mrb[0].mxu0
        %v5112 = vadd.f32 0.0, %v5111
        %v5113 = vpop.f32.mrb[0].mxu0
        %5114 = vmatprep.mubr.bf16.mxu0 0
        %5115 = vmatmul.mubr.bf16.gmra.mrb[0].mxu0 %v5054
        %v5116 = vpop.f32.mrb[0].mxu0
        %v5117 = vadd.f32 0.0, %v5116
        %v5118 = vpop.f32.mrb[0].mxu0
        %v5119 = vpop.f32.mrb[0].mxu0
        %v5120 = vadd.f32 0.0, %v5119
        %v5121 = vpop.f32.mrb[0].mxu0
        %5122 = vmatprep.mubr.bf16.mxu0 0
        %5123 = vmatmul.mubr.bf16.gmra.mrb[0].mxu0 %v5057
        %v5124 = vpop.f32.mrb[0].mxu0
        %v5125 = vadd.f32 0.0, %v5124
        %v5126 = vpop.f32.mrb[0].mxu0
        %v5127 = vpop.f32.mrb[0].mxu0
        %v5128 = vadd.f32 0.0, %v5127
        %v5129 = vpop.f32.mrb[0].mxu0
        %5130 = vmatprep.mubr.bf16.mxu0 0
        %5131 = vmatmul.mubr.bf16.gmra.mrb[0].mxu0 %v5060
        %v5132 = vpop.f32.mrb[0].mxu0
        %v5133 = vadd.f32 0.0, %v5132
        %v5134 = vpop.f32.mrb[0].mxu0
        %v5135 = vpop.f32.mrb[0].mxu0
        %v5136 = vadd.f32 0.0, %v5135
        %v5137 = vpop.f32.mrb[0].mxu0
        %5138 = vmatprep.mubr.bf16.mxu0 0
        %5139 = vmatmul.mubr.bf16.gmra.mrb[0].mxu0 %v5063
        %v5140 = vpop.f32.mrb[0].mxu0
        %v5141 = vadd.f32 0.0, %v5140
        %v5142 = vpop.f32.mrb[0].mxu0
        %v5143 = vpop.f32.mrb[0].mxu0
        %v5144 = vadd.f32 0.0, %v5143
        %v5145 = vpop.f32.mrb[0].mxu0
        %5146 = vmatprep.mubr.bf16.mxu0 0
        %5147 = vmatmul.mubr.bf16.gmra.mrb[0].mxu0 %v5066
        %v5148 = vpop.f32.mrb[0].mxu0
        %v5149 = vadd.f32 0.0, %v5148
        %v5150 = vpop.f32.mrb[0].mxu0
        %v5151 = vpop.f32.mrb[0].mxu0
        %v5152 = vadd.f32 0.0, %v5151
        %v5153 = vpop.f32.mrb[0].mxu0
        %5154 = vmatprep.mubr.bf16.mxu0 0
        %5155 = vmatmul.mubr.bf16.gmra.mrb[0].mxu0 %v5069
        %v5156 = vpop.f32.mrb[0].mxu0
        %v5157 = vadd.f32 0.0, %v5156
        %v5158 = vpop.f32.mrb[0].mxu0
        %v5159 = vpop.f32.mrb[0].mxu0
        %v5160 = vadd.f32 0.0, %v5159
        %v5161 = vpop.f32.mrb[0].mxu0
        %5162 = vmatprep.mubr.bf16.mxu0 0
        %5163 = vmatmul.mubr.bf16.gmra.mrb[0].mxu0 %v5072
        %v5164 = vpop.f32.mrb[0].mxu0
        %v5165 = vadd.f32 0.0, %v5164
        %v5166 = vpop.f32.mrb[0].mxu0
        %v5167 = vpop.f32.mrb[0].mxu0
        %v5168 = vadd.f32 0.0, %v5167
        %v5169 = vpop.f32.mrb[0].mxu0
        %5170 = vdwg.mxu0
        %v5171 = vadd.f32 %v4155, %v5109
        %v5172 = vadd.f32 %v4156, %v5112
        %v5173 = vadd.f32 %v4157, %v5117
        %v5174 = vadd.f32 %v4158, %v5120
        %v5175 = vadd.f32 %v4159, %v5125
        %v5176 = vadd.f32 %v4160, %v5128
        %v5177 = vadd.f32 %v4161, %v5133
        %v5178 = vadd.f32 %v4162, %v5136
        %v5179 = vadd.f32 %v4163, %v5141
        %v5180 = vadd.f32 %v4164, %v5144
        %v5181 = vadd.f32 %v4165, %v5149
        %v5182 = vadd.f32 %v4166, %v5152
        %v5183 = vadd.f32 %v4167, %v5157
        %v5184 = vadd.f32 %v4168, %v5160
        %v5185 = vadd.f32 %v4169, %v5165
        %v5186 = vadd.f32 %v4170, %v5168
        %5195 = vrot.lane.b32.xlu0 %v4342, 112
        %v5196 = vpop.permute.xlu0 %5195
        %5197 = vrot.lane.b32.xlu0 %v4343, 112
        %v5198 = vpop.permute.xlu0 %5197
        %5199 = vrot.lane.b32.xlu0 %v4344, 112
        %v5200 = vpop.permute.xlu0 %5199
        %5201 = vrot.lane.b32.xlu0 %v4345, 112
        %v5202 = vpop.permute.xlu0 %5201
        %5203 = vrot.lane.b32.xlu0 %v4346, 112
        %v5204 = vpop.permute.xlu0 %5203
        %5205 = vrot.lane.b32.xlu0 %v4347, 112
        %v5206 = vpop.permute.xlu0 %5205
        %5207 = vrot.lane.b32.xlu0 %v4348, 112
        %v5208 = vpop.permute.xlu0 %5207
        %5209 = vrot.lane.b32.xlu0 %v4349, 112
        %v5210 = vpop.permute.xlu0 %5209
        %5219 = vrot.lane.b32.xlu0 %v4480, 112
        %v5220 = vpop.permute.xlu0 %5219
        %5221 = vrot.lane.b32.xlu0 %v4481, 112
        %v5222 = vpop.permute.xlu0 %5221
        %5223 = vrot.lane.b32.xlu0 %v4482, 112
        %v5224 = vpop.permute.xlu0 %5223
        %5225 = vrot.lane.b32.xlu0 %v4483, 112
        %v5226 = vpop.permute.xlu0 %5225
        %5227 = vrot.lane.b32.xlu0 %v4484, 112
        %v5228 = vpop.permute.xlu0 %5227
        %5229 = vrot.lane.b32.xlu0 %v4485, 112
        %v5230 = vpop.permute.xlu0 %5229
        %5231 = vrot.lane.b32.xlu0 %v4486, 112
        %v5232 = vpop.permute.xlu0 %5231
        %5233 = vrot.lane.b32.xlu0 %v4487, 112
        %v5234 = vpop.permute.xlu0 %5233
        %v5236 = vsel %vm1734, %v5196, 0
        %v5239 = vsel %vm1734, %v5198, 0
        %v5242 = vsel %vm1734, %v5200, 0
        %v5245 = vsel %vm1734, %v5202, 0
        %v5248 = vsel %vm1734, %v5204, 0
        %v5251 = vsel %vm1734, %v5206, 0
        %v5254 = vsel %vm1734, %v5208, 0
        %v5257 = vsel %vm1734, %v5210, 0
        %v5260 = vsel %vm1734, %v5220, 0
        %v5263 = vsel %vm1734, %v5222, 0
        %v5266 = vsel %vm1734, %v5224, 0
        %v5269 = vsel %vm1734, %v5226, 0
        %v5272 = vsel %vm1734, %v5228, 0
        %v5275 = vsel %vm1734, %v5230, 0
        %v5278 = vsel %vm1734, %v5232, 0
        %v5281 = vsel %vm1734, %v5234, 0
        %5283 = vmatprep.subr.bf16.mxu0 0
        %5284 = vmatpush1.bf16.xpose.msra.mxu0 %v5260
        %5285 = vmatprep.subr.bf16.mxu0 0
        %5286 = vmatpush1.bf16.xpose.msra.mxu0 %v5263
        %5287 = vmatprep.subr.bf16.mxu0 0
        %5288 = vmatpush1.bf16.xpose.msra.mxu0 %v5266
        %5289 = vmatprep.subr.bf16.mxu0 0
        %5290 = vmatpush1.bf16.xpose.msra.mxu0 %v5269
        %5291 = vmatprep.subr.bf16.mxu0 0
        %5292 = vmatpush1.bf16.xpose.msra.mxu0 %v5272
        %5293 = vmatprep.subr.bf16.mxu0 0
        %5294 = vmatpush1.bf16.xpose.msra.mxu0 %v5275
        %5295 = vmatprep.subr.bf16.mxu0 0
        %5296 = vmatpush1.bf16.xpose.msra.mxu0 %v5278
        %5297 = vmatprep.subr.bf16.mxu0 0
        %5298 = vmatpush1.bf16.xpose.msra.mxu0 %v5281
        %5299 = vmatprep.subr.bf16.mxu0 0
        %5300 = vmatpush1.bf16.xpose.msra.mxu0 0
        %5301 = vmatprep.subr.bf16.mxu0 0
        %5302 = vmatpush1.bf16.xpose.msra.mxu0 0
        %5303 = vmatprep.subr.bf16.mxu0 0
        %5304 = vmatpush1.bf16.xpose.msra.mxu0 0
        %5305 = vmatprep.subr.bf16.mxu0 0
        %5306 = vmatpush1.bf16.xpose.msra.mxu0 0
        %5307 = vmatprep.subr.bf16.mxu0 0
        %5308 = vmatpush1.bf16.xpose.msra.mxu0 0
        %5309 = vmatprep.subr.bf16.mxu0 0
        %5310 = vmatpush1.bf16.xpose.msra.mxu0 0
        %5311 = vmatprep.subr.bf16.mxu0 0
        %5312 = vmatpush1.bf16.xpose.msra.mxu0 0
        %5313 = vmatprep.subr.bf16.mxu0 0
        %5314 = vmatpush1.bf16.xpose.msra.mxu0 0
        %5315 = vmatprep.mubr.bf16.mxu0 0
        %5316 = vmatmul.mubr.bf16.gmra.mrb[0].mxu0 %v5236
        %v5317 = vpop.f32.mrb[0].mxu0
        %v5318 = vadd.f32 %v960, %v5317
        %v5319 = vpop.f32.mrb[0].mxu0
        %v5320 = vpop.f32.mrb[0].mxu0
        %v5321 = vadd.f32 %v961, %v5320
        %v5322 = vpop.f32.mrb[0].mxu0
        %5323 = vmatprep.mubr.bf16.mxu0 0
        %5324 = vmatmul.mubr.bf16.gmra.mrb[0].mxu0 %v5239
        %v5325 = vpop.f32.mrb[0].mxu0
        %v5326 = vadd.f32 %v962, %v5325
        %v5327 = vpop.f32.mrb[0].mxu0
        %v5328 = vpop.f32.mrb[0].mxu0
        %v5329 = vadd.f32 %v963, %v5328
        %v5330 = vpop.f32.mrb[0].mxu0
        %5331 = vmatprep.mubr.bf16.mxu0 0
        %5332 = vmatmul.mubr.bf16.gmra.mrb[0].mxu0 %v5242
        %v5333 = vpop.f32.mrb[0].mxu0
        %v5334 = vadd.f32 %v964, %v5333
        %v5335 = vpop.f32.mrb[0].mxu0
        %v5336 = vpop.f32.mrb[0].mxu0
        %v5337 = vadd.f32 %v965, %v5336
        %v5338 = vpop.f32.mrb[0].mxu0
        %5339 = vmatprep.mubr.bf16.mxu0 0
        %5340 = vmatmul.mubr.bf16.gmra.mrb[0].mxu0 %v5245
        %v5341 = vpop.f32.mrb[0].mxu0
        %v5342 = vadd.f32 %v966, %v5341
        %v5343 = vpop.f32.mrb[0].mxu0
        %v5344 = vpop.f32.mrb[0].mxu0
        %v5345 = vadd.f32 %v967, %v5344
        %v5346 = vpop.f32.mrb[0].mxu0
        %5347 = vmatprep.mubr.bf16.mxu0 0
        %5348 = vmatmul.mubr.bf16.gmra.mrb[0].mxu0 %v5248
        %v5349 = vpop.f32.mrb[0].mxu0
        %v5350 = vadd.f32 %v968, %v5349
        %v5351 = vpop.f32.mrb[0].mxu0
        %v5352 = vpop.f32.mrb[0].mxu0
        %v5353 = vadd.f32 %v969, %v5352
        %v5354 = vpop.f32.mrb[0].mxu0
        %5355 = vmatprep.mubr.bf16.mxu0 0
        %5356 = vmatmul.mubr.bf16.gmra.mrb[0].mxu0 %v5251
        %v5357 = vpop.f32.mrb[0].mxu0
        %v5358 = vadd.f32 %v970, %v5357
        %v5359 = vpop.f32.mrb[0].mxu0
        %v5360 = vpop.f32.mrb[0].mxu0
        %v5361 = vadd.f32 %v971, %v5360
        %v5362 = vpop.f32.mrb[0].mxu0
        %5363 = vmatprep.mubr.bf16.mxu0 0
        %5364 = vmatmul.mubr.bf16.gmra.mrb[0].mxu0 %v5254
        %v5365 = vpop.f32.mrb[0].mxu0
        %v5366 = vadd.f32 %v972, %v5365
        %v5367 = vpop.f32.mrb[0].mxu0
        %v5368 = vpop.f32.mrb[0].mxu0
        %v5369 = vadd.f32 %v973, %v5368
        %v5370 = vpop.f32.mrb[0].mxu0
        %5371 = vmatprep.mubr.bf16.mxu0 0
        %5372 = vmatmul.mubr.bf16.gmra.mrb[0].mxu0 %v5257
        %v5373 = vpop.f32.mrb[0].mxu0
        %v5374 = vadd.f32 %v974, %v5373
        %v5375 = vpop.f32.mrb[0].mxu0
        %v5376 = vpop.f32.mrb[0].mxu0
        %v5377 = vadd.f32 %v975, %v5376
        %v5378 = vpop.f32.mrb[0].mxu0
        %5379 = vdwg.mxu0
        %5380 = vmax.xlane.f32.xlu0 %v5318
        %v5381 = vpop.xlane.xlu0 %5380
        %5382 = vmax.xlane.f32.xlu0 %v5321
        %v5383 = vpop.xlane.xlu0 %5382
        %5384 = vmax.xlane.f32.xlu0 %v5326
        %v5385 = vpop.xlane.xlu0 %5384
        %5386 = vmax.xlane.f32.xlu0 %v5329
        %v5387 = vpop.xlane.xlu0 %5386
        %5388 = vmax.xlane.f32.xlu0 %v5334
        %v5389 = vpop.xlane.xlu0 %5388
        %5390 = vmax.xlane.f32.xlu0 %v5337
        %v5391 = vpop.xlane.xlu0 %5390
        %5392 = vmax.xlane.f32.xlu0 %v5342
        %v5393 = vpop.xlane.xlu0 %5392
        %5394 = vmax.xlane.f32.xlu0 %v5345
        %v5395 = vpop.xlane.xlu0 %5394
        %5396 = vmax.xlane.f32.xlu0 %v5350
        %v5397 = vpop.xlane.xlu0 %5396
        %5398 = vmax.xlane.f32.xlu0 %v5353
        %v5399 = vpop.xlane.xlu0 %5398
        %5400 = vmax.xlane.f32.xlu0 %v5358
        %v5401 = vpop.xlane.xlu0 %5400
        %5402 = vmax.xlane.f32.xlu0 %v5361
        %v5403 = vpop.xlane.xlu0 %5402
        %5404 = vmax.xlane.f32.xlu0 %v5366
        %v5405 = vpop.xlane.xlu0 %5404
        %5406 = vmax.xlane.f32.xlu0 %v5369
        %v5407 = vpop.xlane.xlu0 %5406
        %5408 = vmax.xlane.f32.xlu0 %v5374
        %v5409 = vpop.xlane.xlu0 %5408
        %5410 = vmax.xlane.f32.xlu0 %v5377
        %v5411 = vpop.xlane.xlu0 %5410
        %v5412 = vsub.f32 %v5318, %v5381
        %v5413 = vsub.f32 %v5321, %v5383
        %v5414 = vsub.f32 %v5326, %v5385
        %v5415 = vsub.f32 %v5329, %v5387
        %v5416 = vsub.f32 %v5334, %v5389
        %v5417 = vsub.f32 %v5337, %v5391
        %v5418 = vsub.f32 %v5342, %v5393
        %v5419 = vsub.f32 %v5345, %v5395
        %v5420 = vsub.f32 %v5350, %v5397
        %v5421 = vsub.f32 %v5353, %v5399
        %v5422 = vsub.f32 %v5358, %v5401
        %v5423 = vsub.f32 %v5361, %v5403
        %v5424 = vsub.f32 %v5366, %v5405
        %v5425 = vsub.f32 %v5369, %v5407
        %v5426 = vsub.f32 %v5374, %v5409
        %v5427 = vsub.f32 %v5377, %v5411
        %v5428 = vmul.f32 %v5412, 1.442695
        %v5429 = vpow.pop %v5428
        %v5430 = vmul.f32 %v5413, 1.442695
        %v5431 = vpow.pop %v5430
        %v5432 = vmul.f32 %v5414, 1.442695
        %v5433 = vpow.pop %v5432
        %v5434 = vmul.f32 %v5415, 1.442695
        %v5435 = vpow.pop %v5434
        %v5436 = vmul.f32 %v5416, 1.442695
        %v5437 = vpow.pop %v5436
        %v5438 = vmul.f32 %v5417, 1.442695
        %v5439 = vpow.pop %v5438
        %v5440 = vmul.f32 %v5418, 1.442695
        %v5441 = vpow.pop %v5440
        %v5442 = vmul.f32 %v5419, 1.442695
        %v5443 = vpow.pop %v5442
        %v5444 = vmul.f32 %v5420, 1.442695
        %v5445 = vpow.pop %v5444
        %v5446 = vmul.f32 %v5421, 1.442695
        %v5447 = vpow.pop %v5446
        %v5448 = vmul.f32 %v5422, 1.442695
        %v5449 = vpow.pop %v5448
        %v5450 = vmul.f32 %v5423, 1.442695
        %v5451 = vpow.pop %v5450
        %v5452 = vmul.f32 %v5424, 1.442695
        %v5453 = vpow.pop %v5452
        %v5454 = vmul.f32 %v5425, 1.442695
        %v5455 = vpow.pop %v5454
        %v5456 = vmul.f32 %v5426, 1.442695
        %v5457 = vpow.pop %v5456
        %v5458 = vmul.f32 %v5427, 1.442695
        %v5459 = vpow.pop %v5458
        %5460 = vadd.xlane.f32.xlu0 %v5429
        %v5461 = vpop.xlane.xlu0 %5460
        %5462 = vadd.xlane.f32.xlu0 %v5431
        %v5463 = vpop.xlane.xlu0 %5462
        %5464 = vadd.xlane.f32.xlu0 %v5433
        %v5465 = vpop.xlane.xlu0 %5464
        %5466 = vadd.xlane.f32.xlu0 %v5435
        %v5467 = vpop.xlane.xlu0 %5466
        %5468 = vadd.xlane.f32.xlu0 %v5437
        %v5469 = vpop.xlane.xlu0 %5468
        %5470 = vadd.xlane.f32.xlu0 %v5439
        %v5471 = vpop.xlane.xlu0 %5470
        %5472 = vadd.xlane.f32.xlu0 %v5441
        %v5473 = vpop.xlane.xlu0 %5472
        %5474 = vadd.xlane.f32.xlu0 %v5443
        %v5475 = vpop.xlane.xlu0 %5474
        %5476 = vadd.xlane.f32.xlu0 %v5445
        %v5477 = vpop.xlane.xlu0 %5476
        %5478 = vadd.xlane.f32.xlu0 %v5447
        %v5479 = vpop.xlane.xlu0 %5478
        %5480 = vadd.xlane.f32.xlu0 %v5449
        %v5481 = vpop.xlane.xlu0 %5480
        %5482 = vadd.xlane.f32.xlu0 %v5451
        %v5483 = vpop.xlane.xlu0 %5482
        %5484 = vadd.xlane.f32.xlu0 %v5453
        %v5485 = vpop.xlane.xlu0 %5484
        %5486 = vadd.xlane.f32.xlu0 %v5455
        %v5487 = vpop.xlane.xlu0 %5486
        %5488 = vadd.xlane.f32.xlu0 %v5457
        %v5489 = vpop.xlane.xlu0 %5488
        %5490 = vadd.xlane.f32.xlu0 %v5459
        %v5491 = vpop.xlane.xlu0 %5490
        %v5492 = vrcp.pop %v5461
        %v5493 = vmul.f32 %v1010, %v5492
        %v5494 = vrcp.pop %v5463
        %v5495 = vmul.f32 %v1013, %v5494
        %v5496 = vrcp.pop %v5465
        %v5497 = vmul.f32 %v1016, %v5496
        %v5498 = vrcp.pop %v5467
        %v5499 = vmul.f32 %v1019, %v5498
        %v5500 = vrcp.pop %v5469
        %v5501 = vmul.f32 %v1022, %v5500
        %v5502 = vrcp.pop %v5471
        %v5503 = vmul.f32 %v1025, %v5502
        %v5504 = vrcp.pop %v5473
        %v5505 = vmul.f32 %v1028, %v5504
        %v5506 = vrcp.pop %v5475
        %v5507 = vmul.f32 %v1031, %v5506
        %v5508 = vrcp.pop %v5477
        %v5509 = vmul.f32 %v1034, %v5508
        %v5510 = vrcp.pop %v5479
        %v5511 = vmul.f32 %v1037, %v5510
        %v5512 = vrcp.pop %v5481
        %v5513 = vmul.f32 %v1040, %v5512
        %v5514 = vrcp.pop %v5483
        %v5515 = vmul.f32 %v1043, %v5514
        %v5516 = vrcp.pop %v5485
        %v5517 = vmul.f32 %v1046, %v5516
        %v5518 = vrcp.pop %v5487
        %v5519 = vmul.f32 %v1049, %v5518
        %v5520 = vrcp.pop %v5489
        %v5521 = vmul.f32 %v1052, %v5520
        %v5522 = vrcp.pop %v5491
        %v5523 = vmul.f32 %v1055, %v5522
        %v5524 = vpack.c.bf16 %v5431, %v5429
        %v5525 = vpack.c.bf16 %v5435, %v5433
        %v5526 = vpack.c.bf16 %v5439, %v5437
        %v5527 = vpack.c.bf16 %v5443, %v5441
        %v5528 = vpack.c.bf16 %v5447, %v5445
        %v5529 = vpack.c.bf16 %v5451, %v5449
        %v5530 = vpack.c.bf16 %v5455, %v5453
        %v5531 = vpack.c.bf16 %v5459, %v5457
        %5540 = vrot.lane.b32.xlu0 %v4618, 112
        %v5541 = vpop.permute.xlu0 %5540
        %5542 = vrot.lane.b32.xlu0 %v4619, 112
        %v5543 = vpop.permute.xlu0 %5542
        %5544 = vrot.lane.b32.xlu0 %v4620, 112
        %v5545 = vpop.permute.xlu0 %5544
        %5546 = vrot.lane.b32.xlu0 %v4621, 112
        %v5547 = vpop.permute.xlu0 %5546
        %5548 = vrot.lane.b32.xlu0 %v4622, 112
        %v5549 = vpop.permute.xlu0 %5548
        %5550 = vrot.lane.b32.xlu0 %v4623, 112
        %v5551 = vpop.permute.xlu0 %5550
        %5552 = vrot.lane.b32.xlu0 %v4624, 112
        %v5553 = vpop.permute.xlu0 %5552
        %5554 = vrot.lane.b32.xlu0 %v4625, 112
        %v5555 = vpop.permute.xlu0 %5554
        %5564 = vmatprep.subr.bf16.mxu0 0
        %5565 = vmatpush1.bf16.msra.mxu0 %v5541
        %5566 = vmatprep.subr.bf16.mxu0 0
        %5567 = vmatpush1.bf16.msra.mxu0 %v5543
        %5568 = vmatprep.subr.bf16.mxu0 0
        %5569 = vmatpush1.bf16.msra.mxu0 %v5545
        %5570 = vmatprep.subr.bf16.mxu0 0
        %5571 = vmatpush1.bf16.msra.mxu0 %v5547
        %5572 = vmatprep.subr.bf16.mxu0 0
        %5573 = vmatpush1.bf16.msra.mxu0 %v5549
        %5574 = vmatprep.subr.bf16.mxu0 0
        %5575 = vmatpush1.bf16.msra.mxu0 %v5551
        %5576 = vmatprep.subr.bf16.mxu0 0
        %5577 = vmatpush1.bf16.msra.mxu0 %v5553
        %5578 = vmatprep.subr.bf16.mxu0 0
        %5579 = vmatpush1.bf16.msra.mxu0 %v5555
        %5580 = vmatprep.subr.bf16.mxu0 0
        %5581 = vmatpush1.bf16.msra.mxu0 0
        %5582 = vmatprep.subr.bf16.mxu0 0
        %5583 = vmatpush1.bf16.msra.mxu0 0
        %5584 = vmatprep.subr.bf16.mxu0 0
        %5585 = vmatpush1.bf16.msra.mxu0 0
        %5586 = vmatprep.subr.bf16.mxu0 0
        %5587 = vmatpush1.bf16.msra.mxu0 0
        %5588 = vmatprep.subr.bf16.mxu0 0
        %5589 = vmatpush1.bf16.msra.mxu0 0
        %5590 = vmatprep.subr.bf16.mxu0 0
        %5591 = vmatpush1.bf16.msra.mxu0 0
        %5592 = vmatprep.subr.bf16.mxu0 0
        %5593 = vmatpush1.bf16.msra.mxu0 0
        %5594 = vmatprep.subr.bf16.mxu0 0
        %5595 = vmatpush1.bf16.msra.mxu0 0
        %5596 = vmatprep.mubr.bf16.mxu0 0
        %5597 = vmatmul.mubr.bf16.gmra.mrb[0].mxu0 %v5524
        %v5598 = vpop.f32.mrb[0].mxu0
        %v5599 = vadd.f32 0.0, %v5598
        %v5600 = vpop.f32.mrb[0].mxu0
        %v5601 = vpop.f32.mrb[0].mxu0
        %v5602 = vadd.f32 0.0, %v5601
        %v5603 = vpop.f32.mrb[0].mxu0
        %5604 = vmatprep.mubr.bf16.mxu0 0
        %5605 = vmatmul.mubr.bf16.gmra.mrb[0].mxu0 %v5525
        %v5606 = vpop.f32.mrb[0].mxu0
        %v5607 = vadd.f32 0.0, %v5606
        %v5608 = vpop.f32.mrb[0].mxu0
        %v5609 = vpop.f32.mrb[0].mxu0
        %v5610 = vadd.f32 0.0, %v5609
        %v5611 = vpop.f32.mrb[0].mxu0
        %5612 = vmatprep.mubr.bf16.mxu0 0
        %5613 = vmatmul.mubr.bf16.gmra.mrb[0].mxu0 %v5526
        %v5614 = vpop.f32.mrb[0].mxu0
        %v5615 = vadd.f32 0.0, %v5614
        %v5616 = vpop.f32.mrb[0].mxu0
        %v5617 = vpop.f32.mrb[0].mxu0
        %v5618 = vadd.f32 0.0, %v5617
        %v5619 = vpop.f32.mrb[0].mxu0
        %5620 = vmatprep.mubr.bf16.mxu0 0
        %5621 = vmatmul.mubr.bf16.gmra.mrb[0].mxu0 %v5527
        %v5622 = vpop.f32.mrb[0].mxu0
        %v5623 = vadd.f32 0.0, %v5622
        %v5624 = vpop.f32.mrb[0].mxu0
        %v5625 = vpop.f32.mrb[0].mxu0
        %v5626 = vadd.f32 0.0, %v5625
        %v5627 = vpop.f32.mrb[0].mxu0
        %5628 = vmatprep.mubr.bf16.mxu0 0
        %5629 = vmatmul.mubr.bf16.gmra.mrb[0].mxu0 %v5528
        %v5630 = vpop.f32.mrb[0].mxu0
        %v5631 = vadd.f32 0.0, %v5630
        %v5632 = vpop.f32.mrb[0].mxu0
        %v5633 = vpop.f32.mrb[0].mxu0
        %v5634 = vadd.f32 0.0, %v5633
        %v5635 = vpop.f32.mrb[0].mxu0
        %5636 = vmatprep.mubr.bf16.mxu0 0
        %5637 = vmatmul.mubr.bf16.gmra.mrb[0].mxu0 %v5529
        %v5638 = vpop.f32.mrb[0].mxu0
        %v5639 = vadd.f32 0.0, %v5638
        %v5640 = vpop.f32.mrb[0].mxu0
        %v5641 = vpop.f32.mrb[0].mxu0
        %v5642 = vadd.f32 0.0, %v5641
        %v5643 = vpop.f32.mrb[0].mxu0
        %5644 = vmatprep.mubr.bf16.mxu0 0
        %5645 = vmatmul.mubr.bf16.gmra.mrb[0].mxu0 %v5530
        %v5646 = vpop.f32.mrb[0].mxu0
        %v5647 = vadd.f32 0.0, %v5646
        %v5648 = vpop.f32.mrb[0].mxu0
        %v5649 = vpop.f32.mrb[0].mxu0
        %v5650 = vadd.f32 0.0, %v5649
        %v5651 = vpop.f32.mrb[0].mxu0
        %5652 = vmatprep.mubr.bf16.mxu0 0
        %5653 = vmatmul.mubr.bf16.gmra.mrb[0].mxu0 %v5531
        %v5654 = vpop.f32.mrb[0].mxu0
        %v5655 = vadd.f32 0.0, %v5654
        %v5656 = vpop.f32.mrb[0].mxu0
        %v5657 = vpop.f32.mrb[0].mxu0
        %v5658 = vadd.f32 0.0, %v5657
        %v5659 = vpop.f32.mrb[0].mxu0
        %5660 = vdwg.mxu0
        %v5661 = vmul.f32 %v5599, %v5493
        %v5662 = vmul.f32 %v5602, %v5495
        %v5663 = vmul.f32 %v5607, %v5497
        %v5664 = vmul.f32 %v5610, %v5499
        %v5665 = vmul.f32 %v5615, %v5501
        %v5666 = vmul.f32 %v5618, %v5503
        %v5667 = vmul.f32 %v5623, %v5505
        %v5668 = vmul.f32 %v5626, %v5507
        %v5669 = vmul.f32 %v5631, %v5509
        %v5670 = vmul.f32 %v5634, %v5511
        %v5671 = vmul.f32 %v5639, %v5513
        %v5672 = vmul.f32 %v5642, %v5515
        %v5673 = vmul.f32 %v5647, %v5517
        %v5674 = vmul.f32 %v5650, %v5519
        %v5675 = vmul.f32 %v5655, %v5521
        %v5676 = vmul.f32 %v5658, %v5523
        %v5677 = vpack.c.bf16 %v5662, %v5661
        %v5678 = vpack.c.bf16 %v5664, %v5663
        %v5679 = vpack.c.bf16 %v5666, %v5665
        %v5680 = vpack.c.bf16 %v5668, %v5667
        %v5681 = vpack.c.bf16 %v5670, %v5669
        %v5682 = vpack.c.bf16 %v5672, %v5671
        %v5683 = vpack.c.bf16 %v5674, %v5673
        %v5684 = vpack.c.bf16 %v5676, %v5675
        %v5687 = vunpack.c.l.b16 %v4182
        %v5688 = vunpack.c.l.b16 %v4183
        %v5689 = vpack.c.b16 %v5688, %v5687
        %v5692 = vsel %vm1734, %v5677, 0
        %v5695 = vsel %vm1734, %v5678, 0
        %v5698 = vsel %vm1734, %v5679, 0
        %v5701 = vsel %vm1734, %v5680, 0
        %v5704 = vsel %vm1734, %v5681, 0
        %v5707 = vsel %vm1734, %v5682, 0
        %v5710 = vsel %vm1734, %v5683, 0
        %v5713 = vsel %vm1734, %v5684, 0
        %5715 = vmatprep.subr.bf16.mxu0 0
        %5716 = vmatpush1.bf16.msra.mxu0 %v5689
        %5717 = vmatprep.subr.bf16.mxu0 0
        %5718 = vmatpush1.bf16.msra.mxu0 0
        %5719 = vmatprep.subr.bf16.mxu0 0
        %5720 = vmatpush1.bf16.msra.mxu0 0
        %5721 = vmatprep.subr.bf16.mxu0 0
        %5722 = vmatpush1.bf16.msra.mxu0 0
        %5723 = vmatprep.subr.bf16.mxu0 0
        %5724 = vmatpush1.bf16.msra.mxu0 0
        %5725 = vmatprep.subr.bf16.mxu0 0
        %5726 = vmatpush1.bf16.msra.mxu0 0
        %5727 = vmatprep.subr.bf16.mxu0 0
        %5728 = vmatpush1.bf16.msra.mxu0 0
        %5729 = vmatprep.subr.bf16.mxu0 0
        %5730 = vmatpush1.bf16.msra.mxu0 0
        %5731 = vmatprep.subr.bf16.mxu0 0
        %5732 = vmatpush1.bf16.msra.mxu0 0
        %5733 = vmatprep.subr.bf16.mxu0 0
        %5734 = vmatpush1.bf16.msra.mxu0 0
        %5735 = vmatprep.subr.bf16.mxu0 0
        %5736 = vmatpush1.bf16.msra.mxu0 0
        %5737 = vmatprep.subr.bf16.mxu0 0
        %5738 = vmatpush1.bf16.msra.mxu0 0
        %5739 = vmatprep.subr.bf16.mxu0 0
        %5740 = vmatpush1.bf16.msra.mxu0 0
        %5741 = vmatprep.subr.bf16.mxu0 0
        %5742 = vmatpush1.bf16.msra.mxu0 0
        %5743 = vmatprep.subr.bf16.mxu0 0
        %5744 = vmatpush1.bf16.msra.mxu0 0
        %5745 = vmatprep.subr.bf16.mxu0 0
        %5746 = vmatpush1.bf16.msra.mxu0 0
        %5747 = vmatprep.mubr.bf16.mxu0 0
        %5748 = vmatmul.mubr.bf16.gmra.mrb[0].mxu0 %v5692
        %v5749 = vpop.f32.mrb[0].mxu0
        %v5750 = vadd.f32 0.0, %v5749
        %v5751 = vpop.f32.mrb[0].mxu0
        %v5752 = vpop.f32.mrb[0].mxu0
        %v5753 = vadd.f32 0.0, %v5752
        %v5754 = vpop.f32.mrb[0].mxu0
        %5755 = vmatprep.mubr.bf16.mxu0 0
        %5756 = vmatmul.mubr.bf16.gmra.mrb[0].mxu0 %v5695
        %v5757 = vpop.f32.mrb[0].mxu0
        %v5758 = vadd.f32 0.0, %v5757
        %v5759 = vpop.f32.mrb[0].mxu0
        %v5760 = vpop.f32.mrb[0].mxu0
        %v5761 = vadd.f32 0.0, %v5760
        %v5762 = vpop.f32.mrb[0].mxu0
        %5763 = vmatprep.mubr.bf16.mxu0 0
        %5764 = vmatmul.mubr.bf16.gmra.mrb[0].mxu0 %v5698
        %v5765 = vpop.f32.mrb[0].mxu0
        %v5766 = vadd.f32 0.0, %v5765
        %v5767 = vpop.f32.mrb[0].mxu0
        %v5768 = vpop.f32.mrb[0].mxu0
        %v5769 = vadd.f32 0.0, %v5768
        %v5770 = vpop.f32.mrb[0].mxu0
        %5771 = vmatprep.mubr.bf16.mxu0 0
        %5772 = vmatmul.mubr.bf16.gmra.mrb[0].mxu0 %v5701
        %v5773 = vpop.f32.mrb[0].mxu0
        %v5774 = vadd.f32 0.0, %v5773
        %v5775 = vpop.f32.mrb[0].mxu0
        %v5776 = vpop.f32.mrb[0].mxu0
        %v5777 = vadd.f32 0.0, %v5776
        %v5778 = vpop.f32.mrb[0].mxu0
        %5779 = vmatprep.mubr.bf16.mxu0 0
        %5780 = vmatmul.mubr.bf16.gmra.mrb[0].mxu0 %v5704
        %v5781 = vpop.f32.mrb[0].mxu0
        %v5782 = vadd.f32 0.0, %v5781
        %v5783 = vpop.f32.mrb[0].mxu0
        %v5784 = vpop.f32.mrb[0].mxu0
        %v5785 = vadd.f32 0.0, %v5784
        %v5786 = vpop.f32.mrb[0].mxu0
        %5787 = vmatprep.mubr.bf16.mxu0 0
        %5788 = vmatmul.mubr.bf16.gmra.mrb[0].mxu0 %v5707
        %v5789 = vpop.f32.mrb[0].mxu0
        %v5790 = vadd.f32 0.0, %v5789
        %v5791 = vpop.f32.mrb[0].mxu0
        %v5792 = vpop.f32.mrb[0].mxu0
        %v5793 = vadd.f32 0.0, %v5792
        %v5794 = vpop.f32.mrb[0].mxu0
        %5795 = vmatprep.mubr.bf16.mxu0 0
        %5796 = vmatmul.mubr.bf16.gmra.mrb[0].mxu0 %v5710
        %v5797 = vpop.f32.mrb[0].mxu0
        %v5798 = vadd.f32 0.0, %v5797
        %v5799 = vpop.f32.mrb[0].mxu0
        %v5800 = vpop.f32.mrb[0].mxu0
        %v5801 = vadd.f32 0.0, %v5800
        %v5802 = vpop.f32.mrb[0].mxu0
        %5803 = vmatprep.mubr.bf16.mxu0 0
        %5804 = vmatmul.mubr.bf16.gmra.mrb[0].mxu0 %v5713
        %v5805 = vpop.f32.mrb[0].mxu0
        %v5806 = vadd.f32 0.0, %v5805
        %v5807 = vpop.f32.mrb[0].mxu0
        %v5808 = vpop.f32.mrb[0].mxu0
        %v5809 = vadd.f32 0.0, %v5808
        %v5810 = vpop.f32.mrb[0].mxu0
        %5811 = vdwg.mxu0
        %v5812 = vadd.f32 %v5171, %v5750
        %v5813 = vadd.f32 %v5172, %v5753
        %v5814 = vadd.f32 %v5173, %v5758
        %v5815 = vadd.f32 %v5174, %v5761
        %v5816 = vadd.f32 %v5175, %v5766
        %v5817 = vadd.f32 %v5176, %v5769
        %v5818 = vadd.f32 %v5177, %v5774
        %v5819 = vadd.f32 %v5178, %v5777
        %v5820 = vadd.f32 %v5179, %v5782
        %v5821 = vadd.f32 %v5180, %v5785
        %v5822 = vadd.f32 %v5181, %v5790
        %v5823 = vadd.f32 %v5182, %v5793
        %v5824 = vadd.f32 %v5183, %v5798
        %v5825 = vadd.f32 %v5184, %v5801
        %v5826 = vadd.f32 %v5185, %v5806
        %v5827 = vadd.f32 %v5186, %v5809
        %5828 = vrot.lane.b32.xlu0 %v4342, 96
        %v5829 = vpop.permute.xlu0 %5828
        %5830 = vrot.lane.b32.xlu0 %v4343, 96
        %v5831 = vpop.permute.xlu0 %5830
        %5832 = vrot.lane.b32.xlu0 %v4344, 96
        %v5833 = vpop.permute.xlu0 %5832
        %5834 = vrot.lane.b32.xlu0 %v4345, 96
        %v5835 = vpop.permute.xlu0 %5834
        %5836 = vrot.lane.b32.xlu0 %v4346, 96
        %v5837 = vpop.permute.xlu0 %5836
        %5838 = vrot.lane.b32.xlu0 %v4347, 96
        %v5839 = vpop.permute.xlu0 %5838
        %5840 = vrot.lane.b32.xlu0 %v4348, 96
        %v5841 = vpop.permute.xlu0 %5840
        %5842 = vrot.lane.b32.xlu0 %v4349, 96
        %v5843 = vpop.permute.xlu0 %5842
        %5844 = vrot.lane.b32.xlu0 %v4480, 96
        %v5845 = vpop.permute.xlu0 %5844
        %5846 = vrot.lane.b32.xlu0 %v4481, 96
        %v5847 = vpop.permute.xlu0 %5846
        %5848 = vrot.lane.b32.xlu0 %v4482, 96
        %v5849 = vpop.permute.xlu0 %5848
        %5850 = vrot.lane.b32.xlu0 %v4483, 96
        %v5851 = vpop.permute.xlu0 %5850
        %5852 = vrot.lane.b32.xlu0 %v4484, 96
        %v5853 = vpop.permute.xlu0 %5852
        %5854 = vrot.lane.b32.xlu0 %v4485, 96
        %v5855 = vpop.permute.xlu0 %5854
        %5856 = vrot.lane.b32.xlu0 %v4486, 96
        %v5857 = vpop.permute.xlu0 %5856
        %5858 = vrot.lane.b32.xlu0 %v4487, 96
        %v5859 = vpop.permute.xlu0 %5858
        %v5861 = vsel %vm1734, %v5829, 0
        %v5864 = vsel %vm1734, %v5831, 0
        %v5867 = vsel %vm1734, %v5833, 0
        %v5870 = vsel %vm1734, %v5835, 0
        %v5873 = vsel %vm1734, %v5837, 0
        %v5876 = vsel %vm1734, %v5839, 0
        %v5879 = vsel %vm1734, %v5841, 0
        %v5882 = vsel %vm1734, %v5843, 0
        %v5885 = vsel %vm1734, %v5845, 0
        %v5888 = vsel %vm1734, %v5847, 0
        %v5891 = vsel %vm1734, %v5849, 0
        %v5894 = vsel %vm1734, %v5851, 0
        %v5897 = vsel %vm1734, %v5853, 0
        %v5900 = vsel %vm1734, %v5855, 0
        %v5903 = vsel %vm1734, %v5857, 0
        %v5906 = vsel %vm1734, %v5859, 0
        %5908 = vmatprep.subr.bf16.mxu0 0
        %5909 = vmatpush1.bf16.xpose.msra.mxu0 %v5885
        %5910 = vmatprep.subr.bf16.mxu0 0
        %5911 = vmatpush1.bf16.xpose.msra.mxu0 %v5888
        %5912 = vmatprep.subr.bf16.mxu0 0
        %5913 = vmatpush1.bf16.xpose.msra.mxu0 %v5891
        %5914 = vmatprep.subr.bf16.mxu0 0
        %5915 = vmatpush1.bf16.xpose.msra.mxu0 %v5894
        %5916 = vmatprep.subr.bf16.mxu0 0
        %5917 = vmatpush1.bf16.xpose.msra.mxu0 %v5897
        %5918 = vmatprep.subr.bf16.mxu0 0
        %5919 = vmatpush1.bf16.xpose.msra.mxu0 %v5900
        %5920 = vmatprep.subr.bf16.mxu0 0
        %5921 = vmatpush1.bf16.xpose.msra.mxu0 %v5903
        %5922 = vmatprep.subr.bf16.mxu0 0
        %5923 = vmatpush1.bf16.xpose.msra.mxu0 %v5906
        %5924 = vmatprep.subr.bf16.mxu0 0
        %5925 = vmatpush1.bf16.xpose.msra.mxu0 0
        %5926 = vmatprep.subr.bf16.mxu0 0
        %5927 = vmatpush1.bf16.xpose.msra.mxu0 0
        %5928 = vmatprep.subr.bf16.mxu0 0
        %5929 = vmatpush1.bf16.xpose.msra.mxu0 0
        %5930 = vmatprep.subr.bf16.mxu0 0
        %5931 = vmatpush1.bf16.xpose.msra.mxu0 0
        %5932 = vmatprep.subr.bf16.mxu0 0
        %5933 = vmatpush1.bf16.xpose.msra.mxu0 0
        %5934 = vmatprep.subr.bf16.mxu0 0
        %5935 = vmatpush1.bf16.xpose.msra.mxu0 0
        %5936 = vmatprep.subr.bf16.mxu0 0
        %5937 = vmatpush1.bf16.xpose.msra.mxu0 0
        %5938 = vmatprep.subr.bf16.mxu0 0
        %5939 = vmatpush1.bf16.xpose.msra.mxu0 0
        %5940 = vmatprep.mubr.bf16.mxu0 0
        %5941 = vmatmul.mubr.bf16.gmra.mrb[0].mxu0 %v5861
        %v5942 = vpop.f32.mrb[0].mxu0
        %v5943 = vadd.f32 %v960, %v5942
        %v5944 = vpop.f32.mrb[0].mxu0
        %v5945 = vpop.f32.mrb[0].mxu0
        %v5946 = vadd.f32 %v961, %v5945
        %v5947 = vpop.f32.mrb[0].mxu0
        %5948 = vmatprep.mubr.bf16.mxu0 0
        %5949 = vmatmul.mubr.bf16.gmra.mrb[0].mxu0 %v5864
        %v5950 = vpop.f32.mrb[0].mxu0
        %v5951 = vadd.f32 %v962, %v5950
        %v5952 = vpop.f32.mrb[0].mxu0
        %v5953 = vpop.f32.mrb[0].mxu0
        %v5954 = vadd.f32 %v963, %v5953
        %v5955 = vpop.f32.mrb[0].mxu0
        %5956 = vmatprep.mubr.bf16.mxu0 0
        %5957 = vmatmul.mubr.bf16.gmra.mrb[0].mxu0 %v5867
        %v5958 = vpop.f32.mrb[0].mxu0
        %v5959 = vadd.f32 %v964, %v5958
        %v5960 = vpop.f32.mrb[0].mxu0
        %v5961 = vpop.f32.mrb[0].mxu0
        %v5962 = vadd.f32 %v965, %v5961
        %v5963 = vpop.f32.mrb[0].mxu0
        %5964 = vmatprep.mubr.bf16.mxu0 0
        %5965 = vmatmul.mubr.bf16.gmra.mrb[0].mxu0 %v5870
        %v5966 = vpop.f32.mrb[0].mxu0
        %v5967 = vadd.f32 %v966, %v5966
        %v5968 = vpop.f32.mrb[0].mxu0
        %v5969 = vpop.f32.mrb[0].mxu0
        %v5970 = vadd.f32 %v967, %v5969
        %v5971 = vpop.f32.mrb[0].mxu0
        %5972 = vmatprep.mubr.bf16.mxu0 0
        %5973 = vmatmul.mubr.bf16.gmra.mrb[0].mxu0 %v5873
        %v5974 = vpop.f32.mrb[0].mxu0
        %v5975 = vadd.f32 %v968, %v5974
        %v5976 = vpop.f32.mrb[0].mxu0
        %v5977 = vpop.f32.mrb[0].mxu0
        %v5978 = vadd.f32 %v969, %v5977
        %v5979 = vpop.f32.mrb[0].mxu0
        %5980 = vmatprep.mubr.bf16.mxu0 0
        %5981 = vmatmul.mubr.bf16.gmra.mrb[0].mxu0 %v5876
        %v5982 = vpop.f32.mrb[0].mxu0
        %v5983 = vadd.f32 %v970, %v5982
        %v5984 = vpop.f32.mrb[0].mxu0
        %v5985 = vpop.f32.mrb[0].mxu0
        %v5986 = vadd.f32 %v971, %v5985
        %v5987 = vpop.f32.mrb[0].mxu0
        %5988 = vmatprep.mubr.bf16.mxu0 0
        %5989 = vmatmul.mubr.bf16.gmra.mrb[0].mxu0 %v5879
        %v5990 = vpop.f32.mrb[0].mxu0
        %v5991 = vadd.f32 %v972, %v5990
        %v5992 = vpop.f32.mrb[0].mxu0
        %v5993 = vpop.f32.mrb[0].mxu0
        %v5994 = vadd.f32 %v973, %v5993
        %v5995 = vpop.f32.mrb[0].mxu0
        %5996 = vmatprep.mubr.bf16.mxu0 0
        %5997 = vmatmul.mubr.bf16.gmra.mrb[0].mxu0 %v5882
        %v5998 = vpop.f32.mrb[0].mxu0
        %v5999 = vadd.f32 %v974, %v5998
        %v6000 = vpop.f32.mrb[0].mxu0
        %v6001 = vpop.f32.mrb[0].mxu0
        %v6002 = vadd.f32 %v975, %v6001
        %v6003 = vpop.f32.mrb[0].mxu0
        %6004 = vdwg.mxu0
        %6005 = vmax.xlane.f32.xlu0 %v5943
        %v6006 = vpop.xlane.xlu0 %6005
        %6007 = vmax.xlane.f32.xlu0 %v5946
        %v6008 = vpop.xlane.xlu0 %6007
        %6009 = vmax.xlane.f32.xlu0 %v5951
        %v6010 = vpop.xlane.xlu0 %6009
        %6011 = vmax.xlane.f32.xlu0 %v5954
        %v6012 = vpop.xlane.xlu0 %6011
        %6013 = vmax.xlane.f32.xlu0 %v5959
        %v6014 = vpop.xlane.xlu0 %6013
        %6015 = vmax.xlane.f32.xlu0 %v5962
        %v6016 = vpop.xlane.xlu0 %6015
        %6017 = vmax.xlane.f32.xlu0 %v5967
        %v6018 = vpop.xlane.xlu0 %6017
        %6019 = vmax.xlane.f32.xlu0 %v5970
        %v6020 = vpop.xlane.xlu0 %6019
        %6021 = vmax.xlane.f32.xlu0 %v5975
        %v6022 = vpop.xlane.xlu0 %6021
        %6023 = vmax.xlane.f32.xlu0 %v5978
        %v6024 = vpop.xlane.xlu0 %6023
        %6025 = vmax.xlane.f32.xlu0 %v5983
        %v6026 = vpop.xlane.xlu0 %6025
        %6027 = vmax.xlane.f32.xlu0 %v5986
        %v6028 = vpop.xlane.xlu0 %6027
        %6029 = vmax.xlane.f32.xlu0 %v5991
        %v6030 = vpop.xlane.xlu0 %6029
        %6031 = vmax.xlane.f32.xlu0 %v5994
        %v6032 = vpop.xlane.xlu0 %6031
        %6033 = vmax.xlane.f32.xlu0 %v5999
        %v6034 = vpop.xlane.xlu0 %6033
        %6035 = vmax.xlane.f32.xlu0 %v6002
        %v6036 = vpop.xlane.xlu0 %6035
        %v6037 = vsub.f32 %v5943, %v6006
        %v6038 = vsub.f32 %v5946, %v6008
        %v6039 = vsub.f32 %v5951, %v6010
        %v6040 = vsub.f32 %v5954, %v6012
        %v6041 = vsub.f32 %v5959, %v6014
        %v6042 = vsub.f32 %v5962, %v6016
        %v6043 = vsub.f32 %v5967, %v6018
        %v6044 = vsub.f32 %v5970, %v6020
        %v6045 = vsub.f32 %v5975, %v6022
        %v6046 = vsub.f32 %v5978, %v6024
        %v6047 = vsub.f32 %v5983, %v6026
        %v6048 = vsub.f32 %v5986, %v6028
        %v6049 = vsub.f32 %v5991, %v6030
        %v6050 = vsub.f32 %v5994, %v6032
        %v6051 = vsub.f32 %v5999, %v6034
        %v6052 = vsub.f32 %v6002, %v6036
        %v6053 = vmul.f32 %v6037, 1.442695
        %v6054 = vpow.pop %v6053
        %v6055 = vmul.f32 %v6038, 1.442695
        %v6056 = vpow.pop %v6055
        %v6057 = vmul.f32 %v6039, 1.442695
        %v6058 = vpow.pop %v6057
        %v6059 = vmul.f32 %v6040, 1.442695
        %v6060 = vpow.pop %v6059
        %v6061 = vmul.f32 %v6041, 1.442695
        %v6062 = vpow.pop %v6061
        %v6063 = vmul.f32 %v6042, 1.442695
        %v6064 = vpow.pop %v6063
        %v6065 = vmul.f32 %v6043, 1.442695
        %v6066 = vpow.pop %v6065
        %v6067 = vmul.f32 %v6044, 1.442695
        %v6068 = vpow.pop %v6067
        %v6069 = vmul.f32 %v6045, 1.442695
        %v6070 = vpow.pop %v6069
        %v6071 = vmul.f32 %v6046, 1.442695
        %v6072 = vpow.pop %v6071
        %v6073 = vmul.f32 %v6047, 1.442695
        %v6074 = vpow.pop %v6073
        %v6075 = vmul.f32 %v6048, 1.442695
        %v6076 = vpow.pop %v6075
        %v6077 = vmul.f32 %v6049, 1.442695
        %v6078 = vpow.pop %v6077
        %v6079 = vmul.f32 %v6050, 1.442695
        %v6080 = vpow.pop %v6079
        %v6081 = vmul.f32 %v6051, 1.442695
        %v6082 = vpow.pop %v6081
        %v6083 = vmul.f32 %v6052, 1.442695
        %v6084 = vpow.pop %v6083
        %6085 = vadd.xlane.f32.xlu0 %v6054
        %v6086 = vpop.xlane.xlu0 %6085
        %6087 = vadd.xlane.f32.xlu0 %v6056
        %v6088 = vpop.xlane.xlu0 %6087
        %6089 = vadd.xlane.f32.xlu0 %v6058
        %v6090 = vpop.xlane.xlu0 %6089
        %6091 = vadd.xlane.f32.xlu0 %v6060
        %v6092 = vpop.xlane.xlu0 %6091
        %6093 = vadd.xlane.f32.xlu0 %v6062
        %v6094 = vpop.xlane.xlu0 %6093
        %6095 = vadd.xlane.f32.xlu0 %v6064
        %v6096 = vpop.xlane.xlu0 %6095
        %6097 = vadd.xlane.f32.xlu0 %v6066
        %v6098 = vpop.xlane.xlu0 %6097
        %6099 = vadd.xlane.f32.xlu0 %v6068
        %v6100 = vpop.xlane.xlu0 %6099
        %6101 = vadd.xlane.f32.xlu0 %v6070
        %v6102 = vpop.xlane.xlu0 %6101
        %6103 = vadd.xlane.f32.xlu0 %v6072
        %v6104 = vpop.xlane.xlu0 %6103
        %6105 = vadd.xlane.f32.xlu0 %v6074
        %v6106 = vpop.xlane.xlu0 %6105
        %6107 = vadd.xlane.f32.xlu0 %v6076
        %v6108 = vpop.xlane.xlu0 %6107
        %6109 = vadd.xlane.f32.xlu0 %v6078
        %v6110 = vpop.xlane.xlu0 %6109
        %6111 = vadd.xlane.f32.xlu0 %v6080
        %v6112 = vpop.xlane.xlu0 %6111
        %6113 = vadd.xlane.f32.xlu0 %v6082
        %v6114 = vpop.xlane.xlu0 %6113
        %6115 = vadd.xlane.f32.xlu0 %v6084
        %v6116 = vpop.xlane.xlu0 %6115
        %v6117 = vrcp.pop %v6086
        %v6118 = vmul.f32 %v1010, %v6117
        %v6119 = vrcp.pop %v6088
        %v6120 = vmul.f32 %v1013, %v6119
        %v6121 = vrcp.pop %v6090
        %v6122 = vmul.f32 %v1016, %v6121
        %v6123 = vrcp.pop %v6092
        %v6124 = vmul.f32 %v1019, %v6123
        %v6125 = vrcp.pop %v6094
        %v6126 = vmul.f32 %v1022, %v6125
        %v6127 = vrcp.pop %v6096
        %v6128 = vmul.f32 %v1025, %v6127
        %v6129 = vrcp.pop %v6098
        %v6130 = vmul.f32 %v1028, %v6129
        %v6131 = vrcp.pop %v6100
        %v6132 = vmul.f32 %v1031, %v6131
        %v6133 = vrcp.pop %v6102
        %v6134 = vmul.f32 %v1034, %v6133
        %v6135 = vrcp.pop %v6104
        %v6136 = vmul.f32 %v1037, %v6135
        %v6137 = vrcp.pop %v6106
        %v6138 = vmul.f32 %v1040, %v6137
        %v6139 = vrcp.pop %v6108
        %v6140 = vmul.f32 %v1043, %v6139
        %v6141 = vrcp.pop %v6110
        %v6142 = vmul.f32 %v1046, %v6141
        %v6143 = vrcp.pop %v6112
        %v6144 = vmul.f32 %v1049, %v6143
        %v6145 = vrcp.pop %v6114
        %v6146 = vmul.f32 %v1052, %v6145
        %v6147 = vrcp.pop %v6116
        %v6148 = vmul.f32 %v1055, %v6147
        %v6149 = vpack.c.bf16 %v6056, %v6054
        %v6150 = vpack.c.bf16 %v6060, %v6058
        %v6151 = vpack.c.bf16 %v6064, %v6062
        %v6152 = vpack.c.bf16 %v6068, %v6066
        %v6153 = vpack.c.bf16 %v6072, %v6070
        %v6154 = vpack.c.bf16 %v6076, %v6074
        %v6155 = vpack.c.bf16 %v6080, %v6078
        %v6156 = vpack.c.bf16 %v6084, %v6082
        %6157 = vrot.lane.b32.xlu0 %v4618, 96
        %v6158 = vpop.permute.xlu0 %6157
        %6159 = vrot.lane.b32.xlu0 %v4619, 96
        %v6160 = vpop.permute.xlu0 %6159
        %6161 = vrot.lane.b32.xlu0 %v4620, 96
        %v6162 = vpop.permute.xlu0 %6161
        %6163 = vrot.lane.b32.xlu0 %v4621, 96
        %v6164 = vpop.permute.xlu0 %6163
        %6165 = vrot.lane.b32.xlu0 %v4622, 96
        %v6166 = vpop.permute.xlu0 %6165
        %6167 = vrot.lane.b32.xlu0 %v4623, 96
        %v6168 = vpop.permute.xlu0 %6167
        %6169 = vrot.lane.b32.xlu0 %v4624, 96
        %v6170 = vpop.permute.xlu0 %6169
        %6171 = vrot.lane.b32.xlu0 %v4625, 96
        %v6172 = vpop.permute.xlu0 %6171
        %6181 = vmatprep.subr.bf16.mxu0 0
        %6182 = vmatpush1.bf16.msra.mxu0 %v6158
        %6183 = vmatprep.subr.bf16.mxu0 0
        %6184 = vmatpush1.bf16.msra.mxu0 %v6160
        %6185 = vmatprep.subr.bf16.mxu0 0
        %6186 = vmatpush1.bf16.msra.mxu0 %v6162
        %6187 = vmatprep.subr.bf16.mxu0 0
        %6188 = vmatpush1.bf16.msra.mxu0 %v6164
        %6189 = vmatprep.subr.bf16.mxu0 0
        %6190 = vmatpush1.bf16.msra.mxu0 %v6166
        %6191 = vmatprep.subr.bf16.mxu0 0
        %6192 = vmatpush1.bf16.msra.mxu0 %v6168
        %6193 = vmatprep.subr.bf16.mxu0 0
        %6194 = vmatpush1.bf16.msra.mxu0 %v6170
        %6195 = vmatprep.subr.bf16.mxu0 0
        %6196 = vmatpush1.bf16.msra.mxu0 %v6172
        %6197 = vmatprep.subr.bf16.mxu0 0
        %6198 = vmatpush1.bf16.msra.mxu0 0
        %6199 = vmatprep.subr.bf16.mxu0 0
        %6200 = vmatpush1.bf16.msra.mxu0 0
        %6201 = vmatprep.subr.bf16.mxu0 0
        %6202 = vmatpush1.bf16.msra.mxu0 0
        %6203 = vmatprep.subr.bf16.mxu0 0
        %6204 = vmatpush1.bf16.msra.mxu0 0
        %6205 = vmatprep.subr.bf16.mxu0 0
        %6206 = vmatpush1.bf16.msra.mxu0 0
        %6207 = vmatprep.subr.bf16.mxu0 0
        %6208 = vmatpush1.bf16.msra.mxu0 0
        %6209 = vmatprep.subr.bf16.mxu0 0
        %6210 = vmatpush1.bf16.msra.mxu0 0
        %6211 = vmatprep.subr.bf16.mxu0 0
        %6212 = vmatpush1.bf16.msra.mxu0 0
        %6213 = vmatprep.mubr.bf16.mxu0 0
        %6214 = vmatmul.mubr.bf16.gmra.mrb[0].mxu0 %v6149
        %v6215 = vpop.f32.mrb[0].mxu0
        %v6216 = vadd.f32 0.0, %v6215
        %v6217 = vpop.f32.mrb[0].mxu0
        %v6218 = vpop.f32.mrb[0].mxu0
        %v6219 = vadd.f32 0.0, %v6218
        %v6220 = vpop.f32.mrb[0].mxu0
        %6221 = vmatprep.mubr.bf16.mxu0 0
        %6222 = vmatmul.mubr.bf16.gmra.mrb[0].mxu0 %v6150
        %v6223 = vpop.f32.mrb[0].mxu0
        %v6224 = vadd.f32 0.0, %v6223
        %v6225 = vpop.f32.mrb[0].mxu0
        %v6226 = vpop.f32.mrb[0].mxu0
        %v6227 = vadd.f32 0.0, %v6226
        %v6228 = vpop.f32.mrb[0].mxu0
        %6229 = vmatprep.mubr.bf16.mxu0 0
        %6230 = vmatmul.mubr.bf16.gmra.mrb[0].mxu0 %v6151
        %v6231 = vpop.f32.mrb[0].mxu0
        %v6232 = vadd.f32 0.0, %v6231
        %v6233 = vpop.f32.mrb[0].mxu0
        %v6234 = vpop.f32.mrb[0].mxu0
        %v6235 = vadd.f32 0.0, %v6234
        %v6236 = vpop.f32.mrb[0].mxu0
        %6237 = vmatprep.mubr.bf16.mxu0 0
        %6238 = vmatmul.mubr.bf16.gmra.mrb[0].mxu0 %v6152
        %v6239 = vpop.f32.mrb[0].mxu0
        %v6240 = vadd.f32 0.0, %v6239
        %v6241 = vpop.f32.mrb[0].mxu0
        %v6242 = vpop.f32.mrb[0].mxu0
        %v6243 = vadd.f32 0.0, %v6242
        %v6244 = vpop.f32.mrb[0].mxu0
        %6245 = vmatprep.mubr.bf16.mxu0 0
        %6246 = vmatmul.mubr.bf16.gmra.mrb[0].mxu0 %v6153
        %v6247 = vpop.f32.mrb[0].mxu0
        %v6248 = vadd.f32 0.0, %v6247
        %v6249 = vpop.f32.mrb[0].mxu0
        %v6250 = vpop.f32.mrb[0].mxu0
        %v6251 = vadd.f32 0.0, %v6250
        %v6252 = vpop.f32.mrb[0].mxu0
        %6253 = vmatprep.mubr.bf16.mxu0 0
        %6254 = vmatmul.mubr.bf16.gmra.mrb[0].mxu0 %v6154
        %v6255 = vpop.f32.mrb[0].mxu0
        %v6256 = vadd.f32 0.0, %v6255
        %v6257 = vpop.f32.mrb[0].mxu0
        %v6258 = vpop.f32.mrb[0].mxu0
        %v6259 = vadd.f32 0.0, %v6258
        %v6260 = vpop.f32.mrb[0].mxu0
        %6261 = vmatprep.mubr.bf16.mxu0 0
        %6262 = vmatmul.mubr.bf16.gmra.mrb[0].mxu0 %v6155
        %v6263 = vpop.f32.mrb[0].mxu0
        %v6264 = vadd.f32 0.0, %v6263
        %v6265 = vpop.f32.mrb[0].mxu0
        %v6266 = vpop.f32.mrb[0].mxu0
        %v6267 = vadd.f32 0.0, %v6266
        %v6268 = vpop.f32.mrb[0].mxu0
        %6269 = vmatprep.mubr.bf16.mxu0 0
        %6270 = vmatmul.mubr.bf16.gmra.mrb[0].mxu0 %v6156
        %v6271 = vpop.f32.mrb[0].mxu0
        %v6272 = vadd.f32 0.0, %v6271
        %v6273 = vpop.f32.mrb[0].mxu0
        %v6274 = vpop.f32.mrb[0].mxu0
        %v6275 = vadd.f32 0.0, %v6274
        %v6276 = vpop.f32.mrb[0].mxu0
        %6277 = vdwg.mxu0
        %v6278 = vmul.f32 %v6216, %v6118
        %v6279 = vmul.f32 %v6219, %v6120
        %v6280 = vmul.f32 %v6224, %v6122
        %v6281 = vmul.f32 %v6227, %v6124
        %v6282 = vmul.f32 %v6232, %v6126
        %v6283 = vmul.f32 %v6235, %v6128
        %v6284 = vmul.f32 %v6240, %v6130
        %v6285 = vmul.f32 %v6243, %v6132
        %v6286 = vmul.f32 %v6248, %v6134
        %v6287 = vmul.f32 %v6251, %v6136
        %v6288 = vmul.f32 %v6256, %v6138
        %v6289 = vmul.f32 %v6259, %v6140
        %v6290 = vmul.f32 %v6264, %v6142
        %v6291 = vmul.f32 %v6267, %v6144
        %v6292 = vmul.f32 %v6272, %v6146
        %v6293 = vmul.f32 %v6275, %v6148
        %v6294 = vpack.c.bf16 %v6279, %v6278
        %v6295 = vpack.c.bf16 %v6281, %v6280
        %v6296 = vpack.c.bf16 %v6283, %v6282
        %v6297 = vpack.c.bf16 %v6285, %v6284
        %v6298 = vpack.c.bf16 %v6287, %v6286
        %v6299 = vpack.c.bf16 %v6289, %v6288
        %v6300 = vpack.c.bf16 %v6291, %v6290
        %v6301 = vpack.c.bf16 %v6293, %v6292
        %v6304 = vunpack.c.l.b16 %v4184
        %v6305 = vunpack.c.l.b16 %v4185
        %v6306 = vpack.c.b16 %v6305, %v6304
        %v6309 = vsel %vm1734, %v6294, 0
        %v6312 = vsel %vm1734, %v6295, 0
        %v6315 = vsel %vm1734, %v6296, 0
        %v6318 = vsel %vm1734, %v6297, 0
        %v6321 = vsel %vm1734, %v6298, 0
        %v6324 = vsel %vm1734, %v6299, 0
        %v6327 = vsel %vm1734, %v6300, 0
        %v6330 = vsel %vm1734, %v6301, 0
        %6332 = vmatprep.subr.bf16.mxu0 0
        %6333 = vmatpush1.bf16.msra.mxu0 %v6306
        %6334 = vmatprep.subr.bf16.mxu0 0
        %6335 = vmatpush1.bf16.msra.mxu0 0
        %6336 = vmatprep.subr.bf16.mxu0 0
        %6337 = vmatpush1.bf16.msra.mxu0 0
        %6338 = vmatprep.subr.bf16.mxu0 0
        %6339 = vmatpush1.bf16.msra.mxu0 0
        %6340 = vmatprep.subr.bf16.mxu0 0
        %6341 = vmatpush1.bf16.msra.mxu0 0
        %6342 = vmatprep.subr.bf16.mxu0 0
        %6343 = vmatpush1.bf16.msra.mxu0 0
        %6344 = vmatprep.subr.bf16.mxu0 0
        %6345 = vmatpush1.bf16.msra.mxu0 0
        %6346 = vmatprep.subr.bf16.mxu0 0
        %6347 = vmatpush1.bf16.msra.mxu0 0
        %6348 = vmatprep.subr.bf16.mxu0 0
        %6349 = vmatpush1.bf16.msra.mxu0 0
        %6350 = vmatprep.subr.bf16.mxu0 0
        %6351 = vmatpush1.bf16.msra.mxu0 0
        %6352 = vmatprep.subr.bf16.mxu0 0
        %6353 = vmatpush1.bf16.msra.mxu0 0
        %6354 = vmatprep.subr.bf16.mxu0 0
        %6355 = vmatpush1.bf16.msra.mxu0 0
        %6356 = vmatprep.subr.bf16.mxu0 0
        %6357 = vmatpush1.bf16.msra.mxu0 0
        %6358 = vmatprep.subr.bf16.mxu0 0
        %6359 = vmatpush1.bf16.msra.mxu0 0
        %6360 = vmatprep.subr.bf16.mxu0 0
        %6361 = vmatpush1.bf16.msra.mxu0 0
        %6362 = vmatprep.subr.bf16.mxu0 0
        %6363 = vmatpush1.bf16.msra.mxu0 0
        %6364 = vmatprep.mubr.bf16.mxu0 0
        %6365 = vmatmul.mubr.bf16.gmra.mrb[0].mxu0 %v6309
        %v6366 = vpop.f32.mrb[0].mxu0
        %v6367 = vadd.f32 0.0, %v6366
        %v6368 = vpop.f32.mrb[0].mxu0
        %v6369 = vpop.f32.mrb[0].mxu0
        %v6370 = vadd.f32 0.0, %v6369
        %v6371 = vpop.f32.mrb[0].mxu0
        %6372 = vmatprep.mubr.bf16.mxu0 0
        %6373 = vmatmul.mubr.bf16.gmra.mrb[0].mxu0 %v6312
        %v6374 = vpop.f32.mrb[0].mxu0
        %v6375 = vadd.f32 0.0, %v6374
        %v6376 = vpop.f32.mrb[0].mxu0
        %v6377 = vpop.f32.mrb[0].mxu0
        %v6378 = vadd.f32 0.0, %v6377
        %v6379 = vpop.f32.mrb[0].mxu0
        %6380 = vmatprep.mubr.bf16.mxu0 0
        %6381 = vmatmul.mubr.bf16.gmra.mrb[0].mxu0 %v6315
        %v6382 = vpop.f32.mrb[0].mxu0
        %v6383 = vadd.f32 0.0, %v6382
        %v6384 = vpop.f32.mrb[0].mxu0
        %v6385 = vpop.f32.mrb[0].mxu0
        %v6386 = vadd.f32 0.0, %v6385
        %v6387 = vpop.f32.mrb[0].mxu0
        %6388 = vmatprep.mubr.bf16.mxu0 0
        %6389 = vmatmul.mubr.bf16.gmra.mrb[0].mxu0 %v6318
        %v6390 = vpop.f32.mrb[0].mxu0
        %v6391 = vadd.f32 0.0, %v6390
        %v6392 = vpop.f32.mrb[0].mxu0
        %v6393 = vpop.f32.mrb[0].mxu0
        %v6394 = vadd.f32 0.0, %v6393
        %v6395 = vpop.f32.mrb[0].mxu0
        %6396 = vmatprep.mubr.bf16.mxu0 0
        %6397 = vmatmul.mubr.bf16.gmra.mrb[0].mxu0 %v6321
        %v6398 = vpop.f32.mrb[0].mxu0
        %v6399 = vadd.f32 0.0, %v6398
        %v6400 = vpop.f32.mrb[0].mxu0
        %v6401 = vpop.f32.mrb[0].mxu0
        %v6402 = vadd.f32 0.0, %v6401
        %v6403 = vpop.f32.mrb[0].mxu0
        %6404 = vmatprep.mubr.bf16.mxu0 0
        %6405 = vmatmul.mubr.bf16.gmra.mrb[0].mxu0 %v6324
        %v6406 = vpop.f32.mrb[0].mxu0
        %v6407 = vadd.f32 0.0, %v6406
        %v6408 = vpop.f32.mrb[0].mxu0
        %v6409 = vpop.f32.mrb[0].mxu0
        %v6410 = vadd.f32 0.0, %v6409
        %v6411 = vpop.f32.mrb[0].mxu0
        %6412 = vmatprep.mubr.bf16.mxu0 0
        %6413 = vmatmul.mubr.bf16.gmra.mrb[0].mxu0 %v6327
        %v6414 = vpop.f32.mrb[0].mxu0
        %v6415 = vadd.f32 0.0, %v6414
        %v6416 = vpop.f32.mrb[0].mxu0
        %v6417 = vpop.f32.mrb[0].mxu0
        %v6418 = vadd.f32 0.0, %v6417
        %v6419 = vpop.f32.mrb[0].mxu0
        %6420 = vmatprep.mubr.bf16.mxu0 0
        %6421 = vmatmul.mubr.bf16.gmra.mrb[0].mxu0 %v6330
        %v6422 = vpop.f32.mrb[0].mxu0
        %v6423 = vadd.f32 0.0, %v6422
        %v6424 = vpop.f32.mrb[0].mxu0
        %v6425 = vpop.f32.mrb[0].mxu0
        %v6426 = vadd.f32 0.0, %v6425
        %v6427 = vpop.f32.mrb[0].mxu0
        %6428 = vdwg.mxu0
        %v6429 = vadd.f32 %v5812, %v6367
        %v6430 = vadd.f32 %v5813, %v6370
        %v6431 = vadd.f32 %v5814, %v6375
        %v6432 = vadd.f32 %v5815, %v6378
        %v6433 = vadd.f32 %v5816, %v6383
        %v6434 = vadd.f32 %v5817, %v6386
        %v6435 = vadd.f32 %v5818, %v6391
        %v6436 = vadd.f32 %v5819, %v6394
        %v6437 = vadd.f32 %v5820, %v6399
        %v6438 = vadd.f32 %v5821, %v6402
        %v6439 = vadd.f32 %v5822, %v6407
        %v6440 = vadd.f32 %v5823, %v6410
        %v6441 = vadd.f32 %v5824, %v6415
        %v6442 = vadd.f32 %v5825, %v6418
        %v6443 = vadd.f32 %v5826, %v6423
        %v6444 = vadd.f32 %v5827, %v6426
        %6445 = vrot.lane.b32.xlu0 %v4342, 80
        %v6446 = vpop.permute.xlu0 %6445
        %6447 = vrot.lane.b32.xlu0 %v4343, 80
        %v6448 = vpop.permute.xlu0 %6447
        %6449 = vrot.lane.b32.xlu0 %v4344, 80
        %v6450 = vpop.permute.xlu0 %6449
        %6451 = vrot.lane.b32.xlu0 %v4345, 80
        %v6452 = vpop.permute.xlu0 %6451
        %6453 = vrot.lane.b32.xlu0 %v4346, 80
        %v6454 = vpop.permute.xlu0 %6453
        %6455 = vrot.lane.b32.xlu0 %v4347, 80
        %v6456 = vpop.permute.xlu0 %6455
        %6457 = vrot.lane.b32.xlu0 %v4348, 80
        %v6458 = vpop.permute.xlu0 %6457
        %6459 = vrot.lane.b32.xlu0 %v4349, 80
        %v6460 = vpop.permute.xlu0 %6459
        %6461 = vrot.lane.b32.xlu0 %v4480, 80
        %v6462 = vpop.permute.xlu0 %6461
        %6463 = vrot.lane.b32.xlu0 %v4481, 80
        %v6464 = vpop.permute.xlu0 %6463
        %6465 = vrot.lane.b32.xlu0 %v4482, 80
        %v6466 = vpop.permute.xlu0 %6465
        %6467 = vrot.lane.b32.xlu0 %v4483, 80
        %v6468 = vpop.permute.xlu0 %6467
        %6469 = vrot.lane.b32.xlu0 %v4484, 80
        %v6470 = vpop.permute.xlu0 %6469
        %6471 = vrot.lane.b32.xlu0 %v4485, 80
        %v6472 = vpop.permute.xlu0 %6471
        %6473 = vrot.lane.b32.xlu0 %v4486, 80
        %v6474 = vpop.permute.xlu0 %6473
        %6475 = vrot.lane.b32.xlu0 %v4487, 80
        %v6476 = vpop.permute.xlu0 %6475
        %v6478 = vsel %vm1734, %v6446, 0
        %v6481 = vsel %vm1734, %v6448, 0
        %v6484 = vsel %vm1734, %v6450, 0
        %v6487 = vsel %vm1734, %v6452, 0
        %v6490 = vsel %vm1734, %v6454, 0
        %v6493 = vsel %vm1734, %v6456, 0
        %v6496 = vsel %vm1734, %v6458, 0
        %v6499 = vsel %vm1734, %v6460, 0
        %v6502 = vsel %vm1734, %v6462, 0
        %v6505 = vsel %vm1734, %v6464, 0
        %v6508 = vsel %vm1734, %v6466, 0
        %v6511 = vsel %vm1734, %v6468, 0
        %v6514 = vsel %vm1734, %v6470, 0
        %v6517 = vsel %vm1734, %v6472, 0
        %v6520 = vsel %vm1734, %v6474, 0
        %v6523 = vsel %vm1734, %v6476, 0
        %6525 = vmatprep.subr.bf16.mxu0 0
        %6526 = vmatpush1.bf16.xpose.msra.mxu0 %v6502
        %6527 = vmatprep.subr.bf16.mxu0 0
        %6528 = vmatpush1.bf16.xpose.msra.mxu0 %v6505
        %6529 = vmatprep.subr.bf16.mxu0 0
        %6530 = vmatpush1.bf16.xpose.msra.mxu0 %v6508
        %6531 = vmatprep.subr.bf16.mxu0 0
        %6532 = vmatpush1.bf16.xpose.msra.mxu0 %v6511
        %6533 = vmatprep.subr.bf16.mxu0 0
        %6534 = vmatpush1.bf16.xpose.msra.mxu0 %v6514
        %6535 = vmatprep.subr.bf16.mxu0 0
        %6536 = vmatpush1.bf16.xpose.msra.mxu0 %v6517
        %6537 = vmatprep.subr.bf16.mxu0 0
        %6538 = vmatpush1.bf16.xpose.msra.mxu0 %v6520
        %6539 = vmatprep.subr.bf16.mxu0 0
        %6540 = vmatpush1.bf16.xpose.msra.mxu0 %v6523
        %6541 = vmatprep.subr.bf16.mxu0 0
        %6542 = vmatpush1.bf16.xpose.msra.mxu0 0
        %6543 = vmatprep.subr.bf16.mxu0 0
        %6544 = vmatpush1.bf16.xpose.msra.mxu0 0
        %6545 = vmatprep.subr.bf16.mxu0 0
        %6546 = vmatpush1.bf16.xpose.msra.mxu0 0
        %6547 = vmatprep.subr.bf16.mxu0 0
        %6548 = vmatpush1.bf16.xpose.msra.mxu0 0
        %6549 = vmatprep.subr.bf16.mxu0 0
        %6550 = vmatpush1.bf16.xpose.msra.mxu0 0
        %6551 = vmatprep.subr.bf16.mxu0 0
        %6552 = vmatpush1.bf16.xpose.msra.mxu0 0
        %6553 = vmatprep.subr.bf16.mxu0 0
        %6554 = vmatpush1.bf16.xpose.msra.mxu0 0
        %6555 = vmatprep.subr.bf16.mxu0 0
        %6556 = vmatpush1.bf16.xpose.msra.mxu0 0
        %6557 = vmatprep.mubr.bf16.mxu0 0
        %6558 = vmatmul.mubr.bf16.gmra.mrb[0].mxu0 %v6478
        %v6559 = vpop.f32.mrb[0].mxu0
        %v6560 = vadd.f32 %v960, %v6559
        %v6561 = vpop.f32.mrb[0].mxu0
        %v6562 = vpop.f32.mrb[0].mxu0
        %v6563 = vadd.f32 %v961, %v6562
        %v6564 = vpop.f32.mrb[0].mxu0
        %6565 = vmatprep.mubr.bf16.mxu0 0
        %6566 = vmatmul.mubr.bf16.gmra.mrb[0].mxu0 %v6481
        %v6567 = vpop.f32.mrb[0].mxu0
        %v6568 = vadd.f32 %v962, %v6567
        %v6569 = vpop.f32.mrb[0].mxu0
        %v6570 = vpop.f32.mrb[0].mxu0
        %v6571 = vadd.f32 %v963, %v6570
        %v6572 = vpop.f32.mrb[0].mxu0
        %6573 = vmatprep.mubr.bf16.mxu0 0
        %6574 = vmatmul.mubr.bf16.gmra.mrb[0].mxu0 %v6484
        %v6575 = vpop.f32.mrb[0].mxu0
        %v6576 = vadd.f32 %v964, %v6575
        %v6577 = vpop.f32.mrb[0].mxu0
        %v6578 = vpop.f32.mrb[0].mxu0
        %v6579 = vadd.f32 %v965, %v6578
        %v6580 = vpop.f32.mrb[0].mxu0
        %6581 = vmatprep.mubr.bf16.mxu0 0
        %6582 = vmatmul.mubr.bf16.gmra.mrb[0].mxu0 %v6487
        %v6583 = vpop.f32.mrb[0].mxu0
        %v6584 = vadd.f32 %v966, %v6583
        %v6585 = vpop.f32.mrb[0].mxu0
        %v6586 = vpop.f32.mrb[0].mxu0
        %v6587 = vadd.f32 %v967, %v6586
        %v6588 = vpop.f32.mrb[0].mxu0
        %6589 = vmatprep.mubr.bf16.mxu0 0
        %6590 = vmatmul.mubr.bf16.gmra.mrb[0].mxu0 %v6490
        %v6591 = vpop.f32.mrb[0].mxu0
        %v6592 = vadd.f32 %v968, %v6591
        %v6593 = vpop.f32.mrb[0].mxu0
        %v6594 = vpop.f32.mrb[0].mxu0
        %v6595 = vadd.f32 %v969, %v6594
        %v6596 = vpop.f32.mrb[0].mxu0
        %6597 = vmatprep.mubr.bf16.mxu0 0
        %6598 = vmatmul.mubr.bf16.gmra.mrb[0].mxu0 %v6493
        %v6599 = vpop.f32.mrb[0].mxu0
        %v6600 = vadd.f32 %v970, %v6599
        %v6601 = vpop.f32.mrb[0].mxu0
        %v6602 = vpop.f32.mrb[0].mxu0
        %v6603 = vadd.f32 %v971, %v6602
        %v6604 = vpop.f32.mrb[0].mxu0
        %6605 = vmatprep.mubr.bf16.mxu0 0
        %6606 = vmatmul.mubr.bf16.gmra.mrb[0].mxu0 %v6496
        %v6607 = vpop.f32.mrb[0].mxu0
        %v6608 = vadd.f32 %v972, %v6607
        %v6609 = vpop.f32.mrb[0].mxu0
        %v6610 = vpop.f32.mrb[0].mxu0
        %v6611 = vadd.f32 %v973, %v6610
        %v6612 = vpop.f32.mrb[0].mxu0
        %6613 = vmatprep.mubr.bf16.mxu0 0
        %6614 = vmatmul.mubr.bf16.gmra.mrb[0].mxu0 %v6499
        %v6615 = vpop.f32.mrb[0].mxu0
        %v6616 = vadd.f32 %v974, %v6615
        %v6617 = vpop.f32.mrb[0].mxu0
        %v6618 = vpop.f32.mrb[0].mxu0
        %v6619 = vadd.f32 %v975, %v6618
        %v6620 = vpop.f32.mrb[0].mxu0
        %6621 = vdwg.mxu0
        %6622 = vmax.xlane.f32.xlu0 %v6560
        %v6623 = vpop.xlane.xlu0 %6622
        %6624 = vmax.xlane.f32.xlu0 %v6563
        %v6625 = vpop.xlane.xlu0 %6624
        %6626 = vmax.xlane.f32.xlu0 %v6568
        %v6627 = vpop.xlane.xlu0 %6626
        %6628 = vmax.xlane.f32.xlu0 %v6571
        %v6629 = vpop.xlane.xlu0 %6628
        %6630 = vmax.xlane.f32.xlu0 %v6576
        %v6631 = vpop.xlane.xlu0 %6630
        %6632 = vmax.xlane.f32.xlu0 %v6579
        %v6633 = vpop.xlane.xlu0 %6632
        %6634 = vmax.xlane.f32.xlu0 %v6584
        %v6635 = vpop.xlane.xlu0 %6634
        %6636 = vmax.xlane.f32.xlu0 %v6587
        %v6637 = vpop.xlane.xlu0 %6636
        %6638 = vmax.xlane.f32.xlu0 %v6592
        %v6639 = vpop.xlane.xlu0 %6638
        %6640 = vmax.xlane.f32.xlu0 %v6595
        %v6641 = vpop.xlane.xlu0 %6640
        %6642 = vmax.xlane.f32.xlu0 %v6600
        %v6643 = vpop.xlane.xlu0 %6642
        %6644 = vmax.xlane.f32.xlu0 %v6603
        %v6645 = vpop.xlane.xlu0 %6644
        %6646 = vmax.xlane.f32.xlu0 %v6608
        %v6647 = vpop.xlane.xlu0 %6646
        %6648 = vmax.xlane.f32.xlu0 %v6611
        %v6649 = vpop.xlane.xlu0 %6648
        %6650 = vmax.xlane.f32.xlu0 %v6616
        %v6651 = vpop.xlane.xlu0 %6650
        %6652 = vmax.xlane.f32.xlu0 %v6619
        %v6653 = vpop.xlane.xlu0 %6652
        %v6654 = vsub.f32 %v6560, %v6623
        %v6655 = vsub.f32 %v6563, %v6625
        %v6656 = vsub.f32 %v6568, %v6627
        %v6657 = vsub.f32 %v6571, %v6629
        %v6658 = vsub.f32 %v6576, %v6631
        %v6659 = vsub.f32 %v6579, %v6633
        %v6660 = vsub.f32 %v6584, %v6635
        %v6661 = vsub.f32 %v6587, %v6637
        %v6662 = vsub.f32 %v6592, %v6639
        %v6663 = vsub.f32 %v6595, %v6641
        %v6664 = vsub.f32 %v6600, %v6643
        %v6665 = vsub.f32 %v6603, %v6645
        %v6666 = vsub.f32 %v6608, %v6647
        %v6667 = vsub.f32 %v6611, %v6649
        %v6668 = vsub.f32 %v6616, %v6651
        %v6669 = vsub.f32 %v6619, %v6653
        %v6670 = vmul.f32 %v6654, 1.442695
        %v6671 = vpow.pop %v6670
        %v6672 = vmul.f32 %v6655, 1.442695
        %v6673 = vpow.pop %v6672
        %v6674 = vmul.f32 %v6656, 1.442695
        %v6675 = vpow.pop %v6674
        %v6676 = vmul.f32 %v6657, 1.442695
        %v6677 = vpow.pop %v6676
        %v6678 = vmul.f32 %v6658, 1.442695
        %v6679 = vpow.pop %v6678
        %v6680 = vmul.f32 %v6659, 1.442695
        %v6681 = vpow.pop %v6680
        %v6682 = vmul.f32 %v6660, 1.442695
        %v6683 = vpow.pop %v6682
        %v6684 = vmul.f32 %v6661, 1.442695
        %v6685 = vpow.pop %v6684
        %v6686 = vmul.f32 %v6662, 1.442695
        %v6687 = vpow.pop %v6686
        %v6688 = vmul.f32 %v6663, 1.442695
        %v6689 = vpow.pop %v6688
        %v6690 = vmul.f32 %v6664, 1.442695
        %v6691 = vpow.pop %v6690
        %v6692 = vmul.f32 %v6665, 1.442695
        %v6693 = vpow.pop %v6692
        %v6694 = vmul.f32 %v6666, 1.442695
        %v6695 = vpow.pop %v6694
        %v6696 = vmul.f32 %v6667, 1.442695
        %v6697 = vpow.pop %v6696
        %v6698 = vmul.f32 %v6668, 1.442695
        %v6699 = vpow.pop %v6698
        %v6700 = vmul.f32 %v6669, 1.442695
        %v6701 = vpow.pop %v6700
        %6702 = vadd.xlane.f32.xlu0 %v6671
        %v6703 = vpop.xlane.xlu0 %6702
        %6704 = vadd.xlane.f32.xlu0 %v6673
        %v6705 = vpop.xlane.xlu0 %6704
        %6706 = vadd.xlane.f32.xlu0 %v6675
        %v6707 = vpop.xlane.xlu0 %6706
        %6708 = vadd.xlane.f32.xlu0 %v6677
        %v6709 = vpop.xlane.xlu0 %6708
        %6710 = vadd.xlane.f32.xlu0 %v6679
        %v6711 = vpop.xlane.xlu0 %6710
        %6712 = vadd.xlane.f32.xlu0 %v6681
        %v6713 = vpop.xlane.xlu0 %6712
        %6714 = vadd.xlane.f32.xlu0 %v6683
        %v6715 = vpop.xlane.xlu0 %6714
        %6716 = vadd.xlane.f32.xlu0 %v6685
        %v6717 = vpop.xlane.xlu0 %6716
        %6718 = vadd.xlane.f32.xlu0 %v6687
        %v6719 = vpop.xlane.xlu0 %6718
        %6720 = vadd.xlane.f32.xlu0 %v6689
        %v6721 = vpop.xlane.xlu0 %6720
        %6722 = vadd.xlane.f32.xlu0 %v6691
        %v6723 = vpop.xlane.xlu0 %6722
        %6724 = vadd.xlane.f32.xlu0 %v6693
        %v6725 = vpop.xlane.xlu0 %6724
        %6726 = vadd.xlane.f32.xlu0 %v6695
        %v6727 = vpop.xlane.xlu0 %6726
        %6728 = vadd.xlane.f32.xlu0 %v6697
        %v6729 = vpop.xlane.xlu0 %6728
        %6730 = vadd.xlane.f32.xlu0 %v6699
        %v6731 = vpop.xlane.xlu0 %6730
        %6732 = vadd.xlane.f32.xlu0 %v6701
        %v6733 = vpop.xlane.xlu0 %6732
        %v6734 = vrcp.pop %v6703
        %v6735 = vmul.f32 %v1010, %v6734
        %v6736 = vrcp.pop %v6705
        %v6737 = vmul.f32 %v1013, %v6736
        %v6738 = vrcp.pop %v6707
        %v6739 = vmul.f32 %v1016, %v6738
        %v6740 = vrcp.pop %v6709
        %v6741 = vmul.f32 %v1019, %v6740
        %v6742 = vrcp.pop %v6711
        %v6743 = vmul.f32 %v1022, %v6742
        %v6744 = vrcp.pop %v6713
        %v6745 = vmul.f32 %v1025, %v6744
        %v6746 = vrcp.pop %v6715
        %v6747 = vmul.f32 %v1028, %v6746
        %v6748 = vrcp.pop %v6717
        %v6749 = vmul.f32 %v1031, %v6748
        %v6750 = vrcp.pop %v6719
        %v6751 = vmul.f32 %v1034, %v6750
        %v6752 = vrcp.pop %v6721
        %v6753 = vmul.f32 %v1037, %v6752
        %v6754 = vrcp.pop %v6723
        %v6755 = vmul.f32 %v1040, %v6754
        %v6756 = vrcp.pop %v6725
        %v6757 = vmul.f32 %v1043, %v6756
        %v6758 = vrcp.pop %v6727
        %v6759 = vmul.f32 %v1046, %v6758
        %v6760 = vrcp.pop %v6729
        %v6761 = vmul.f32 %v1049, %v6760
        %v6762 = vrcp.pop %v6731
        %v6763 = vmul.f32 %v1052, %v6762
        %v6764 = vrcp.pop %v6733
        %v6765 = vmul.f32 %v1055, %v6764
        %v6766 = vpack.c.bf16 %v6673, %v6671
        %v6767 = vpack.c.bf16 %v6677, %v6675
        %v6768 = vpack.c.bf16 %v6681, %v6679
        %v6769 = vpack.c.bf16 %v6685, %v6683
        %v6770 = vpack.c.bf16 %v6689, %v6687
        %v6771 = vpack.c.bf16 %v6693, %v6691
        %v6772 = vpack.c.bf16 %v6697, %v6695
        %v6773 = vpack.c.bf16 %v6701, %v6699
        %6774 = vrot.lane.b32.xlu0 %v4618, 80
        %v6775 = vpop.permute.xlu0 %6774
        %6776 = vrot.lane.b32.xlu0 %v4619, 80
        %v6777 = vpop.permute.xlu0 %6776
        %6778 = vrot.lane.b32.xlu0 %v4620, 80
        %v6779 = vpop.permute.xlu0 %6778
        %6780 = vrot.lane.b32.xlu0 %v4621, 80
        %v6781 = vpop.permute.xlu0 %6780
        %6782 = vrot.lane.b32.xlu0 %v4622, 80
        %v6783 = vpop.permute.xlu0 %6782
        %6784 = vrot.lane.b32.xlu0 %v4623, 80
        %v6785 = vpop.permute.xlu0 %6784
        %6786 = vrot.lane.b32.xlu0 %v4624, 80
        %v6787 = vpop.permute.xlu0 %6786
        %6788 = vrot.lane.b32.xlu0 %v4625, 80
        %v6789 = vpop.permute.xlu0 %6788
        %6798 = vmatprep.subr.bf16.mxu0 0
        %6799 = vmatpush1.bf16.msra.mxu0 %v6775
        %6800 = vmatprep.subr.bf16.mxu0 0
        %6801 = vmatpush1.bf16.msra.mxu0 %v6777
        %6802 = vmatprep.subr.bf16.mxu0 0
        %6803 = vmatpush1.bf16.msra.mxu0 %v6779
        %6804 = vmatprep.subr.bf16.mxu0 0
        %6805 = vmatpush1.bf16.msra.mxu0 %v6781
        %6806 = vmatprep.subr.bf16.mxu0 0
        %6807 = vmatpush1.bf16.msra.mxu0 %v6783
        %6808 = vmatprep.subr.bf16.mxu0 0
        %6809 = vmatpush1.bf16.msra.mxu0 %v6785
        %6810 = vmatprep.subr.bf16.mxu0 0
        %6811 = vmatpush1.bf16.msra.mxu0 %v6787
        %6812 = vmatprep.subr.bf16.mxu0 0
        %6813 = vmatpush1.bf16.msra.mxu0 %v6789
        %6814 = vmatprep.subr.bf16.mxu0 0
        %6815 = vmatpush1.bf16.msra.mxu0 0
        %6816 = vmatprep.subr.bf16.mxu0 0
        %6817 = vmatpush1.bf16.msra.mxu0 0
        %6818 = vmatprep.subr.bf16.mxu0 0
        %6819 = vmatpush1.bf16.msra.mxu0 0
        %6820 = vmatprep.subr.bf16.mxu0 0
        %6821 = vmatpush1.bf16.msra.mxu0 0
        %6822 = vmatprep.subr.bf16.mxu0 0
        %6823 = vmatpush1.bf16.msra.mxu0 0
        %6824 = vmatprep.subr.bf16.mxu0 0
        %6825 = vmatpush1.bf16.msra.mxu0 0
        %6826 = vmatprep.subr.bf16.mxu0 0
        %6827 = vmatpush1.bf16.msra.mxu0 0
        %6828 = vmatprep.subr.bf16.mxu0 0
        %6829 = vmatpush1.bf16.msra.mxu0 0
        %6830 = vmatprep.mubr.bf16.mxu0 0
        %6831 = vmatmul.mubr.bf16.gmra.mrb[0].mxu0 %v6766
        %v6832 = vpop.f32.mrb[0].mxu0
        %v6833 = vadd.f32 0.0, %v6832
        %v6834 = vpop.f32.mrb[0].mxu0
        %v6835 = vpop.f32.mrb[0].mxu0
        %v6836 = vadd.f32 0.0, %v6835
        %v6837 = vpop.f32.mrb[0].mxu0
        %6838 = vmatprep.mubr.bf16.mxu0 0
        %6839 = vmatmul.mubr.bf16.gmra.mrb[0].mxu0 %v6767
        %v6840 = vpop.f32.mrb[0].mxu0
        %v6841 = vadd.f32 0.0, %v6840
        %v6842 = vpop.f32.mrb[0].mxu0
        %v6843 = vpop.f32.mrb[0].mxu0
        %v6844 = vadd.f32 0.0, %v6843
        %v6845 = vpop.f32.mrb[0].mxu0
        %6846 = vmatprep.mubr.bf16.mxu0 0
        %6847 = vmatmul.mubr.bf16.gmra.mrb[0].mxu0 %v6768
        %v6848 = vpop.f32.mrb[0].mxu0
        %v6849 = vadd.f32 0.0, %v6848
        %v6850 = vpop.f32.mrb[0].mxu0
        %v6851 = vpop.f32.mrb[0].mxu0
        %v6852 = vadd.f32 0.0, %v6851
        %v6853 = vpop.f32.mrb[0].mxu0
        %6854 = vmatprep.mubr.bf16.mxu0 0
        %6855 = vmatmul.mubr.bf16.gmra.mrb[0].mxu0 %v6769
        %v6856 = vpop.f32.mrb[0].mxu0
        %v6857 = vadd.f32 0.0, %v6856
        %v6858 = vpop.f32.mrb[0].mxu0
        %v6859 = vpop.f32.mrb[0].mxu0
        %v6860 = vadd.f32 0.0, %v6859
        %v6861 = vpop.f32.mrb[0].mxu0
        %6862 = vmatprep.mubr.bf16.mxu0 0
        %6863 = vmatmul.mubr.bf16.gmra.mrb[0].mxu0 %v6770
        %v6864 = vpop.f32.mrb[0].mxu0
        %v6865 = vadd.f32 0.0, %v6864
        %v6866 = vpop.f32.mrb[0].mxu0
        %v6867 = vpop.f32.mrb[0].mxu0
        %v6868 = vadd.f32 0.0, %v6867
        %v6869 = vpop.f32.mrb[0].mxu0
        %6870 = vmatprep.mubr.bf16.mxu0 0
        %6871 = vmatmul.mubr.bf16.gmra.mrb[0].mxu0 %v6771
        %v6872 = vpop.f32.mrb[0].mxu0
        %v6873 = vadd.f32 0.0, %v6872
        %v6874 = vpop.f32.mrb[0].mxu0
        %v6875 = vpop.f32.mrb[0].mxu0
        %v6876 = vadd.f32 0.0, %v6875
        %v6877 = vpop.f32.mrb[0].mxu0
        %6878 = vmatprep.mubr.bf16.mxu0 0
        %6879 = vmatmul.mubr.bf16.gmra.mrb[0].mxu0 %v6772
        %v6880 = vpop.f32.mrb[0].mxu0
        %v6881 = vadd.f32 0.0, %v6880
        %v6882 = vpop.f32.mrb[0].mxu0
        %v6883 = vpop.f32.mrb[0].mxu0
        %v6884 = vadd.f32 0.0, %v6883
        %v6885 = vpop.f32.mrb[0].mxu0
        %6886 = vmatprep.mubr.bf16.mxu0 0
        %6887 = vmatmul.mubr.bf16.gmra.mrb[0].mxu0 %v6773
        %v6888 = vpop.f32.mrb[0].mxu0
        %v6889 = vadd.f32 0.0, %v6888
        %v6890 = vpop.f32.mrb[0].mxu0
        %v6891 = vpop.f32.mrb[0].mxu0
        %v6892 = vadd.f32 0.0, %v6891
        %v6893 = vpop.f32.mrb[0].mxu0
        %6894 = vdwg.mxu0
        %v6895 = vmul.f32 %v6833, %v6735
        %v6896 = vmul.f32 %v6836, %v6737
        %v6897 = vmul.f32 %v6841, %v6739
        %v6898 = vmul.f32 %v6844, %v6741
        %v6899 = vmul.f32 %v6849, %v6743
        %v6900 = vmul.f32 %v6852, %v6745
        %v6901 = vmul.f32 %v6857, %v6747
        %v6902 = vmul.f32 %v6860, %v6749
        %v6903 = vmul.f32 %v6865, %v6751
        %v6904 = vmul.f32 %v6868, %v6753
        %v6905 = vmul.f32 %v6873, %v6755
        %v6906 = vmul.f32 %v6876, %v6757
        %v6907 = vmul.f32 %v6881, %v6759
        %v6908 = vmul.f32 %v6884, %v6761
        %v6909 = vmul.f32 %v6889, %v6763
        %v6910 = vmul.f32 %v6892, %v6765
        %v6911 = vpack.c.bf16 %v6896, %v6895
        %v6912 = vpack.c.bf16 %v6898, %v6897
        %v6913 = vpack.c.bf16 %v6900, %v6899
        %v6914 = vpack.c.bf16 %v6902, %v6901
        %v6915 = vpack.c.bf16 %v6904, %v6903
        %v6916 = vpack.c.bf16 %v6906, %v6905
        %v6917 = vpack.c.bf16 %v6908, %v6907
        %v6918 = vpack.c.bf16 %v6910, %v6909
        %v6921 = vunpack.c.l.b16 %v4186
        %v6922 = vunpack.c.l.b16 %v4187
        %v6923 = vpack.c.b16 %v6922, %v6921
        %v6926 = vsel %vm1734, %v6911, 0
        %v6929 = vsel %vm1734, %v6912, 0
        %v6932 = vsel %vm1734, %v6913, 0
        %v6935 = vsel %vm1734, %v6914, 0
        %v6938 = vsel %vm1734, %v6915, 0
        %v6941 = vsel %vm1734, %v6916, 0
        %v6944 = vsel %vm1734, %v6917, 0
        %v6947 = vsel %vm1734, %v6918, 0
        %6949 = vmatprep.subr.bf16.mxu0 0
        %6950 = vmatpush1.bf16.msra.mxu0 %v6923
        %6951 = vmatprep.subr.bf16.mxu0 0
        %6952 = vmatpush1.bf16.msra.mxu0 0
        %6953 = vmatprep.subr.bf16.mxu0 0
        %6954 = vmatpush1.bf16.msra.mxu0 0
        %6955 = vmatprep.subr.bf16.mxu0 0
        %6956 = vmatpush1.bf16.msra.mxu0 0
        %6957 = vmatprep.subr.bf16.mxu0 0
        %6958 = vmatpush1.bf16.msra.mxu0 0
        %6959 = vmatprep.subr.bf16.mxu0 0
        %6960 = vmatpush1.bf16.msra.mxu0 0
        %6961 = vmatprep.subr.bf16.mxu0 0
        %6962 = vmatpush1.bf16.msra.mxu0 0
        %6963 = vmatprep.subr.bf16.mxu0 0
        %6964 = vmatpush1.bf16.msra.mxu0 0
        %6965 = vmatprep.subr.bf16.mxu0 0
        %6966 = vmatpush1.bf16.msra.mxu0 0
        %6967 = vmatprep.subr.bf16.mxu0 0
        %6968 = vmatpush1.bf16.msra.mxu0 0
        %6969 = vmatprep.subr.bf16.mxu0 0
        %6970 = vmatpush1.bf16.msra.mxu0 0
        %6971 = vmatprep.subr.bf16.mxu0 0
        %6972 = vmatpush1.bf16.msra.mxu0 0
        %6973 = vmatprep.subr.bf16.mxu0 0
        %6974 = vmatpush1.bf16.msra.mxu0 0
        %6975 = vmatprep.subr.bf16.mxu0 0
        %6976 = vmatpush1.bf16.msra.mxu0 0
        %6977 = vmatprep.subr.bf16.mxu0 0
        %6978 = vmatpush1.bf16.msra.mxu0 0
        %6979 = vmatprep.subr.bf16.mxu0 0
        %6980 = vmatpush1.bf16.msra.mxu0 0
        %6981 = vmatprep.mubr.bf16.mxu0 0
        %6982 = vmatmul.mubr.bf16.gmra.mrb[0].mxu0 %v6926
        %v6983 = vpop.f32.mrb[0].mxu0
        %v6984 = vadd.f32 0.0, %v6983
        %v6985 = vpop.f32.mrb[0].mxu0
        %v6986 = vpop.f32.mrb[0].mxu0
        %v6987 = vadd.f32 0.0, %v6986
        %v6988 = vpop.f32.mrb[0].mxu0
        %6989 = vmatprep.mubr.bf16.mxu0 0
        %6990 = vmatmul.mubr.bf16.gmra.mrb[0].mxu0 %v6929
        %v6991 = vpop.f32.mrb[0].mxu0
        %v6992 = vadd.f32 0.0, %v6991
        %v6993 = vpop.f32.mrb[0].mxu0
        %v6994 = vpop.f32.mrb[0].mxu0
        %v6995 = vadd.f32 0.0, %v6994
        %v6996 = vpop.f32.mrb[0].mxu0
        %6997 = vmatprep.mubr.bf16.mxu0 0
        %6998 = vmatmul.mubr.bf16.gmra.mrb[0].mxu0 %v6932
        %v6999 = vpop.f32.mrb[0].mxu0
        %v7000 = vadd.f32 0.0, %v6999
        %v7001 = vpop.f32.mrb[0].mxu0
        %v7002 = vpop.f32.mrb[0].mxu0
        %v7003 = vadd.f32 0.0, %v7002
        %v7004 = vpop.f32.mrb[0].mxu0
        %7005 = vmatprep.mubr.bf16.mxu0 0
        %7006 = vmatmul.mubr.bf16.gmra.mrb[0].mxu0 %v6935
        %v7007 = vpop.f32.mrb[0].mxu0
        %v7008 = vadd.f32 0.0, %v7007
        %v7009 = vpop.f32.mrb[0].mxu0
        %v7010 = vpop.f32.mrb[0].mxu0
        %v7011 = vadd.f32 0.0, %v7010
        %v7012 = vpop.f32.mrb[0].mxu0
        %7013 = vmatprep.mubr.bf16.mxu0 0
        %7014 = vmatmul.mubr.bf16.gmra.mrb[0].mxu0 %v6938
        %v7015 = vpop.f32.mrb[0].mxu0
        %v7016 = vadd.f32 0.0, %v7015
        %v7017 = vpop.f32.mrb[0].mxu0
        %v7018 = vpop.f32.mrb[0].mxu0
        %v7019 = vadd.f32 0.0, %v7018
        %v7020 = vpop.f32.mrb[0].mxu0
        %7021 = vmatprep.mubr.bf16.mxu0 0
        %7022 = vmatmul.mubr.bf16.gmra.mrb[0].mxu0 %v6941
        %v7023 = vpop.f32.mrb[0].mxu0
        %v7024 = vadd.f32 0.0, %v7023
        %v7025 = vpop.f32.mrb[0].mxu0
        %v7026 = vpop.f32.mrb[0].mxu0
        %v7027 = vadd.f32 0.0, %v7026
        %v7028 = vpop.f32.mrb[0].mxu0
        %7029 = vmatprep.mubr.bf16.mxu0 0
        %7030 = vmatmul.mubr.bf16.gmra.mrb[0].mxu0 %v6944
        %v7031 = vpop.f32.mrb[0].mxu0
        %v7032 = vadd.f32 0.0, %v7031
        %v7033 = vpop.f32.mrb[0].mxu0
        %v7034 = vpop.f32.mrb[0].mxu0
        %v7035 = vadd.f32 0.0, %v7034
        %v7036 = vpop.f32.mrb[0].mxu0
        %7037 = vmatprep.mubr.bf16.mxu0 0
        %7038 = vmatmul.mubr.bf16.gmra.mrb[0].mxu0 %v6947
        %v7039 = vpop.f32.mrb[0].mxu0
        %v7040 = vadd.f32 0.0, %v7039
        %v7041 = vpop.f32.mrb[0].mxu0
        %v7042 = vpop.f32.mrb[0].mxu0
        %v7043 = vadd.f32 0.0, %v7042
        %v7044 = vpop.f32.mrb[0].mxu0
        %7045 = vdwg.mxu0
        %v7046 = vadd.f32 %v6429, %v6984
        %v7047 = vadd.f32 %v6430, %v6987
        %v7048 = vadd.f32 %v6431, %v6992
        %v7049 = vadd.f32 %v6432, %v6995
        %v7050 = vadd.f32 %v6433, %v7000
        %v7051 = vadd.f32 %v6434, %v7003
        %v7052 = vadd.f32 %v6435, %v7008
        %v7053 = vadd.f32 %v6436, %v7011
        %v7054 = vadd.f32 %v6437, %v7016
        %v7055 = vadd.f32 %v6438, %v7019
        %v7056 = vadd.f32 %v6439, %v7024
        %v7057 = vadd.f32 %v6440, %v7027
        %v7058 = vadd.f32 %v6441, %v7032
        %v7059 = vadd.f32 %v6442, %v7035
        %v7060 = vadd.f32 %v6443, %v7040
        %v7061 = vadd.f32 %v6444, %v7043
        %v7062 = vpack.c.bf16 %v7047, %v7046
        %v7063 = vpack.c.bf16 %v7049, %v7048
        %v7064 = vpack.c.bf16 %v7051, %v7050
        %v7065 = vpack.c.bf16 %v7053, %v7052
        %v7066 = vpack.c.bf16 %v7055, %v7054
        %v7067 = vpack.c.bf16 %v7057, %v7056
        %v7068 = vpack.c.bf16 %v7059, %v7058
        %v7069 = vpack.c.bf16 %v7061, %v7060
        %s7070 = scalar_lea.vmem [#allocation10], 64
        %v7071 = vld [vmem:[%s7070] sm:$0xf]
        %v7072 = vld [vmem:[%s7070 + $0x4] sm:$0xf]
        %v7073 = vld [vmem:[%s7070 + $0x8] sm:$0xf]
        %v7074 = vld [vmem:[%s7070 + $0xc] sm:$0xf]
        %v7075 = vld [vmem:[%s7070 + $0x10] sm:$0xf]
        %v7076 = vld [vmem:[%s7070 + $0x14] sm:$0xf]
        %v7077 = vld [vmem:[%s7070 + $0x18] sm:$0xf]
        %v7078 = vld [vmem:[%s7070 + $0x1c] sm:$0xf]
        %s7079 = scalar_lea.vmem [#allocation5], 64
        %v7080 = vld [vmem:[%s7079] sm:$0xf]
        %v7081 = vld [vmem:[%s7079 + $0x4] sm:$0xf]
        %v7082 = vld [vmem:[%s7079 + $0x8] sm:$0xf]
        %v7083 = vld [vmem:[%s7079 + $0xc] sm:$0xf]
        %v7084 = vld [vmem:[%s7079 + $0x10] sm:$0xf]
        %v7085 = vld [vmem:[%s7079 + $0x14] sm:$0xf]
        %v7086 = vld [vmem:[%s7079 + $0x18] sm:$0xf]
        %v7087 = vld [vmem:[%s7079 + $0x1c] sm:$0xf]
        %v7096 = vunpack.c.l.b16 %v7080
        %v7097 = vunpack.c.l.b16 %v7081
        %v7098 = vunpack.c.l.b16 %v7082
        %v7099 = vunpack.c.l.b16 %v7083
        %v7100 = vunpack.c.l.b16 %v7084
        %v7101 = vunpack.c.l.b16 %v7085
        %v7102 = vunpack.c.l.b16 %v7086
        %v7103 = vunpack.c.l.b16 %v7087
        %v7104 = vpack.c.b16 %v7097, %v7096
        %v7105 = vpack.c.b16 %v7099, %v7098
        %v7106 = vpack.c.b16 %v7101, %v7100
        %v7107 = vpack.c.b16 %v7103, %v7102
        %v7113 = vsel %vm1330, %v7062, 0
        %v7116 = vsel %vm1330, %v7063, 0
        %v7119 = vsel %vm1330, %v7064, 0
        %v7122 = vsel %vm1330, %v7065, 0
        %v7125 = vsel %vm1330, %v7066, 0
        %v7128 = vsel %vm1330, %v7067, 0
        %v7131 = vsel %vm1330, %v7068, 0
        %v7134 = vsel %vm1330, %v7069, 0
        %7136 = vmatprep.subr.bf16.mxu0 0
        %7137 = vmatpush1.bf16.msra.mxu0 %v7104
        %7138 = vmatprep.subr.bf16.mxu0 0
        %7139 = vmatpush1.bf16.msra.mxu0 %v7105
        %7140 = vmatprep.subr.bf16.mxu0 0
        %7141 = vmatpush1.bf16.msra.mxu0 %v7106
        %7142 = vmatprep.subr.bf16.mxu0 0
        %7143 = vmatpush1.bf16.msra.mxu0 %v7107
        %7144 = vmatprep.subr.bf16.mxu0 0
        %7145 = vmatpush1.bf16.msra.mxu0 0
        %7146 = vmatprep.subr.bf16.mxu0 0
        %7147 = vmatpush1.bf16.msra.mxu0 0
        %7148 = vmatprep.subr.bf16.mxu0 0
        %7149 = vmatpush1.bf16.msra.mxu0 0
        %7150 = vmatprep.subr.bf16.mxu0 0
        %7151 = vmatpush1.bf16.msra.mxu0 0
        %7152 = vmatprep.subr.bf16.mxu0 0
        %7153 = vmatpush1.bf16.msra.mxu0 0
        %7154 = vmatprep.subr.bf16.mxu0 0
        %7155 = vmatpush1.bf16.msra.mxu0 0
        %7156 = vmatprep.subr.bf16.mxu0 0
        %7157 = vmatpush1.bf16.msra.mxu0 0
        %7158 = vmatprep.subr.bf16.mxu0 0
        %7159 = vmatpush1.bf16.msra.mxu0 0
        %7160 = vmatprep.subr.bf16.mxu0 0
        %7161 = vmatpush1.bf16.msra.mxu0 0
        %7162 = vmatprep.subr.bf16.mxu0 0
        %7163 = vmatpush1.bf16.msra.mxu0 0
        %7164 = vmatprep.subr.bf16.mxu0 0
        %7165 = vmatpush1.bf16.msra.mxu0 0
        %7166 = vmatprep.subr.bf16.mxu0 0
        %7167 = vmatpush1.bf16.msra.mxu0 0
        %7168 = vmatprep.mubr.bf16.mxu0 0
        %7169 = vmatmul.mubr.bf16.gmra.mrb[0].mxu0 %v7113
        %v7170 = vpop.f32.mrb[0].mxu0
        %v7171 = vadd.f32 0.0, %v7170
        %v7172 = vpop.f32.mrb[0].mxu0
        %v7173 = vpop.f32.mrb[0].mxu0
        %v7174 = vadd.f32 0.0, %v7173
        %v7175 = vpop.f32.mrb[0].mxu0
        %7176 = vmatprep.mubr.bf16.mxu0 0
        %7177 = vmatmul.mubr.bf16.gmra.mrb[0].mxu0 %v7116
        %v7178 = vpop.f32.mrb[0].mxu0
        %v7179 = vadd.f32 0.0, %v7178
        %v7180 = vpop.f32.mrb[0].mxu0
        %v7181 = vpop.f32.mrb[0].mxu0
        %v7182 = vadd.f32 0.0, %v7181
        %v7183 = vpop.f32.mrb[0].mxu0
        %7184 = vmatprep.mubr.bf16.mxu0 0
        %7185 = vmatmul.mubr.bf16.gmra.mrb[0].mxu0 %v7119
        %v7186 = vpop.f32.mrb[0].mxu0
        %v7187 = vadd.f32 0.0, %v7186
        %v7188 = vpop.f32.mrb[0].mxu0
        %v7189 = vpop.f32.mrb[0].mxu0
        %v7190 = vadd.f32 0.0, %v7189
        %v7191 = vpop.f32.mrb[0].mxu0
        %7192 = vmatprep.mubr.bf16.mxu0 0
        %7193 = vmatmul.mubr.bf16.gmra.mrb[0].mxu0 %v7122
        %v7194 = vpop.f32.mrb[0].mxu0
        %v7195 = vadd.f32 0.0, %v7194
        %v7196 = vpop.f32.mrb[0].mxu0
        %v7197 = vpop.f32.mrb[0].mxu0
        %v7198 = vadd.f32 0.0, %v7197
        %v7199 = vpop.f32.mrb[0].mxu0
        %7200 = vmatprep.mubr.bf16.mxu0 0
        %7201 = vmatmul.mubr.bf16.gmra.mrb[0].mxu0 %v7125
        %v7202 = vpop.f32.mrb[0].mxu0
        %v7203 = vadd.f32 0.0, %v7202
        %v7204 = vpop.f32.mrb[0].mxu0
        %v7205 = vpop.f32.mrb[0].mxu0
        %v7206 = vadd.f32 0.0, %v7205
        %v7207 = vpop.f32.mrb[0].mxu0
        %7208 = vmatprep.mubr.bf16.mxu0 0
        %7209 = vmatmul.mubr.bf16.gmra.mrb[0].mxu0 %v7128
        %v7210 = vpop.f32.mrb[0].mxu0
        %v7211 = vadd.f32 0.0, %v7210
        %v7212 = vpop.f32.mrb[0].mxu0
        %v7213 = vpop.f32.mrb[0].mxu0
        %v7214 = vadd.f32 0.0, %v7213
        %v7215 = vpop.f32.mrb[0].mxu0
        %7216 = vmatprep.mubr.bf16.mxu0 0
        %7217 = vmatmul.mubr.bf16.gmra.mrb[0].mxu0 %v7131
        %v7218 = vpop.f32.mrb[0].mxu0
        %v7219 = vadd.f32 0.0, %v7218
        %v7220 = vpop.f32.mrb[0].mxu0
        %v7221 = vpop.f32.mrb[0].mxu0
        %v7222 = vadd.f32 0.0, %v7221
        %v7223 = vpop.f32.mrb[0].mxu0
        %7224 = vmatprep.mubr.bf16.mxu0 0
        %7225 = vmatmul.mubr.bf16.gmra.mrb[0].mxu0 %v7134
        %v7226 = vpop.f32.mrb[0].mxu0
        %v7227 = vadd.f32 0.0, %v7226
        %v7228 = vpop.f32.mrb[0].mxu0
        %v7229 = vpop.f32.mrb[0].mxu0
        %v7230 = vadd.f32 0.0, %v7229
        %v7231 = vpop.f32.mrb[0].mxu0
        %7232 = vdwg.mxu0
        %v7233 = vpack.c.bf16 %v7174, %v7171
        %v7234 = vpack.c.bf16 %v7182, %v7179
        %v7235 = vpack.c.bf16 %v7190, %v7187
        %v7236 = vpack.c.bf16 %v7198, %v7195
        %v7237 = vpack.c.bf16 %v7206, %v7203
        %v7238 = vpack.c.bf16 %v7214, %v7211
        %v7239 = vpack.c.bf16 %v7222, %v7219
        %v7240 = vpack.c.bf16 %v7230, %v7227
        %s7241 = scalar_lea.vmem [#allocation7], 64
        %v7242 = vld [vmem:[%s7241] sm:$0xf]
        %v7243 = vld [vmem:[%s7241 + $0x4] sm:$0xf]
        %v7244 = vld [vmem:[%s7241 + $0x8] sm:$0xf]
        %v7245 = vld [vmem:[%s7241 + $0xc] sm:$0xf]
        %v7246 = vld [vmem:[%s7241 + $0x10] sm:$0xf]
        %v7247 = vld [vmem:[%s7241 + $0x14] sm:$0xf]
        %v7248 = vld [vmem:[%s7241 + $0x18] sm:$0xf]
        %v7249 = vld [vmem:[%s7241 + $0x1c] sm:$0xf]
        %v7258 = vunpack.c.l.b16 %v7242
        %v7259 = vunpack.c.l.b16 %v7243
        %v7260 = vunpack.c.l.b16 %v7244
        %v7261 = vunpack.c.l.b16 %v7245
        %v7262 = vunpack.c.l.b16 %v7246
        %v7263 = vunpack.c.l.b16 %v7247
        %v7264 = vunpack.c.l.b16 %v7248
        %v7265 = vunpack.c.l.b16 %v7249
        %v7266 = vpack.c.b16 %v7259, %v7258
        %v7267 = vpack.c.b16 %v7261, %v7260
        %v7268 = vpack.c.b16 %v7263, %v7262
        %v7269 = vpack.c.b16 %v7265, %v7264
        %7274 = vmatprep.subr.bf16.mxu0 0
        %7275 = vmatpush1.bf16.msra.mxu0 %v7266
        %7276 = vmatprep.subr.bf16.mxu0 0
        %7277 = vmatpush1.bf16.msra.mxu0 %v7267
        %7278 = vmatprep.subr.bf16.mxu0 0
        %7279 = vmatpush1.bf16.msra.mxu0 %v7268
        %7280 = vmatprep.subr.bf16.mxu0 0
        %7281 = vmatpush1.bf16.msra.mxu0 %v7269
        %7282 = vmatprep.subr.bf16.mxu0 0
        %7283 = vmatpush1.bf16.msra.mxu0 0
        %7284 = vmatprep.subr.bf16.mxu0 0
        %7285 = vmatpush1.bf16.msra.mxu0 0
        %7286 = vmatprep.subr.bf16.mxu0 0
        %7287 = vmatpush1.bf16.msra.mxu0 0
        %7288 = vmatprep.subr.bf16.mxu0 0
        %7289 = vmatpush1.bf16.msra.mxu0 0
        %7290 = vmatprep.subr.bf16.mxu0 0
        %7291 = vmatpush1.bf16.msra.mxu0 0
        %7292 = vmatprep.subr.bf16.mxu0 0
        %7293 = vmatpush1.bf16.msra.mxu0 0
        %7294 = vmatprep.subr.bf16.mxu0 0
        %7295 = vmatpush1.bf16.msra.mxu0 0
        %7296 = vmatprep.subr.bf16.mxu0 0
        %7297 = vmatpush1.bf16.msra.mxu0 0
        %7298 = vmatprep.subr.bf16.mxu0 0
        %7299 = vmatpush1.bf16.msra.mxu0 0
        %7300 = vmatprep.subr.bf16.mxu0 0
        %7301 = vmatpush1.bf16.msra.mxu0 0
        %7302 = vmatprep.subr.bf16.mxu0 0
        %7303 = vmatpush1.bf16.msra.mxu0 0
        %7304 = vmatprep.subr.bf16.mxu0 0
        %7305 = vmatpush1.bf16.msra.mxu0 0
        %7306 = vmatprep.mubr.bf16.mxu0 0
        %7307 = vmatmul.mubr.bf16.gmra.mrb[0].mxu0 %v7113
        %v7308 = vpop.f32.mrb[0].mxu0
        %v7309 = vadd.f32 0.0, %v7308
        %v7310 = vpop.f32.mrb[0].mxu0
        %v7311 = vpop.f32.mrb[0].mxu0
        %v7312 = vadd.f32 0.0, %v7311
        %v7313 = vpop.f32.mrb[0].mxu0
        %7314 = vmatprep.mubr.bf16.mxu0 0
        %7315 = vmatmul.mubr.bf16.gmra.mrb[0].mxu0 %v7116
        %v7316 = vpop.f32.mrb[0].mxu0
        %v7317 = vadd.f32 0.0, %v7316
        %v7318 = vpop.f32.mrb[0].mxu0
        %v7319 = vpop.f32.mrb[0].mxu0
        %v7320 = vadd.f32 0.0, %v7319
        %v7321 = vpop.f32.mrb[0].mxu0
        %7322 = vmatprep.mubr.bf16.mxu0 0
        %7323 = vmatmul.mubr.bf16.gmra.mrb[0].mxu0 %v7119
        %v7324 = vpop.f32.mrb[0].mxu0
        %v7325 = vadd.f32 0.0, %v7324
        %v7326 = vpop.f32.mrb[0].mxu0
        %v7327 = vpop.f32.mrb[0].mxu0
        %v7328 = vadd.f32 0.0, %v7327
        %v7329 = vpop.f32.mrb[0].mxu0
        %7330 = vmatprep.mubr.bf16.mxu0 0
        %7331 = vmatmul.mubr.bf16.gmra.mrb[0].mxu0 %v7122
        %v7332 = vpop.f32.mrb[0].mxu0
        %v7333 = vadd.f32 0.0, %v7332
        %v7334 = vpop.f32.mrb[0].mxu0
        %v7335 = vpop.f32.mrb[0].mxu0
        %v7336 = vadd.f32 0.0, %v7335
        %v7337 = vpop.f32.mrb[0].mxu0
        %7338 = vmatprep.mubr.bf16.mxu0 0
        %7339 = vmatmul.mubr.bf16.gmra.mrb[0].mxu0 %v7125
        %v7340 = vpop.f32.mrb[0].mxu0
        %v7341 = vadd.f32 0.0, %v7340
        %v7342 = vpop.f32.mrb[0].mxu0
        %v7343 = vpop.f32.mrb[0].mxu0
        %v7344 = vadd.f32 0.0, %v7343
        %v7345 = vpop.f32.mrb[0].mxu0
        %7346 = vmatprep.mubr.bf16.mxu0 0
        %7347 = vmatmul.mubr.bf16.gmra.mrb[0].mxu0 %v7128
        %v7348 = vpop.f32.mrb[0].mxu0
        %v7349 = vadd.f32 0.0, %v7348
        %v7350 = vpop.f32.mrb[0].mxu0
        %v7351 = vpop.f32.mrb[0].mxu0
        %v7352 = vadd.f32 0.0, %v7351
        %v7353 = vpop.f32.mrb[0].mxu0
        %7354 = vmatprep.mubr.bf16.mxu0 0
        %7355 = vmatmul.mubr.bf16.gmra.mrb[0].mxu0 %v7131
        %v7356 = vpop.f32.mrb[0].mxu0
        %v7357 = vadd.f32 0.0, %v7356
        %v7358 = vpop.f32.mrb[0].mxu0
        %v7359 = vpop.f32.mrb[0].mxu0
        %v7360 = vadd.f32 0.0, %v7359
        %v7361 = vpop.f32.mrb[0].mxu0
        %7362 = vmatprep.mubr.bf16.mxu0 0
        %7363 = vmatmul.mubr.bf16.gmra.mrb[0].mxu0 %v7134
        %v7364 = vpop.f32.mrb[0].mxu0
        %v7365 = vadd.f32 0.0, %v7364
        %v7366 = vpop.f32.mrb[0].mxu0
        %v7367 = vpop.f32.mrb[0].mxu0
        %v7368 = vadd.f32 0.0, %v7367
        %v7369 = vpop.f32.mrb[0].mxu0
        %7370 = vdwg.mxu0
        %v7371 = vpack.c.bf16 %v7312, %v7309
        %v7372 = vpack.c.bf16 %v7320, %v7317
        %v7373 = vpack.c.bf16 %v7328, %v7325
        %v7374 = vpack.c.bf16 %v7336, %v7333
        %v7375 = vpack.c.bf16 %v7344, %v7341
        %v7376 = vpack.c.bf16 %v7352, %v7349
        %v7377 = vpack.c.bf16 %v7360, %v7357
        %v7378 = vpack.c.bf16 %v7368, %v7365
        %s7379 = scalar_lea.vmem [#allocation8], 64
        %v7380 = vld [vmem:[%s7379] sm:$0xf]
        %v7381 = vld [vmem:[%s7379 + $0x4] sm:$0xf]
        %v7382 = vld [vmem:[%s7379 + $0x8] sm:$0xf]
        %v7383 = vld [vmem:[%s7379 + $0xc] sm:$0xf]
        %v7384 = vld [vmem:[%s7379 + $0x10] sm:$0xf]
        %v7385 = vld [vmem:[%s7379 + $0x14] sm:$0xf]
        %v7386 = vld [vmem:[%s7379 + $0x18] sm:$0xf]
        %v7387 = vld [vmem:[%s7379 + $0x1c] sm:$0xf]
        %v7396 = vunpack.c.l.b16 %v7380
        %v7397 = vunpack.c.l.b16 %v7381
        %v7398 = vunpack.c.l.b16 %v7382
        %v7399 = vunpack.c.l.b16 %v7383
        %v7400 = vunpack.c.l.b16 %v7384
        %v7401 = vunpack.c.l.b16 %v7385
        %v7402 = vunpack.c.l.b16 %v7386
        %v7403 = vunpack.c.l.b16 %v7387
        %v7404 = vpack.c.b16 %v7397, %v7396
        %v7405 = vpack.c.b16 %v7399, %v7398
        %v7406 = vpack.c.b16 %v7401, %v7400
        %v7407 = vpack.c.b16 %v7403, %v7402
        %7412 = vmatprep.subr.bf16.mxu0 0
        %7413 = vmatpush1.bf16.msra.mxu0 %v7404
        %7414 = vmatprep.subr.bf16.mxu0 0
        %7415 = vmatpush1.bf16.msra.mxu0 %v7405
        %7416 = vmatprep.subr.bf16.mxu0 0
        %7417 = vmatpush1.bf16.msra.mxu0 %v7406
        %7418 = vmatprep.subr.bf16.mxu0 0
        %7419 = vmatpush1.bf16.msra.mxu0 %v7407
        %7420 = vmatprep.subr.bf16.mxu0 0
        %7421 = vmatpush1.bf16.msra.mxu0 0
        %7422 = vmatprep.subr.bf16.mxu0 0
        %7423 = vmatpush1.bf16.msra.mxu0 0
        %7424 = vmatprep.subr.bf16.mxu0 0
        %7425 = vmatpush1.bf16.msra.mxu0 0
        %7426 = vmatprep.subr.bf16.mxu0 0
        %7427 = vmatpush1.bf16.msra.mxu0 0
        %7428 = vmatprep.subr.bf16.mxu0 0
        %7429 = vmatpush1.bf16.msra.mxu0 0
        %7430 = vmatprep.subr.bf16.mxu0 0
        %7431 = vmatpush1.bf16.msra.mxu0 0
        %7432 = vmatprep.subr.bf16.mxu0 0
        %7433 = vmatpush1.bf16.msra.mxu0 0
        %7434 = vmatprep.subr.bf16.mxu0 0
        %7435 = vmatpush1.bf16.msra.mxu0 0
        %7436 = vmatprep.subr.bf16.mxu0 0
        %7437 = vmatpush1.bf16.msra.mxu0 0
        %7438 = vmatprep.subr.bf16.mxu0 0
        %7439 = vmatpush1.bf16.msra.mxu0 0
        %7440 = vmatprep.subr.bf16.mxu0 0
        %7441 = vmatpush1.bf16.msra.mxu0 0
        %7442 = vmatprep.subr.bf16.mxu0 0
        %7443 = vmatpush1.bf16.msra.mxu0 0
        %7444 = vmatprep.mubr.bf16.mxu0 0
        %7445 = vmatmul.mubr.bf16.gmra.mrb[0].mxu0 %v7113
        %v7446 = vpop.f32.mrb[0].mxu0
        %v7447 = vadd.f32 0.0, %v7446
        %v7448 = vpop.f32.mrb[0].mxu0
        %v7449 = vpop.f32.mrb[0].mxu0
        %v7450 = vadd.f32 0.0, %v7449
        %v7451 = vpop.f32.mrb[0].mxu0
        %7452 = vmatprep.mubr.bf16.mxu0 0
        %7453 = vmatmul.mubr.bf16.gmra.mrb[0].mxu0 %v7116
        %v7454 = vpop.f32.mrb[0].mxu0
        %v7455 = vadd.f32 0.0, %v7454
        %v7456 = vpop.f32.mrb[0].mxu0
        %v7457 = vpop.f32.mrb[0].mxu0
        %v7458 = vadd.f32 0.0, %v7457
        %v7459 = vpop.f32.mrb[0].mxu0
        %7460 = vmatprep.mubr.bf16.mxu0 0
        %7461 = vmatmul.mubr.bf16.gmra.mrb[0].mxu0 %v7119
        %v7462 = vpop.f32.mrb[0].mxu0
        %v7463 = vadd.f32 0.0, %v7462
        %v7464 = vpop.f32.mrb[0].mxu0
        %v7465 = vpop.f32.mrb[0].mxu0
        %v7466 = vadd.f32 0.0, %v7465
        %v7467 = vpop.f32.mrb[0].mxu0
        %7468 = vmatprep.mubr.bf16.mxu0 0
        %7469 = vmatmul.mubr.bf16.gmra.mrb[0].mxu0 %v7122
        %v7470 = vpop.f32.mrb[0].mxu0
        %v7471 = vadd.f32 0.0, %v7470
        %v7472 = vpop.f32.mrb[0].mxu0
        %v7473 = vpop.f32.mrb[0].mxu0
        %v7474 = vadd.f32 0.0, %v7473
        %v7475 = vpop.f32.mrb[0].mxu0
        %7476 = vmatprep.mubr.bf16.mxu0 0
        %7477 = vmatmul.mubr.bf16.gmra.mrb[0].mxu0 %v7125
        %v7478 = vpop.f32.mrb[0].mxu0
        %v7479 = vadd.f32 0.0, %v7478
        %v7480 = vpop.f32.mrb[0].mxu0
        %v7481 = vpop.f32.mrb[0].mxu0
        %v7482 = vadd.f32 0.0, %v7481
        %v7483 = vpop.f32.mrb[0].mxu0
        %7484 = vmatprep.mubr.bf16.mxu0 0
        %7485 = vmatmul.mubr.bf16.gmra.mrb[0].mxu0 %v7128
        %v7486 = vpop.f32.mrb[0].mxu0
        %v7487 = vadd.f32 0.0, %v7486
        %v7488 = vpop.f32.mrb[0].mxu0
        %v7489 = vpop.f32.mrb[0].mxu0
        %v7490 = vadd.f32 0.0, %v7489
        %v7491 = vpop.f32.mrb[0].mxu0
        %7492 = vmatprep.mubr.bf16.mxu0 0
        %7493 = vmatmul.mubr.bf16.gmra.mrb[0].mxu0 %v7131
        %v7494 = vpop.f32.mrb[0].mxu0
        %v7495 = vadd.f32 0.0, %v7494
        %v7496 = vpop.f32.mrb[0].mxu0
        %v7497 = vpop.f32.mrb[0].mxu0
        %v7498 = vadd.f32 0.0, %v7497
        %v7499 = vpop.f32.mrb[0].mxu0
        %7500 = vmatprep.mubr.bf16.mxu0 0
        %7501 = vmatmul.mubr.bf16.gmra.mrb[0].mxu0 %v7134
        %v7502 = vpop.f32.mrb[0].mxu0
        %v7503 = vadd.f32 0.0, %v7502
        %v7504 = vpop.f32.mrb[0].mxu0
        %v7505 = vpop.f32.mrb[0].mxu0
        %v7506 = vadd.f32 0.0, %v7505
        %v7507 = vpop.f32.mrb[0].mxu0
        %7508 = vdwg.mxu0
        %v7509 = vpack.c.bf16 %v7450, %v7447
        %v7510 = vpack.c.bf16 %v7458, %v7455
        %v7511 = vpack.c.bf16 %v7466, %v7463
        %v7512 = vpack.c.bf16 %v7474, %v7471
        %v7513 = vpack.c.bf16 %v7482, %v7479
        %v7514 = vpack.c.bf16 %v7490, %v7487
        %v7515 = vpack.c.bf16 %v7498, %v7495
        %v7516 = vpack.c.bf16 %v7506, %v7503
        %v7518 = vsel %vm1734, %v7233, 0
        %v7521 = vsel %vm1734, %v7234, 0
        %v7524 = vsel %vm1734, %v7235, 0
        %v7527 = vsel %vm1734, %v7236, 0
        %v7530 = vsel %vm1734, %v7237, 0
        %v7533 = vsel %vm1734, %v7238, 0
        %v7536 = vsel %vm1734, %v7239, 0
        %v7539 = vsel %vm1734, %v7240, 0
        %v7542 = vsel %vm1734, %v7371, 0
        %v7545 = vsel %vm1734, %v7372, 0
        %v7548 = vsel %vm1734, %v7373, 0
        %v7551 = vsel %vm1734, %v7374, 0
        %v7554 = vsel %vm1734, %v7375, 0
        %v7557 = vsel %vm1734, %v7376, 0
        %v7560 = vsel %vm1734, %v7377, 0
        %v7563 = vsel %vm1734, %v7378, 0
        %7565 = vmatprep.subr.bf16.mxu0 0
        %7566 = vmatpush1.bf16.xpose.msra.mxu0 %v7542
        %7567 = vmatprep.subr.bf16.mxu0 0
        %7568 = vmatpush1.bf16.xpose.msra.mxu0 %v7545
        %7569 = vmatprep.subr.bf16.mxu0 0
        %7570 = vmatpush1.bf16.xpose.msra.mxu0 %v7548
        %7571 = vmatprep.subr.bf16.mxu0 0
        %7572 = vmatpush1.bf16.xpose.msra.mxu0 %v7551
        %7573 = vmatprep.subr.bf16.mxu0 0
        %7574 = vmatpush1.bf16.xpose.msra.mxu0 %v7554
        %7575 = vmatprep.subr.bf16.mxu0 0
        %7576 = vmatpush1.bf16.xpose.msra.mxu0 %v7557
        %7577 = vmatprep.subr.bf16.mxu0 0
        %7578 = vmatpush1.bf16.xpose.msra.mxu0 %v7560
        %7579 = vmatprep.subr.bf16.mxu0 0
        %7580 = vmatpush1.bf16.xpose.msra.mxu0 %v7563
        %7581 = vmatprep.subr.bf16.mxu0 0
        %7582 = vmatpush1.bf16.xpose.msra.mxu0 0
        %7583 = vmatprep.subr.bf16.mxu0 0
        %7584 = vmatpush1.bf16.xpose.msra.mxu0 0
        %7585 = vmatprep.subr.bf16.mxu0 0
        %7586 = vmatpush1.bf16.xpose.msra.mxu0 0
        %7587 = vmatprep.subr.bf16.mxu0 0
        %7588 = vmatpush1.bf16.xpose.msra.mxu0 0
        %7589 = vmatprep.subr.bf16.mxu0 0
        %7590 = vmatpush1.bf16.xpose.msra.mxu0 0
        %7591 = vmatprep.subr.bf16.mxu0 0
        %7592 = vmatpush1.bf16.xpose.msra.mxu0 0
        %7593 = vmatprep.subr.bf16.mxu0 0
        %7594 = vmatpush1.bf16.xpose.msra.mxu0 0
        %7595 = vmatprep.subr.bf16.mxu0 0
        %7596 = vmatpush1.bf16.xpose.msra.mxu0 0
        %7597 = vmatprep.mubr.bf16.mxu0 0
        %7598 = vmatmul.mubr.bf16.gmra.mrb[0].mxu0 %v7518
        %v7599 = vpop.f32.mrb[0].mxu0
        %v7600 = vadd.f32 %v960, %v7599
        %v7601 = vpop.f32.mrb[0].mxu0
        %v7602 = vpop.f32.mrb[0].mxu0
        %v7603 = vadd.f32 %v961, %v7602
        %v7604 = vpop.f32.mrb[0].mxu0
        %7605 = vmatprep.mubr.bf16.mxu0 0
        %7606 = vmatmul.mubr.bf16.gmra.mrb[0].mxu0 %v7521
        %v7607 = vpop.f32.mrb[0].mxu0
        %v7608 = vadd.f32 %v962, %v7607
        %v7609 = vpop.f32.mrb[0].mxu0
        %v7610 = vpop.f32.mrb[0].mxu0
        %v7611 = vadd.f32 %v963, %v7610
        %v7612 = vpop.f32.mrb[0].mxu0
        %7613 = vmatprep.mubr.bf16.mxu0 0
        %7614 = vmatmul.mubr.bf16.gmra.mrb[0].mxu0 %v7524
        %v7615 = vpop.f32.mrb[0].mxu0
        %v7616 = vadd.f32 %v964, %v7615
        %v7617 = vpop.f32.mrb[0].mxu0
        %v7618 = vpop.f32.mrb[0].mxu0
        %v7619 = vadd.f32 %v965, %v7618
        %v7620 = vpop.f32.mrb[0].mxu0
        %7621 = vmatprep.mubr.bf16.mxu0 0
        %7622 = vmatmul.mubr.bf16.gmra.mrb[0].mxu0 %v7527
        %v7623 = vpop.f32.mrb[0].mxu0
        %v7624 = vadd.f32 %v966, %v7623
        %v7625 = vpop.f32.mrb[0].mxu0
        %v7626 = vpop.f32.mrb[0].mxu0
        %v7627 = vadd.f32 %v967, %v7626
        %v7628 = vpop.f32.mrb[0].mxu0
        %7629 = vmatprep.mubr.bf16.mxu0 0
        %7630 = vmatmul.mubr.bf16.gmra.mrb[0].mxu0 %v7530
        %v7631 = vpop.f32.mrb[0].mxu0
        %v7632 = vadd.f32 %v968, %v7631
        %v7633 = vpop.f32.mrb[0].mxu0
        %v7634 = vpop.f32.mrb[0].mxu0
        %v7635 = vadd.f32 %v969, %v7634
        %v7636 = vpop.f32.mrb[0].mxu0
        %7637 = vmatprep.mubr.bf16.mxu0 0
        %7638 = vmatmul.mubr.bf16.gmra.mrb[0].mxu0 %v7533
        %v7639 = vpop.f32.mrb[0].mxu0
        %v7640 = vadd.f32 %v970, %v7639
        %v7641 = vpop.f32.mrb[0].mxu0
        %v7642 = vpop.f32.mrb[0].mxu0
        %v7643 = vadd.f32 %v971, %v7642
        %v7644 = vpop.f32.mrb[0].mxu0
        %7645 = vmatprep.mubr.bf16.mxu0 0
        %7646 = vmatmul.mubr.bf16.gmra.mrb[0].mxu0 %v7536
        %v7647 = vpop.f32.mrb[0].mxu0
        %v7648 = vadd.f32 %v972, %v7647
        %v7649 = vpop.f32.mrb[0].mxu0
        %v7650 = vpop.f32.mrb[0].mxu0
        %v7651 = vadd.f32 %v973, %v7650
        %v7652 = vpop.f32.mrb[0].mxu0
        %7653 = vmatprep.mubr.bf16.mxu0 0
        %7654 = vmatmul.mubr.bf16.gmra.mrb[0].mxu0 %v7539
        %v7655 = vpop.f32.mrb[0].mxu0
        %v7656 = vadd.f32 %v974, %v7655
        %v7657 = vpop.f32.mrb[0].mxu0
        %v7658 = vpop.f32.mrb[0].mxu0
        %v7659 = vadd.f32 %v975, %v7658
        %v7660 = vpop.f32.mrb[0].mxu0
        %7661 = vdwg.mxu0
        %7662 = vmax.xlane.f32.xlu0 %v7600
        %v7663 = vpop.xlane.xlu0 %7662
        %7664 = vmax.xlane.f32.xlu0 %v7603
        %v7665 = vpop.xlane.xlu0 %7664
        %7666 = vmax.xlane.f32.xlu0 %v7608
        %v7667 = vpop.xlane.xlu0 %7666
        %7668 = vmax.xlane.f32.xlu0 %v7611
        %v7669 = vpop.xlane.xlu0 %7668
        %7670 = vmax.xlane.f32.xlu0 %v7616
        %v7671 = vpop.xlane.xlu0 %7670
        %7672 = vmax.xlane.f32.xlu0 %v7619
        %v7673 = vpop.xlane.xlu0 %7672
        %7674 = vmax.xlane.f32.xlu0 %v7624
        %v7675 = vpop.xlane.xlu0 %7674
        %7676 = vmax.xlane.f32.xlu0 %v7627
        %v7677 = vpop.xlane.xlu0 %7676
        %7678 = vmax.xlane.f32.xlu0 %v7632
        %v7679 = vpop.xlane.xlu0 %7678
        %7680 = vmax.xlane.f32.xlu0 %v7635
        %v7681 = vpop.xlane.xlu0 %7680
        %7682 = vmax.xlane.f32.xlu0 %v7640
        %v7683 = vpop.xlane.xlu0 %7682
        %7684 = vmax.xlane.f32.xlu0 %v7643
        %v7685 = vpop.xlane.xlu0 %7684
        %7686 = vmax.xlane.f32.xlu0 %v7648
        %v7687 = vpop.xlane.xlu0 %7686
        %7688 = vmax.xlane.f32.xlu0 %v7651
        %v7689 = vpop.xlane.xlu0 %7688
        %7690 = vmax.xlane.f32.xlu0 %v7656
        %v7691 = vpop.xlane.xlu0 %7690
        %7692 = vmax.xlane.f32.xlu0 %v7659
        %v7693 = vpop.xlane.xlu0 %7692
        %v7694 = vsub.f32 %v7600, %v7663
        %v7695 = vsub.f32 %v7603, %v7665
        %v7696 = vsub.f32 %v7608, %v7667
        %v7697 = vsub.f32 %v7611, %v7669
        %v7698 = vsub.f32 %v7616, %v7671
        %v7699 = vsub.f32 %v7619, %v7673
        %v7700 = vsub.f32 %v7624, %v7675
        %v7701 = vsub.f32 %v7627, %v7677
        %v7702 = vsub.f32 %v7632, %v7679
        %v7703 = vsub.f32 %v7635, %v7681
        %v7704 = vsub.f32 %v7640, %v7683
        %v7705 = vsub.f32 %v7643, %v7685
        %v7706 = vsub.f32 %v7648, %v7687
        %v7707 = vsub.f32 %v7651, %v7689
        %v7708 = vsub.f32 %v7656, %v7691
        %v7709 = vsub.f32 %v7659, %v7693
        %v7710 = vmul.f32 %v7694, 1.442695
        %v7711 = vpow.pop %v7710
        %v7712 = vmul.f32 %v7695, 1.442695
        %v7713 = vpow.pop %v7712
        %v7714 = vmul.f32 %v7696, 1.442695
        %v7715 = vpow.pop %v7714
        %v7716 = vmul.f32 %v7697, 1.442695
        %v7717 = vpow.pop %v7716
        %v7718 = vmul.f32 %v7698, 1.442695
        %v7719 = vpow.pop %v7718
        %v7720 = vmul.f32 %v7699, 1.442695
        %v7721 = vpow.pop %v7720
        %v7722 = vmul.f32 %v7700, 1.442695
        %v7723 = vpow.pop %v7722
        %v7724 = vmul.f32 %v7701, 1.442695
        %v7725 = vpow.pop %v7724
        %v7726 = vmul.f32 %v7702, 1.442695
        %v7727 = vpow.pop %v7726
        %v7728 = vmul.f32 %v7703, 1.442695
        %v7729 = vpow.pop %v7728
        %v7730 = vmul.f32 %v7704, 1.442695
        %v7731 = vpow.pop %v7730
        %v7732 = vmul.f32 %v7705, 1.442695
        %v7733 = vpow.pop %v7732
        %v7734 = vmul.f32 %v7706, 1.442695
        %v7735 = vpow.pop %v7734
        %v7736 = vmul.f32 %v7707, 1.442695
        %v7737 = vpow.pop %v7736
        %v7738 = vmul.f32 %v7708, 1.442695
        %v7739 = vpow.pop %v7738
        %v7740 = vmul.f32 %v7709, 1.442695
        %v7741 = vpow.pop %v7740
        %7742 = vadd.xlane.f32.xlu0 %v7711
        %v7743 = vpop.xlane.xlu0 %7742
        %7744 = vadd.xlane.f32.xlu0 %v7713
        %v7745 = vpop.xlane.xlu0 %7744
        %7746 = vadd.xlane.f32.xlu0 %v7715
        %v7747 = vpop.xlane.xlu0 %7746
        %7748 = vadd.xlane.f32.xlu0 %v7717
        %v7749 = vpop.xlane.xlu0 %7748
        %7750 = vadd.xlane.f32.xlu0 %v7719
        %v7751 = vpop.xlane.xlu0 %7750
        %7752 = vadd.xlane.f32.xlu0 %v7721
        %v7753 = vpop.xlane.xlu0 %7752
        %7754 = vadd.xlane.f32.xlu0 %v7723
        %v7755 = vpop.xlane.xlu0 %7754
        %7756 = vadd.xlane.f32.xlu0 %v7725
        %v7757 = vpop.xlane.xlu0 %7756
        %7758 = vadd.xlane.f32.xlu0 %v7727
        %v7759 = vpop.xlane.xlu0 %7758
        %7760 = vadd.xlane.f32.xlu0 %v7729
        %v7761 = vpop.xlane.xlu0 %7760
        %7762 = vadd.xlane.f32.xlu0 %v7731
        %v7763 = vpop.xlane.xlu0 %7762
        %7764 = vadd.xlane.f32.xlu0 %v7733
        %v7765 = vpop.xlane.xlu0 %7764
        %7766 = vadd.xlane.f32.xlu0 %v7735
        %v7767 = vpop.xlane.xlu0 %7766
        %7768 = vadd.xlane.f32.xlu0 %v7737
        %v7769 = vpop.xlane.xlu0 %7768
        %7770 = vadd.xlane.f32.xlu0 %v7739
        %v7771 = vpop.xlane.xlu0 %7770
        %7772 = vadd.xlane.f32.xlu0 %v7741
        %v7773 = vpop.xlane.xlu0 %7772
        %v7774 = vrcp.pop %v7743
        %v7775 = vmul.f32 %v1010, %v7774
        %v7776 = vrcp.pop %v7745
        %v7777 = vmul.f32 %v1013, %v7776
        %v7778 = vrcp.pop %v7747
        %v7779 = vmul.f32 %v1016, %v7778
        %v7780 = vrcp.pop %v7749
        %v7781 = vmul.f32 %v1019, %v7780
        %v7782 = vrcp.pop %v7751
        %v7783 = vmul.f32 %v1022, %v7782
        %v7784 = vrcp.pop %v7753
        %v7785 = vmul.f32 %v1025, %v7784
        %v7786 = vrcp.pop %v7755
        %v7787 = vmul.f32 %v1028, %v7786
        %v7788 = vrcp.pop %v7757
        %v7789 = vmul.f32 %v1031, %v7788
        %v7790 = vrcp.pop %v7759
        %v7791 = vmul.f32 %v1034, %v7790
        %v7792 = vrcp.pop %v7761
        %v7793 = vmul.f32 %v1037, %v7792
        %v7794 = vrcp.pop %v7763
        %v7795 = vmul.f32 %v1040, %v7794
        %v7796 = vrcp.pop %v7765
        %v7797 = vmul.f32 %v1043, %v7796
        %v7798 = vrcp.pop %v7767
        %v7799 = vmul.f32 %v1046, %v7798
        %v7800 = vrcp.pop %v7769
        %v7801 = vmul.f32 %v1049, %v7800
        %v7802 = vrcp.pop %v7771
        %v7803 = vmul.f32 %v1052, %v7802
        %v7804 = vrcp.pop %v7773
        %v7805 = vmul.f32 %v1055, %v7804
        %v7806 = vpack.c.bf16 %v7713, %v7711
        %v7807 = vpack.c.bf16 %v7717, %v7715
        %v7808 = vpack.c.bf16 %v7721, %v7719
        %v7809 = vpack.c.bf16 %v7725, %v7723
        %v7810 = vpack.c.bf16 %v7729, %v7727
        %v7811 = vpack.c.bf16 %v7733, %v7731
        %v7812 = vpack.c.bf16 %v7737, %v7735
        %v7813 = vpack.c.bf16 %v7741, %v7739
        %7814 = vmatprep.subr.bf16.mxu0 0
        %7815 = vmatpush1.bf16.msra.mxu0 %v7509
        %7816 = vmatprep.subr.bf16.mxu0 0
        %7817 = vmatpush1.bf16.msra.mxu0 %v7510
        %7818 = vmatprep.subr.bf16.mxu0 0
        %7819 = vmatpush1.bf16.msra.mxu0 %v7511
        %7820 = vmatprep.subr.bf16.mxu0 0
        %7821 = vmatpush1.bf16.msra.mxu0 %v7512
        %7822 = vmatprep.subr.bf16.mxu0 0
        %7823 = vmatpush1.bf16.msra.mxu0 %v7513
        %7824 = vmatprep.subr.bf16.mxu0 0
        %7825 = vmatpush1.bf16.msra.mxu0 %v7514
        %7826 = vmatprep.subr.bf16.mxu0 0
        %7827 = vmatpush1.bf16.msra.mxu0 %v7515
        %7828 = vmatprep.subr.bf16.mxu0 0
        %7829 = vmatpush1.bf16.msra.mxu0 %v7516
        %7830 = vmatprep.subr.bf16.mxu0 0
        %7831 = vmatpush1.bf16.msra.mxu0 0
        %7832 = vmatprep.subr.bf16.mxu0 0
        %7833 = vmatpush1.bf16.msra.mxu0 0
        %7834 = vmatprep.subr.bf16.mxu0 0
        %7835 = vmatpush1.bf16.msra.mxu0 0
        %7836 = vmatprep.subr.bf16.mxu0 0
        %7837 = vmatpush1.bf16.msra.mxu0 0
        %7838 = vmatprep.subr.bf16.mxu0 0
        %7839 = vmatpush1.bf16.msra.mxu0 0
        %7840 = vmatprep.subr.bf16.mxu0 0
        %7841 = vmatpush1.bf16.msra.mxu0 0
        %7842 = vmatprep.subr.bf16.mxu0 0
        %7843 = vmatpush1.bf16.msra.mxu0 0
        %7844 = vmatprep.subr.bf16.mxu0 0
        %7845 = vmatpush1.bf16.msra.mxu0 0
        %7846 = vmatprep.mubr.bf16.mxu0 0
        %7847 = vmatmul.mubr.bf16.gmra.mrb[0].mxu0 %v7806
        %v7848 = vpop.f32.mrb[0].mxu0
        %v7849 = vadd.f32 0.0, %v7848
        %v7850 = vpop.f32.mrb[0].mxu0
        %v7851 = vpop.f32.mrb[0].mxu0
        %v7852 = vadd.f32 0.0, %v7851
        %v7853 = vpop.f32.mrb[0].mxu0
        %7854 = vmatprep.mubr.bf16.mxu0 0
        %7855 = vmatmul.mubr.bf16.gmra.mrb[0].mxu0 %v7807
        %v7856 = vpop.f32.mrb[0].mxu0
        %v7857 = vadd.f32 0.0, %v7856
        %v7858 = vpop.f32.mrb[0].mxu0
        %v7859 = vpop.f32.mrb[0].mxu0
        %v7860 = vadd.f32 0.0, %v7859
        %v7861 = vpop.f32.mrb[0].mxu0
        %7862 = vmatprep.mubr.bf16.mxu0 0
        %7863 = vmatmul.mubr.bf16.gmra.mrb[0].mxu0 %v7808
        %v7864 = vpop.f32.mrb[0].mxu0
        %v7865 = vadd.f32 0.0, %v7864
        %v7866 = vpop.f32.mrb[0].mxu0
        %v7867 = vpop.f32.mrb[0].mxu0
        %v7868 = vadd.f32 0.0, %v7867
        %v7869 = vpop.f32.mrb[0].mxu0
        %7870 = vmatprep.mubr.bf16.mxu0 0
        %7871 = vmatmul.mubr.bf16.gmra.mrb[0].mxu0 %v7809
        %v7872 = vpop.f32.mrb[0].mxu0
        %v7873 = vadd.f32 0.0, %v7872
        %v7874 = vpop.f32.mrb[0].mxu0
        %v7875 = vpop.f32.mrb[0].mxu0
        %v7876 = vadd.f32 0.0, %v7875
        %v7877 = vpop.f32.mrb[0].mxu0
        %7878 = vmatprep.mubr.bf16.mxu0 0
        %7879 = vmatmul.mubr.bf16.gmra.mrb[0].mxu0 %v7810
        %v7880 = vpop.f32.mrb[0].mxu0
        %v7881 = vadd.f32 0.0, %v7880
        %v7882 = vpop.f32.mrb[0].mxu0
        %v7883 = vpop.f32.mrb[0].mxu0
        %v7884 = vadd.f32 0.0, %v7883
        %v7885 = vpop.f32.mrb[0].mxu0
        %7886 = vmatprep.mubr.bf16.mxu0 0
        %7887 = vmatmul.mubr.bf16.gmra.mrb[0].mxu0 %v7811
        %v7888 = vpop.f32.mrb[0].mxu0
        %v7889 = vadd.f32 0.0, %v7888
        %v7890 = vpop.f32.mrb[0].mxu0
        %v7891 = vpop.f32.mrb[0].mxu0
        %v7892 = vadd.f32 0.0, %v7891
        %v7893 = vpop.f32.mrb[0].mxu0
        %7894 = vmatprep.mubr.bf16.mxu0 0
        %7895 = vmatmul.mubr.bf16.gmra.mrb[0].mxu0 %v7812
        %v7896 = vpop.f32.mrb[0].mxu0
        %v7897 = vadd.f32 0.0, %v7896
        %v7898 = vpop.f32.mrb[0].mxu0
        %v7899 = vpop.f32.mrb[0].mxu0
        %v7900 = vadd.f32 0.0, %v7899
        %v7901 = vpop.f32.mrb[0].mxu0
        %7902 = vmatprep.mubr.bf16.mxu0 0
        %7903 = vmatmul.mubr.bf16.gmra.mrb[0].mxu0 %v7813
        %v7904 = vpop.f32.mrb[0].mxu0
        %v7905 = vadd.f32 0.0, %v7904
        %v7906 = vpop.f32.mrb[0].mxu0
        %v7907 = vpop.f32.mrb[0].mxu0
        %v7908 = vadd.f32 0.0, %v7907
        %v7909 = vpop.f32.mrb[0].mxu0
        %7910 = vdwg.mxu0
        %v7911 = vmul.f32 %v7849, %v7775
        %v7912 = vmul.f32 %v7852, %v7777
        %v7913 = vmul.f32 %v7857, %v7779
        %v7914 = vmul.f32 %v7860, %v7781
        %v7915 = vmul.f32 %v7865, %v7783
        %v7916 = vmul.f32 %v7868, %v7785
        %v7917 = vmul.f32 %v7873, %v7787
        %v7918 = vmul.f32 %v7876, %v7789
        %v7919 = vmul.f32 %v7881, %v7791
        %v7920 = vmul.f32 %v7884, %v7793
        %v7921 = vmul.f32 %v7889, %v7795
        %v7922 = vmul.f32 %v7892, %v7797
        %v7923 = vmul.f32 %v7897, %v7799
        %v7924 = vmul.f32 %v7900, %v7801
        %v7925 = vmul.f32 %v7905, %v7803
        %v7926 = vmul.f32 %v7908, %v7805
        %v7927 = vpack.c.bf16 %v7912, %v7911
        %v7928 = vpack.c.bf16 %v7914, %v7913
        %v7929 = vpack.c.bf16 %v7916, %v7915
        %v7930 = vpack.c.bf16 %v7918, %v7917
        %v7931 = vpack.c.bf16 %v7920, %v7919
        %v7932 = vpack.c.bf16 %v7922, %v7921
        %v7933 = vpack.c.bf16 %v7924, %v7923
        %v7934 = vpack.c.bf16 %v7926, %v7925
        %v7937 = vunpack.c.l.b16 %v7071
        %v7938 = vunpack.c.l.b16 %v7072
        %v7939 = vpack.c.b16 %v7938, %v7937
        %v7942 = vsel %vm1734, %v7927, 0
        %v7945 = vsel %vm1734, %v7928, 0
        %v7948 = vsel %vm1734, %v7929, 0
        %v7951 = vsel %vm1734, %v7930, 0
        %v7954 = vsel %vm1734, %v7931, 0
        %v7957 = vsel %vm1734, %v7932, 0
        %v7960 = vsel %vm1734, %v7933, 0
        %v7963 = vsel %vm1734, %v7934, 0
        %7965 = vmatprep.subr.bf16.mxu0 0
        %7966 = vmatpush1.bf16.msra.mxu0 %v7939
        %7967 = vmatprep.subr.bf16.mxu0 0
        %7968 = vmatpush1.bf16.msra.mxu0 0
        %7969 = vmatprep.subr.bf16.mxu0 0
        %7970 = vmatpush1.bf16.msra.mxu0 0
        %7971 = vmatprep.subr.bf16.mxu0 0
        %7972 = vmatpush1.bf16.msra.mxu0 0
        %7973 = vmatprep.subr.bf16.mxu0 0
        %7974 = vmatpush1.bf16.msra.mxu0 0
        %7975 = vmatprep.subr.bf16.mxu0 0
        %7976 = vmatpush1.bf16.msra.mxu0 0
        %7977 = vmatprep.subr.bf16.mxu0 0
        %7978 = vmatpush1.bf16.msra.mxu0 0
        %7979 = vmatprep.subr.bf16.mxu0 0
        %7980 = vmatpush1.bf16.msra.mxu0 0
        %7981 = vmatprep.subr.bf16.mxu0 0
        %7982 = vmatpush1.bf16.msra.mxu0 0
        %7983 = vmatprep.subr.bf16.mxu0 0
        %7984 = vmatpush1.bf16.msra.mxu0 0
        %7985 = vmatprep.subr.bf16.mxu0 0
        %7986 = vmatpush1.bf16.msra.mxu0 0
        %7987 = vmatprep.subr.bf16.mxu0 0
        %7988 = vmatpush1.bf16.msra.mxu0 0
        %7989 = vmatprep.subr.bf16.mxu0 0
        %7990 = vmatpush1.bf16.msra.mxu0 0
        %7991 = vmatprep.subr.bf16.mxu0 0
        %7992 = vmatpush1.bf16.msra.mxu0 0
        %7993 = vmatprep.subr.bf16.mxu0 0
        %7994 = vmatpush1.bf16.msra.mxu0 0
        %7995 = vmatprep.subr.bf16.mxu0 0
        %7996 = vmatpush1.bf16.msra.mxu0 0
        %7997 = vmatprep.mubr.bf16.mxu0 0
        %7998 = vmatmul.mubr.bf16.gmra.mrb[0].mxu0 %v7942
        %v7999 = vpop.f32.mrb[0].mxu0
        %v8000 = vadd.f32 0.0, %v7999
        %v8001 = vpop.f32.mrb[0].mxu0
        %v8002 = vpop.f32.mrb[0].mxu0
        %v8003 = vadd.f32 0.0, %v8002
        %v8004 = vpop.f32.mrb[0].mxu0
        %8005 = vmatprep.mubr.bf16.mxu0 0
        %8006 = vmatmul.mubr.bf16.gmra.mrb[0].mxu0 %v7945
        %v8007 = vpop.f32.mrb[0].mxu0
        %v8008 = vadd.f32 0.0, %v8007
        %v8009 = vpop.f32.mrb[0].mxu0
        %v8010 = vpop.f32.mrb[0].mxu0
        %v8011 = vadd.f32 0.0, %v8010
        %v8012 = vpop.f32.mrb[0].mxu0
        %8013 = vmatprep.mubr.bf16.mxu0 0
        %8014 = vmatmul.mubr.bf16.gmra.mrb[0].mxu0 %v7948
        %v8015 = vpop.f32.mrb[0].mxu0
        %v8016 = vadd.f32 0.0, %v8015
        %v8017 = vpop.f32.mrb[0].mxu0
        %v8018 = vpop.f32.mrb[0].mxu0
        %v8019 = vadd.f32 0.0, %v8018
        %v8020 = vpop.f32.mrb[0].mxu0
        %8021 = vmatprep.mubr.bf16.mxu0 0
        %8022 = vmatmul.mubr.bf16.gmra.mrb[0].mxu0 %v7951
        %v8023 = vpop.f32.mrb[0].mxu0
        %v8024 = vadd.f32 0.0, %v8023
        %v8025 = vpop.f32.mrb[0].mxu0
        %v8026 = vpop.f32.mrb[0].mxu0
        %v8027 = vadd.f32 0.0, %v8026
        %v8028 = vpop.f32.mrb[0].mxu0
        %8029 = vmatprep.mubr.bf16.mxu0 0
        %8030 = vmatmul.mubr.bf16.gmra.mrb[0].mxu0 %v7954
        %v8031 = vpop.f32.mrb[0].mxu0
        %v8032 = vadd.f32 0.0, %v8031
        %v8033 = vpop.f32.mrb[0].mxu0
        %v8034 = vpop.f32.mrb[0].mxu0
        %v8035 = vadd.f32 0.0, %v8034
        %v8036 = vpop.f32.mrb[0].mxu0
        %8037 = vmatprep.mubr.bf16.mxu0 0
        %8038 = vmatmul.mubr.bf16.gmra.mrb[0].mxu0 %v7957
        %v8039 = vpop.f32.mrb[0].mxu0
        %v8040 = vadd.f32 0.0, %v8039
        %v8041 = vpop.f32.mrb[0].mxu0
        %v8042 = vpop.f32.mrb[0].mxu0
        %v8043 = vadd.f32 0.0, %v8042
        %v8044 = vpop.f32.mrb[0].mxu0
        %8045 = vmatprep.mubr.bf16.mxu0 0
        %8046 = vmatmul.mubr.bf16.gmra.mrb[0].mxu0 %v7960
        %v8047 = vpop.f32.mrb[0].mxu0
        %v8048 = vadd.f32 0.0, %v8047
        %v8049 = vpop.f32.mrb[0].mxu0
        %v8050 = vpop.f32.mrb[0].mxu0
        %v8051 = vadd.f32 0.0, %v8050
        %v8052 = vpop.f32.mrb[0].mxu0
        %8053 = vmatprep.mubr.bf16.mxu0 0
        %8054 = vmatmul.mubr.bf16.gmra.mrb[0].mxu0 %v7963
        %v8055 = vpop.f32.mrb[0].mxu0
        %v8056 = vadd.f32 0.0, %v8055
        %v8057 = vpop.f32.mrb[0].mxu0
        %v8058 = vpop.f32.mrb[0].mxu0
        %v8059 = vadd.f32 0.0, %v8058
        %v8060 = vpop.f32.mrb[0].mxu0
        %8061 = vdwg.mxu0
        %v8062 = vadd.f32 %v7046, %v8000
        %v8063 = vadd.f32 %v7047, %v8003
        %v8064 = vadd.f32 %v7048, %v8008
        %v8065 = vadd.f32 %v7049, %v8011
        %v8066 = vadd.f32 %v7050, %v8016
        %v8067 = vadd.f32 %v7051, %v8019
        %v8068 = vadd.f32 %v7052, %v8024
        %v8069 = vadd.f32 %v7053, %v8027
        %v8070 = vadd.f32 %v7054, %v8032
        %v8071 = vadd.f32 %v7055, %v8035
        %v8072 = vadd.f32 %v7056, %v8040
        %v8073 = vadd.f32 %v7057, %v8043
        %v8074 = vadd.f32 %v7058, %v8048
        %v8075 = vadd.f32 %v7059, %v8051
        %v8076 = vadd.f32 %v7060, %v8056
        %v8077 = vadd.f32 %v7061, %v8059
        %8086 = vrot.lane.b32.xlu0 %v7233, 112
        %v8087 = vpop.permute.xlu0 %8086
        %8088 = vrot.lane.b32.xlu0 %v7234, 112
        %v8089 = vpop.permute.xlu0 %8088
        %8090 = vrot.lane.b32.xlu0 %v7235, 112
        %v8091 = vpop.permute.xlu0 %8090
        %8092 = vrot.lane.b32.xlu0 %v7236, 112
        %v8093 = vpop.permute.xlu0 %8092
        %8094 = vrot.lane.b32.xlu0 %v7237, 112
        %v8095 = vpop.permute.xlu0 %8094
        %8096 = vrot.lane.b32.xlu0 %v7238, 112
        %v8097 = vpop.permute.xlu0 %8096
        %8098 = vrot.lane.b32.xlu0 %v7239, 112
        %v8099 = vpop.permute.xlu0 %8098
        %8100 = vrot.lane.b32.xlu0 %v7240, 112
        %v8101 = vpop.permute.xlu0 %8100
        %8110 = vrot.lane.b32.xlu0 %v7371, 112
        %v8111 = vpop.permute.xlu0 %8110
        %8112 = vrot.lane.b32.xlu0 %v7372, 112
        %v8113 = vpop.permute.xlu0 %8112
        %8114 = vrot.lane.b32.xlu0 %v7373, 112
        %v8115 = vpop.permute.xlu0 %8114
        %8116 = vrot.lane.b32.xlu0 %v7374, 112
        %v8117 = vpop.permute.xlu0 %8116
        %8118 = vrot.lane.b32.xlu0 %v7375, 112
        %v8119 = vpop.permute.xlu0 %8118
        %8120 = vrot.lane.b32.xlu0 %v7376, 112
        %v8121 = vpop.permute.xlu0 %8120
        %8122 = vrot.lane.b32.xlu0 %v7377, 112
        %v8123 = vpop.permute.xlu0 %8122
        %8124 = vrot.lane.b32.xlu0 %v7378, 112
        %v8125 = vpop.permute.xlu0 %8124
        %v8127 = vsel %vm1734, %v8087, 0
        %v8130 = vsel %vm1734, %v8089, 0
        %v8133 = vsel %vm1734, %v8091, 0
        %v8136 = vsel %vm1734, %v8093, 0
        %v8139 = vsel %vm1734, %v8095, 0
        %v8142 = vsel %vm1734, %v8097, 0
        %v8145 = vsel %vm1734, %v8099, 0
        %v8148 = vsel %vm1734, %v8101, 0
        %v8151 = vsel %vm1734, %v8111, 0
        %v8154 = vsel %vm1734, %v8113, 0
        %v8157 = vsel %vm1734, %v8115, 0
        %v8160 = vsel %vm1734, %v8117, 0
        %v8163 = vsel %vm1734, %v8119, 0
        %v8166 = vsel %vm1734, %v8121, 0
        %v8169 = vsel %vm1734, %v8123, 0
        %v8172 = vsel %vm1734, %v8125, 0
        %8174 = vmatprep.subr.bf16.mxu0 0
        %8175 = vmatpush1.bf16.xpose.msra.mxu0 %v8151
        %8176 = vmatprep.subr.bf16.mxu0 0
        %8177 = vmatpush1.bf16.xpose.msra.mxu0 %v8154
        %8178 = vmatprep.subr.bf16.mxu0 0
        %8179 = vmatpush1.bf16.xpose.msra.mxu0 %v8157
        %8180 = vmatprep.subr.bf16.mxu0 0
        %8181 = vmatpush1.bf16.xpose.msra.mxu0 %v8160
        %8182 = vmatprep.subr.bf16.mxu0 0
        %8183 = vmatpush1.bf16.xpose.msra.mxu0 %v8163
        %8184 = vmatprep.subr.bf16.mxu0 0
        %8185 = vmatpush1.bf16.xpose.msra.mxu0 %v8166
        %8186 = vmatprep.subr.bf16.mxu0 0
        %8187 = vmatpush1.bf16.xpose.msra.mxu0 %v8169
        %8188 = vmatprep.subr.bf16.mxu0 0
        %8189 = vmatpush1.bf16.xpose.msra.mxu0 %v8172
        %8190 = vmatprep.subr.bf16.mxu0 0
        %8191 = vmatpush1.bf16.xpose.msra.mxu0 0
        %8192 = vmatprep.subr.bf16.mxu0 0
        %8193 = vmatpush1.bf16.xpose.msra.mxu0 0
        %8194 = vmatprep.subr.bf16.mxu0 0
        %8195 = vmatpush1.bf16.xpose.msra.mxu0 0
        %8196 = vmatprep.subr.bf16.mxu0 0
        %8197 = vmatpush1.bf16.xpose.msra.mxu0 0
        %8198 = vmatprep.subr.bf16.mxu0 0
        %8199 = vmatpush1.bf16.xpose.msra.mxu0 0
        %8200 = vmatprep.subr.bf16.mxu0 0
        %8201 = vmatpush1.bf16.xpose.msra.mxu0 0
        %8202 = vmatprep.subr.bf16.mxu0 0
        %8203 = vmatpush1.bf16.xpose.msra.mxu0 0
        %8204 = vmatprep.subr.bf16.mxu0 0
        %8205 = vmatpush1.bf16.xpose.msra.mxu0 0
        %8206 = vmatprep.mubr.bf16.mxu0 0
        %8207 = vmatmul.mubr.bf16.gmra.mrb[0].mxu0 %v8127
        %v8208 = vpop.f32.mrb[0].mxu0
        %v8209 = vadd.f32 %v960, %v8208
        %v8210 = vpop.f32.mrb[0].mxu0
        %v8211 = vpop.f32.mrb[0].mxu0
        %v8212 = vadd.f32 %v961, %v8211
        %v8213 = vpop.f32.mrb[0].mxu0
        %8214 = vmatprep.mubr.bf16.mxu0 0
        %8215 = vmatmul.mubr.bf16.gmra.mrb[0].mxu0 %v8130
        %v8216 = vpop.f32.mrb[0].mxu0
        %v8217 = vadd.f32 %v962, %v8216
        %v8218 = vpop.f32.mrb[0].mxu0
        %v8219 = vpop.f32.mrb[0].mxu0
        %v8220 = vadd.f32 %v963, %v8219
        %v8221 = vpop.f32.mrb[0].mxu0
        %8222 = vmatprep.mubr.bf16.mxu0 0
        %8223 = vmatmul.mubr.bf16.gmra.mrb[0].mxu0 %v8133
        %v8224 = vpop.f32.mrb[0].mxu0
        %v8225 = vadd.f32 %v964, %v8224
        %v8226 = vpop.f32.mrb[0].mxu0
        %v8227 = vpop.f32.mrb[0].mxu0
        %v8228 = vadd.f32 %v965, %v8227
        %v8229 = vpop.f32.mrb[0].mxu0
        %8230 = vmatprep.mubr.bf16.mxu0 0
        %8231 = vmatmul.mubr.bf16.gmra.mrb[0].mxu0 %v8136
        %v8232 = vpop.f32.mrb[0].mxu0
        %v8233 = vadd.f32 %v966, %v8232
        %v8234 = vpop.f32.mrb[0].mxu0
        %v8235 = vpop.f32.mrb[0].mxu0
        %v8236 = vadd.f32 %v967, %v8235
        %v8237 = vpop.f32.mrb[0].mxu0
        %8238 = vmatprep.mubr.bf16.mxu0 0
        %8239 = vmatmul.mubr.bf16.gmra.mrb[0].mxu0 %v8139
        %v8240 = vpop.f32.mrb[0].mxu0
        %v8241 = vadd.f32 %v968, %v8240
        %v8242 = vpop.f32.mrb[0].mxu0
        %v8243 = vpop.f32.mrb[0].mxu0
        %v8244 = vadd.f32 %v969, %v8243
        %v8245 = vpop.f32.mrb[0].mxu0
        %8246 = vmatprep.mubr.bf16.mxu0 0
        %8247 = vmatmul.mubr.bf16.gmra.mrb[0].mxu0 %v8142
        %v8248 = vpop.f32.mrb[0].mxu0
        %v8249 = vadd.f32 %v970, %v8248
        %v8250 = vpop.f32.mrb[0].mxu0
        %v8251 = vpop.f32.mrb[0].mxu0
        %v8252 = vadd.f32 %v971, %v8251
        %v8253 = vpop.f32.mrb[0].mxu0
        %8254 = vmatprep.mubr.bf16.mxu0 0
        %8255 = vmatmul.mubr.bf16.gmra.mrb[0].mxu0 %v8145
        %v8256 = vpop.f32.mrb[0].mxu0
        %v8257 = vadd.f32 %v972, %v8256
        %v8258 = vpop.f32.mrb[0].mxu0
        %v8259 = vpop.f32.mrb[0].mxu0
        %v8260 = vadd.f32 %v973, %v8259
        %v8261 = vpop.f32.mrb[0].mxu0
        %8262 = vmatprep.mubr.bf16.mxu0 0
        %8263 = vmatmul.mubr.bf16.gmra.mrb[0].mxu0 %v8148
        %v8264 = vpop.f32.mrb[0].mxu0
        %v8265 = vadd.f32 %v974, %v8264
        %v8266 = vpop.f32.mrb[0].mxu0
        %v8267 = vpop.f32.mrb[0].mxu0
        %v8268 = vadd.f32 %v975, %v8267
        %v8269 = vpop.f32.mrb[0].mxu0
        %8270 = vdwg.mxu0
        %8271 = vmax.xlane.f32.xlu0 %v8209
        %v8272 = vpop.xlane.xlu0 %8271
        %8273 = vmax.xlane.f32.xlu0 %v8212
        %v8274 = vpop.xlane.xlu0 %8273
        %8275 = vmax.xlane.f32.xlu0 %v8217
        %v8276 = vpop.xlane.xlu0 %8275
        %8277 = vmax.xlane.f32.xlu0 %v8220
        %v8278 = vpop.xlane.xlu0 %8277
        %8279 = vmax.xlane.f32.xlu0 %v8225
        %v8280 = vpop.xlane.xlu0 %8279
        %8281 = vmax.xlane.f32.xlu0 %v8228
        %v8282 = vpop.xlane.xlu0 %8281
        %8283 = vmax.xlane.f32.xlu0 %v8233
        %v8284 = vpop.xlane.xlu0 %8283
        %8285 = vmax.xlane.f32.xlu0 %v8236
        %v8286 = vpop.xlane.xlu0 %8285
        %8287 = vmax.xlane.f32.xlu0 %v8241
        %v8288 = vpop.xlane.xlu0 %8287
        %8289 = vmax.xlane.f32.xlu0 %v8244
        %v8290 = vpop.xlane.xlu0 %8289
        %8291 = vmax.xlane.f32.xlu0 %v8249
        %v8292 = vpop.xlane.xlu0 %8291
        %8293 = vmax.xlane.f32.xlu0 %v8252
        %v8294 = vpop.xlane.xlu0 %8293
        %8295 = vmax.xlane.f32.xlu0 %v8257
        %v8296 = vpop.xlane.xlu0 %8295
        %8297 = vmax.xlane.f32.xlu0 %v8260
        %v8298 = vpop.xlane.xlu0 %8297
        %8299 = vmax.xlane.f32.xlu0 %v8265
        %v8300 = vpop.xlane.xlu0 %8299
        %8301 = vmax.xlane.f32.xlu0 %v8268
        %v8302 = vpop.xlane.xlu0 %8301
        %v8303 = vsub.f32 %v8209, %v8272
        %v8304 = vsub.f32 %v8212, %v8274
        %v8305 = vsub.f32 %v8217, %v8276
        %v8306 = vsub.f32 %v8220, %v8278
        %v8307 = vsub.f32 %v8225, %v8280
        %v8308 = vsub.f32 %v8228, %v8282
        %v8309 = vsub.f32 %v8233, %v8284
        %v8310 = vsub.f32 %v8236, %v8286
        %v8311 = vsub.f32 %v8241, %v8288
        %v8312 = vsub.f32 %v8244, %v8290
        %v8313 = vsub.f32 %v8249, %v8292
        %v8314 = vsub.f32 %v8252, %v8294
        %v8315 = vsub.f32 %v8257, %v8296
        %v8316 = vsub.f32 %v8260, %v8298
        %v8317 = vsub.f32 %v8265, %v8300
        %v8318 = vsub.f32 %v8268, %v8302
        %v8319 = vmul.f32 %v8303, 1.442695
        %v8320 = vpow.pop %v8319
        %v8321 = vmul.f32 %v8304, 1.442695
        %v8322 = vpow.pop %v8321
        %v8323 = vmul.f32 %v8305, 1.442695
        %v8324 = vpow.pop %v8323
        %v8325 = vmul.f32 %v8306, 1.442695
        %v8326 = vpow.pop %v8325
        %v8327 = vmul.f32 %v8307, 1.442695
        %v8328 = vpow.pop %v8327
        %v8329 = vmul.f32 %v8308, 1.442695
        %v8330 = vpow.pop %v8329
        %v8331 = vmul.f32 %v8309, 1.442695
        %v8332 = vpow.pop %v8331
        %v8333 = vmul.f32 %v8310, 1.442695
        %v8334 = vpow.pop %v8333
        %v8335 = vmul.f32 %v8311, 1.442695
        %v8336 = vpow.pop %v8335
        %v8337 = vmul.f32 %v8312, 1.442695
        %v8338 = vpow.pop %v8337
        %v8339 = vmul.f32 %v8313, 1.442695
        %v8340 = vpow.pop %v8339
        %v8341 = vmul.f32 %v8314, 1.442695
        %v8342 = vpow.pop %v8341
        %v8343 = vmul.f32 %v8315, 1.442695
        %v8344 = vpow.pop %v8343
        %v8345 = vmul.f32 %v8316, 1.442695
        %v8346 = vpow.pop %v8345
        %v8347 = vmul.f32 %v8317, 1.442695
        %v8348 = vpow.pop %v8347
        %v8349 = vmul.f32 %v8318, 1.442695
        %v8350 = vpow.pop %v8349
        %8351 = vadd.xlane.f32.xlu0 %v8320
        %v8352 = vpop.xlane.xlu0 %8351
        %8353 = vadd.xlane.f32.xlu0 %v8322
        %v8354 = vpop.xlane.xlu0 %8353
        %8355 = vadd.xlane.f32.xlu0 %v8324
        %v8356 = vpop.xlane.xlu0 %8355
        %8357 = vadd.xlane.f32.xlu0 %v8326
        %v8358 = vpop.xlane.xlu0 %8357
        %8359 = vadd.xlane.f32.xlu0 %v8328
        %v8360 = vpop.xlane.xlu0 %8359
        %8361 = vadd.xlane.f32.xlu0 %v8330
        %v8362 = vpop.xlane.xlu0 %8361
        %8363 = vadd.xlane.f32.xlu0 %v8332
        %v8364 = vpop.xlane.xlu0 %8363
        %8365 = vadd.xlane.f32.xlu0 %v8334
        %v8366 = vpop.xlane.xlu0 %8365
        %8367 = vadd.xlane.f32.xlu0 %v8336
        %v8368 = vpop.xlane.xlu0 %8367
        %8369 = vadd.xlane.f32.xlu0 %v8338
        %v8370 = vpop.xlane.xlu0 %8369
        %8371 = vadd.xlane.f32.xlu0 %v8340
        %v8372 = vpop.xlane.xlu0 %8371
        %8373 = vadd.xlane.f32.xlu0 %v8342
        %v8374 = vpop.xlane.xlu0 %8373
        %8375 = vadd.xlane.f32.xlu0 %v8344
        %v8376 = vpop.xlane.xlu0 %8375
        %8377 = vadd.xlane.f32.xlu0 %v8346
        %v8378 = vpop.xlane.xlu0 %8377
        %8379 = vadd.xlane.f32.xlu0 %v8348
        %v8380 = vpop.xlane.xlu0 %8379
        %8381 = vadd.xlane.f32.xlu0 %v8350
        %v8382 = vpop.xlane.xlu0 %8381
        %v8383 = vrcp.pop %v8352
        %v8384 = vmul.f32 %v1010, %v8383
        %v8385 = vrcp.pop %v8354
        %v8386 = vmul.f32 %v1013, %v8385
        %v8387 = vrcp.pop %v8356
        %v8388 = vmul.f32 %v1016, %v8387
        %v8389 = vrcp.pop %v8358
        %v8390 = vmul.f32 %v1019, %v8389
        %v8391 = vrcp.pop %v8360
        %v8392 = vmul.f32 %v1022, %v8391
        %v8393 = vrcp.pop %v8362
        %v8394 = vmul.f32 %v1025, %v8393
        %v8395 = vrcp.pop %v8364
        %v8396 = vmul.f32 %v1028, %v8395
        %v8397 = vrcp.pop %v8366
        %v8398 = vmul.f32 %v1031, %v8397
        %v8399 = vrcp.pop %v8368
        %v8400 = vmul.f32 %v1034, %v8399
        %v8401 = vrcp.pop %v8370
        %v8402 = vmul.f32 %v1037, %v8401
        %v8403 = vrcp.pop %v8372
        %v8404 = vmul.f32 %v1040, %v8403
        %v8405 = vrcp.pop %v8374
        %v8406 = vmul.f32 %v1043, %v8405
        %v8407 = vrcp.pop %v8376
        %v8408 = vmul.f32 %v1046, %v8407
        %v8409 = vrcp.pop %v8378
        %v8410 = vmul.f32 %v1049, %v8409
        %v8411 = vrcp.pop %v8380
        %v8412 = vmul.f32 %v1052, %v8411
        %v8413 = vrcp.pop %v8382
        %v8414 = vmul.f32 %v1055, %v8413
        %v8415 = vpack.c.bf16 %v8322, %v8320
        %v8416 = vpack.c.bf16 %v8326, %v8324
        %v8417 = vpack.c.bf16 %v8330, %v8328
        %v8418 = vpack.c.bf16 %v8334, %v8332
        %v8419 = vpack.c.bf16 %v8338, %v8336
        %v8420 = vpack.c.bf16 %v8342, %v8340
        %v8421 = vpack.c.bf16 %v8346, %v8344
        %v8422 = vpack.c.bf16 %v8350, %v8348
        %8431 = vrot.lane.b32.xlu0 %v7509, 112
        %v8432 = vpop.permute.xlu0 %8431
        %8433 = vrot.lane.b32.xlu0 %v7510, 112
        %v8434 = vpop.permute.xlu0 %8433
        %8435 = vrot.lane.b32.xlu0 %v7511, 112
        %v8436 = vpop.permute.xlu0 %8435
        %8437 = vrot.lane.b32.xlu0 %v7512, 112
        %v8438 = vpop.permute.xlu0 %8437
        %8439 = vrot.lane.b32.xlu0 %v7513, 112
        %v8440 = vpop.permute.xlu0 %8439
        %8441 = vrot.lane.b32.xlu0 %v7514, 112
        %v8442 = vpop.permute.xlu0 %8441
        %8443 = vrot.lane.b32.xlu0 %v7515, 112
        %v8444 = vpop.permute.xlu0 %8443
        %8445 = vrot.lane.b32.xlu0 %v7516, 112
        %v8446 = vpop.permute.xlu0 %8445
        %8455 = vmatprep.subr.bf16.mxu0 0
        %8456 = vmatpush1.bf16.msra.mxu0 %v8432
        %8457 = vmatprep.subr.bf16.mxu0 0
        %8458 = vmatpush1.bf16.msra.mxu0 %v8434
        %8459 = vmatprep.subr.bf16.mxu0 0
        %8460 = vmatpush1.bf16.msra.mxu0 %v8436
        %8461 = vmatprep.subr.bf16.mxu0 0
        %8462 = vmatpush1.bf16.msra.mxu0 %v8438
        %8463 = vmatprep.subr.bf16.mxu0 0
        %8464 = vmatpush1.bf16.msra.mxu0 %v8440
        %8465 = vmatprep.subr.bf16.mxu0 0
        %8466 = vmatpush1.bf16.msra.mxu0 %v8442
        %8467 = vmatprep.subr.bf16.mxu0 0
        %8468 = vmatpush1.bf16.msra.mxu0 %v8444
        %8469 = vmatprep.subr.bf16.mxu0 0
        %8470 = vmatpush1.bf16.msra.mxu0 %v8446
        %8471 = vmatprep.subr.bf16.mxu0 0
        %8472 = vmatpush1.bf16.msra.mxu0 0
        %8473 = vmatprep.subr.bf16.mxu0 0
        %8474 = vmatpush1.bf16.msra.mxu0 0
        %8475 = vmatprep.subr.bf16.mxu0 0
        %8476 = vmatpush1.bf16.msra.mxu0 0
        %8477 = vmatprep.subr.bf16.mxu0 0
        %8478 = vmatpush1.bf16.msra.mxu0 0
        %8479 = vmatprep.subr.bf16.mxu0 0
        %8480 = vmatpush1.bf16.msra.mxu0 0
        %8481 = vmatprep.subr.bf16.mxu0 0
        %8482 = vmatpush1.bf16.msra.mxu0 0
        %8483 = vmatprep.subr.bf16.mxu0 0
        %8484 = vmatpush1.bf16.msra.mxu0 0
        %8485 = vmatprep.subr.bf16.mxu0 0
        %8486 = vmatpush1.bf16.msra.mxu0 0
        %8487 = vmatprep.mubr.bf16.mxu0 0
        %8488 = vmatmul.mubr.bf16.gmra.mrb[0].mxu0 %v8415
        %v8489 = vpop.f32.mrb[0].mxu0
        %v8490 = vadd.f32 0.0, %v8489
        %v8491 = vpop.f32.mrb[0].mxu0
        %v8492 = vpop.f32.mrb[0].mxu0
        %v8493 = vadd.f32 0.0, %v8492
        %v8494 = vpop.f32.mrb[0].mxu0
        %8495 = vmatprep.mubr.bf16.mxu0 0
        %8496 = vmatmul.mubr.bf16.gmra.mrb[0].mxu0 %v8416
        %v8497 = vpop.f32.mrb[0].mxu0
        %v8498 = vadd.f32 0.0, %v8497
        %v8499 = vpop.f32.mrb[0].mxu0
        %v8500 = vpop.f32.mrb[0].mxu0
        %v8501 = vadd.f32 0.0, %v8500
        %v8502 = vpop.f32.mrb[0].mxu0
        %8503 = vmatprep.mubr.bf16.mxu0 0
        %8504 = vmatmul.mubr.bf16.gmra.mrb[0].mxu0 %v8417
        %v8505 = vpop.f32.mrb[0].mxu0
        %v8506 = vadd.f32 0.0, %v8505
        %v8507 = vpop.f32.mrb[0].mxu0
        %v8508 = vpop.f32.mrb[0].mxu0
        %v8509 = vadd.f32 0.0, %v8508
        %v8510 = vpop.f32.mrb[0].mxu0
        %8511 = vmatprep.mubr.bf16.mxu0 0
        %8512 = vmatmul.mubr.bf16.gmra.mrb[0].mxu0 %v8418
        %v8513 = vpop.f32.mrb[0].mxu0
        %v8514 = vadd.f32 0.0, %v8513
        %v8515 = vpop.f32.mrb[0].mxu0
        %v8516 = vpop.f32.mrb[0].mxu0
        %v8517 = vadd.f32 0.0, %v8516
        %v8518 = vpop.f32.mrb[0].mxu0
        %8519 = vmatprep.mubr.bf16.mxu0 0
        %8520 = vmatmul.mubr.bf16.gmra.mrb[0].mxu0 %v8419
        %v8521 = vpop.f32.mrb[0].mxu0
        %v8522 = vadd.f32 0.0, %v8521
        %v8523 = vpop.f32.mrb[0].mxu0
        %v8524 = vpop.f32.mrb[0].mxu0
        %v8525 = vadd.f32 0.0, %v8524
        %v8526 = vpop.f32.mrb[0].mxu0
        %8527 = vmatprep.mubr.bf16.mxu0 0
        %8528 = vmatmul.mubr.bf16.gmra.mrb[0].mxu0 %v8420
        %v8529 = vpop.f32.mrb[0].mxu0
        %v8530 = vadd.f32 0.0, %v8529
        %v8531 = vpop.f32.mrb[0].mxu0
        %v8532 = vpop.f32.mrb[0].mxu0
        %v8533 = vadd.f32 0.0, %v8532
        %v8534 = vpop.f32.mrb[0].mxu0
        %8535 = vmatprep.mubr.bf16.mxu0 0
        %8536 = vmatmul.mubr.bf16.gmra.mrb[0].mxu0 %v8421
        %v8537 = vpop.f32.mrb[0].mxu0
        %v8538 = vadd.f32 0.0, %v8537
        %v8539 = vpop.f32.mrb[0].mxu0
        %v8540 = vpop.f32.mrb[0].mxu0
        %v8541 = vadd.f32 0.0, %v8540
        %v8542 = vpop.f32.mrb[0].mxu0
        %8543 = vmatprep.mubr.bf16.mxu0 0
        %8544 = vmatmul.mubr.bf16.gmra.mrb[0].mxu0 %v8422
        %v8545 = vpop.f32.mrb[0].mxu0
        %v8546 = vadd.f32 0.0, %v8545
        %v8547 = vpop.f32.mrb[0].mxu0
        %v8548 = vpop.f32.mrb[0].mxu0
        %v8549 = vadd.f32 0.0, %v8548
        %v8550 = vpop.f32.mrb[0].mxu0
        %8551 = vdwg.mxu0
        %v8552 = vmul.f32 %v8490, %v8384
        %v8553 = vmul.f32 %v8493, %v8386
        %v8554 = vmul.f32 %v8498, %v8388
        %v8555 = vmul.f32 %v8501, %v8390
        %v8556 = vmul.f32 %v8506, %v8392
        %v8557 = vmul.f32 %v8509, %v8394
        %v8558 = vmul.f32 %v8514, %v8396
        %v8559 = vmul.f32 %v8517, %v8398
        %v8560 = vmul.f32 %v8522, %v8400
        %v8561 = vmul.f32 %v8525, %v8402
        %v8562 = vmul.f32 %v8530, %v8404
        %v8563 = vmul.f32 %v8533, %v8406
        %v8564 = vmul.f32 %v8538, %v8408
        %v8565 = vmul.f32 %v8541, %v8410
        %v8566 = vmul.f32 %v8546, %v8412
        %v8567 = vmul.f32 %v8549, %v8414
        %v8568 = vpack.c.bf16 %v8553, %v8552
        %v8569 = vpack.c.bf16 %v8555, %v8554
        %v8570 = vpack.c.bf16 %v8557, %v8556
        %v8571 = vpack.c.bf16 %v8559, %v8558
        %v8572 = vpack.c.bf16 %v8561, %v8560
        %v8573 = vpack.c.bf16 %v8563, %v8562
        %v8574 = vpack.c.bf16 %v8565, %v8564
        %v8575 = vpack.c.bf16 %v8567, %v8566
        %v8578 = vunpack.c.l.b16 %v7073
        %v8579 = vunpack.c.l.b16 %v7074
        %v8580 = vpack.c.b16 %v8579, %v8578
        %v8583 = vsel %vm1734, %v8568, 0
        %v8586 = vsel %vm1734, %v8569, 0
        %v8589 = vsel %vm1734, %v8570, 0
        %v8592 = vsel %vm1734, %v8571, 0
        %v8595 = vsel %vm1734, %v8572, 0
        %v8598 = vsel %vm1734, %v8573, 0
        %v8601 = vsel %vm1734, %v8574, 0
        %v8604 = vsel %vm1734, %v8575, 0
        %8606 = vmatprep.subr.bf16.mxu0 0
        %8607 = vmatpush1.bf16.msra.mxu0 %v8580
        %8608 = vmatprep.subr.bf16.mxu0 0
        %8609 = vmatpush1.bf16.msra.mxu0 0
        %8610 = vmatprep.subr.bf16.mxu0 0
        %8611 = vmatpush1.bf16.msra.mxu0 0
        %8612 = vmatprep.subr.bf16.mxu0 0
        %8613 = vmatpush1.bf16.msra.mxu0 0
        %8614 = vmatprep.subr.bf16.mxu0 0
        %8615 = vmatpush1.bf16.msra.mxu0 0
        %8616 = vmatprep.subr.bf16.mxu0 0
        %8617 = vmatpush1.bf16.msra.mxu0 0
        %8618 = vmatprep.subr.bf16.mxu0 0
        %8619 = vmatpush1.bf16.msra.mxu0 0
        %8620 = vmatprep.subr.bf16.mxu0 0
        %8621 = vmatpush1.bf16.msra.mxu0 0
        %8622 = vmatprep.subr.bf16.mxu0 0
        %8623 = vmatpush1.bf16.msra.mxu0 0
        %8624 = vmatprep.subr.bf16.mxu0 0
        %8625 = vmatpush1.bf16.msra.mxu0 0
        %8626 = vmatprep.subr.bf16.mxu0 0
        %8627 = vmatpush1.bf16.msra.mxu0 0
        %8628 = vmatprep.subr.bf16.mxu0 0
        %8629 = vmatpush1.bf16.msra.mxu0 0
        %8630 = vmatprep.subr.bf16.mxu0 0
        %8631 = vmatpush1.bf16.msra.mxu0 0
        %8632 = vmatprep.subr.bf16.mxu0 0
        %8633 = vmatpush1.bf16.msra.mxu0 0
        %8634 = vmatprep.subr.bf16.mxu0 0
        %8635 = vmatpush1.bf16.msra.mxu0 0
        %8636 = vmatprep.subr.bf16.mxu0 0
        %8637 = vmatpush1.bf16.msra.mxu0 0
        %8638 = vmatprep.mubr.bf16.mxu0 0
        %8639 = vmatmul.mubr.bf16.gmra.mrb[0].mxu0 %v8583
        %v8640 = vpop.f32.mrb[0].mxu0
        %v8641 = vadd.f32 0.0, %v8640
        %v8642 = vpop.f32.mrb[0].mxu0
        %v8643 = vpop.f32.mrb[0].mxu0
        %v8644 = vadd.f32 0.0, %v8643
        %v8645 = vpop.f32.mrb[0].mxu0
        %8646 = vmatprep.mubr.bf16.mxu0 0
        %8647 = vmatmul.mubr.bf16.gmra.mrb[0].mxu0 %v8586
        %v8648 = vpop.f32.mrb[0].mxu0
        %v8649 = vadd.f32 0.0, %v8648
        %v8650 = vpop.f32.mrb[0].mxu0
        %v8651 = vpop.f32.mrb[0].mxu0
        %v8652 = vadd.f32 0.0, %v8651
        %v8653 = vpop.f32.mrb[0].mxu0
        %8654 = vmatprep.mubr.bf16.mxu0 0
        %8655 = vmatmul.mubr.bf16.gmra.mrb[0].mxu0 %v8589
        %v8656 = vpop.f32.mrb[0].mxu0
        %v8657 = vadd.f32 0.0, %v8656
        %v8658 = vpop.f32.mrb[0].mxu0
        %v8659 = vpop.f32.mrb[0].mxu0
        %v8660 = vadd.f32 0.0, %v8659
        %v8661 = vpop.f32.mrb[0].mxu0
        %8662 = vmatprep.mubr.bf16.mxu0 0
        %8663 = vmatmul.mubr.bf16.gmra.mrb[0].mxu0 %v8592
        %v8664 = vpop.f32.mrb[0].mxu0
        %v8665 = vadd.f32 0.0, %v8664
        %v8666 = vpop.f32.mrb[0].mxu0
        %v8667 = vpop.f32.mrb[0].mxu0
        %v8668 = vadd.f32 0.0, %v8667
        %v8669 = vpop.f32.mrb[0].mxu0
        %8670 = vmatprep.mubr.bf16.mxu0 0
        %8671 = vmatmul.mubr.bf16.gmra.mrb[0].mxu0 %v8595
        %v8672 = vpop.f32.mrb[0].mxu0
        %v8673 = vadd.f32 0.0, %v8672
        %v8674 = vpop.f32.mrb[0].mxu0
        %v8675 = vpop.f32.mrb[0].mxu0
        %v8676 = vadd.f32 0.0, %v8675
        %v8677 = vpop.f32.mrb[0].mxu0
        %8678 = vmatprep.mubr.bf16.mxu0 0
        %8679 = vmatmul.mubr.bf16.gmra.mrb[0].mxu0 %v8598
        %v8680 = vpop.f32.mrb[0].mxu0
        %v8681 = vadd.f32 0.0, %v8680
        %v8682 = vpop.f32.mrb[0].mxu0
        %v8683 = vpop.f32.mrb[0].mxu0
        %v8684 = vadd.f32 0.0, %v8683
        %v8685 = vpop.f32.mrb[0].mxu0
        %8686 = vmatprep.mubr.bf16.mxu0 0
        %8687 = vmatmul.mubr.bf16.gmra.mrb[0].mxu0 %v8601
        %v8688 = vpop.f32.mrb[0].mxu0
        %v8689 = vadd.f32 0.0, %v8688
        %v8690 = vpop.f32.mrb[0].mxu0
        %v8691 = vpop.f32.mrb[0].mxu0
        %v8692 = vadd.f32 0.0, %v8691
        %v8693 = vpop.f32.mrb[0].mxu0
        %8694 = vmatprep.mubr.bf16.mxu0 0
        %8695 = vmatmul.mubr.bf16.gmra.mrb[0].mxu0 %v8604
        %v8696 = vpop.f32.mrb[0].mxu0
        %v8697 = vadd.f32 0.0, %v8696
        %v8698 = vpop.f32.mrb[0].mxu0
        %v8699 = vpop.f32.mrb[0].mxu0
        %v8700 = vadd.f32 0.0, %v8699
        %v8701 = vpop.f32.mrb[0].mxu0
        %8702 = vdwg.mxu0
        %v8703 = vadd.f32 %v8062, %v8641
        %v8704 = vadd.f32 %v8063, %v8644
        %v8705 = vadd.f32 %v8064, %v8649
        %v8706 = vadd.f32 %v8065, %v8652
        %v8707 = vadd.f32 %v8066, %v8657
        %v8708 = vadd.f32 %v8067, %v8660
        %v8709 = vadd.f32 %v8068, %v8665
        %v8710 = vadd.f32 %v8069, %v8668
        %v8711 = vadd.f32 %v8070, %v8673
        %v8712 = vadd.f32 %v8071, %v8676
        %v8713 = vadd.f32 %v8072, %v8681
        %v8714 = vadd.f32 %v8073, %v8684
        %v8715 = vadd.f32 %v8074, %v8689
        %v8716 = vadd.f32 %v8075, %v8692
        %v8717 = vadd.f32 %v8076, %v8697
        %v8718 = vadd.f32 %v8077, %v8700
        %8719 = vrot.lane.b32.xlu0 %v7233, 96
        %v8720 = vpop.permute.xlu0 %8719
        %8721 = vrot.lane.b32.xlu0 %v7234, 96
        %v8722 = vpop.permute.xlu0 %8721
        %8723 = vrot.lane.b32.xlu0 %v7235, 96
        %v8724 = vpop.permute.xlu0 %8723
        %8725 = vrot.lane.b32.xlu0 %v7236, 96
        %v8726 = vpop.permute.xlu0 %8725
        %8727 = vrot.lane.b32.xlu0 %v7237, 96
        %v8728 = vpop.permute.xlu0 %8727
        %8729 = vrot.lane.b32.xlu0 %v7238, 96
        %v8730 = vpop.permute.xlu0 %8729
        %8731 = vrot.lane.b32.xlu0 %v7239, 96
        %v8732 = vpop.permute.xlu0 %8731
        %8733 = vrot.lane.b32.xlu0 %v7240, 96
        %v8734 = vpop.permute.xlu0 %8733
        %8735 = vrot.lane.b32.xlu0 %v7371, 96
        %v8736 = vpop.permute.xlu0 %8735
        %8737 = vrot.lane.b32.xlu0 %v7372, 96
        %v8738 = vpop.permute.xlu0 %8737
        %8739 = vrot.lane.b32.xlu0 %v7373, 96
        %v8740 = vpop.permute.xlu0 %8739
        %8741 = vrot.lane.b32.xlu0 %v7374, 96
        %v8742 = vpop.permute.xlu0 %8741
        %8743 = vrot.lane.b32.xlu0 %v7375, 96
        %v8744 = vpop.permute.xlu0 %8743
        %8745 = vrot.lane.b32.xlu0 %v7376, 96
        %v8746 = vpop.permute.xlu0 %8745
        %8747 = vrot.lane.b32.xlu0 %v7377, 96
        %v8748 = vpop.permute.xlu0 %8747
        %8749 = vrot.lane.b32.xlu0 %v7378, 96
        %v8750 = vpop.permute.xlu0 %8749
        %v8752 = vsel %vm1734, %v8720, 0
        %v8755 = vsel %vm1734, %v8722, 0
        %v8758 = vsel %vm1734, %v8724, 0
        %v8761 = vsel %vm1734, %v8726, 0
        %v8764 = vsel %vm1734, %v8728, 0
        %v8767 = vsel %vm1734, %v8730, 0
        %v8770 = vsel %vm1734, %v8732, 0
        %v8773 = vsel %vm1734, %v8734, 0
        %v8776 = vsel %vm1734, %v8736, 0
        %v8779 = vsel %vm1734, %v8738, 0
        %v8782 = vsel %vm1734, %v8740, 0
        %v8785 = vsel %vm1734, %v8742, 0
        %v8788 = vsel %vm1734, %v8744, 0
        %v8791 = vsel %vm1734, %v8746, 0
        %v8794 = vsel %vm1734, %v8748, 0
        %v8797 = vsel %vm1734, %v8750, 0
        %8799 = vmatprep.subr.bf16.mxu0 0
        %8800 = vmatpush1.bf16.xpose.msra.mxu0 %v8776
        %8801 = vmatprep.subr.bf16.mxu0 0
        %8802 = vmatpush1.bf16.xpose.msra.mxu0 %v8779
        %8803 = vmatprep.subr.bf16.mxu0 0
        %8804 = vmatpush1.bf16.xpose.msra.mxu0 %v8782
        %8805 = vmatprep.subr.bf16.mxu0 0
        %8806 = vmatpush1.bf16.xpose.msra.mxu0 %v8785
        %8807 = vmatprep.subr.bf16.mxu0 0
        %8808 = vmatpush1.bf16.xpose.msra.mxu0 %v8788
        %8809 = vmatprep.subr.bf16.mxu0 0
        %8810 = vmatpush1.bf16.xpose.msra.mxu0 %v8791
        %8811 = vmatprep.subr.bf16.mxu0 0
        %8812 = vmatpush1.bf16.xpose.msra.mxu0 %v8794
        %8813 = vmatprep.subr.bf16.mxu0 0
        %8814 = vmatpush1.bf16.xpose.msra.mxu0 %v8797
        %8815 = vmatprep.subr.bf16.mxu0 0
        %8816 = vmatpush1.bf16.xpose.msra.mxu0 0
        %8817 = vmatprep.subr.bf16.mxu0 0
        %8818 = vmatpush1.bf16.xpose.msra.mxu0 0
        %8819 = vmatprep.subr.bf16.mxu0 0
        %8820 = vmatpush1.bf16.xpose.msra.mxu0 0
        %8821 = vmatprep.subr.bf16.mxu0 0
        %8822 = vmatpush1.bf16.xpose.msra.mxu0 0
        %8823 = vmatprep.subr.bf16.mxu0 0
        %8824 = vmatpush1.bf16.xpose.msra.mxu0 0
        %8825 = vmatprep.subr.bf16.mxu0 0
        %8826 = vmatpush1.bf16.xpose.msra.mxu0 0
        %8827 = vmatprep.subr.bf16.mxu0 0
        %8828 = vmatpush1.bf16.xpose.msra.mxu0 0
        %8829 = vmatprep.subr.bf16.mxu0 0
        %8830 = vmatpush1.bf16.xpose.msra.mxu0 0
        %8831 = vmatprep.mubr.bf16.mxu0 0
        %8832 = vmatmul.mubr.bf16.gmra.mrb[0].mxu0 %v8752
        %v8833 = vpop.f32.mrb[0].mxu0
        %v8834 = vadd.f32 %v960, %v8833
        %v8835 = vpop.f32.mrb[0].mxu0
        %v8836 = vpop.f32.mrb[0].mxu0
        %v8837 = vadd.f32 %v961, %v8836
        %v8838 = vpop.f32.mrb[0].mxu0
        %8839 = vmatprep.mubr.bf16.mxu0 0
        %8840 = vmatmul.mubr.bf16.gmra.mrb[0].mxu0 %v8755
        %v8841 = vpop.f32.mrb[0].mxu0
        %v8842 = vadd.f32 %v962, %v8841
        %v8843 = vpop.f32.mrb[0].mxu0
        %v8844 = vpop.f32.mrb[0].mxu0
        %v8845 = vadd.f32 %v963, %v8844
        %v8846 = vpop.f32.mrb[0].mxu0
        %8847 = vmatprep.mubr.bf16.mxu0 0
        %8848 = vmatmul.mubr.bf16.gmra.mrb[0].mxu0 %v8758
        %v8849 = vpop.f32.mrb[0].mxu0
        %v8850 = vadd.f32 %v964, %v8849
        %v8851 = vpop.f32.mrb[0].mxu0
        %v8852 = vpop.f32.mrb[0].mxu0
        %v8853 = vadd.f32 %v965, %v8852
        %v8854 = vpop.f32.mrb[0].mxu0
        %8855 = vmatprep.mubr.bf16.mxu0 0
        %8856 = vmatmul.mubr.bf16.gmra.mrb[0].mxu0 %v8761
        %v8857 = vpop.f32.mrb[0].mxu0
        %v8858 = vadd.f32 %v966, %v8857
        %v8859 = vpop.f32.mrb[0].mxu0
        %v8860 = vpop.f32.mrb[0].mxu0
        %v8861 = vadd.f32 %v967, %v8860
        %v8862 = vpop.f32.mrb[0].mxu0
        %8863 = vmatprep.mubr.bf16.mxu0 0
        %8864 = vmatmul.mubr.bf16.gmra.mrb[0].mxu0 %v8764
        %v8865 = vpop.f32.mrb[0].mxu0
        %v8866 = vadd.f32 %v968, %v8865
        %v8867 = vpop.f32.mrb[0].mxu0
        %v8868 = vpop.f32.mrb[0].mxu0
        %v8869 = vadd.f32 %v969, %v8868
        %v8870 = vpop.f32.mrb[0].mxu0
        %8871 = vmatprep.mubr.bf16.mxu0 0
        %8872 = vmatmul.mubr.bf16.gmra.mrb[0].mxu0 %v8767
        %v8873 = vpop.f32.mrb[0].mxu0
        %v8874 = vadd.f32 %v970, %v8873
        %v8875 = vpop.f32.mrb[0].mxu0
        %v8876 = vpop.f32.mrb[0].mxu0
        %v8877 = vadd.f32 %v971, %v8876
        %v8878 = vpop.f32.mrb[0].mxu0
        %8879 = vmatprep.mubr.bf16.mxu0 0
        %8880 = vmatmul.mubr.bf16.gmra.mrb[0].mxu0 %v8770
        %v8881 = vpop.f32.mrb[0].mxu0
        %v8882 = vadd.f32 %v972, %v8881
        %v8883 = vpop.f32.mrb[0].mxu0
        %v8884 = vpop.f32.mrb[0].mxu0
        %v8885 = vadd.f32 %v973, %v8884
        %v8886 = vpop.f32.mrb[0].mxu0
        %8887 = vmatprep.mubr.bf16.mxu0 0
        %8888 = vmatmul.mubr.bf16.gmra.mrb[0].mxu0 %v8773
        %v8889 = vpop.f32.mrb[0].mxu0
        %v8890 = vadd.f32 %v974, %v8889
        %v8891 = vpop.f32.mrb[0].mxu0
        %v8892 = vpop.f32.mrb[0].mxu0
        %v8893 = vadd.f32 %v975, %v8892
        %v8894 = vpop.f32.mrb[0].mxu0
        %8895 = vdwg.mxu0
        %8896 = vmax.xlane.f32.xlu0 %v8834
        %v8897 = vpop.xlane.xlu0 %8896
        %8898 = vmax.xlane.f32.xlu0 %v8837
        %v8899 = vpop.xlane.xlu0 %8898
        %8900 = vmax.xlane.f32.xlu0 %v8842
        %v8901 = vpop.xlane.xlu0 %8900
        %8902 = vmax.xlane.f32.xlu0 %v8845
        %v8903 = vpop.xlane.xlu0 %8902
        %8904 = vmax.xlane.f32.xlu0 %v8850
        %v8905 = vpop.xlane.xlu0 %8904
        %8906 = vmax.xlane.f32.xlu0 %v8853
        %v8907 = vpop.xlane.xlu0 %8906
        %8908 = vmax.xlane.f32.xlu0 %v8858
        %v8909 = vpop.xlane.xlu0 %8908
        %8910 = vmax.xlane.f32.xlu0 %v8861
        %v8911 = vpop.xlane.xlu0 %8910
        %8912 = vmax.xlane.f32.xlu0 %v8866
        %v8913 = vpop.xlane.xlu0 %8912
        %8914 = vmax.xlane.f32.xlu0 %v8869
        %v8915 = vpop.xlane.xlu0 %8914
        %8916 = vmax.xlane.f32.xlu0 %v8874
        %v8917 = vpop.xlane.xlu0 %8916
        %8918 = vmax.xlane.f32.xlu0 %v8877
        %v8919 = vpop.xlane.xlu0 %8918
        %8920 = vmax.xlane.f32.xlu0 %v8882
        %v8921 = vpop.xlane.xlu0 %8920
        %8922 = vmax.xlane.f32.xlu0 %v8885
        %v8923 = vpop.xlane.xlu0 %8922
        %8924 = vmax.xlane.f32.xlu0 %v8890
        %v8925 = vpop.xlane.xlu0 %8924
        %8926 = vmax.xlane.f32.xlu0 %v8893
        %v8927 = vpop.xlane.xlu0 %8926
        %v8928 = vsub.f32 %v8834, %v8897
        %v8929 = vsub.f32 %v8837, %v8899
        %v8930 = vsub.f32 %v8842, %v8901
        %v8931 = vsub.f32 %v8845, %v8903
        %v8932 = vsub.f32 %v8850, %v8905
        %v8933 = vsub.f32 %v8853, %v8907
        %v8934 = vsub.f32 %v8858, %v8909
        %v8935 = vsub.f32 %v8861, %v8911
        %v8936 = vsub.f32 %v8866, %v8913
        %v8937 = vsub.f32 %v8869, %v8915
        %v8938 = vsub.f32 %v8874, %v8917
        %v8939 = vsub.f32 %v8877, %v8919
        %v8940 = vsub.f32 %v8882, %v8921
        %v8941 = vsub.f32 %v8885, %v8923
        %v8942 = vsub.f32 %v8890, %v8925
        %v8943 = vsub.f32 %v8893, %v8927
        %v8944 = vmul.f32 %v8928, 1.442695
        %v8945 = vpow.pop %v8944
        %v8946 = vmul.f32 %v8929, 1.442695
        %v8947 = vpow.pop %v8946
        %v8948 = vmul.f32 %v8930, 1.442695
        %v8949 = vpow.pop %v8948
        %v8950 = vmul.f32 %v8931, 1.442695
        %v8951 = vpow.pop %v8950
        %v8952 = vmul.f32 %v8932, 1.442695
        %v8953 = vpow.pop %v8952
        %v8954 = vmul.f32 %v8933, 1.442695
        %v8955 = vpow.pop %v8954
        %v8956 = vmul.f32 %v8934, 1.442695
        %v8957 = vpow.pop %v8956
        %v8958 = vmul.f32 %v8935, 1.442695
        %v8959 = vpow.pop %v8958
        %v8960 = vmul.f32 %v8936, 1.442695
        %v8961 = vpow.pop %v8960
        %v8962 = vmul.f32 %v8937, 1.442695
        %v8963 = vpow.pop %v8962
        %v8964 = vmul.f32 %v8938, 1.442695
        %v8965 = vpow.pop %v8964
        %v8966 = vmul.f32 %v8939, 1.442695
        %v8967 = vpow.pop %v8966
        %v8968 = vmul.f32 %v8940, 1.442695
        %v8969 = vpow.pop %v8968
        %v8970 = vmul.f32 %v8941, 1.442695
        %v8971 = vpow.pop %v8970
        %v8972 = vmul.f32 %v8942, 1.442695
        %v8973 = vpow.pop %v8972
        %v8974 = vmul.f32 %v8943, 1.442695
        %v8975 = vpow.pop %v8974
        %8976 = vadd.xlane.f32.xlu0 %v8945
        %v8977 = vpop.xlane.xlu0 %8976
        %8978 = vadd.xlane.f32.xlu0 %v8947
        %v8979 = vpop.xlane.xlu0 %8978
        %8980 = vadd.xlane.f32.xlu0 %v8949
        %v8981 = vpop.xlane.xlu0 %8980
        %8982 = vadd.xlane.f32.xlu0 %v8951
        %v8983 = vpop.xlane.xlu0 %8982
        %8984 = vadd.xlane.f32.xlu0 %v8953
        %v8985 = vpop.xlane.xlu0 %8984
        %8986 = vadd.xlane.f32.xlu0 %v8955
        %v8987 = vpop.xlane.xlu0 %8986
        %8988 = vadd.xlane.f32.xlu0 %v8957
        %v8989 = vpop.xlane.xlu0 %8988
        %8990 = vadd.xlane.f32.xlu0 %v8959
        %v8991 = vpop.xlane.xlu0 %8990
        %8992 = vadd.xlane.f32.xlu0 %v8961
        %v8993 = vpop.xlane.xlu0 %8992
        %8994 = vadd.xlane.f32.xlu0 %v8963
        %v8995 = vpop.xlane.xlu0 %8994
        %8996 = vadd.xlane.f32.xlu0 %v8965
        %v8997 = vpop.xlane.xlu0 %8996
        %8998 = vadd.xlane.f32.xlu0 %v8967
        %v8999 = vpop.xlane.xlu0 %8998
        %9000 = vadd.xlane.f32.xlu0 %v8969
        %v9001 = vpop.xlane.xlu0 %9000
        %9002 = vadd.xlane.f32.xlu0 %v8971
        %v9003 = vpop.xlane.xlu0 %9002
        %9004 = vadd.xlane.f32.xlu0 %v8973
        %v9005 = vpop.xlane.xlu0 %9004
        %9006 = vadd.xlane.f32.xlu0 %v8975
        %v9007 = vpop.xlane.xlu0 %9006
        %v9008 = vrcp.pop %v8977
        %v9009 = vmul.f32 %v1010, %v9008
        %v9010 = vrcp.pop %v8979
        %v9011 = vmul.f32 %v1013, %v9010
        %v9012 = vrcp.pop %v8981
        %v9013 = vmul.f32 %v1016, %v9012
        %v9014 = vrcp.pop %v8983
        %v9015 = vmul.f32 %v1019, %v9014
        %v9016 = vrcp.pop %v8985
        %v9017 = vmul.f32 %v1022, %v9016
        %v9018 = vrcp.pop %v8987
        %v9019 = vmul.f32 %v1025, %v9018
        %v9020 = vrcp.pop %v8989
        %v9021 = vmul.f32 %v1028, %v9020
        %v9022 = vrcp.pop %v8991
        %v9023 = vmul.f32 %v1031, %v9022
        %v9024 = vrcp.pop %v8993
        %v9025 = vmul.f32 %v1034, %v9024
        %v9026 = vrcp.pop %v8995
        %v9027 = vmul.f32 %v1037, %v9026
        %v9028 = vrcp.pop %v8997
        %v9029 = vmul.f32 %v1040, %v9028
        %v9030 = vrcp.pop %v8999
        %v9031 = vmul.f32 %v1043, %v9030
        %v9032 = vrcp.pop %v9001
        %v9033 = vmul.f32 %v1046, %v9032
        %v9034 = vrcp.pop %v9003
        %v9035 = vmul.f32 %v1049, %v9034
        %v9036 = vrcp.pop %v9005
        %v9037 = vmul.f32 %v1052, %v9036
        %v9038 = vrcp.pop %v9007
        %v9039 = vmul.f32 %v1055, %v9038
        %v9040 = vpack.c.bf16 %v8947, %v8945
        %v9041 = vpack.c.bf16 %v8951, %v8949
        %v9042 = vpack.c.bf16 %v8955, %v8953
        %v9043 = vpack.c.bf16 %v8959, %v8957
        %v9044 = vpack.c.bf16 %v8963, %v8961
        %v9045 = vpack.c.bf16 %v8967, %v8965
        %v9046 = vpack.c.bf16 %v8971, %v8969
        %v9047 = vpack.c.bf16 %v8975, %v8973
        %9048 = vrot.lane.b32.xlu0 %v7509, 96
        %v9049 = vpop.permute.xlu0 %9048
        %9050 = vrot.lane.b32.xlu0 %v7510, 96
        %v9051 = vpop.permute.xlu0 %9050
        %9052 = vrot.lane.b32.xlu0 %v7511, 96
        %v9053 = vpop.permute.xlu0 %9052
        %9054 = vrot.lane.b32.xlu0 %v7512, 96
        %v9055 = vpop.permute.xlu0 %9054
        %9056 = vrot.lane.b32.xlu0 %v7513, 96
        %v9057 = vpop.permute.xlu0 %9056
        %9058 = vrot.lane.b32.xlu0 %v7514, 96
        %v9059 = vpop.permute.xlu0 %9058
        %9060 = vrot.lane.b32.xlu0 %v7515, 96
        %v9061 = vpop.permute.xlu0 %9060
        %9062 = vrot.lane.b32.xlu0 %v7516, 96
        %v9063 = vpop.permute.xlu0 %9062
        %9072 = vmatprep.subr.bf16.mxu0 0
        %9073 = vmatpush1.bf16.msra.mxu0 %v9049
        %9074 = vmatprep.subr.bf16.mxu0 0
        %9075 = vmatpush1.bf16.msra.mxu0 %v9051
        %9076 = vmatprep.subr.bf16.mxu0 0
        %9077 = vmatpush1.bf16.msra.mxu0 %v9053
        %9078 = vmatprep.subr.bf16.mxu0 0
        %9079 = vmatpush1.bf16.msra.mxu0 %v9055
        %9080 = vmatprep.subr.bf16.mxu0 0
        %9081 = vmatpush1.bf16.msra.mxu0 %v9057
        %9082 = vmatprep.subr.bf16.mxu0 0
        %9083 = vmatpush1.bf16.msra.mxu0 %v9059
        %9084 = vmatprep.subr.bf16.mxu0 0
        %9085 = vmatpush1.bf16.msra.mxu0 %v9061
        %9086 = vmatprep.subr.bf16.mxu0 0
        %9087 = vmatpush1.bf16.msra.mxu0 %v9063
        %9088 = vmatprep.subr.bf16.mxu0 0
        %9089 = vmatpush1.bf16.msra.mxu0 0
        %9090 = vmatprep.subr.bf16.mxu0 0
        %9091 = vmatpush1.bf16.msra.mxu0 0
        %9092 = vmatprep.subr.bf16.mxu0 0
        %9093 = vmatpush1.bf16.msra.mxu0 0
        %9094 = vmatprep.subr.bf16.mxu0 0
        %9095 = vmatpush1.bf16.msra.mxu0 0
        %9096 = vmatprep.subr.bf16.mxu0 0
        %9097 = vmatpush1.bf16.msra.mxu0 0
        %9098 = vmatprep.subr.bf16.mxu0 0
        %9099 = vmatpush1.bf16.msra.mxu0 0
        %9100 = vmatprep.subr.bf16.mxu0 0
        %9101 = vmatpush1.bf16.msra.mxu0 0
        %9102 = vmatprep.subr.bf16.mxu0 0
        %9103 = vmatpush1.bf16.msra.mxu0 0
        %9104 = vmatprep.mubr.bf16.mxu0 0
        %9105 = vmatmul.mubr.bf16.gmra.mrb[0].mxu0 %v9040
        %v9106 = vpop.f32.mrb[0].mxu0
        %v9107 = vadd.f32 0.0, %v9106
        %v9108 = vpop.f32.mrb[0].mxu0
        %v9109 = vpop.f32.mrb[0].mxu0
        %v9110 = vadd.f32 0.0, %v9109
        %v9111 = vpop.f32.mrb[0].mxu0
        %9112 = vmatprep.mubr.bf16.mxu0 0
        %9113 = vmatmul.mubr.bf16.gmra.mrb[0].mxu0 %v9041
        %v9114 = vpop.f32.mrb[0].mxu0
        %v9115 = vadd.f32 0.0, %v9114
        %v9116 = vpop.f32.mrb[0].mxu0
        %v9117 = vpop.f32.mrb[0].mxu0
        %v9118 = vadd.f32 0.0, %v9117
        %v9119 = vpop.f32.mrb[0].mxu0
        %9120 = vmatprep.mubr.bf16.mxu0 0
        %9121 = vmatmul.mubr.bf16.gmra.mrb[0].mxu0 %v9042
        %v9122 = vpop.f32.mrb[0].mxu0
        %v9123 = vadd.f32 0.0, %v9122
        %v9124 = vpop.f32.mrb[0].mxu0
        %v9125 = vpop.f32.mrb[0].mxu0
        %v9126 = vadd.f32 0.0, %v9125
        %v9127 = vpop.f32.mrb[0].mxu0
        %9128 = vmatprep.mubr.bf16.mxu0 0
        %9129 = vmatmul.mubr.bf16.gmra.mrb[0].mxu0 %v9043
        %v9130 = vpop.f32.mrb[0].mxu0
        %v9131 = vadd.f32 0.0, %v9130
        %v9132 = vpop.f32.mrb[0].mxu0
        %v9133 = vpop.f32.mrb[0].mxu0
        %v9134 = vadd.f32 0.0, %v9133
        %v9135 = vpop.f32.mrb[0].mxu0
        %9136 = vmatprep.mubr.bf16.mxu0 0
        %9137 = vmatmul.mubr.bf16.gmra.mrb[0].mxu0 %v9044
        %v9138 = vpop.f32.mrb[0].mxu0
        %v9139 = vadd.f32 0.0, %v9138
        %v9140 = vpop.f32.mrb[0].mxu0
        %v9141 = vpop.f32.mrb[0].mxu0
        %v9142 = vadd.f32 0.0, %v9141
        %v9143 = vpop.f32.mrb[0].mxu0
        %9144 = vmatprep.mubr.bf16.mxu0 0
        %9145 = vmatmul.mubr.bf16.gmra.mrb[0].mxu0 %v9045
        %v9146 = vpop.f32.mrb[0].mxu0
        %v9147 = vadd.f32 0.0, %v9146
        %v9148 = vpop.f32.mrb[0].mxu0
        %v9149 = vpop.f32.mrb[0].mxu0
        %v9150 = vadd.f32 0.0, %v9149
        %v9151 = vpop.f32.mrb[0].mxu0
        %9152 = vmatprep.mubr.bf16.mxu0 0
        %9153 = vmatmul.mubr.bf16.gmra.mrb[0].mxu0 %v9046
        %v9154 = vpop.f32.mrb[0].mxu0
        %v9155 = vadd.f32 0.0, %v9154
        %v9156 = vpop.f32.mrb[0].mxu0
        %v9157 = vpop.f32.mrb[0].mxu0
        %v9158 = vadd.f32 0.0, %v9157
        %v9159 = vpop.f32.mrb[0].mxu0
        %9160 = vmatprep.mubr.bf16.mxu0 0
        %9161 = vmatmul.mubr.bf16.gmra.mrb[0].mxu0 %v9047
        %v9162 = vpop.f32.mrb[0].mxu0
        %v9163 = vadd.f32 0.0, %v9162
        %v9164 = vpop.f32.mrb[0].mxu0
        %v9165 = vpop.f32.mrb[0].mxu0
        %v9166 = vadd.f32 0.0, %v9165
        %v9167 = vpop.f32.mrb[0].mxu0
        %9168 = vdwg.mxu0
        %v9169 = vmul.f32 %v9107, %v9009
        %v9170 = vmul.f32 %v9110, %v9011
        %v9171 = vmul.f32 %v9115, %v9013
        %v9172 = vmul.f32 %v9118, %v9015
        %v9173 = vmul.f32 %v9123, %v9017
        %v9174 = vmul.f32 %v9126, %v9019
        %v9175 = vmul.f32 %v9131, %v9021
        %v9176 = vmul.f32 %v9134, %v9023
        %v9177 = vmul.f32 %v9139, %v9025
        %v9178 = vmul.f32 %v9142, %v9027
        %v9179 = vmul.f32 %v9147, %v9029
        %v9180 = vmul.f32 %v9150, %v9031
        %v9181 = vmul.f32 %v9155, %v9033
        %v9182 = vmul.f32 %v9158, %v9035
        %v9183 = vmul.f32 %v9163, %v9037
        %v9184 = vmul.f32 %v9166, %v9039
        %v9185 = vpack.c.bf16 %v9170, %v9169
        %v9186 = vpack.c.bf16 %v9172, %v9171
        %v9187 = vpack.c.bf16 %v9174, %v9173
        %v9188 = vpack.c.bf16 %v9176, %v9175
        %v9189 = vpack.c.bf16 %v9178, %v9177
        %v9190 = vpack.c.bf16 %v9180, %v9179
        %v9191 = vpack.c.bf16 %v9182, %v9181
        %v9192 = vpack.c.bf16 %v9184, %v9183
        %v9195 = vunpack.c.l.b16 %v7075
        %v9196 = vunpack.c.l.b16 %v7076
        %v9197 = vpack.c.b16 %v9196, %v9195
        %v9200 = vsel %vm1734, %v9185, 0
        %v9203 = vsel %vm1734, %v9186, 0
        %v9206 = vsel %vm1734, %v9187, 0
        %v9209 = vsel %vm1734, %v9188, 0
        %v9212 = vsel %vm1734, %v9189, 0
        %v9215 = vsel %vm1734, %v9190, 0
        %v9218 = vsel %vm1734, %v9191, 0
        %v9221 = vsel %vm1734, %v9192, 0
        %9223 = vmatprep.subr.bf16.mxu0 0
        %9224 = vmatpush1.bf16.msra.mxu0 %v9197
        %9225 = vmatprep.subr.bf16.mxu0 0
        %9226 = vmatpush1.bf16.msra.mxu0 0
        %9227 = vmatprep.subr.bf16.mxu0 0
        %9228 = vmatpush1.bf16.msra.mxu0 0
        %9229 = vmatprep.subr.bf16.mxu0 0
        %9230 = vmatpush1.bf16.msra.mxu0 0
        %9231 = vmatprep.subr.bf16.mxu0 0
        %9232 = vmatpush1.bf16.msra.mxu0 0
        %9233 = vmatprep.subr.bf16.mxu0 0
        %9234 = vmatpush1.bf16.msra.mxu0 0
        %9235 = vmatprep.subr.bf16.mxu0 0
        %9236 = vmatpush1.bf16.msra.mxu0 0
        %9237 = vmatprep.subr.bf16.mxu0 0
        %9238 = vmatpush1.bf16.msra.mxu0 0
        %9239 = vmatprep.subr.bf16.mxu0 0
        %9240 = vmatpush1.bf16.msra.mxu0 0
        %9241 = vmatprep.subr.bf16.mxu0 0
        %9242 = vmatpush1.bf16.msra.mxu0 0
        %9243 = vmatprep.subr.bf16.mxu0 0
        %9244 = vmatpush1.bf16.msra.mxu0 0
        %9245 = vmatprep.subr.bf16.mxu0 0
        %9246 = vmatpush1.bf16.msra.mxu0 0
        %9247 = vmatprep.subr.bf16.mxu0 0
        %9248 = vmatpush1.bf16.msra.mxu0 0
        %9249 = vmatprep.subr.bf16.mxu0 0
        %9250 = vmatpush1.bf16.msra.mxu0 0
        %9251 = vmatprep.subr.bf16.mxu0 0
        %9252 = vmatpush1.bf16.msra.mxu0 0
        %9253 = vmatprep.subr.bf16.mxu0 0
        %9254 = vmatpush1.bf16.msra.mxu0 0
        %9255 = vmatprep.mubr.bf16.mxu0 0
        %9256 = vmatmul.mubr.bf16.gmra.mrb[0].mxu0 %v9200
        %v9257 = vpop.f32.mrb[0].mxu0
        %v9258 = vadd.f32 0.0, %v9257
        %v9259 = vpop.f32.mrb[0].mxu0
        %v9260 = vpop.f32.mrb[0].mxu0
        %v9261 = vadd.f32 0.0, %v9260
        %v9262 = vpop.f32.mrb[0].mxu0
        %9263 = vmatprep.mubr.bf16.mxu0 0
        %9264 = vmatmul.mubr.bf16.gmra.mrb[0].mxu0 %v9203
        %v9265 = vpop.f32.mrb[0].mxu0
        %v9266 = vadd.f32 0.0, %v9265
        %v9267 = vpop.f32.mrb[0].mxu0
        %v9268 = vpop.f32.mrb[0].mxu0
        %v9269 = vadd.f32 0.0, %v9268
        %v9270 = vpop.f32.mrb[0].mxu0
        %9271 = vmatprep.mubr.bf16.mxu0 0
        %9272 = vmatmul.mubr.bf16.gmra.mrb[0].mxu0 %v9206
        %v9273 = vpop.f32.mrb[0].mxu0
        %v9274 = vadd.f32 0.0, %v9273
        %v9275 = vpop.f32.mrb[0].mxu0
        %v9276 = vpop.f32.mrb[0].mxu0
        %v9277 = vadd.f32 0.0, %v9276
        %v9278 = vpop.f32.mrb[0].mxu0
        %9279 = vmatprep.mubr.bf16.mxu0 0
        %9280 = vmatmul.mubr.bf16.gmra.mrb[0].mxu0 %v9209
        %v9281 = vpop.f32.mrb[0].mxu0
        %v9282 = vadd.f32 0.0, %v9281
        %v9283 = vpop.f32.mrb[0].mxu0
        %v9284 = vpop.f32.mrb[0].mxu0
        %v9285 = vadd.f32 0.0, %v9284
        %v9286 = vpop.f32.mrb[0].mxu0
        %9287 = vmatprep.mubr.bf16.mxu0 0
        %9288 = vmatmul.mubr.bf16.gmra.mrb[0].mxu0 %v9212
        %v9289 = vpop.f32.mrb[0].mxu0
        %v9290 = vadd.f32 0.0, %v9289
        %v9291 = vpop.f32.mrb[0].mxu0
        %v9292 = vpop.f32.mrb[0].mxu0
        %v9293 = vadd.f32 0.0, %v9292
        %v9294 = vpop.f32.mrb[0].mxu0
        %9295 = vmatprep.mubr.bf16.mxu0 0
        %9296 = vmatmul.mubr.bf16.gmra.mrb[0].mxu0 %v9215
        %v9297 = vpop.f32.mrb[0].mxu0
        %v9298 = vadd.f32 0.0, %v9297
        %v9299 = vpop.f32.mrb[0].mxu0
        %v9300 = vpop.f32.mrb[0].mxu0
        %v9301 = vadd.f32 0.0, %v9300
        %v9302 = vpop.f32.mrb[0].mxu0
        %9303 = vmatprep.mubr.bf16.mxu0 0
        %9304 = vmatmul.mubr.bf16.gmra.mrb[0].mxu0 %v9218
        %v9305 = vpop.f32.mrb[0].mxu0
        %v9306 = vadd.f32 0.0, %v9305
        %v9307 = vpop.f32.mrb[0].mxu0
        %v9308 = vpop.f32.mrb[0].mxu0
        %v9309 = vadd.f32 0.0, %v9308
        %v9310 = vpop.f32.mrb[0].mxu0
        %9311 = vmatprep.mubr.bf16.mxu0 0
        %9312 = vmatmul.mubr.bf16.gmra.mrb[0].mxu0 %v9221
        %v9313 = vpop.f32.mrb[0].mxu0
        %v9314 = vadd.f32 0.0, %v9313
        %v9315 = vpop.f32.mrb[0].mxu0
        %v9316 = vpop.f32.mrb[0].mxu0
        %v9317 = vadd.f32 0.0, %v9316
        %v9318 = vpop.f32.mrb[0].mxu0
        %9319 = vdwg.mxu0
        %v9320 = vadd.f32 %v8703, %v9258
        %v9321 = vadd.f32 %v8704, %v9261
        %v9322 = vadd.f32 %v8705, %v9266
        %v9323 = vadd.f32 %v8706, %v9269
        %v9324 = vadd.f32 %v8707, %v9274
        %v9325 = vadd.f32 %v8708, %v9277
        %v9326 = vadd.f32 %v8709, %v9282
        %v9327 = vadd.f32 %v8710, %v9285
        %v9328 = vadd.f32 %v8711, %v9290
        %v9329 = vadd.f32 %v8712, %v9293
        %v9330 = vadd.f32 %v8713, %v9298
        %v9331 = vadd.f32 %v8714, %v9301
        %v9332 = vadd.f32 %v8715, %v9306
        %v9333 = vadd.f32 %v8716, %v9309
        %v9334 = vadd.f32 %v8717, %v9314
        %v9335 = vadd.f32 %v8718, %v9317
        %9336 = vrot.lane.b32.xlu0 %v7233, 80
        %v9337 = vpop.permute.xlu0 %9336
        %9338 = vrot.lane.b32.xlu0 %v7234, 80
        %v9339 = vpop.permute.xlu0 %9338
        %9340 = vrot.lane.b32.xlu0 %v7235, 80
        %v9341 = vpop.permute.xlu0 %9340
        %9342 = vrot.lane.b32.xlu0 %v7236, 80
        %v9343 = vpop.permute.xlu0 %9342
        %9344 = vrot.lane.b32.xlu0 %v7237, 80
        %v9345 = vpop.permute.xlu0 %9344
        %9346 = vrot.lane.b32.xlu0 %v7238, 80
        %v9347 = vpop.permute.xlu0 %9346
        %9348 = vrot.lane.b32.xlu0 %v7239, 80
        %v9349 = vpop.permute.xlu0 %9348
        %9350 = vrot.lane.b32.xlu0 %v7240, 80
        %v9351 = vpop.permute.xlu0 %9350
        %9352 = vrot.lane.b32.xlu0 %v7371, 80
        %v9353 = vpop.permute.xlu0 %9352
        %9354 = vrot.lane.b32.xlu0 %v7372, 80
        %v9355 = vpop.permute.xlu0 %9354
        %9356 = vrot.lane.b32.xlu0 %v7373, 80
        %v9357 = vpop.permute.xlu0 %9356
        %9358 = vrot.lane.b32.xlu0 %v7374, 80
        %v9359 = vpop.permute.xlu0 %9358
        %9360 = vrot.lane.b32.xlu0 %v7375, 80
        %v9361 = vpop.permute.xlu0 %9360
        %9362 = vrot.lane.b32.xlu0 %v7376, 80
        %v9363 = vpop.permute.xlu0 %9362
        %9364 = vrot.lane.b32.xlu0 %v7377, 80
        %v9365 = vpop.permute.xlu0 %9364
        %9366 = vrot.lane.b32.xlu0 %v7378, 80
        %v9367 = vpop.permute.xlu0 %9366
        %v9369 = vsel %vm1734, %v9337, 0
        %v9372 = vsel %vm1734, %v9339, 0
        %v9375 = vsel %vm1734, %v9341, 0
        %v9378 = vsel %vm1734, %v9343, 0
        %v9381 = vsel %vm1734, %v9345, 0
        %v9384 = vsel %vm1734, %v9347, 0
        %v9387 = vsel %vm1734, %v9349, 0
        %v9390 = vsel %vm1734, %v9351, 0
        %v9393 = vsel %vm1734, %v9353, 0
        %v9396 = vsel %vm1734, %v9355, 0
        %v9399 = vsel %vm1734, %v9357, 0
        %v9402 = vsel %vm1734, %v9359, 0
        %v9405 = vsel %vm1734, %v9361, 0
        %v9408 = vsel %vm1734, %v9363, 0
        %v9411 = vsel %vm1734, %v9365, 0
        %v9414 = vsel %vm1734, %v9367, 0
        %9416 = vmatprep.subr.bf16.mxu0 0
        %9417 = vmatpush1.bf16.xpose.msra.mxu0 %v9393
        %9418 = vmatprep.subr.bf16.mxu0 0
        %9419 = vmatpush1.bf16.xpose.msra.mxu0 %v9396
        %9420 = vmatprep.subr.bf16.mxu0 0
        %9421 = vmatpush1.bf16.xpose.msra.mxu0 %v9399
        %9422 = vmatprep.subr.bf16.mxu0 0
        %9423 = vmatpush1.bf16.xpose.msra.mxu0 %v9402
        %9424 = vmatprep.subr.bf16.mxu0 0
        %9425 = vmatpush1.bf16.xpose.msra.mxu0 %v9405
        %9426 = vmatprep.subr.bf16.mxu0 0
        %9427 = vmatpush1.bf16.xpose.msra.mxu0 %v9408
        %9428 = vmatprep.subr.bf16.mxu0 0
        %9429 = vmatpush1.bf16.xpose.msra.mxu0 %v9411
        %9430 = vmatprep.subr.bf16.mxu0 0
        %9431 = vmatpush1.bf16.xpose.msra.mxu0 %v9414
        %9432 = vmatprep.subr.bf16.mxu0 0
        %9433 = vmatpush1.bf16.xpose.msra.mxu0 0
        %9434 = vmatprep.subr.bf16.mxu0 0
        %9435 = vmatpush1.bf16.xpose.msra.mxu0 0
        %9436 = vmatprep.subr.bf16.mxu0 0
        %9437 = vmatpush1.bf16.xpose.msra.mxu0 0
        %9438 = vmatprep.subr.bf16.mxu0 0
        %9439 = vmatpush1.bf16.xpose.msra.mxu0 0
        %9440 = vmatprep.subr.bf16.mxu0 0
        %9441 = vmatpush1.bf16.xpose.msra.mxu0 0
        %9442 = vmatprep.subr.bf16.mxu0 0
        %9443 = vmatpush1.bf16.xpose.msra.mxu0 0
        %9444 = vmatprep.subr.bf16.mxu0 0
        %9445 = vmatpush1.bf16.xpose.msra.mxu0 0
        %9446 = vmatprep.subr.bf16.mxu0 0
        %9447 = vmatpush1.bf16.xpose.msra.mxu0 0
        %9448 = vmatprep.mubr.bf16.mxu0 0
        %9449 = vmatmul.mubr.bf16.gmra.mrb[0].mxu0 %v9369
        %v9450 = vpop.f32.mrb[0].mxu0
        %v9451 = vadd.f32 %v960, %v9450
        %v9452 = vpop.f32.mrb[0].mxu0
        %v9453 = vpop.f32.mrb[0].mxu0
        %v9454 = vadd.f32 %v961, %v9453
        %v9455 = vpop.f32.mrb[0].mxu0
        %9456 = vmatprep.mubr.bf16.mxu0 0
        %9457 = vmatmul.mubr.bf16.gmra.mrb[0].mxu0 %v9372
        %v9458 = vpop.f32.mrb[0].mxu0
        %v9459 = vadd.f32 %v962, %v9458
        %v9460 = vpop.f32.mrb[0].mxu0
        %v9461 = vpop.f32.mrb[0].mxu0
        %v9462 = vadd.f32 %v963, %v9461
        %v9463 = vpop.f32.mrb[0].mxu0
        %9464 = vmatprep.mubr.bf16.mxu0 0
        %9465 = vmatmul.mubr.bf16.gmra.mrb[0].mxu0 %v9375
        %v9466 = vpop.f32.mrb[0].mxu0
        %v9467 = vadd.f32 %v964, %v9466
        %v9468 = vpop.f32.mrb[0].mxu0
        %v9469 = vpop.f32.mrb[0].mxu0
        %v9470 = vadd.f32 %v965, %v9469
        %v9471 = vpop.f32.mrb[0].mxu0
        %9472 = vmatprep.mubr.bf16.mxu0 0
        %9473 = vmatmul.mubr.bf16.gmra.mrb[0].mxu0 %v9378
        %v9474 = vpop.f32.mrb[0].mxu0
        %v9475 = vadd.f32 %v966, %v9474
        %v9476 = vpop.f32.mrb[0].mxu0
        %v9477 = vpop.f32.mrb[0].mxu0
        %v9478 = vadd.f32 %v967, %v9477
        %v9479 = vpop.f32.mrb[0].mxu0
        %9480 = vmatprep.mubr.bf16.mxu0 0
        %9481 = vmatmul.mubr.bf16.gmra.mrb[0].mxu0 %v9381
        %v9482 = vpop.f32.mrb[0].mxu0
        %v9483 = vadd.f32 %v968, %v9482
        %v9484 = vpop.f32.mrb[0].mxu0
        %v9485 = vpop.f32.mrb[0].mxu0
        %v9486 = vadd.f32 %v969, %v9485
        %v9487 = vpop.f32.mrb[0].mxu0
        %9488 = vmatprep.mubr.bf16.mxu0 0
        %9489 = vmatmul.mubr.bf16.gmra.mrb[0].mxu0 %v9384
        %v9490 = vpop.f32.mrb[0].mxu0
        %v9491 = vadd.f32 %v970, %v9490
        %v9492 = vpop.f32.mrb[0].mxu0
        %v9493 = vpop.f32.mrb[0].mxu0
        %v9494 = vadd.f32 %v971, %v9493
        %v9495 = vpop.f32.mrb[0].mxu0
        %9496 = vmatprep.mubr.bf16.mxu0 0
        %9497 = vmatmul.mubr.bf16.gmra.mrb[0].mxu0 %v9387
        %v9498 = vpop.f32.mrb[0].mxu0
        %v9499 = vadd.f32 %v972, %v9498
        %v9500 = vpop.f32.mrb[0].mxu0
        %v9501 = vpop.f32.mrb[0].mxu0
        %v9502 = vadd.f32 %v973, %v9501
        %v9503 = vpop.f32.mrb[0].mxu0
        %9504 = vmatprep.mubr.bf16.mxu0 0
        %9505 = vmatmul.mubr.bf16.gmra.mrb[0].mxu0 %v9390
        %v9506 = vpop.f32.mrb[0].mxu0
        %v9507 = vadd.f32 %v974, %v9506
        %v9508 = vpop.f32.mrb[0].mxu0
        %v9509 = vpop.f32.mrb[0].mxu0
        %v9510 = vadd.f32 %v975, %v9509
        %v9511 = vpop.f32.mrb[0].mxu0
        %9512 = vdwg.mxu0
        %9513 = vmax.xlane.f32.xlu0 %v9451
        %v9514 = vpop.xlane.xlu0 %9513
        %9515 = vmax.xlane.f32.xlu0 %v9454
        %v9516 = vpop.xlane.xlu0 %9515
        %9517 = vmax.xlane.f32.xlu0 %v9459
        %v9518 = vpop.xlane.xlu0 %9517
        %9519 = vmax.xlane.f32.xlu0 %v9462
        %v9520 = vpop.xlane.xlu0 %9519
        %9521 = vmax.xlane.f32.xlu0 %v9467
        %v9522 = vpop.xlane.xlu0 %9521
        %9523 = vmax.xlane.f32.xlu0 %v9470
        %v9524 = vpop.xlane.xlu0 %9523
        %9525 = vmax.xlane.f32.xlu0 %v9475
        %v9526 = vpop.xlane.xlu0 %9525
        %9527 = vmax.xlane.f32.xlu0 %v9478
        %v9528 = vpop.xlane.xlu0 %9527
        %9529 = vmax.xlane.f32.xlu0 %v9483
        %v9530 = vpop.xlane.xlu0 %9529
        %9531 = vmax.xlane.f32.xlu0 %v9486
        %v9532 = vpop.xlane.xlu0 %9531
        %9533 = vmax.xlane.f32.xlu0 %v9491
        %v9534 = vpop.xlane.xlu0 %9533
        %9535 = vmax.xlane.f32.xlu0 %v9494
        %v9536 = vpop.xlane.xlu0 %9535
        %9537 = vmax.xlane.f32.xlu0 %v9499
        %v9538 = vpop.xlane.xlu0 %9537
        %9539 = vmax.xlane.f32.xlu0 %v9502
        %v9540 = vpop.xlane.xlu0 %9539
        %9541 = vmax.xlane.f32.xlu0 %v9507
        %v9542 = vpop.xlane.xlu0 %9541
        %9543 = vmax.xlane.f32.xlu0 %v9510
        %v9544 = vpop.xlane.xlu0 %9543
        %v9545 = vsub.f32 %v9451, %v9514
        %v9546 = vsub.f32 %v9454, %v9516
        %v9547 = vsub.f32 %v9459, %v9518
        %v9548 = vsub.f32 %v9462, %v9520
        %v9549 = vsub.f32 %v9467, %v9522
        %v9550 = vsub.f32 %v9470, %v9524
        %v9551 = vsub.f32 %v9475, %v9526
        %v9552 = vsub.f32 %v9478, %v9528
        %v9553 = vsub.f32 %v9483, %v9530
        %v9554 = vsub.f32 %v9486, %v9532
        %v9555 = vsub.f32 %v9491, %v9534
        %v9556 = vsub.f32 %v9494, %v9536
        %v9557 = vsub.f32 %v9499, %v9538
        %v9558 = vsub.f32 %v9502, %v9540
        %v9559 = vsub.f32 %v9507, %v9542
        %v9560 = vsub.f32 %v9510, %v9544
        %v9561 = vmul.f32 %v9545, 1.442695
        %v9562 = vpow.pop %v9561
        %v9563 = vmul.f32 %v9546, 1.442695
        %v9564 = vpow.pop %v9563
        %v9565 = vmul.f32 %v9547, 1.442695
        %v9566 = vpow.pop %v9565
        %v9567 = vmul.f32 %v9548, 1.442695
        %v9568 = vpow.pop %v9567
        %v9569 = vmul.f32 %v9549, 1.442695
        %v9570 = vpow.pop %v9569
        %v9571 = vmul.f32 %v9550, 1.442695
        %v9572 = vpow.pop %v9571
        %v9573 = vmul.f32 %v9551, 1.442695
        %v9574 = vpow.pop %v9573
        %v9575 = vmul.f32 %v9552, 1.442695
        %v9576 = vpow.pop %v9575
        %v9577 = vmul.f32 %v9553, 1.442695
        %v9578 = vpow.pop %v9577
        %v9579 = vmul.f32 %v9554, 1.442695
        %v9580 = vpow.pop %v9579
        %v9581 = vmul.f32 %v9555, 1.442695
        %v9582 = vpow.pop %v9581
        %v9583 = vmul.f32 %v9556, 1.442695
        %v9584 = vpow.pop %v9583
        %v9585 = vmul.f32 %v9557, 1.442695
        %v9586 = vpow.pop %v9585
        %v9587 = vmul.f32 %v9558, 1.442695
        %v9588 = vpow.pop %v9587
        %v9589 = vmul.f32 %v9559, 1.442695
        %v9590 = vpow.pop %v9589
        %v9591 = vmul.f32 %v9560, 1.442695
        %v9592 = vpow.pop %v9591
        %9593 = vadd.xlane.f32.xlu0 %v9562
        %v9594 = vpop.xlane.xlu0 %9593
        %9595 = vadd.xlane.f32.xlu0 %v9564
        %v9596 = vpop.xlane.xlu0 %9595
        %9597 = vadd.xlane.f32.xlu0 %v9566
        %v9598 = vpop.xlane.xlu0 %9597
        %9599 = vadd.xlane.f32.xlu0 %v9568
        %v9600 = vpop.xlane.xlu0 %9599
        %9601 = vadd.xlane.f32.xlu0 %v9570
        %v9602 = vpop.xlane.xlu0 %9601
        %9603 = vadd.xlane.f32.xlu0 %v9572
        %v9604 = vpop.xlane.xlu0 %9603
        %9605 = vadd.xlane.f32.xlu0 %v9574
        %v9606 = vpop.xlane.xlu0 %9605
        %9607 = vadd.xlane.f32.xlu0 %v9576
        %v9608 = vpop.xlane.xlu0 %9607
        %9609 = vadd.xlane.f32.xlu0 %v9578
        %v9610 = vpop.xlane.xlu0 %9609
        %9611 = vadd.xlane.f32.xlu0 %v9580
        %v9612 = vpop.xlane.xlu0 %9611
        %9613 = vadd.xlane.f32.xlu0 %v9582
        %v9614 = vpop.xlane.xlu0 %9613
        %9615 = vadd.xlane.f32.xlu0 %v9584
        %v9616 = vpop.xlane.xlu0 %9615
        %9617 = vadd.xlane.f32.xlu0 %v9586
        %v9618 = vpop.xlane.xlu0 %9617
        %9619 = vadd.xlane.f32.xlu0 %v9588
        %v9620 = vpop.xlane.xlu0 %9619
        %9621 = vadd.xlane.f32.xlu0 %v9590
        %v9622 = vpop.xlane.xlu0 %9621
        %9623 = vadd.xlane.f32.xlu0 %v9592
        %v9624 = vpop.xlane.xlu0 %9623
        %v9625 = vrcp.pop %v9594
        %v9626 = vmul.f32 %v1010, %v9625
        %v9627 = vrcp.pop %v9596
        %v9628 = vmul.f32 %v1013, %v9627
        %v9629 = vrcp.pop %v9598
        %v9630 = vmul.f32 %v1016, %v9629
        %v9631 = vrcp.pop %v9600
        %v9632 = vmul.f32 %v1019, %v9631
        %v9633 = vrcp.pop %v9602
        %v9634 = vmul.f32 %v1022, %v9633
        %v9635 = vrcp.pop %v9604
        %v9636 = vmul.f32 %v1025, %v9635
        %v9637 = vrcp.pop %v9606
        %v9638 = vmul.f32 %v1028, %v9637
        %v9639 = vrcp.pop %v9608
        %v9640 = vmul.f32 %v1031, %v9639
        %v9641 = vrcp.pop %v9610
        %v9642 = vmul.f32 %v1034, %v9641
        %v9643 = vrcp.pop %v9612
        %v9644 = vmul.f32 %v1037, %v9643
        %v9645 = vrcp.pop %v9614
        %v9646 = vmul.f32 %v1040, %v9645
        %v9647 = vrcp.pop %v9616
        %v9648 = vmul.f32 %v1043, %v9647
        %v9649 = vrcp.pop %v9618
        %v9650 = vmul.f32 %v1046, %v9649
        %v9651 = vrcp.pop %v9620
        %v9652 = vmul.f32 %v1049, %v9651
        %v9653 = vrcp.pop %v9622
        %v9654 = vmul.f32 %v1052, %v9653
        %v9655 = vrcp.pop %v9624
        %v9656 = vmul.f32 %v1055, %v9655
        %v9657 = vpack.c.bf16 %v9564, %v9562
        %v9658 = vpack.c.bf16 %v9568, %v9566
        %v9659 = vpack.c.bf16 %v9572, %v9570
        %v9660 = vpack.c.bf16 %v9576, %v9574
        %v9661 = vpack.c.bf16 %v9580, %v9578
        %v9662 = vpack.c.bf16 %v9584, %v9582
        %v9663 = vpack.c.bf16 %v9588, %v9586
        %v9664 = vpack.c.bf16 %v9592, %v9590
        %9665 = vrot.lane.b32.xlu0 %v7509, 80
        %v9666 = vpop.permute.xlu0 %9665
        %9667 = vrot.lane.b32.xlu0 %v7510, 80
        %v9668 = vpop.permute.xlu0 %9667
        %9669 = vrot.lane.b32.xlu0 %v7511, 80
        %v9670 = vpop.permute.xlu0 %9669
        %9671 = vrot.lane.b32.xlu0 %v7512, 80
        %v9672 = vpop.permute.xlu0 %9671
        %9673 = vrot.lane.b32.xlu0 %v7513, 80
        %v9674 = vpop.permute.xlu0 %9673
        %9675 = vrot.lane.b32.xlu0 %v7514, 80
        %v9676 = vpop.permute.xlu0 %9675
        %9677 = vrot.lane.b32.xlu0 %v7515, 80
        %v9678 = vpop.permute.xlu0 %9677
        %9679 = vrot.lane.b32.xlu0 %v7516, 80
        %v9680 = vpop.permute.xlu0 %9679
        %9689 = vmatprep.subr.bf16.mxu0 0
        %9690 = vmatpush1.bf16.msra.mxu0 %v9666
        %9691 = vmatprep.subr.bf16.mxu0 0
        %9692 = vmatpush1.bf16.msra.mxu0 %v9668
        %9693 = vmatprep.subr.bf16.mxu0 0
        %9694 = vmatpush1.bf16.msra.mxu0 %v9670
        %9695 = vmatprep.subr.bf16.mxu0 0
        %9696 = vmatpush1.bf16.msra.mxu0 %v9672
        %9697 = vmatprep.subr.bf16.mxu0 0
        %9698 = vmatpush1.bf16.msra.mxu0 %v9674
        %9699 = vmatprep.subr.bf16.mxu0 0
        %9700 = vmatpush1.bf16.msra.mxu0 %v9676
        %9701 = vmatprep.subr.bf16.mxu0 0
        %9702 = vmatpush1.bf16.msra.mxu0 %v9678
        %9703 = vmatprep.subr.bf16.mxu0 0
        %9704 = vmatpush1.bf16.msra.mxu0 %v9680
        %9705 = vmatprep.subr.bf16.mxu0 0
        %9706 = vmatpush1.bf16.msra.mxu0 0
        %9707 = vmatprep.subr.bf16.mxu0 0
        %9708 = vmatpush1.bf16.msra.mxu0 0
        %9709 = vmatprep.subr.bf16.mxu0 0
        %9710 = vmatpush1.bf16.msra.mxu0 0
        %9711 = vmatprep.subr.bf16.mxu0 0
        %9712 = vmatpush1.bf16.msra.mxu0 0
        %9713 = vmatprep.subr.bf16.mxu0 0
        %9714 = vmatpush1.bf16.msra.mxu0 0
        %9715 = vmatprep.subr.bf16.mxu0 0
        %9716 = vmatpush1.bf16.msra.mxu0 0
        %9717 = vmatprep.subr.bf16.mxu0 0
        %9718 = vmatpush1.bf16.msra.mxu0 0
        %9719 = vmatprep.subr.bf16.mxu0 0
        %9720 = vmatpush1.bf16.msra.mxu0 0
        %9721 = vmatprep.mubr.bf16.mxu0 0
        %9722 = vmatmul.mubr.bf16.gmra.mrb[0].mxu0 %v9657
        %v9723 = vpop.f32.mrb[0].mxu0
        %v9724 = vadd.f32 0.0, %v9723
        %v9725 = vpop.f32.mrb[0].mxu0
        %v9726 = vpop.f32.mrb[0].mxu0
        %v9727 = vadd.f32 0.0, %v9726
        %v9728 = vpop.f32.mrb[0].mxu0
        %9729 = vmatprep.mubr.bf16.mxu0 0
        %9730 = vmatmul.mubr.bf16.gmra.mrb[0].mxu0 %v9658
        %v9731 = vpop.f32.mrb[0].mxu0
        %v9732 = vadd.f32 0.0, %v9731
        %v9733 = vpop.f32.mrb[0].mxu0
        %v9734 = vpop.f32.mrb[0].mxu0
        %v9735 = vadd.f32 0.0, %v9734
        %v9736 = vpop.f32.mrb[0].mxu0
        %9737 = vmatprep.mubr.bf16.mxu0 0
        %9738 = vmatmul.mubr.bf16.gmra.mrb[0].mxu0 %v9659
        %v9739 = vpop.f32.mrb[0].mxu0
        %v9740 = vadd.f32 0.0, %v9739
        %v9741 = vpop.f32.mrb[0].mxu0
        %v9742 = vpop.f32.mrb[0].mxu0
        %v9743 = vadd.f32 0.0, %v9742
        %v9744 = vpop.f32.mrb[0].mxu0
        %9745 = vmatprep.mubr.bf16.mxu0 0
        %9746 = vmatmul.mubr.bf16.gmra.mrb[0].mxu0 %v9660
        %v9747 = vpop.f32.mrb[0].mxu0
        %v9748 = vadd.f32 0.0, %v9747
        %v9749 = vpop.f32.mrb[0].mxu0
        %v9750 = vpop.f32.mrb[0].mxu0
        %v9751 = vadd.f32 0.0, %v9750
        %v9752 = vpop.f32.mrb[0].mxu0
        %9753 = vmatprep.mubr.bf16.mxu0 0
        %9754 = vmatmul.mubr.bf16.gmra.mrb[0].mxu0 %v9661
        %v9755 = vpop.f32.mrb[0].mxu0
        %v9756 = vadd.f32 0.0, %v9755
        %v9757 = vpop.f32.mrb[0].mxu0
        %v9758 = vpop.f32.mrb[0].mxu0
        %v9759 = vadd.f32 0.0, %v9758
        %v9760 = vpop.f32.mrb[0].mxu0
        %9761 = vmatprep.mubr.bf16.mxu0 0
        %9762 = vmatmul.mubr.bf16.gmra.mrb[0].mxu0 %v9662
        %v9763 = vpop.f32.mrb[0].mxu0
        %v9764 = vadd.f32 0.0, %v9763
        %v9765 = vpop.f32.mrb[0].mxu0
        %v9766 = vpop.f32.mrb[0].mxu0
        %v9767 = vadd.f32 0.0, %v9766
        %v9768 = vpop.f32.mrb[0].mxu0
        %9769 = vmatprep.mubr.bf16.mxu0 0
        %9770 = vmatmul.mubr.bf16.gmra.mrb[0].mxu0 %v9663
        %v9771 = vpop.f32.mrb[0].mxu0
        %v9772 = vadd.f32 0.0, %v9771
        %v9773 = vpop.f32.mrb[0].mxu0
        %v9774 = vpop.f32.mrb[0].mxu0
        %v9775 = vadd.f32 0.0, %v9774
        %v9776 = vpop.f32.mrb[0].mxu0
        %9777 = vmatprep.mubr.bf16.mxu0 0
        %9778 = vmatmul.mubr.bf16.gmra.mrb[0].mxu0 %v9664
        %v9779 = vpop.f32.mrb[0].mxu0
        %v9780 = vadd.f32 0.0, %v9779
        %v9781 = vpop.f32.mrb[0].mxu0
        %v9782 = vpop.f32.mrb[0].mxu0
        %v9783 = vadd.f32 0.0, %v9782
        %v9784 = vpop.f32.mrb[0].mxu0
        %9785 = vdwg.mxu0
        %v9786 = vmul.f32 %v9724, %v9626
        %v9787 = vmul.f32 %v9727, %v9628
        %v9788 = vmul.f32 %v9732, %v9630
        %v9789 = vmul.f32 %v9735, %v9632
        %v9790 = vmul.f32 %v9740, %v9634
        %v9791 = vmul.f32 %v9743, %v9636
        %v9792 = vmul.f32 %v9748, %v9638
        %v9793 = vmul.f32 %v9751, %v9640
        %v9794 = vmul.f32 %v9756, %v9642
        %v9795 = vmul.f32 %v9759, %v9644
        %v9796 = vmul.f32 %v9764, %v9646
        %v9797 = vmul.f32 %v9767, %v9648
        %v9798 = vmul.f32 %v9772, %v9650
        %v9799 = vmul.f32 %v9775, %v9652
        %v9800 = vmul.f32 %v9780, %v9654
        %v9801 = vmul.f32 %v9783, %v9656
        %v9802 = vpack.c.bf16 %v9787, %v9786
        %v9803 = vpack.c.bf16 %v9789, %v9788
        %v9804 = vpack.c.bf16 %v9791, %v9790
        %v9805 = vpack.c.bf16 %v9793, %v9792
        %v9806 = vpack.c.bf16 %v9795, %v9794
        %v9807 = vpack.c.bf16 %v9797, %v9796
        %v9808 = vpack.c.bf16 %v9799, %v9798
        %v9809 = vpack.c.bf16 %v9801, %v9800
        %v9812 = vunpack.c.l.b16 %v7077
        %v9813 = vunpack.c.l.b16 %v7078
        %v9814 = vpack.c.b16 %v9813, %v9812
        %v9817 = vsel %vm1734, %v9802, 0
        %v9820 = vsel %vm1734, %v9803, 0
        %v9823 = vsel %vm1734, %v9804, 0
        %v9826 = vsel %vm1734, %v9805, 0
        %v9829 = vsel %vm1734, %v9806, 0
        %v9832 = vsel %vm1734, %v9807, 0
        %v9835 = vsel %vm1734, %v9808, 0
        %v9838 = vsel %vm1734, %v9809, 0
        %9840 = vmatprep.subr.bf16.mxu0 0
        %9841 = vmatpush1.bf16.msra.mxu0 %v9814
        %9842 = vmatprep.subr.bf16.mxu0 0
        %9843 = vmatpush1.bf16.msra.mxu0 0
        %9844 = vmatprep.subr.bf16.mxu0 0
        %9845 = vmatpush1.bf16.msra.mxu0 0
        %9846 = vmatprep.subr.bf16.mxu0 0
        %9847 = vmatpush1.bf16.msra.mxu0 0
        %9848 = vmatprep.subr.bf16.mxu0 0
        %9849 = vmatpush1.bf16.msra.mxu0 0
        %9850 = vmatprep.subr.bf16.mxu0 0
        %9851 = vmatpush1.bf16.msra.mxu0 0
        %9852 = vmatprep.subr.bf16.mxu0 0
        %9853 = vmatpush1.bf16.msra.mxu0 0
        %9854 = vmatprep.subr.bf16.mxu0 0
        %9855 = vmatpush1.bf16.msra.mxu0 0
        %9856 = vmatprep.subr.bf16.mxu0 0
        %9857 = vmatpush1.bf16.msra.mxu0 0
        %9858 = vmatprep.subr.bf16.mxu0 0
        %9859 = vmatpush1.bf16.msra.mxu0 0
        %9860 = vmatprep.subr.bf16.mxu0 0
        %9861 = vmatpush1.bf16.msra.mxu0 0
        %9862 = vmatprep.subr.bf16.mxu0 0
        %9863 = vmatpush1.bf16.msra.mxu0 0
        %9864 = vmatprep.subr.bf16.mxu0 0
        %9865 = vmatpush1.bf16.msra.mxu0 0
        %9866 = vmatprep.subr.bf16.mxu0 0
        %9867 = vmatpush1.bf16.msra.mxu0 0
        %9868 = vmatprep.subr.bf16.mxu0 0
        %9869 = vmatpush1.bf16.msra.mxu0 0
        %9870 = vmatprep.subr.bf16.mxu0 0
        %9871 = vmatpush1.bf16.msra.mxu0 0
        %9872 = vmatprep.mubr.bf16.mxu0 0
        %9873 = vmatmul.mubr.bf16.gmra.mrb[0].mxu0 %v9817
        %v9874 = vpop.f32.mrb[0].mxu0
        %v9875 = vadd.f32 0.0, %v9874
        %v9876 = vpop.f32.mrb[0].mxu0
        %v9877 = vpop.f32.mrb[0].mxu0
        %v9878 = vadd.f32 0.0, %v9877
        %v9879 = vpop.f32.mrb[0].mxu0
        %9880 = vmatprep.mubr.bf16.mxu0 0
        %9881 = vmatmul.mubr.bf16.gmra.mrb[0].mxu0 %v9820
        %v9882 = vpop.f32.mrb[0].mxu0
        %v9883 = vadd.f32 0.0, %v9882
        %v9884 = vpop.f32.mrb[0].mxu0
        %v9885 = vpop.f32.mrb[0].mxu0
        %v9886 = vadd.f32 0.0, %v9885
        %v9887 = vpop.f32.mrb[0].mxu0
        %9888 = vmatprep.mubr.bf16.mxu0 0
        %9889 = vmatmul.mubr.bf16.gmra.mrb[0].mxu0 %v9823
        %v9890 = vpop.f32.mrb[0].mxu0
        %v9891 = vadd.f32 0.0, %v9890
        %v9892 = vpop.f32.mrb[0].mxu0
        %v9893 = vpop.f32.mrb[0].mxu0
        %v9894 = vadd.f32 0.0, %v9893
        %v9895 = vpop.f32.mrb[0].mxu0
        %9896 = vmatprep.mubr.bf16.mxu0 0
        %9897 = vmatmul.mubr.bf16.gmra.mrb[0].mxu0 %v9826
        %v9898 = vpop.f32.mrb[0].mxu0
        %v9899 = vadd.f32 0.0, %v9898
        %v9900 = vpop.f32.mrb[0].mxu0
        %v9901 = vpop.f32.mrb[0].mxu0
        %v9902 = vadd.f32 0.0, %v9901
        %v9903 = vpop.f32.mrb[0].mxu0
        %9904 = vmatprep.mubr.bf16.mxu0 0
        %9905 = vmatmul.mubr.bf16.gmra.mrb[0].mxu0 %v9829
        %v9906 = vpop.f32.mrb[0].mxu0
        %v9907 = vadd.f32 0.0, %v9906
        %v9908 = vpop.f32.mrb[0].mxu0
        %v9909 = vpop.f32.mrb[0].mxu0
        %v9910 = vadd.f32 0.0, %v9909
        %v9911 = vpop.f32.mrb[0].mxu0
        %9912 = vmatprep.mubr.bf16.mxu0 0
        %9913 = vmatmul.mubr.bf16.gmra.mrb[0].mxu0 %v9832
        %v9914 = vpop.f32.mrb[0].mxu0
        %v9915 = vadd.f32 0.0, %v9914
        %v9916 = vpop.f32.mrb[0].mxu0
        %v9917 = vpop.f32.mrb[0].mxu0
        %v9918 = vadd.f32 0.0, %v9917
        %v9919 = vpop.f32.mrb[0].mxu0
        %9920 = vmatprep.mubr.bf16.mxu0 0
        %9921 = vmatmul.mubr.bf16.gmra.mrb[0].mxu0 %v9835
        %v9922 = vpop.f32.mrb[0].mxu0
        %v9923 = vadd.f32 0.0, %v9922
        %v9924 = vpop.f32.mrb[0].mxu0
        %v9925 = vpop.f32.mrb[0].mxu0
        %v9926 = vadd.f32 0.0, %v9925
        %v9927 = vpop.f32.mrb[0].mxu0
        %9928 = vmatprep.mubr.bf16.mxu0 0
        %9929 = vmatmul.mubr.bf16.gmra.mrb[0].mxu0 %v9838
        %v9930 = vpop.f32.mrb[0].mxu0
        %v9931 = vadd.f32 0.0, %v9930
        %v9932 = vpop.f32.mrb[0].mxu0
        %v9933 = vpop.f32.mrb[0].mxu0
        %v9934 = vadd.f32 0.0, %v9933
        %v9935 = vpop.f32.mrb[0].mxu0
        %9936 = vdwg.mxu0
        %v9937 = vadd.f32 %v9320, %v9875
        %v9938 = vadd.f32 %v9321, %v9878
        %v9939 = vadd.f32 %v9322, %v9883
        %v9940 = vadd.f32 %v9323, %v9886
        %v9941 = vadd.f32 %v9324, %v9891
        %v9942 = vadd.f32 %v9325, %v9894
        %v9943 = vadd.f32 %v9326, %v9899
        %v9944 = vadd.f32 %v9327, %v9902
        %v9945 = vadd.f32 %v9328, %v9907
        %v9946 = vadd.f32 %v9329, %v9910
        %v9947 = vadd.f32 %v9330, %v9915
        %v9948 = vadd.f32 %v9331, %v9918
        %v9949 = vadd.f32 %v9332, %v9923
        %v9950 = vadd.f32 %v9333, %v9926
        %v9951 = vadd.f32 %v9334, %v9931
        %v9952 = vadd.f32 %v9335, %v9934
        %v9953 = vld [vmem:[#allocation16] sm:$0xff]
        %v9954 = vld [vmem:[#allocation16 + $0x8] sm:$0xff]
        %9955 = vmatprep.subr.mxu0 0.0
        %9956 = vmatpush1.msra.mxu0 %v9937
        %9957 = vmatprep.subr.mxu0 0.0
        %9958 = vmatpush1.msra.mxu0 %v9938
        %9959 = vmatprep.subr.mxu0 0.0
        %9960 = vmatpush1.msra.mxu0 %v9939
        %9961 = vmatprep.subr.mxu0 0.0
        %9962 = vmatpush1.msra.mxu0 %v9940
        %9963 = vmatprep.subr.mxu0 0.0
        %9964 = vmatpush1.msra.mxu0 %v9941
        %9965 = vmatprep.subr.mxu0 0.0
        %9966 = vmatpush1.msra.mxu0 %v9942
        %9967 = vmatprep.subr.mxu0 0.0
        %9968 = vmatpush1.msra.mxu0 %v9943
        %9969 = vmatprep.subr.mxu0 0.0
        %9970 = vmatpush1.msra.mxu0 %v9944
        %9971 = vmatprep.subr.mxu0 0.0
        %9972 = vmatpush1.msra.mxu0 %v9945
        %9973 = vmatprep.subr.mxu0 0.0
        %9974 = vmatpush1.msra.mxu0 %v9946
        %9975 = vmatprep.subr.mxu0 0.0
        %9976 = vmatpush1.msra.mxu0 %v9947
        %9977 = vmatprep.subr.mxu0 0.0
        %9978 = vmatpush1.msra.mxu0 %v9948
        %9979 = vmatprep.subr.mxu0 0.0
        %9980 = vmatpush1.msra.mxu0 %v9949
        %9981 = vmatprep.subr.mxu0 0.0
        %9982 = vmatpush1.msra.mxu0 %v9950
        %9983 = vmatprep.subr.mxu0 0.0
        %9984 = vmatpush1.msra.mxu0 %v9951
        %9985 = vmatprep.subr.mxu0 0.0
        %9986 = vmatpush1.msra.mxu0 %v9952
        %9987 = vmatprep.subr.mxu0 0.0
        %9988 = vmatpush1.msra.mxu0 0.0
        %9989 = vmatprep.subr.mxu0 0.0
        %9990 = vmatpush1.msra.mxu0 0.0
        %9991 = vmatprep.subr.mxu0 0.0
        %9992 = vmatpush1.msra.mxu0 0.0
        %9993 = vmatprep.subr.mxu0 0.0
        %9994 = vmatpush1.msra.mxu0 0.0
        %9995 = vmatprep.subr.mxu0 0.0
        %9996 = vmatpush1.msra.mxu0 0.0
        %9997 = vmatprep.subr.mxu0 0.0
        %9998 = vmatpush1.msra.mxu0 0.0
        %9999 = vmatprep.subr.mxu0 0.0
        %10000 = vmatpush1.msra.mxu0 0.0
        %10001 = vmatprep.subr.mxu0 0.0
        %10002 = vmatpush1.msra.mxu0 0.0
        %10003 = vmatprep.subr.mxu0 0.0
        %10004 = vmatpush1.msra.mxu0 0.0
        %10005 = vmatprep.subr.mxu0 0.0
        %10006 = vmatpush1.msra.mxu0 0.0
        %10007 = vmatprep.subr.mxu0 0.0
        %10008 = vmatpush1.msra.mxu0 0.0
        %10009 = vmatprep.subr.mxu0 0.0
        %10010 = vmatpush1.msra.mxu0 0.0
        %10011 = vmatprep.subr.mxu0 0.0
        %10012 = vmatpush1.msra.mxu0 0.0
        %10013 = vmatprep.subr.mxu0 0.0
        %10014 = vmatpush1.msra.mxu0 0.0
        %10015 = vmatprep.subr.mxu0 0.0
        %10016 = vmatpush1.msra.mxu0 0.0
        %10017 = vmatprep.subr.mxu0 0.0
        %10018 = vmatpush1.msra.mxu0 0.0
        %10019 = vmatprep.mubr.f32.mxu0 0.0
        %10020 = vmatmul.mubr.f32.gmra.mrb[0].mxu0 %v9953
        %v10021 = vpop.f32.mrb[0].mxu0
        %v10022 = vadd.f32 0.0, %v10021
        %v10023 = vpop.f32.mrb[0].mxu0
        %10024 = vmatprep.mubr.f32.mxu0 0.0
        %10025 = vmatmul.mubr.f32.gmra.mrb[0].mxu0 %v9954
        %v10026 = vpop.f32.mrb[0].mxu0
        %v10027 = vadd.f32 0.0, %v10026
        %v10028 = vpop.f32.mrb[0].mxu0
        %10029 = vdwg.mxu0
        %v10030 = vld [vmem:[#allocation11] sm:$0xff]
        %v10031 = vld [vmem:[#allocation11 + $0x8] sm:$0xff]
        %v10032 = vld [vmem:[#allocation11 + $0x10] sm:$0xff]
        %v10033 = vld [vmem:[#allocation11 + $0x18] sm:$0xff]
        %v10034 = vld [vmem:[#allocation11 + $0x20] sm:$0xff]
        %v10035 = vld [vmem:[#allocation11 + $0x28] sm:$0xff]
        %v10036 = vld [vmem:[#allocation11 + $0x30] sm:$0xff]
        %v10037 = vld [vmem:[#allocation11 + $0x38] sm:$0xff]
        %v10039 = vsel %vm1330, %v10022, 0
        %v10042 = vsel %vm1330, %v10027, 0
        %10044 = vmatprep.subr.mxu0 0.0
        %10045 = vmatpush1.msra.mxu0 %v10030
        %10046 = vmatprep.subr.mxu0 0.0
        %10047 = vmatpush1.msra.mxu0 %v10031
        %10048 = vmatprep.subr.mxu0 0.0
        %10049 = vmatpush1.msra.mxu0 %v10032
        %10050 = vmatprep.subr.mxu0 0.0
        %10051 = vmatpush1.msra.mxu0 %v10033
        %10052 = vmatprep.subr.mxu0 0.0
        %10053 = vmatpush1.msra.mxu0 %v10034
        %10054 = vmatprep.subr.mxu0 0.0
        %10055 = vmatpush1.msra.mxu0 %v10035
        %10056 = vmatprep.subr.mxu0 0.0
        %10057 = vmatpush1.msra.mxu0 %v10036
        %10058 = vmatprep.subr.mxu0 0.0
        %10059 = vmatpush1.msra.mxu0 %v10037
        %10060 = vmatprep.subr.mxu0 0.0
        %10061 = vmatpush1.msra.mxu0 0.0
        %10062 = vmatprep.subr.mxu0 0.0
        %10063 = vmatpush1.msra.mxu0 0.0
        %10064 = vmatprep.subr.mxu0 0.0
        %10065 = vmatpush1.msra.mxu0 0.0
        %10066 = vmatprep.subr.mxu0 0.0
        %10067 = vmatpush1.msra.mxu0 0.0
        %10068 = vmatprep.subr.mxu0 0.0
        %10069 = vmatpush1.msra.mxu0 0.0
        %10070 = vmatprep.subr.mxu0 0.0
        %10071 = vmatpush1.msra.mxu0 0.0
        %10072 = vmatprep.subr.mxu0 0.0
        %10073 = vmatpush1.msra.mxu0 0.0
        %10074 = vmatprep.subr.mxu0 0.0
        %10075 = vmatpush1.msra.mxu0 0.0
        %10076 = vmatprep.subr.mxu0 0.0
        %10077 = vmatpush1.msra.mxu0 0.0
        %10078 = vmatprep.subr.mxu0 0.0
        %10079 = vmatpush1.msra.mxu0 0.0
        %10080 = vmatprep.subr.mxu0 0.0
        %10081 = vmatpush1.msra.mxu0 0.0
        %10082 = vmatprep.subr.mxu0 0.0
        %10083 = vmatpush1.msra.mxu0 0.0
        %10084 = vmatprep.subr.mxu0 0.0
        %10085 = vmatpush1.msra.mxu0 0.0
        %10086 = vmatprep.subr.mxu0 0.0
        %10087 = vmatpush1.msra.mxu0 0.0
        %10088 = vmatprep.subr.mxu0 0.0
        %10089 = vmatpush1.msra.mxu0 0.0
        %10090 = vmatprep.subr.mxu0 0.0
        %10091 = vmatpush1.msra.mxu0 0.0
        %10092 = vmatprep.subr.mxu0 0.0
        %10093 = vmatpush1.msra.mxu0 0.0
        %10094 = vmatprep.subr.mxu0 0.0
        %10095 = vmatpush1.msra.mxu0 0.0
        %10096 = vmatprep.subr.mxu0 0.0
        %10097 = vmatpush1.msra.mxu0 0.0
        %10098 = vmatprep.subr.mxu0 0.0
        %10099 = vmatpush1.msra.mxu0 0.0
        %10100 = vmatprep.subr.mxu0 0.0
        %10101 = vmatpush1.msra.mxu0 0.0
        %10102 = vmatprep.subr.mxu0 0.0
        %10103 = vmatpush1.msra.mxu0 0.0
        %10104 = vmatprep.subr.mxu0 0.0
        %10105 = vmatpush1.msra.mxu0 0.0
        %10106 = vmatprep.subr.mxu0 0.0
        %10107 = vmatpush1.msra.mxu0 0.0
        %10108 = vmatprep.mubr.f32.mxu0 0.0
        %10109 = vmatmul.mubr.f32.gmra.mrb[0].mxu0 %v10039
        %v10110 = vpop.f32.mrb[0].mxu0
        %v10111 = vadd.f32 0.0, %v10110
        %v10112 = vpop.f32.mrb[0].mxu0
        %10113 = vmatprep.mubr.f32.mxu0 0.0
        %10114 = vmatmul.mubr.f32.gmra.mrb[0].mxu0 %v10042
        %v10115 = vpop.f32.mrb[0].mxu0
        %v10116 = vadd.f32 0.0, %v10115
        %v10117 = vpop.f32.mrb[0].mxu0
        %10118 = vdwg.mxu0
        %v10119 = vmax.f32 %v10111, 0.0
        %v10120 = vmax.f32 %v10116, 0.0
        %v10121 = vmax.f32 %v9937, 0.0
        %v10122 = vmax.f32 %v9938, 0.0
        %v10123 = vmax.f32 %v9939, 0.0
        %v10124 = vmax.f32 %v9940, 0.0
        %v10125 = vmax.f32 %v9941, 0.0
        %v10126 = vmax.f32 %v9942, 0.0
        %v10127 = vmax.f32 %v9943, 0.0
        %v10128 = vmax.f32 %v9944, 0.0
        %v10129 = vmax.f32 %v9945, 0.0
        %v10130 = vmax.f32 %v9946, 0.0
        %v10131 = vmax.f32 %v9947, 0.0
        %v10132 = vmax.f32 %v9948, 0.0
        %v10133 = vmax.f32 %v9949, 0.0
        %v10134 = vmax.f32 %v9950, 0.0
        %v10135 = vmax.f32 %v9951, 0.0
        %v10136 = vmax.f32 %v9952, 0.0
        %v10137 = vpack.c.bf16 %v10122, %v10121
        %v10138 = vpack.c.bf16 %v10124, %v10123
        %v10139 = vpack.c.bf16 %v10126, %v10125
        %v10140 = vpack.c.bf16 %v10128, %v10127
        %v10141 = vpack.c.bf16 %v10130, %v10129
        %v10142 = vpack.c.bf16 %v10132, %v10131
        %v10143 = vpack.c.bf16 %v10134, %v10133
        %v10144 = vpack.c.bf16 %v10136, %v10135
        %v10145 = vld [vmem:[#allocation14] sm:$0xff]
        %v10146 = vld [vmem:[#allocation14 + $0x8] sm:$0xff]
        %v10147 = vld [vmem:[#allocation14 + $0x10] sm:$0xff]
        %v10148 = vld [vmem:[#allocation14 + $0x18] sm:$0xff]
        %v10149 = vld [vmem:[#allocation14 + $0x20] sm:$0xff]
        %v10150 = vld [vmem:[#allocation14 + $0x28] sm:$0xff]
        %v10151 = vld [vmem:[#allocation14 + $0x30] sm:$0xff]
        %v10152 = vld [vmem:[#allocation14 + $0x38] sm:$0xff]
        %v10161 = vunpack.c.l.b16 %v10145
        %v10162 = vunpack.c.h.b16 %v10145
        %v10163 = vunpack.c.l.b16 %v10146
        %v10164 = vunpack.c.h.b16 %v10146
        %v10165 = vunpack.c.l.b16 %v10147
        %v10166 = vunpack.c.h.b16 %v10147
        %v10167 = vunpack.c.l.b16 %v10148
        %v10168 = vunpack.c.h.b16 %v10148
        %v10169 = vunpack.c.l.b16 %v10149
        %v10170 = vunpack.c.h.b16 %v10149
        %v10171 = vunpack.c.l.b16 %v10150
        %v10172 = vunpack.c.h.b16 %v10150
        %v10173 = vunpack.c.l.b16 %v10151
        %v10174 = vunpack.c.h.b16 %v10151
        %v10175 = vunpack.c.l.b16 %v10152
        %v10176 = vunpack.c.h.b16 %v10152
        %v10177 = vpack.c.b16 %v10163, %v10161
        %v10178 = vpack.c.b16 %v10164, %v10162
        %v10179 = vpack.c.b16 %v10167, %v10165
        %v10180 = vpack.c.b16 %v10168, %v10166
        %v10181 = vpack.c.b16 %v10171, %v10169
        %v10182 = vpack.c.b16 %v10172, %v10170
        %v10183 = vpack.c.b16 %v10175, %v10173
        %v10184 = vpack.c.b16 %v10176, %v10174
        %v10194 = vsel %vm1330, %v10137, 0
        %v10197 = vsel %vm1330, %v10138, 0
        %v10200 = vsel %vm1330, %v10139, 0
        %v10203 = vsel %vm1330, %v10140, 0
        %v10206 = vsel %vm1330, %v10141, 0
        %v10209 = vsel %vm1330, %v10142, 0
        %v10212 = vsel %vm1330, %v10143, 0
        %v10215 = vsel %vm1330, %v10144, 0
        %10217 = vmatprep.subr.bf16.mxu0 %v10178
        %10218 = vmatpush1.bf16.msra.mxu0 %v10177
        %10219 = vmatprep.subr.bf16.mxu0 %v10180
        %10220 = vmatpush1.bf16.msra.mxu0 %v10179
        %10221 = vmatprep.subr.bf16.mxu0 %v10182
        %10222 = vmatpush1.bf16.msra.mxu0 %v10181
        %10223 = vmatprep.subr.bf16.mxu0 %v10184
        %10224 = vmatpush1.bf16.msra.mxu0 %v10183
        %10225 = vmatprep.subr.bf16.mxu0 0
        %10226 = vmatpush1.bf16.msra.mxu0 0
        %10227 = vmatprep.subr.bf16.mxu0 0
        %10228 = vmatpush1.bf16.msra.mxu0 0
        %10229 = vmatprep.subr.bf16.mxu0 0
        %10230 = vmatpush1.bf16.msra.mxu0 0
        %10231 = vmatprep.subr.bf16.mxu0 0
        %10232 = vmatpush1.bf16.msra.mxu0 0
        %10233 = vmatprep.subr.bf16.mxu0 0
        %10234 = vmatpush1.bf16.msra.mxu0 0
        %10235 = vmatprep.subr.bf16.mxu0 0
        %10236 = vmatpush1.bf16.msra.mxu0 0
        %10237 = vmatprep.subr.bf16.mxu0 0
        %10238 = vmatpush1.bf16.msra.mxu0 0
        %10239 = vmatprep.subr.bf16.mxu0 0
        %10240 = vmatpush1.bf16.msra.mxu0 0
        %10241 = vmatprep.subr.bf16.mxu0 0
        %10242 = vmatpush1.bf16.msra.mxu0 0
        %10243 = vmatprep.subr.bf16.mxu0 0
        %10244 = vmatpush1.bf16.msra.mxu0 0
        %10245 = vmatprep.subr.bf16.mxu0 0
        %10246 = vmatpush1.bf16.msra.mxu0 0
        %10247 = vmatprep.subr.bf16.mxu0 0
        %10248 = vmatpush1.bf16.msra.mxu0 0
        %10249 = vmatprep.mubr.bf16.mxu0 0
        %10250 = vmatmul.mubr.bf16.gmra.mrb[0].mxu0 %v10194
        %v10251 = vpop.f32.mrb[0].mxu0
        %v10252 = vadd.f32 0.0, %v10251
        %v10253 = vpop.f32.mrb[0].mxu0
        %v10254 = vadd.f32 0.0, %v10253
        %v10255 = vpop.f32.mrb[0].mxu0
        %v10256 = vadd.f32 0.0, %v10255
        %v10257 = vpop.f32.mrb[0].mxu0
        %v10258 = vadd.f32 0.0, %v10257
        %10259 = vmatprep.mubr.bf16.mxu0 0
        %10260 = vmatmul.mubr.bf16.gmra.mrb[0].mxu0 %v10197
        %v10261 = vpop.f32.mrb[0].mxu0
        %v10262 = vadd.f32 0.0, %v10261
        %v10263 = vpop.f32.mrb[0].mxu0
        %v10264 = vadd.f32 0.0, %v10263
        %v10265 = vpop.f32.mrb[0].mxu0
        %v10266 = vadd.f32 0.0, %v10265
        %v10267 = vpop.f32.mrb[0].mxu0
        %v10268 = vadd.f32 0.0, %v10267
        %10269 = vmatprep.mubr.bf16.mxu0 0
        %10270 = vmatmul.mubr.bf16.gmra.mrb[0].mxu0 %v10200
        %v10271 = vpop.f32.mrb[0].mxu0
        %v10272 = vadd.f32 0.0, %v10271
        %v10273 = vpop.f32.mrb[0].mxu0
        %v10274 = vadd.f32 0.0, %v10273
        %v10275 = vpop.f32.mrb[0].mxu0
        %v10276 = vadd.f32 0.0, %v10275
        %v10277 = vpop.f32.mrb[0].mxu0
        %v10278 = vadd.f32 0.0, %v10277
        %10279 = vmatprep.mubr.bf16.mxu0 0
        %10280 = vmatmul.mubr.bf16.gmra.mrb[0].mxu0 %v10203
        %v10281 = vpop.f32.mrb[0].mxu0
        %v10282 = vadd.f32 0.0, %v10281
        %v10283 = vpop.f32.mrb[0].mxu0
        %v10284 = vadd.f32 0.0, %v10283
        %v10285 = vpop.f32.mrb[0].mxu0
        %v10286 = vadd.f32 0.0, %v10285
        %v10287 = vpop.f32.mrb[0].mxu0
        %v10288 = vadd.f32 0.0, %v10287
        %10289 = vmatprep.mubr.bf16.mxu0 0
        %10290 = vmatmul.mubr.bf16.gmra.mrb[0].mxu0 %v10206
        %v10291 = vpop.f32.mrb[0].mxu0
        %v10292 = vadd.f32 0.0, %v10291
        %v10293 = vpop.f32.mrb[0].mxu0
        %v10294 = vadd.f32 0.0, %v10293
        %v10295 = vpop.f32.mrb[0].mxu0
        %v10296 = vadd.f32 0.0, %v10295
        %v10297 = vpop.f32.mrb[0].mxu0
        %v10298 = vadd.f32 0.0, %v10297
        %10299 = vmatprep.mubr.bf16.mxu0 0
        %10300 = vmatmul.mubr.bf16.gmra.mrb[0].mxu0 %v10209
        %v10301 = vpop.f32.mrb[0].mxu0
        %v10302 = vadd.f32 0.0, %v10301
        %v10303 = vpop.f32.mrb[0].mxu0
        %v10304 = vadd.f32 0.0, %v10303
        %v10305 = vpop.f32.mrb[0].mxu0
        %v10306 = vadd.f32 0.0, %v10305
        %v10307 = vpop.f32.mrb[0].mxu0
        %v10308 = vadd.f32 0.0, %v10307
        %10309 = vmatprep.mubr.bf16.mxu0 0
        %10310 = vmatmul.mubr.bf16.gmra.mrb[0].mxu0 %v10212
        %v10311 = vpop.f32.mrb[0].mxu0
        %v10312 = vadd.f32 0.0, %v10311
        %v10313 = vpop.f32.mrb[0].mxu0
        %v10314 = vadd.f32 0.0, %v10313
        %v10315 = vpop.f32.mrb[0].mxu0
        %v10316 = vadd.f32 0.0, %v10315
        %v10317 = vpop.f32.mrb[0].mxu0
        %v10318 = vadd.f32 0.0, %v10317
        %10319 = vmatprep.mubr.bf16.mxu0 0
        %10320 = vmatmul.mubr.bf16.gmra.mrb[0].mxu0 %v10215
        %v10321 = vpop.f32.mrb[0].mxu0
        %v10322 = vadd.f32 0.0, %v10321
        %v10323 = vpop.f32.mrb[0].mxu0
        %v10324 = vadd.f32 0.0, %v10323
        %v10325 = vpop.f32.mrb[0].mxu0
        %v10326 = vadd.f32 0.0, %v10325
        %v10327 = vpop.f32.mrb[0].mxu0
        %v10328 = vadd.f32 0.0, %v10327
        %10329 = vdwg.mxu0
        %v10330 = vld [vmem:[%s10] sm:$0xff]
        %v10331 = vld [vmem:[%s10 + $0x8] sm:$0xff]
        %v10332 = vld [vmem:[%s10 + $0x10] sm:$0xff]
        %v10333 = vld [vmem:[%s10 + $0x18] sm:$0xff]
        %v10334 = vld [vmem:[%s10 + $0x20] sm:$0xff]
        %v10335 = vld [vmem:[%s10 + $0x28] sm:$0xff]
        %v10336 = vld [vmem:[%s10 + $0x30] sm:$0xff]
        %v10337 = vld [vmem:[%s10 + $0x38] sm:$0xff]
        %v10346 = vunpack.c.l.b16 %v10330
        %v10347 = vunpack.c.h.b16 %v10330
        %v10348 = vunpack.c.l.b16 %v10331
        %v10349 = vunpack.c.h.b16 %v10331
        %v10350 = vunpack.c.l.b16 %v10332
        %v10351 = vunpack.c.h.b16 %v10332
        %v10352 = vunpack.c.l.b16 %v10333
        %v10353 = vunpack.c.h.b16 %v10333
        %v10354 = vunpack.c.l.b16 %v10334
        %v10355 = vunpack.c.h.b16 %v10334
        %v10356 = vunpack.c.l.b16 %v10335
        %v10357 = vunpack.c.h.b16 %v10335
        %v10358 = vunpack.c.l.b16 %v10336
        %v10359 = vunpack.c.h.b16 %v10336
        %v10360 = vunpack.c.l.b16 %v10337
        %v10361 = vunpack.c.h.b16 %v10337
        %v10362 = vpack.c.b16 %v10348, %v10346
        %v10363 = vpack.c.b16 %v10349, %v10347
        %v10364 = vpack.c.b16 %v10352, %v10350
        %v10365 = vpack.c.b16 %v10353, %v10351
        %v10366 = vpack.c.b16 %v10356, %v10354
        %v10367 = vpack.c.b16 %v10357, %v10355
        %v10368 = vpack.c.b16 %v10360, %v10358
        %v10369 = vpack.c.b16 %v10361, %v10359
        %10378 = vmatprep.subr.bf16.mxu0 %v10363
        %10379 = vmatpush1.bf16.msra.mxu0 %v10362
        %10380 = vmatprep.subr.bf16.mxu0 %v10365
        %10381 = vmatpush1.bf16.msra.mxu0 %v10364
        %10382 = vmatprep.subr.bf16.mxu0 %v10367
        %10383 = vmatpush1.bf16.msra.mxu0 %v10366
        %10384 = vmatprep.subr.bf16.mxu0 %v10369
        %10385 = vmatpush1.bf16.msra.mxu0 %v10368
        %10386 = vmatprep.subr.bf16.mxu0 0
        %10387 = vmatpush1.bf16.msra.mxu0 0
        %10388 = vmatprep.subr.bf16.mxu0 0
        %10389 = vmatpush1.bf16.msra.mxu0 0
        %10390 = vmatprep.subr.bf16.mxu0 0
        %10391 = vmatpush1.bf16.msra.mxu0 0
        %10392 = vmatprep.subr.bf16.mxu0 0
        %10393 = vmatpush1.bf16.msra.mxu0 0
        %10394 = vmatprep.subr.bf16.mxu0 0
        %10395 = vmatpush1.bf16.msra.mxu0 0
        %10396 = vmatprep.subr.bf16.mxu0 0
        %10397 = vmatpush1.bf16.msra.mxu0 0
        %10398 = vmatprep.subr.bf16.mxu0 0
        %10399 = vmatpush1.bf16.msra.mxu0 0
        %10400 = vmatprep.subr.bf16.mxu0 0
        %10401 = vmatpush1.bf16.msra.mxu0 0
        %10402 = vmatprep.subr.bf16.mxu0 0
        %10403 = vmatpush1.bf16.msra.mxu0 0
        %10404 = vmatprep.subr.bf16.mxu0 0
        %10405 = vmatpush1.bf16.msra.mxu0 0
        %10406 = vmatprep.subr.bf16.mxu0 0
        %10407 = vmatpush1.bf16.msra.mxu0 0
        %10408 = vmatprep.subr.bf16.mxu0 0
        %10409 = vmatpush1.bf16.msra.mxu0 0
        %10410 = vmatprep.mubr.bf16.mxu0 0
        %10411 = vmatmul.mubr.bf16.gmra.mrb[0].mxu0 %v10194
        %v10412 = vpop.f32.mrb[0].mxu0
        %v10413 = vadd.f32 0.0, %v10412
        %v10414 = vpop.f32.mrb[0].mxu0
        %v10415 = vadd.f32 0.0, %v10414
        %v10416 = vpop.f32.mrb[0].mxu0
        %v10417 = vadd.f32 0.0, %v10416
        %v10418 = vpop.f32.mrb[0].mxu0
        %v10419 = vadd.f32 0.0, %v10418
        %10420 = vmatprep.mubr.bf16.mxu0 0
        %10421 = vmatmul.mubr.bf16.gmra.mrb[0].mxu0 %v10197
        %v10422 = vpop.f32.mrb[0].mxu0
        %v10423 = vadd.f32 0.0, %v10422
        %v10424 = vpop.f32.mrb[0].mxu0
        %v10425 = vadd.f32 0.0, %v10424
        %v10426 = vpop.f32.mrb[0].mxu0
        %v10427 = vadd.f32 0.0, %v10426
        %v10428 = vpop.f32.mrb[0].mxu0
        %v10429 = vadd.f32 0.0, %v10428
        %10430 = vmatprep.mubr.bf16.mxu0 0
        %10431 = vmatmul.mubr.bf16.gmra.mrb[0].mxu0 %v10200
        %v10432 = vpop.f32.mrb[0].mxu0
        %v10433 = vadd.f32 0.0, %v10432
        %v10434 = vpop.f32.mrb[0].mxu0
        %v10435 = vadd.f32 0.0, %v10434
        %v10436 = vpop.f32.mrb[0].mxu0
        %v10437 = vadd.f32 0.0, %v10436
        %v10438 = vpop.f32.mrb[0].mxu0
        %v10439 = vadd.f32 0.0, %v10438
        %10440 = vmatprep.mubr.bf16.mxu0 0
        %10441 = vmatmul.mubr.bf16.gmra.mrb[0].mxu0 %v10203
        %v10442 = vpop.f32.mrb[0].mxu0
        %v10443 = vadd.f32 0.0, %v10442
        %v10444 = vpop.f32.mrb[0].mxu0
        %v10445 = vadd.f32 0.0, %v10444
        %v10446 = vpop.f32.mrb[0].mxu0
        %v10447 = vadd.f32 0.0, %v10446
        %v10448 = vpop.f32.mrb[0].mxu0
        %v10449 = vadd.f32 0.0, %v10448
        %10450 = vmatprep.mubr.bf16.mxu0 0
        %10451 = vmatmul.mubr.bf16.gmra.mrb[0].mxu0 %v10206
        %v10452 = vpop.f32.mrb[0].mxu0
        %v10453 = vadd.f32 0.0, %v10452
        %v10454 = vpop.f32.mrb[0].mxu0
        %v10455 = vadd.f32 0.0, %v10454
        %v10456 = vpop.f32.mrb[0].mxu0
        %v10457 = vadd.f32 0.0, %v10456
        %v10458 = vpop.f32.mrb[0].mxu0
        %v10459 = vadd.f32 0.0, %v10458
        %10460 = vmatprep.mubr.bf16.mxu0 0
        %10461 = vmatmul.mubr.bf16.gmra.mrb[0].mxu0 %v10209
        %v10462 = vpop.f32.mrb[0].mxu0
        %v10463 = vadd.f32 0.0, %v10462
        %v10464 = vpop.f32.mrb[0].mxu0
        %v10465 = vadd.f32 0.0, %v10464
        %v10466 = vpop.f32.mrb[0].mxu0
        %v10467 = vadd.f32 0.0, %v10466
        %v10468 = vpop.f32.mrb[0].mxu0
        %v10469 = vadd.f32 0.0, %v10468
        %10470 = vmatprep.mubr.bf16.mxu0 0
        %10471 = vmatmul.mubr.bf16.gmra.mrb[0].mxu0 %v10212
        %v10472 = vpop.f32.mrb[0].mxu0
        %v10473 = vadd.f32 0.0, %v10472
        %v10474 = vpop.f32.mrb[0].mxu0
        %v10475 = vadd.f32 0.0, %v10474
        %v10476 = vpop.f32.mrb[0].mxu0
        %v10477 = vadd.f32 0.0, %v10476
        %v10478 = vpop.f32.mrb[0].mxu0
        %v10479 = vadd.f32 0.0, %v10478
        %10480 = vmatprep.mubr.bf16.mxu0 0
        %10481 = vmatmul.mubr.bf16.gmra.mrb[0].mxu0 %v10215
        %v10482 = vpop.f32.mrb[0].mxu0
        %v10483 = vadd.f32 0.0, %v10482
        %v10484 = vpop.f32.mrb[0].mxu0
        %v10485 = vadd.f32 0.0, %v10484
        %v10486 = vpop.f32.mrb[0].mxu0
        %v10487 = vadd.f32 0.0, %v10486
        %v10488 = vpop.f32.mrb[0].mxu0
        %v10489 = vadd.f32 0.0, %v10488
        %10490 = vdwg.mxu0
        %v10491 = vld [vmem:[%s15] sm:$0xff]
        %v10492 = vld [vmem:[%s15 + $0x8] sm:$0xff]
        %v10493 = vld [vmem:[%s15 + $0x10] sm:$0xff]
        %v10494 = vld [vmem:[%s15 + $0x18] sm:$0xff]
        %v10495 = vld [vmem:[%s15 + $0x20] sm:$0xff]
        %v10496 = vld [vmem:[%s15 + $0x28] sm:$0xff]
        %v10497 = vld [vmem:[%s15 + $0x30] sm:$0xff]
        %v10498 = vld [vmem:[%s15 + $0x38] sm:$0xff]
        %v10499 = vld [vmem:[%s15 + $0x40] sm:$0xff]
        %v10500 = vld [vmem:[%s15 + $0x48] sm:$0xff]
        %v10501 = vld [vmem:[%s15 + $0x50] sm:$0xff]
        %v10502 = vld [vmem:[%s15 + $0x58] sm:$0xff]
        %v10503 = vld [vmem:[%s15 + $0x60] sm:$0xff]
        %v10504 = vld [vmem:[%s15 + $0x68] sm:$0xff]
        %v10505 = vld [vmem:[%s15 + $0x70] sm:$0xff]
        %v10506 = vld [vmem:[%s15 + $0x78] sm:$0xff]
        %v10507 = vld [vmem:[%s15 + $0x80] sm:$0xff]
        %v10508 = vld [vmem:[%s15 + $0x88] sm:$0xff]
        %v10509 = vld [vmem:[%s15 + $0x90] sm:$0xff]
        %v10510 = vld [vmem:[%s15 + $0x98] sm:$0xff]
        %v10511 = vld [vmem:[%s15 + $0xa0] sm:$0xff]
        %v10512 = vld [vmem:[%s15 + $0xa8] sm:$0xff]
        %v10513 = vld [vmem:[%s15 + $0xb0] sm:$0xff]
        %v10514 = vld [vmem:[%s15 + $0xb8] sm:$0xff]
        %v10515 = vld [vmem:[%s15 + $0xc0] sm:$0xff]
        %v10516 = vld [vmem:[%s15 + $0xc8] sm:$0xff]
        %v10517 = vld [vmem:[%s15 + $0xd0] sm:$0xff]
        %v10518 = vld [vmem:[%s15 + $0xd8] sm:$0xff]
        %v10519 = vld [vmem:[%s15 + $0xe0] sm:$0xff]
        %v10520 = vld [vmem:[%s15 + $0xe8] sm:$0xff]
        %v10521 = vld [vmem:[%s15 + $0xf0] sm:$0xff]
        %v10522 = vld [vmem:[%s15 + $0xf8] sm:$0xff]
        %v10523 = vmul.f32 %v10252, %v10491
        %v10524 = vmul.f32 %v10254, %v10492
        %v10525 = vmul.f32 %v10256, %v10493
        %v10526 = vmul.f32 %v10258, %v10494
        %v10527 = vmul.f32 %v10262, %v10495
        %v10528 = vmul.f32 %v10264, %v10496
        %v10529 = vmul.f32 %v10266, %v10497
        %v10530 = vmul.f32 %v10268, %v10498
        %v10531 = vmul.f32 %v10272, %v10499
        %v10532 = vmul.f32 %v10274, %v10500
        %v10533 = vmul.f32 %v10276, %v10501
        %v10534 = vmul.f32 %v10278, %v10502
        %v10535 = vmul.f32 %v10282, %v10503
        %v10536 = vmul.f32 %v10284, %v10504
        %v10537 = vmul.f32 %v10286, %v10505
        %v10538 = vmul.f32 %v10288, %v10506
        %v10539 = vmul.f32 %v10292, %v10507
        %v10540 = vmul.f32 %v10294, %v10508
        %v10541 = vmul.f32 %v10296, %v10509
        %v10542 = vmul.f32 %v10298, %v10510
        %v10543 = vmul.f32 %v10302, %v10511
        %v10544 = vmul.f32 %v10304, %v10512
        %v10545 = vmul.f32 %v10306, %v10513
        %v10546 = vmul.f32 %v10308, %v10514
        %v10547 = vmul.f32 %v10312, %v10515
        %v10548 = vmul.f32 %v10314, %v10516
        %v10549 = vmul.f32 %v10316, %v10517
        %v10550 = vmul.f32 %v10318, %v10518
        %v10551 = vmul.f32 %v10322, %v10519
        %v10552 = vmul.f32 %v10324, %v10520
        %v10553 = vmul.f32 %v10326, %v10521
        %v10554 = vmul.f32 %v10328, %v10522
        %v10555 = vld [vmem:[%s16] sm:$0xff]
        %v10556 = vld [vmem:[%s16 + $0x8] sm:$0xff]
        %v10557 = vld [vmem:[%s16 + $0x10] sm:$0xff]
        %v10558 = vld [vmem:[%s16 + $0x18] sm:$0xff]
        %v10559 = vld [vmem:[%s16 + $0x20] sm:$0xff]
        %v10560 = vld [vmem:[%s16 + $0x28] sm:$0xff]
        %v10561 = vld [vmem:[%s16 + $0x30] sm:$0xff]
        %v10562 = vld [vmem:[%s16 + $0x38] sm:$0xff]
        %v10563 = vld [vmem:[%s16 + $0x40] sm:$0xff]
        %v10564 = vld [vmem:[%s16 + $0x48] sm:$0xff]
        %v10565 = vld [vmem:[%s16 + $0x50] sm:$0xff]
        %v10566 = vld [vmem:[%s16 + $0x58] sm:$0xff]
        %v10567 = vld [vmem:[%s16 + $0x60] sm:$0xff]
        %v10568 = vld [vmem:[%s16 + $0x68] sm:$0xff]
        %v10569 = vld [vmem:[%s16 + $0x70] sm:$0xff]
        %v10570 = vld [vmem:[%s16 + $0x78] sm:$0xff]
        %v10571 = vld [vmem:[%s16 + $0x80] sm:$0xff]
        %v10572 = vld [vmem:[%s16 + $0x88] sm:$0xff]
        %v10573 = vld [vmem:[%s16 + $0x90] sm:$0xff]
        %v10574 = vld [vmem:[%s16 + $0x98] sm:$0xff]
        %v10575 = vld [vmem:[%s16 + $0xa0] sm:$0xff]
        %v10576 = vld [vmem:[%s16 + $0xa8] sm:$0xff]
        %v10577 = vld [vmem:[%s16 + $0xb0] sm:$0xff]
        %v10578 = vld [vmem:[%s16 + $0xb8] sm:$0xff]
        %v10579 = vld [vmem:[%s16 + $0xc0] sm:$0xff]
        %v10580 = vld [vmem:[%s16 + $0xc8] sm:$0xff]
        %v10581 = vld [vmem:[%s16 + $0xd0] sm:$0xff]
        %v10582 = vld [vmem:[%s16 + $0xd8] sm:$0xff]
        %v10583 = vld [vmem:[%s16 + $0xe0] sm:$0xff]
        %v10584 = vld [vmem:[%s16 + $0xe8] sm:$0xff]
        %v10585 = vld [vmem:[%s16 + $0xf0] sm:$0xff]
        %v10586 = vld [vmem:[%s16 + $0xf8] sm:$0xff]
        %v10587 = vmul.f32 %v10413, %v10555
        %v10588 = vmul.f32 %v10415, %v10556
        %v10589 = vmul.f32 %v10417, %v10557
        %v10590 = vmul.f32 %v10419, %v10558
        %v10591 = vmul.f32 %v10423, %v10559
        %v10592 = vmul.f32 %v10425, %v10560
        %v10593 = vmul.f32 %v10427, %v10561
        %v10594 = vmul.f32 %v10429, %v10562
        %v10595 = vmul.f32 %v10433, %v10563
        %v10596 = vmul.f32 %v10435, %v10564
        %v10597 = vmul.f32 %v10437, %v10565
        %v10598 = vmul.f32 %v10439, %v10566
        %v10599 = vmul.f32 %v10443, %v10567
        %v10600 = vmul.f32 %v10445, %v10568
        %v10601 = vmul.f32 %v10447, %v10569
        %v10602 = vmul.f32 %v10449, %v10570
        %v10603 = vmul.f32 %v10453, %v10571
        %v10604 = vmul.f32 %v10455, %v10572
        %v10605 = vmul.f32 %v10457, %v10573
        %v10606 = vmul.f32 %v10459, %v10574
        %v10607 = vmul.f32 %v10463, %v10575
        %v10608 = vmul.f32 %v10465, %v10576
        %v10609 = vmul.f32 %v10467, %v10577
        %v10610 = vmul.f32 %v10469, %v10578
        %v10611 = vmul.f32 %v10473, %v10579
        %v10612 = vmul.f32 %v10475, %v10580
        %v10613 = vmul.f32 %v10477, %v10581
        %v10614 = vmul.f32 %v10479, %v10582
        %v10615 = vmul.f32 %v10483, %v10583
        %v10616 = vmul.f32 %v10485, %v10584
        %v10617 = vmul.f32 %v10487, %v10585
        %v10618 = vmul.f32 %v10489, %v10586
        %v10619 = vadd.f32 %v10523, %v10587
        %v10620 = vadd.f32 %v10524, %v10588
        %v10621 = vadd.f32 %v10525, %v10589
        %v10622 = vadd.f32 %v10526, %v10590
        %v10623 = vadd.f32 %v10527, %v10591
        %v10624 = vadd.f32 %v10528, %v10592
        %v10625 = vadd.f32 %v10529, %v10593
        %v10626 = vadd.f32 %v10530, %v10594
        %v10627 = vadd.f32 %v10531, %v10595
        %v10628 = vadd.f32 %v10532, %v10596
        %v10629 = vadd.f32 %v10533, %v10597
        %v10630 = vadd.f32 %v10534, %v10598
        %v10631 = vadd.f32 %v10535, %v10599
        %v10632 = vadd.f32 %v10536, %v10600
        %v10633 = vadd.f32 %v10537, %v10601
        %v10634 = vadd.f32 %v10538, %v10602
        %v10635 = vadd.f32 %v10539, %v10603
        %v10636 = vadd.f32 %v10540, %v10604
        %v10637 = vadd.f32 %v10541, %v10605
        %v10638 = vadd.f32 %v10542, %v10606
        %v10639 = vadd.f32 %v10543, %v10607
        %v10640 = vadd.f32 %v10544, %v10608
        %v10641 = vadd.f32 %v10545, %v10609
        %v10642 = vadd.f32 %v10546, %v10610
        %v10643 = vadd.f32 %v10547, %v10611
        %v10644 = vadd.f32 %v10548, %v10612
        %v10645 = vadd.f32 %v10549, %v10613
        %v10646 = vadd.f32 %v10550, %v10614
        %v10647 = vadd.f32 %v10551, %v10615
        %v10648 = vadd.f32 %v10552, %v10616
        %v10649 = vadd.f32 %v10553, %v10617
        %v10650 = vadd.f32 %v10554, %v10618
        %v10651 = vld [vmem:[#allocation13] sm:$0xff]
        %v10652 = vld [vmem:[#allocation13 + $0x8] sm:$0xff]
        %v10653 = vld [vmem:[#allocation13 + $0x10] sm:$0xff]
        %v10654 = vld [vmem:[#allocation13 + $0x18] sm:$0xff]
        %v10655 = vld [vmem:[#allocation13 + $0x20] sm:$0xff]
        %v10656 = vld [vmem:[#allocation13 + $0x28] sm:$0xff]
        %v10657 = vld [vmem:[#allocation13 + $0x30] sm:$0xff]
        %v10658 = vld [vmem:[#allocation13 + $0x38] sm:$0xff]
        %v10659 = vld [vmem:[#allocation13 + $0x40] sm:$0xff]
        %v10660 = vld [vmem:[#allocation13 + $0x48] sm:$0xff]
        %v10661 = vld [vmem:[#allocation13 + $0x50] sm:$0xff]
        %v10662 = vld [vmem:[#allocation13 + $0x58] sm:$0xff]
        %v10663 = vld [vmem:[#allocation13 + $0x60] sm:$0xff]
        %v10664 = vld [vmem:[#allocation13 + $0x68] sm:$0xff]
        %v10665 = vld [vmem:[#allocation13 + $0x70] sm:$0xff]
        %v10666 = vld [vmem:[#allocation13 + $0x78] sm:$0xff]
        %v10668 = vsel %vm1330, %v10119, 0
        %v10671 = vsel %vm1330, %v10120, 0
        %10673 = vmatprep.subr.mxu0 %v10652
        %10674 = vmatpush1.msra.mxu0 %v10651
        %10675 = vmatprep.subr.mxu0 %v10654
        %10676 = vmatpush1.msra.mxu0 %v10653
        %10677 = vmatprep.subr.mxu0 %v10656
        %10678 = vmatpush1.msra.mxu0 %v10655
        %10679 = vmatprep.subr.mxu0 %v10658
        %10680 = vmatpush1.msra.mxu0 %v10657
        %10681 = vmatprep.subr.mxu0 %v10660
        %10682 = vmatpush1.msra.mxu0 %v10659
        %10683 = vmatprep.subr.mxu0 %v10662
        %10684 = vmatpush1.msra.mxu0 %v10661
        %10685 = vmatprep.subr.mxu0 %v10664
        %10686 = vmatpush1.msra.mxu0 %v10663
        %10687 = vmatprep.subr.mxu0 %v10666
        %10688 = vmatpush1.msra.mxu0 %v10665
        %10689 = vmatprep.subr.mxu0 0.0
        %10690 = vmatpush1.msra.mxu0 0.0
        %10691 = vmatprep.subr.mxu0 0.0
        %10692 = vmatpush1.msra.mxu0 0.0
        %10693 = vmatprep.subr.mxu0 0.0
        %10694 = vmatpush1.msra.mxu0 0.0
        %10695 = vmatprep.subr.mxu0 0.0
        %10696 = vmatpush1.msra.mxu0 0.0
        %10697 = vmatprep.subr.mxu0 0.0
        %10698 = vmatpush1.msra.mxu0 0.0
        %10699 = vmatprep.subr.mxu0 0.0
        %10700 = vmatpush1.msra.mxu0 0.0
        %10701 = vmatprep.subr.mxu0 0.0
        %10702 = vmatpush1.msra.mxu0 0.0
        %10703 = vmatprep.subr.mxu0 0.0
        %10704 = vmatpush1.msra.mxu0 0.0
        %10705 = vmatprep.subr.mxu0 0.0
        %10706 = vmatpush1.msra.mxu0 0.0
        %10707 = vmatprep.subr.mxu0 0.0
        %10708 = vmatpush1.msra.mxu0 0.0
        %10709 = vmatprep.subr.mxu0 0.0
        %10710 = vmatpush1.msra.mxu0 0.0
        %10711 = vmatprep.subr.mxu0 0.0
        %10712 = vmatpush1.msra.mxu0 0.0
        %10713 = vmatprep.subr.mxu0 0.0
        %10714 = vmatpush1.msra.mxu0 0.0
        %10715 = vmatprep.subr.mxu0 0.0
        %10716 = vmatpush1.msra.mxu0 0.0
        %10717 = vmatprep.subr.mxu0 0.0
        %10718 = vmatpush1.msra.mxu0 0.0
        %10719 = vmatprep.subr.mxu0 0.0
        %10720 = vmatpush1.msra.mxu0 0.0
        %10721 = vmatprep.subr.mxu0 0.0
        %10722 = vmatpush1.msra.mxu0 0.0
        %10723 = vmatprep.subr.mxu0 0.0
        %10724 = vmatpush1.msra.mxu0 0.0
        %10725 = vmatprep.subr.mxu0 0.0
        %10726 = vmatpush1.msra.mxu0 0.0
        %10727 = vmatprep.subr.mxu0 0.0
        %10728 = vmatpush1.msra.mxu0 0.0
        %10729 = vmatprep.subr.mxu0 0.0
        %10730 = vmatpush1.msra.mxu0 0.0
        %10731 = vmatprep.subr.mxu0 0.0
        %10732 = vmatpush1.msra.mxu0 0.0
        %10733 = vmatprep.subr.mxu0 0.0
        %10734 = vmatpush1.msra.mxu0 0.0
        %10735 = vmatprep.subr.mxu0 0.0
        %10736 = vmatpush1.msra.mxu0 0.0
        %10737 = vmatprep.mubr.f32.mxu0 0.0
        %10738 = vmatmul.mubr.f32.gmra.mrb[0].mxu0 %v10668
        %v10739 = vpop.f32.mrb[0].mxu0
        %v10740 = vadd.f32 0.0, %v10739
        %v10741 = vpop.f32.mrb[0].mxu0
        %v10742 = vadd.f32 0.0, %v10741
        %10743 = vmatprep.mubr.f32.mxu0 0.0
        %10744 = vmatmul.mubr.f32.gmra.mrb[0].mxu0 %v10671
        %v10745 = vpop.f32.mrb[0].mxu0
        %v10746 = vadd.f32 0.0, %v10745
        %v10747 = vpop.f32.mrb[0].mxu0
        %v10748 = vadd.f32 0.0, %v10747
        %10749 = vdwg.mxu0
        %10750 = vmatprep.subr.mxu0 %v10620
        %10751 = vmatpush1.msra.mxu0 %v10619
        %10752 = vmatprep.subr.mxu0 %v10622
        %10753 = vmatpush1.msra.mxu0 %v10621
        %10754 = vmatprep.subr.mxu0 %v10624
        %10755 = vmatpush1.msra.mxu0 %v10623
        %10756 = vmatprep.subr.mxu0 %v10626
        %10757 = vmatpush1.msra.mxu0 %v10625
        %10758 = vmatprep.subr.mxu0 %v10628
        %10759 = vmatpush1.msra.mxu0 %v10627
        %10760 = vmatprep.subr.mxu0 %v10630
        %10761 = vmatpush1.msra.mxu0 %v10629
        %10762 = vmatprep.subr.mxu0 %v10632
        %10763 = vmatpush1.msra.mxu0 %v10631
        %10764 = vmatprep.subr.mxu0 %v10634
        %10765 = vmatpush1.msra.mxu0 %v10633
        %10766 = vmatprep.subr.mxu0 %v10636
        %10767 = vmatpush1.msra.mxu0 %v10635
        %10768 = vmatprep.subr.mxu0 %v10638
        %10769 = vmatpush1.msra.mxu0 %v10637
        %10770 = vmatprep.subr.mxu0 %v10640
        %10771 = vmatpush1.msra.mxu0 %v10639
        %10772 = vmatprep.subr.mxu0 %v10642
        %10773 = vmatpush1.msra.mxu0 %v10641
        %10774 = vmatprep.subr.mxu0 %v10644
        %10775 = vmatpush1.msra.mxu0 %v10643
        %10776 = vmatprep.subr.mxu0 %v10646
        %10777 = vmatpush1.msra.mxu0 %v10645
        %10778 = vmatprep.subr.mxu0 %v10648
        %10779 = vmatpush1.msra.mxu0 %v10647
        %10780 = vmatprep.subr.mxu0 %v10650
        %10781 = vmatpush1.msra.mxu0 %v10649
        %10782 = vmatprep.subr.mxu0 0.0
        %10783 = vmatpush1.msra.mxu0 0.0
        %10784 = vmatprep.subr.mxu0 0.0
        %10785 = vmatpush1.msra.mxu0 0.0
        %10786 = vmatprep.subr.mxu0 0.0
        %10787 = vmatpush1.msra.mxu0 0.0
        %10788 = vmatprep.subr.mxu0 0.0
        %10789 = vmatpush1.msra.mxu0 0.0
        %10790 = vmatprep.subr.mxu0 0.0
        %10791 = vmatpush1.msra.mxu0 0.0
        %10792 = vmatprep.subr.mxu0 0.0
        %10793 = vmatpush1.msra.mxu0 0.0
        %10794 = vmatprep.subr.mxu0 0.0
        %10795 = vmatpush1.msra.mxu0 0.0
        %10796 = vmatprep.subr.mxu0 0.0
        %10797 = vmatpush1.msra.mxu0 0.0
        %10798 = vmatprep.subr.mxu0 0.0
        %10799 = vmatpush1.msra.mxu0 0.0
        %10800 = vmatprep.subr.mxu0 0.0
        %10801 = vmatpush1.msra.mxu0 0.0
        %10802 = vmatprep.subr.mxu0 0.0
        %10803 = vmatpush1.msra.mxu0 0.0
        %10804 = vmatprep.subr.mxu0 0.0
        %10805 = vmatpush1.msra.mxu0 0.0
        %10806 = vmatprep.subr.mxu0 0.0
        %10807 = vmatpush1.msra.mxu0 0.0
        %10808 = vmatprep.subr.mxu0 0.0
        %10809 = vmatpush1.msra.mxu0 0.0
        %10810 = vmatprep.subr.mxu0 0.0
        %10811 = vmatpush1.msra.mxu0 0.0
        %10812 = vmatprep.subr.mxu0 0.0
        %10813 = vmatpush1.msra.mxu0 0.0
        %10814 = vmatprep.mubr.f32.mxu0 0.0
        %10815 = vmatmul.mubr.f32.gmra.mrb[0].mxu0 %v9953
        %v10816 = vpop.f32.mrb[0].mxu0
        %v10817 = vadd.f32 %v10740, %v10816
        %v10818 = vpop.f32.mrb[0].mxu0
        %v10819 = vadd.f32 %v10742, %v10818
        %10820 = vmatprep.mubr.f32.mxu0 0.0
        %10821 = vmatmul.mubr.f32.gmra.mrb[0].mxu0 %v9954
        %v10822 = vpop.f32.mrb[0].mxu0
        %v10823 = vadd.f32 %v10746, %v10822
        %v10824 = vpop.f32.mrb[0].mxu0
        %v10825 = vadd.f32 %v10748, %v10824
        %10826 = vdwg.mxu0
        %v10827 = vld [vmem:[%s11] sm:$0x3]
        %v10829 = vlaneseq
        %v10830 = vshrl.u32 %v10829, 7
        %v10831 = vsub.s32 0, %v10830
        %v10832 = vrot.slane %v10827, %v10831
        %v10833 = vlaneseq
        %v10834 = vshrl.u32 %v10833, 7
        %v10835 = vsub.s32 1, %v10834
        %v10836 = vrot.slane %v10827, %v10835
        %v10839 = vadd.f32 %v10817, %v10832
        %v10840 = vadd.f32 %v10819, %v10836
        %v10841 = vadd.f32 %v10823, %v10832
        %v10842 = vadd.f32 %v10825, %v10836
        %10843 = vst [vmem:[%s702] sm:$0xff] %v10839
        %10844 = vst [vmem:[%s702 + $0x8] sm:$0xff] %v10840
        %10845 = vst [vmem:[%s702 + $0x10] sm:$0xff] %v10841
        %10846 = vst [vmem:[%s702 + $0x18] sm:$0xff] %v10842
        %s10847 = sand.u32 %s412, 1
        %s10848 = scalar_lea.sflag [#allocation4], %s10847
        %s10849 = sand.u32 %s412, 1
        %s10850 = smul.addr %s10849, 32
        %s10851 = scalar_lea.vmem [#allocation19], %s10850
        // Predicated region
        $region129: #{tpu_custom_call.1} parent=87 // pred_check
          %p10852 = pneg %p422
        $region130: #{tpu_custom_call.1} parent=87 // pred_check_branch
          %10854 = sbr.rel (%p10852) target = $region132
        $region131: #{tpu_custom_call.1} parent=87 // pred_region
          %s10855 = smul.u32 2, %s37
          %s10857 = ssub.s32 512, 512
          %10858 = vsyncadd %s10848, %s10857
          %s10859 = smul.addr %s10855, 2
          %s10860 = smul.addr %s10859, 128
          %s10861 = scalar_lea.hbm %s17, %s10860
          %s10862 = sshll.u32 %s10851, 4
          %s10863 = int_to_ptr.vmem [resolvable:$true] %s10862
          %10868 = dma.vmem_to_hbm [thread:$0]  %s10863, 512, %s10861, %s10848, 256, 256, 16
        $region132: #{tpu_custom_call.1} parent=87 // pred_fallthru
          _
      $region88: #{tpu_custom_call.1} parent=5 // pred_fallthru
        _
      %p10869 = scmp.le.s32.totalorder 2, %s32
      // Predicated region
      $region133: #{tpu_custom_call.1} parent=5 // pred_check
        %p10870 = pneg %p10869
      $region134: #{tpu_custom_call.1} parent=5 // pred_check_branch
        %10872 = sbr.rel (%p10870) target = $region136
      $region135: #{tpu_custom_call.1} parent=5 // pred_region
        %s10873 = ssub.s32 %s32, 2
        // Predicated region
        $region137: #{tpu_custom_call.1} parent=135 // pred_check
          %p10874 = pneg %p428
        $region138: #{tpu_custom_call.1} parent=135 // pred_check_branch
          %10876 = sbr.rel (%p10874) target = $region140
        $region139: #{tpu_custom_call.1} parent=135 // pred_region
          %s10877 = sand.u32 %s413, 1
          %s10878 = scalar_lea.sflag [#allocation4], %s10877
          %s10879 = sand.u32 %s413, 1
          %s10880 = smul.addr %s10879, 32
          %s10881 = scalar_lea.vmem [#allocation19], %s10880
          %10882 = dma.done %s10878, 512
        $region140: #{tpu_custom_call.1} parent=135 // pred_fallthru
          _
      $region136: #{tpu_custom_call.1} parent=5 // pred_fallthru
        _
    $region6: #{tpu_custom_call.1} parent=1 // loop_footer
      %s36 = sadd.s32 1, %s32
    $region7: #{tpu_custom_call.1} parent=1 // loop_footer_branch
      %31 = sbr.rel target = $region3
    $region8: #{tpu_custom_call.1} parent=1 // loop_exit
      _
    %10883 = vsyncpa [#allocation3], 1
    %s10884 = scalar_lea.sflag [#allocation3], 1
    %10885 = vsyncpa %s10884, 1
    %10886 = vsyncpa [#allocation6], 1
    %10887 = vsyncpa [#allocation9], 1
    %10888 = vsyncpa [#allocation12], 1
    %10889 = vsyncpa [#allocation15], 1
    %10890 = vsyncpa [#allocation18], 1
    %10891 = vsyncpa [#allocation4], 1
    %s10892 = scalar_lea.sflag [#allocation4], 1
    %10893 = vsyncpa %s10892, 1

</llo_original>
